<compile_context>
chip_gen: v6e
topology: v6e:2x2x1
jax: 0.10.0
libtpu: 0.0.40
codegen_flags: <defaults>
</compile_context>

<pallas_src>
import jax
import jax.numpy as jnp
from jax import lax
from jax.experimental import pallas as pl
from jax.experimental.pallas import tpu as pltpu


def _round_up(x: int, m: int) -> int:
    return ((x + m - 1) // m) * m


def _distmult_score_kernel(s_idx_ref, p_idx_ref, o_idx_ref,   # (TN, 1) int32
                           ent_ref, rel_ref,                  # full tables, VMEM
                           out_ref):                          # (1, 1, TN) f32
    """Scores one tile of TN triples.

    Gather is a one-hot matmul against the VMEM-resident tables (exact: each
    output row sums exactly one 1.0 * value), then VPU product + lane reduce.
    """
    tn = s_idx_ref.shape[0]
    ent = ent_ref[...]                       # (V, E)  bf16 / f32
    rel = rel_ref[...]                       # (R, E)
    num_ent = ent.shape[0]
    num_rel = rel.shape[0]

    ent_iota = lax.broadcasted_iota(jnp.int32, (tn, num_ent), 1)
    rel_iota = lax.broadcasted_iota(jnp.int32, (tn, num_rel), 1)

    s_onehot = (s_idx_ref[...] == ent_iota).astype(ent.dtype)   # (TN, V)
    o_onehot = (o_idx_ref[...] == ent_iota).astype(ent.dtype)   # (TN, V)
    p_onehot = (p_idx_ref[...] == rel_iota).astype(rel.dtype)   # (TN, R)

    # MXU one-hot gather -> f32 rows (exact lookup, f32 accumulation).
    s_emb = jnp.dot(s_onehot, ent, preferred_element_type=jnp.float32)
    p_emb = jnp.dot(p_onehot, rel, preferred_element_type=jnp.float32)
    o_emb = jnp.dot(o_onehot, ent, preferred_element_type=jnp.float32)

    # VPU elementwise product + XLU lane reduction, f32 accumulation.
    scores = jnp.sum(s_emb * p_emb * o_emb, axis=-1)             # (TN,)
    out_ref[...] = scores.reshape(1, 1, tn)                      # lane-dense store


class PallasDecoder:
    """JAX/Pallas port of `Decoder(nn.Module)`."""

    def __init__(self, e: int, tile_n: int = 512):
        self.e = e
        self.tile_n = tile_n   # triples per grid step (multiple of 128)

    def s_dim(self):
        return self.e

    def p_dim(self):
        return self.e

    def o_dim(self):
        return self.e

    def forward(self, triples, corruptions, corr_index, entities, relations,
                forward=True):
        # TODO(synk): base-class Decoder.forward is @abstractmethod (no concrete
        # semantics); this implements the canonical DistMult triple-scoring hot
        # path.  corruptions / corr_index are unused by the abstract base.
        e = self.e
        assert entities.shape[1] == e and relations.shape[1] == e

        if relations.dtype != entities.dtype:
            relations = relations.astype(entities.dtype)

        # Lane-align the embedding dim.  NOTE: pre-pad once at construction for
        # large tables (per-call padding copies them in HBM); the demo uses
        # e % 128 == 0 so this whole block is a no-op.
        e_pad = _round_up(max(e, 128), 128)
        if e_pad != e:
            entities = jnp.pad(entities, ((0, 0), (0, e_pad - e)))
            relations = jnp.pad(relations, ((0, 0), (0, e_pad - e)))

        # Row-pad tables to a sublane-friendly multiple of 16 (zero rows are
        # never selected by the one-hot, so scores are unchanged).
        def pad_rows(t):
            r = t.shape[0]
            r_pad = _round_up(r, 16)
            return t if r_pad == r else jnp.pad(t, ((0, r_pad - r), (0, 0)))
        entities = pad_rows(entities)
        relations = pad_rows(relations)

        num_ent, num_rel = entities.shape[0], relations.shape[0]
        itemsize = jnp.dtype(entities.dtype).itemsize
        # Tables + one-hot tiles must fit VMEM (v7x has the smallest: 64 MiB
        # physical, 32 MiB scoped default).
        # TODO(synk): for very large entity tables fall back to an HBM
        # (memory_space=pl.ANY) double-buffered DMA-gather pipeline.
        assert (num_ent + num_rel) * e_pad * itemsize <= 8 * 1024 * 1024, \
            "entity/relation tables too large for the VMEM-resident fast path"

        n = triples.shape[0]
        tn = self.tile_n
        n_pad = _round_up(max(n, tn), tn)
        num_tiles = n_pad // tn

        tri = triples.astype(jnp.int32)
        # Pad the ragged tail with row 0 (a valid index); padded scores are
        # sliced off below.  Column-vector layout (n_pad, 1) keeps the in-kernel
        # one-hot broadcast on the cheap lane-0 path.
        def col(c):
            return jnp.pad(tri[:, c], (0, n_pad - n)).reshape(n_pad, 1)
        s_idx, p_idx, o_idx = col(0), col(1), col(2)

        out = pl.pallas_call(
            _distmult_score_kernel,
            out_shape=jax.ShapeDtypeStruct((num_tiles, 1, tn), jnp.float32),
            grid_spec=pltpu.PrefetchScalarGridSpec(
                num_scalar_prefetch=0,
                grid=(num_tiles,),
                in_specs=[
                    pl.BlockSpec((tn, 1), lambda i: (i, 0)),           # s indices
                    pl.BlockSpec((tn, 1), lambda i: (i, 0)),           # p indices
                    pl.BlockSpec((tn, 1), lambda i: (i, 0)),           # o indices
                    pl.BlockSpec((num_ent, e_pad), lambda i: (0, 0)),  # entities (VMEM-resident)
                    pl.BlockSpec((num_rel, e_pad), lambda i: (0, 0)),  # relations (VMEM-resident)
                ],
                out_specs=pl.BlockSpec((1, 1, tn), lambda i: (i, 0, 0)),
            ),
            compiler_params=pltpu.CompilerParams(
                dimension_semantics=("parallel",)),   # megacore-shard on v7x
        )(s_idx, p_idx, o_idx, entities, relations)

        return out.reshape(-1)[:n]                    # (N,) scores


if __name__ == "__main__":
    # Small deterministic setup: lane-aligned embedding dim (e = 128) and
    # enough triples (1200) to exercise multiple 512-row grid tiles plus a
    # ragged tail.
    e = 128
    num_entities = 64
    num_relations = 8
    n_triples = 1200

    key = jax.random.PRNGKey(0)
    k_ent, k_rel, k_s = jax.random.split(key, 3)

    # bf16 tables (halves VMEM bytes; gather/score accumulate in f32).
    entities = jax.random.normal(k_ent, (num_entities, e),
                                 dtype=jnp.float32).astype(jnp.bfloat16)
    relations = jax.random.normal(k_rel, (num_relations, e),
                                  dtype=jnp.float32).astype(jnp.bfloat16)

    subj = jax.random.randint(k_s, (n_triples,), 0, num_entities,
                              dtype=jnp.int32)
    pred = (jnp.arange(n_triples, dtype=jnp.int32) * 3) % num_relations
    obj = (subj + 7) % num_entities
    triples = jnp.stack([subj, pred, obj], axis=1)            # (N, 3) int32

    # corruptions / corr_index are unused by the abstract base class forward.
    corruptions = jnp.zeros((n_triples, 3), dtype=jnp.int32)
    corr_index = jnp.zeros((n_triples,), dtype=jnp.int32)

    dec = PallasDecoder(e)
    assert dec.s_dim() == dec.p_dim() == dec.o_dim() == e

    scores = dec.forward(triples, corruptions, corr_index,
                         entities, relations, forward=True)
    scores = jax.block_until_ready(scores)

    # Pure-JAX reference (same bf16 inputs, f32 math).
    ref = jnp.sum(entities[triples[:, 0]].astype(jnp.float32)
                  * relations[triples[:, 1]].astype(jnp.float32)
                  * entities[triples[:, 2]].astype(jnp.float32), axis=-1)

    assert scores.shape == (n_triples,)
    assert jnp.allclose(scores, ref, atol=1e-3, rtol=1e-3), \
        float(jnp.max(jnp.abs(scores - ref)))

    print("KERNEL_OK")
</pallas_src>

<mosaic_0001>
module attributes {stable_mosaic.version = 11 : i64} {
  func.func @_distmult_score_kernel(%arg0: i32, %arg1: memref<512x1xi32, #tpu.memory_space<vmem>>, %arg2: memref<512x1xi32, #tpu.memory_space<vmem>>, %arg3: memref<512x1xi32, #tpu.memory_space<vmem>>, %arg4: memref<64x128xbf16, #tpu.memory_space<vmem>>, %arg5: memref<16x128xbf16, #tpu.memory_space<vmem>>, %arg6: memref<1x1x512xf32, #tpu.memory_space<vmem>>) attributes {dimension_semantics = [#tpu.dimension_semantics<parallel>], iteration_bounds = array<i64: 3>, scalar_prefetch = 0 : i64, scratch_operands = 0 : i64, tpu.core_type = #tpu.core_type<tc>, window_params = [{transform_indices = @transform_0, window_bounds = array<i64: 512, 1>}, {transform_indices = @transform_1, window_bounds = array<i64: 512, 1>}, {transform_indices = @transform_2, window_bounds = array<i64: 512, 1>}, {pipeline_mode = #tpu.pipeline_mode<synchronous>, transform_indices = @transform_3, window_bounds = array<i64: 64, 128>}, {pipeline_mode = #tpu.pipeline_mode<synchronous>, transform_indices = @transform_4, window_bounds = array<i64: 16, 128>}, {transform_indices = @transform_5, window_bounds = array<i64: 1, 1, 512>}]} {
    %c0 = arith.constant 0 : index
    %c0_0 = arith.constant 0 : index
    %0 = vector.load %arg4[%c0, %c0_0] : memref<64x128xbf16, #tpu.memory_space<vmem>>, vector<64x128xbf16>
    %c0_1 = arith.constant 0 : index
    %c0_2 = arith.constant 0 : index
    %1 = vector.load %arg5[%c0_1, %c0_2] : memref<16x128xbf16, #tpu.memory_space<vmem>>, vector<16x128xbf16>
    %2 = tpu.iota {dimensions = array<i32: 1>} : vector<512x64xi32>
    %3 = tpu.iota {dimensions = array<i32: 1>} : vector<512x16xi32>
    %c0_3 = arith.constant 0 : index
    %c0_4 = arith.constant 0 : index
    %4 = vector.load %arg1[%c0_3, %c0_4] : memref<512x1xi32, #tpu.memory_space<vmem>>, vector<512x1xi32>
    %5 = vector.broadcast %4 : vector<512x1xi32> to vector<512x64xi32>
    %6 = arith.cmpi eq, %5, %2 : vector<512x64xi32>
    %7 = arith.extui %6 : vector<512x64xi1> to vector<512x64xi32>
    %8 = arith.sitofp %7 : vector<512x64xi32> to vector<512x64xf32>
    %9 = arith.truncf %8 : vector<512x64xf32> to vector<512x64xbf16>
    %c0_5 = arith.constant 0 : index
    %c0_6 = arith.constant 0 : index
    %10 = vector.load %arg3[%c0_5, %c0_6] : memref<512x1xi32, #tpu.memory_space<vmem>>, vector<512x1xi32>
    %11 = vector.broadcast %10 : vector<512x1xi32> to vector<512x64xi32>
    %12 = arith.cmpi eq, %11, %2 : vector<512x64xi32>
    %13 = arith.extui %12 : vector<512x64xi1> to vector<512x64xi32>
    %14 = arith.sitofp %13 : vector<512x64xi32> to vector<512x64xf32>
    %15 = arith.truncf %14 : vector<512x64xf32> to vector<512x64xbf16>
    %c0_7 = arith.constant 0 : index
    %c0_8 = arith.constant 0 : index
    %16 = vector.load %arg2[%c0_7, %c0_8] : memref<512x1xi32, #tpu.memory_space<vmem>>, vector<512x1xi32>
    %17 = vector.broadcast %16 : vector<512x1xi32> to vector<512x16xi32>
    %18 = arith.cmpi eq, %17, %3 : vector<512x16xi32>
    %19 = arith.extui %18 : vector<512x16xi1> to vector<512x16xi32>
    %20 = arith.sitofp %19 : vector<512x16xi32> to vector<512x16xf32>
    %21 = arith.truncf %20 : vector<512x16xf32> to vector<512x16xbf16>
    %cst = arith.constant dense<0.000000e+00> : vector<512x128xf32>
    %22 = tpu.matmul %9, %0, %cst {dimension_numbers = #tpu.dot_dimension_numbers<[1], [0], [0], [1], [0, 0, 1, 1], [], []>} : vector<512x64xbf16>, vector<64x128xbf16>, vector<512x128xf32> -> vector<512x128xf32>
    %cst_9 = arith.constant dense<0.000000e+00> : vector<512x128xf32>
    %23 = tpu.matmul %21, %1, %cst_9 {dimension_numbers = #tpu.dot_dimension_numbers<[1], [0], [0], [1], [0, 0, 1, 1], [], []>} : vector<512x16xbf16>, vector<16x128xbf16>, vector<512x128xf32> -> vector<512x128xf32>
    %cst_10 = arith.constant dense<0.000000e+00> : vector<512x128xf32>
    %24 = tpu.matmul %15, %0, %cst_10 {dimension_numbers = #tpu.dot_dimension_numbers<[1], [0], [0], [1], [0, 0, 1, 1], [], []>} : vector<512x64xbf16>, vector<64x128xbf16>, vector<512x128xf32> -> vector<512x128xf32>
    %25 = arith.mulf %22, %23 : vector<512x128xf32>
    %26 = arith.mulf %25, %24 : vector<512x128xf32>
    %cst_11 = arith.constant dense<0.000000e+00> : vector<512xf32>
    %27 = vector.multi_reduction <add>, %26, %cst_11 [1] : vector<512x128xf32> to vector<512xf32>
    %28 = vector.shape_cast %27 : vector<512xf32> to vector<1x1x512xf32>
    %c0_12 = arith.constant 0 : index
    %c0_13 = arith.constant 0 : index
    %c0_14 = arith.constant 0 : index
    %29 = vector.load %arg6[%c0_12, %c0_13, %c0_14] : memref<1x1x512xf32, #tpu.memory_space<vmem>>, vector<1x1x512xf32>
    tpu.vector_store %arg6[%c0_12, %c0_13, %c0_14], %28 {strides = array<i32>} : memref<1x1x512xf32, #tpu.memory_space<vmem>>, vector<1x1x512xf32>,
    return
  }
  func.func @transform_0(%arg0: i32) -> (i32, i32) {
    %c0_i32 = arith.constant 0 : i32
    %c0_i32_0 = arith.constant 0 : i32
    return %arg0, %c0_i32 : i32, i32
  }
  func.func @transform_1(%arg0: i32) -> (i32, i32) {
    %c0_i32 = arith.constant 0 : i32
    %c0_i32_0 = arith.constant 0 : i32
    return %arg0, %c0_i32 : i32, i32
  }
  func.func @transform_2(%arg0: i32) -> (i32, i32) {
    %c0_i32 = arith.constant 0 : i32
    %c0_i32_0 = arith.constant 0 : i32
    return %arg0, %c0_i32 : i32, i32
  }
  func.func @transform_3(%arg0: i32) -> (i32, i32) {
    %c0_i32 = arith.constant 0 : i32
    %c0_i32_0 = arith.constant 0 : i32
    %c0_i32_1 = arith.constant 0 : i32
    return %c0_i32, %c0_i32_0 : i32, i32
  }
  func.func @transform_4(%arg0: i32) -> (i32, i32) {
    %c0_i32 = arith.constant 0 : i32
    %c0_i32_0 = arith.constant 0 : i32
    %c0_i32_1 = arith.constant 0 : i32
    return %c0_i32, %c0_i32_0 : i32, i32
  }
  func.func @transform_5(%arg0: i32) -> (i32, i32, i32) {
    %c0_i32 = arith.constant 0 : i32
    %c0_i32_0 = arith.constant 0 : i32
    %c0_i32_1 = arith.constant 0 : i32
    return %arg0, %c0_i32, %c0_i32_0 : i32, i32, i32
  }
}

</mosaic_0001>

<llo_original>
// kernel: tpu_custom_call.1
$region0: #{tpu_custom_call.1}
  #allocation0 [shape = 'u32[]', space=smem, size = 0x4, offset = 0x4, fixed_abs, tag = 'smem constant byte address 0x4 - core index']
  #allocation1 [shape = 'u32[144,128]{1,0:T(1,128)}', space=vmem, size = 0x12000, scoped, tag = 'internal scratch']
  %s0 = inlined_call_operand.vmem [shape: s32[1536,1], index: 0, kind: input, shape index: {}]
  %s1 = inlined_call_operand.vmem [shape: s32[1536,1], index: 1, kind: input, shape index: {}]
  %s2 = inlined_call_operand.vmem [shape: s32[1536,1], index: 2, kind: input, shape index: {}]
  %s3 = inlined_call_operand.vmem [shape: bf16[64,128], index: 3, kind: input, shape index: {}]
  %s4 = inlined_call_operand.vmem [shape: bf16[16,128], index: 4, kind: input, shape index: {}]
  %s5 = inlined_call_operand.hbm [shape: f32[3,1,512], index: 5, kind: output, shape index: {}]
  %s6 = sld [smem:[#allocation0]]
  $region53: #{tpu_custom_call.1} parent=0
    _
  %s8 = ssub.s32 1, %s6
  %s9 = scalar_select 0, %s8, %s6
  $region1: #{tpu_custom_call.1} parent=0
    #allocation2 [shape = 'u8[4096]{0}', space=vmem, size = 0x1000, scoped, tag = 'output window, operand 0']
    #allocation3 [shape = 's32[2]{0}', space=sflag, size = 0x8, scoped, tag = 'scoped memory for tpu_custom_call.1']
    %10 = vsyncpa [#allocation3], 0
    %s11 = scalar_lea.sflag [#allocation3], 1
    %12 = vsyncpa %s11, 0
    loop: start=0, step=1, limit=5
    $region2: #{tpu_custom_call.1} parent=1 // loop_pre_header
      _
    $region3: #{tpu_custom_call.1} parent=1 // loop_header
      %s14 = sphi 0, %s18
      %p15 = scmp.ge.s32.totalorder %s14, 5
      %s24 = sphi 0, %s26
      %s27 = sphi 0, %s24
      %s28 = sphi 0, %s27
      %s44 = sphi 0, %s28
      %s50 = sphi 0, %s52
      %s53 = sphi 0, %s50
      %s54 = sphi 0, %s53
      %s70 = sphi 0, %s54
      %s76 = sphi 0, %s78
      %s79 = sphi 0, %s76
      %s80 = sphi 0, %s79
      %s96 = sphi 0, %s80
      %s100 = sphi 0, %s100
      %s102 = sphi 0, %s100
      %s103 = sphi 0, %s102
      %s117 = sphi 0, %s103
      %s121 = sphi 0, %s121
      %s123 = sphi 0, %s121
      %s124 = sphi 0, %s123
      %s138 = sphi 0, %s124
      %s144 = sphi 0, %s146
      %s147 = sphi 0, %s144
      %s148 = sphi 0, %s147
      %s164 = sphi 0, %s148
    $region4: #{tpu_custom_call.1} parent=1 // loop_header_branch
      %17 = sbr.rel (%p15) target = $region8
    $region5: #{tpu_custom_call.1} parent=1 // loop_body
      %s19 = ssub.s32 %s14, 1
      %s20 = ssub.s32 %s14, 2
      %s21 = sadd.s32 %s14, 1
      %s22 = ssub.s32 %s14, %s21
      %p23 = scmp.eq.s32.totalorder %s22, 0
      %s25 = sadd.s32 %s24, 1
      %s26 = scalar_select %p23, %s24, %s25
      %p29 = pneg %p23
      %p30 = scmp.eq.s32.totalorder %s14, 2
      %p31 = por %p29, %p30
      %p32 = scmp.ne.s32.totalorder %s24, %s27
      %p33 = scmp.eq.s32.totalorder %s14, 0
      %p34 = por %p32, %p33
      %p35 = scmp.ne.s32.totalorder %s24, %s27
      %p36 = scmp.eq.s32.totalorder %s19, 2
      %p37 = por %p35, %p36
      %p38 = scmp.ne.s32.totalorder %s27, %s28
      %p39 = scmp.eq.s32.totalorder %s19, 0
      %p40 = por %p38, %p39
      %p41 = scmp.ne.s32.totalorder %s27, %s28
      %p42 = scmp.eq.s32.totalorder %s20, 2
      %p43 = por %p41, %p42
      %p45 = scmp.ne.s32.totalorder %s28, %s44
      %p46 = scmp.eq.s32.totalorder %s20, 0
      %p47 = por %p45, %p46
      %s48 = ssub.s32 %s14, %s21
      %p49 = scmp.eq.s32.totalorder %s48, 0
      %s51 = sadd.s32 %s50, 1
      %s52 = scalar_select %p49, %s50, %s51
      %p55 = pneg %p49
      %p56 = scmp.eq.s32.totalorder %s14, 2
      %p57 = por %p55, %p56
      %p58 = scmp.ne.s32.totalorder %s50, %s53
      %p59 = scmp.eq.s32.totalorder %s14, 0
      %p60 = por %p58, %p59
      %p61 = scmp.ne.s32.totalorder %s50, %s53
      %p62 = scmp.eq.s32.totalorder %s19, 2
      %p63 = por %p61, %p62
      %p64 = scmp.ne.s32.totalorder %s53, %s54
      %p65 = scmp.eq.s32.totalorder %s19, 0
      %p66 = por %p64, %p65
      %p67 = scmp.ne.s32.totalorder %s53, %s54
      %p68 = scmp.eq.s32.totalorder %s20, 2
      %p69 = por %p67, %p68
      %p71 = scmp.ne.s32.totalorder %s54, %s70
      %p72 = scmp.eq.s32.totalorder %s20, 0
      %p73 = por %p71, %p72
      %s74 = ssub.s32 %s14, %s21
      %p75 = scmp.eq.s32.totalorder %s74, 0
      %s77 = sadd.s32 %s76, 1
      %s78 = scalar_select %p75, %s76, %s77
      %p81 = pneg %p75
      %p82 = scmp.eq.s32.totalorder %s14, 2
      %p83 = por %p81, %p82
      %p84 = scmp.ne.s32.totalorder %s76, %s79
      %p85 = scmp.eq.s32.totalorder %s14, 0
      %p86 = por %p84, %p85
      %p87 = scmp.ne.s32.totalorder %s76, %s79
      %p88 = scmp.eq.s32.totalorder %s19, 2
      %p89 = por %p87, %p88
      %p90 = scmp.ne.s32.totalorder %s79, %s80
      %p91 = scmp.eq.s32.totalorder %s19, 0
      %p92 = por %p90, %p91
      %p93 = scmp.ne.s32.totalorder %s79, %s80
      %p94 = scmp.eq.s32.totalorder %s20, 2
      %p95 = por %p93, %p94
      %p97 = scmp.ne.s32.totalorder %s80, %s96
      %p98 = scmp.eq.s32.totalorder %s20, 0
      %p99 = por %p97, %p98
      %s101 = sadd.s32 %s100, 1
      %p104 = scmp.eq.s32.totalorder %s14, 2
      %p105 = scmp.ne.s32.totalorder %s100, %s102
      %p106 = scmp.eq.s32.totalorder %s14, 0
      %p107 = por %p105, %p106
      %p108 = scmp.ne.s32.totalorder %s100, %s102
      %p109 = scmp.eq.s32.totalorder %s19, 2
      %p110 = por %p108, %p109
      %p111 = scmp.ne.s32.totalorder %s102, %s103
      %p112 = scmp.eq.s32.totalorder %s19, 0
      %p113 = por %p111, %p112
      %p114 = scmp.ne.s32.totalorder %s102, %s103
      %p115 = scmp.eq.s32.totalorder %s20, 2
      %p116 = por %p114, %p115
      %p118 = scmp.ne.s32.totalorder %s103, %s117
      %p119 = scmp.eq.s32.totalorder %s20, 0
      %p120 = por %p118, %p119
      %s122 = sadd.s32 %s121, 1
      %p125 = scmp.eq.s32.totalorder %s14, 2
      %p126 = scmp.ne.s32.totalorder %s121, %s123
      %p127 = scmp.eq.s32.totalorder %s14, 0
      %p128 = por %p126, %p127
      %p129 = scmp.ne.s32.totalorder %s121, %s123
      %p130 = scmp.eq.s32.totalorder %s19, 2
      %p131 = por %p129, %p130
      %p132 = scmp.ne.s32.totalorder %s123, %s124
      %p133 = scmp.eq.s32.totalorder %s19, 0
      %p134 = por %p132, %p133
      %p135 = scmp.ne.s32.totalorder %s123, %s124
      %p136 = scmp.eq.s32.totalorder %s20, 2
      %p137 = por %p135, %p136
      %p139 = scmp.ne.s32.totalorder %s124, %s138
      %p140 = scmp.eq.s32.totalorder %s20, 0
      %p141 = por %p139, %p140
      %s142 = ssub.s32 %s14, %s21
      %p143 = scmp.eq.s32.totalorder %s142, 0
      %s145 = sadd.s32 %s144, 1
      %s146 = scalar_select %p143, %s144, %s145
      %p149 = pneg %p143
      %p150 = scmp.eq.s32.totalorder %s14, 2
      %p151 = por %p149, %p150
      %p152 = scmp.ne.s32.totalorder %s144, %s147
      %p153 = scmp.eq.s32.totalorder %s14, 0
      %p154 = por %p152, %p153
      %p155 = scmp.ne.s32.totalorder %s144, %s147
      %p156 = scmp.eq.s32.totalorder %s19, 2
      %p157 = por %p155, %p156
      %p158 = scmp.ne.s32.totalorder %s147, %s148
      %p159 = scmp.eq.s32.totalorder %s19, 0
      %p160 = por %p158, %p159
      %p161 = scmp.ne.s32.totalorder %s147, %s148
      %p162 = scmp.eq.s32.totalorder %s20, 2
      %p163 = por %p161, %p162
      %p165 = scmp.ne.s32.totalorder %s148, %s164
      %p166 = scmp.eq.s32.totalorder %s20, 0
      %p167 = por %p165, %p166
      %p168 = scmp.le.s32.totalorder 1, %s14
      %p169 = scmp.lt.s32.totalorder %s14, 4
      %p170 = pnand %p168, %p169
      %p171 = pneg %p170
      // Predicated region
      $region9: #{tpu_custom_call.1} parent=5 // pred_check
        _
      $region10: #{tpu_custom_call.1} parent=5 // pred_check_branch
        %173 = sbr.rel (%p170) target = $region12
      $region11: #{tpu_custom_call.1} parent=5 // pred_region
        %s174 = ssub.s32 %s14, 1
        // Predicated region
        $region13: #{tpu_custom_call.1} parent=11 // pred_check
          %p175 = pneg %p113
        $region14: #{tpu_custom_call.1} parent=11 // pred_check_branch
          %177 = sbr.rel (%p175) target = $region16
        $region15: #{tpu_custom_call.1} parent=11 // pred_region
          _
        $region16: #{tpu_custom_call.1} parent=11 // pred_fallthru
          _
        // Predicated region
        $region17: #{tpu_custom_call.1} parent=11 // pred_check
          %p178 = pneg %p134
        $region18: #{tpu_custom_call.1} parent=11 // pred_check_branch
          %180 = sbr.rel (%p178) target = $region20
        $region19: #{tpu_custom_call.1} parent=11 // pred_region
          _
        $region20: #{tpu_custom_call.1} parent=11 // pred_fallthru
          _
      $region12: #{tpu_custom_call.1} parent=5 // pred_fallthru
        _
      %p181 = scmp.lt.s32.totalorder %s14, 3
      // Predicated region
      $region21: #{tpu_custom_call.1} parent=5 // pred_check
        %p182 = pneg %p181
      $region22: #{tpu_custom_call.1} parent=5 // pred_check_branch
        %184 = sbr.rel (%p182) target = $region24
      $region23: #{tpu_custom_call.1} parent=5 // pred_region
        // Predicated region
        $region25: #{tpu_custom_call.1} parent=23 // pred_check
          %p185 = pneg %p34
        $region26: #{tpu_custom_call.1} parent=23 // pred_check_branch
          %187 = sbr.rel (%p185) target = $region28
        $region27: #{tpu_custom_call.1} parent=23 // pred_region
          %s188 = smul.u32 64, %s14
          %p189 = scmp.lt.s32.totalorder %s188, 191
          %s190 = scalar_select %p189, %s188, 191
          %s191 = smul.addr %s190, 8
          %s192 = scalar_lea.vmem %s0, %s191
          %s193 = smul.u32 64, %s14
        $region28: #{tpu_custom_call.1} parent=23 // pred_fallthru
          _
        // Predicated region
        $region29: #{tpu_custom_call.1} parent=23 // pred_check
          %p194 = pneg %p60
        $region30: #{tpu_custom_call.1} parent=23 // pred_check_branch
          %196 = sbr.rel (%p194) target = $region32
        $region31: #{tpu_custom_call.1} parent=23 // pred_region
          %s197 = smul.u32 64, %s14
          %p198 = scmp.lt.s32.totalorder %s197, 191
          %s199 = scalar_select %p198, %s197, 191
          %s200 = smul.addr %s199, 8
          %s201 = scalar_lea.vmem %s1, %s200
          %s202 = smul.u32 64, %s14
        $region32: #{tpu_custom_call.1} parent=23 // pred_fallthru
          _
        // Predicated region
        $region33: #{tpu_custom_call.1} parent=23 // pred_check
          %p203 = pneg %p86
        $region34: #{tpu_custom_call.1} parent=23 // pred_check_branch
          %205 = sbr.rel (%p203) target = $region36
        $region35: #{tpu_custom_call.1} parent=23 // pred_region
          %s206 = smul.u32 64, %s14
          %p207 = scmp.lt.s32.totalorder %s206, 191
          %s208 = scalar_select %p207, %s206, 191
          %s209 = smul.addr %s208, 8
          %s210 = scalar_lea.vmem %s2, %s209
          %s211 = smul.u32 64, %s14
        $region36: #{tpu_custom_call.1} parent=23 // pred_fallthru
          _
      $region24: #{tpu_custom_call.1} parent=5 // pred_fallthru
        _
      %p212 = scmp.le.s32.totalorder 1, %s14
      %p213 = scmp.lt.s32.totalorder %s14, 4
      %p214 = pnand %p212, %p213
      %p215 = pneg %p214
      // Predicated region
      $region37: #{tpu_custom_call.1} parent=5 // pred_check
        _
      $region38: #{tpu_custom_call.1} parent=5 // pred_check_branch
        %217 = sbr.rel (%p214) target = $region40
      $region39: #{tpu_custom_call.1} parent=5 // pred_region
        %s218 = ssub.s32 %s14, 1
        %s219 = smul.u32 64, %s19
        %p220 = scmp.lt.s32.totalorder %s219, 191
        %s221 = scalar_select %p220, %s219, 191
        %s222 = smul.addr %s221, 8
        %s223 = scalar_lea.vmem %s0, %s222
        %p224 = pneg %p40
        %p225 = pneg %p37
        %s226 = smul.u32 64, %s19
        %p227 = scmp.lt.s32.totalorder %s226, 191
        %s228 = scalar_select %p227, %s226, 191
        %s229 = smul.addr %s228, 8
        %s230 = scalar_lea.vmem %s1, %s229
        %p231 = pneg %p66
        %p232 = pneg %p63
        %s233 = smul.u32 64, %s19
        %p234 = scmp.lt.s32.totalorder %s233, 191
        %s235 = scalar_select %p234, %s233, 191
        %s236 = smul.addr %s235, 8
        %s237 = scalar_lea.vmem %s2, %s236
        %p238 = pneg %p92
        %p239 = pneg %p89
        %p240 = pneg %p113
        %p241 = pneg %p110
        %p242 = pneg %p134
        %p243 = pneg %p131
        %p244 = pneg %p160
        %p245 = pneg %p157
        %s246 = sand.u32 %s147, 1
        %s247 = scalar_lea.sflag [#allocation3], %s246
        %s248 = sand.u32 %s147, 1
        %s249 = smul.addr %s248, 4
        %s250 = scalar_lea.vmem [#allocation2], %s249
        %s251 = smul.u32 64, %s19
        %p252 = scmp.lt.s32.totalorder %s251, 191
        %s253 = scalar_select %p252, %s251, 191
        %s254 = smul.addr %s253, 8
        %s255 = scalar_lea.vmem %s0, %s254
        %s256 = smul.u32 64, %s19
        %s257 = smul.u32 64, %s19
        %p258 = scmp.lt.s32.totalorder %s257, 191
        %s259 = scalar_select %p258, %s257, 191
        %s260 = smul.addr %s259, 8
        %s261 = scalar_lea.vmem %s1, %s260
        %s262 = smul.u32 64, %s19
        %s263 = smul.u32 64, %s19
        %p264 = scmp.lt.s32.totalorder %s263, 191
        %s265 = scalar_select %p264, %s263, 191
        %s266 = smul.addr %s265, 8
        %s267 = scalar_lea.vmem %s2, %s266
        %s268 = smul.u32 64, %s19
        %v270 = vld [vmem:[%s3] sm:$0xf]
        %v271 = vld [vmem:[%s3 + $0x4] sm:$0xf]
        %v272 = vld [vmem:[%s3 + $0x8] sm:$0xf]
        %v273 = vld [vmem:[%s3 + $0xc] sm:$0xf]
        %v274 = vld [vmem:[%s3 + $0x10] sm:$0xf]
        %v275 = vld [vmem:[%s3 + $0x14] sm:$0xf]
        %v276 = vld [vmem:[%s3 + $0x18] sm:$0xf]
        %v277 = vld [vmem:[%s3 + $0x1c] sm:$0xf]
        %v278 = vld [vmem:[%s4] sm:$0xf]
        %v279 = vld [vmem:[%s4 + $0x4] sm:$0xf]
        %v280 = vlaneseq
        %v281 = vand.u32 %v280, 127
        %v282 = vld [vmem:[%s255] sm:$0xff]
        %v283 = vld [vmem:[%s255 + $0x8] sm:$0xff]
        %v284 = vld [vmem:[%s255 + $0x10] sm:$0xff]
        %v285 = vld [vmem:[%s255 + $0x18] sm:$0xff]
        %v286 = vld [vmem:[%s255 + $0x20] sm:$0xff]
        %v287 = vld [vmem:[%s255 + $0x28] sm:$0xff]
        %v288 = vld [vmem:[%s255 + $0x30] sm:$0xff]
        %v289 = vld [vmem:[%s255 + $0x38] sm:$0xff]
        %v290 = vld [vmem:[%s255 + $0x40] sm:$0xff]
        %v291 = vld [vmem:[%s255 + $0x48] sm:$0xff]
        %v292 = vld [vmem:[%s255 + $0x50] sm:$0xff]
        %v293 = vld [vmem:[%s255 + $0x58] sm:$0xff]
        %v294 = vld [vmem:[%s255 + $0x60] sm:$0xff]
        %v295 = vld [vmem:[%s255 + $0x68] sm:$0xff]
        %v296 = vld [vmem:[%s255 + $0x70] sm:$0xff]
        %v297 = vld [vmem:[%s255 + $0x78] sm:$0xff]
        %v298 = vld [vmem:[%s255 + $0x80] sm:$0xff]
        %v299 = vld [vmem:[%s255 + $0x88] sm:$0xff]
        %v300 = vld [vmem:[%s255 + $0x90] sm:$0xff]
        %v301 = vld [vmem:[%s255 + $0x98] sm:$0xff]
        %v302 = vld [vmem:[%s255 + $0xa0] sm:$0xff]
        %v303 = vld [vmem:[%s255 + $0xa8] sm:$0xff]
        %v304 = vld [vmem:[%s255 + $0xb0] sm:$0xff]
        %v305 = vld [vmem:[%s255 + $0xb8] sm:$0xff]
        %v306 = vld [vmem:[%s255 + $0xc0] sm:$0xff]
        %v307 = vld [vmem:[%s255 + $0xc8] sm:$0xff]
        %v308 = vld [vmem:[%s255 + $0xd0] sm:$0xff]
        %v309 = vld [vmem:[%s255 + $0xd8] sm:$0xff]
        %v310 = vld [vmem:[%s255 + $0xe0] sm:$0xff]
        %v311 = vld [vmem:[%s255 + $0xe8] sm:$0xff]
        %v312 = vld [vmem:[%s255 + $0xf0] sm:$0xff]
        %v313 = vld [vmem:[%s255 + $0xf8] sm:$0xff]
        %v314 = vld [vmem:[%s255 + $0x100] sm:$0xff]
        %v315 = vld [vmem:[%s255 + $0x108] sm:$0xff]
        %v316 = vld [vmem:[%s255 + $0x110] sm:$0xff]
        %v317 = vld [vmem:[%s255 + $0x118] sm:$0xff]
        %v318 = vld [vmem:[%s255 + $0x120] sm:$0xff]
        %v319 = vld [vmem:[%s255 + $0x128] sm:$0xff]
        %v320 = vld [vmem:[%s255 + $0x130] sm:$0xff]
        %v321 = vld [vmem:[%s255 + $0x138] sm:$0xff]
        %v322 = vld [vmem:[%s255 + $0x140] sm:$0xff]
        %v323 = vld [vmem:[%s255 + $0x148] sm:$0xff]
        %v324 = vld [vmem:[%s255 + $0x150] sm:$0xff]
        %v325 = vld [vmem:[%s255 + $0x158] sm:$0xff]
        %v326 = vld [vmem:[%s255 + $0x160] sm:$0xff]
        %v327 = vld [vmem:[%s255 + $0x168] sm:$0xff]
        %v328 = vld [vmem:[%s255 + $0x170] sm:$0xff]
        %v329 = vld [vmem:[%s255 + $0x178] sm:$0xff]
        %v330 = vld [vmem:[%s255 + $0x180] sm:$0xff]
        %v331 = vld [vmem:[%s255 + $0x188] sm:$0xff]
        %v332 = vld [vmem:[%s255 + $0x190] sm:$0xff]
        %v333 = vld [vmem:[%s255 + $0x198] sm:$0xff]
        %v334 = vld [vmem:[%s255 + $0x1a0] sm:$0xff]
        %v335 = vld [vmem:[%s255 + $0x1a8] sm:$0xff]
        %v336 = vld [vmem:[%s255 + $0x1b0] sm:$0xff]
        %v337 = vld [vmem:[%s255 + $0x1b8] sm:$0xff]
        %v338 = vld [vmem:[%s255 + $0x1c0] sm:$0xff]
        %v339 = vld [vmem:[%s255 + $0x1c8] sm:$0xff]
        %v340 = vld [vmem:[%s255 + $0x1d0] sm:$0xff]
        %v341 = vld [vmem:[%s255 + $0x1d8] sm:$0xff]
        %v342 = vld [vmem:[%s255 + $0x1e0] sm:$0xff]
        %v343 = vld [vmem:[%s255 + $0x1e8] sm:$0xff]
        %v344 = vld [vmem:[%s255 + $0x1f0] sm:$0xff]
        %v345 = vld [vmem:[%s255 + $0x1f8] sm:$0xff]
        %346 = vset.pattern.permute.xlu0 0
        %347 = vperm.xlu0 %346, %v282
        %v348 = vpop.permute.xlu0 %347
        %349 = vset.pattern.permute.xlu0 0
        %350 = vperm.xlu0 %349, %v283
        %v351 = vpop.permute.xlu0 %350
        %352 = vset.pattern.permute.xlu0 0
        %353 = vperm.xlu0 %352, %v284
        %v354 = vpop.permute.xlu0 %353
        %355 = vset.pattern.permute.xlu0 0
        %356 = vperm.xlu0 %355, %v285
        %v357 = vpop.permute.xlu0 %356
        %358 = vset.pattern.permute.xlu0 0
        %359 = vperm.xlu0 %358, %v286
        %v360 = vpop.permute.xlu0 %359
        %361 = vset.pattern.permute.xlu0 0
        %362 = vperm.xlu0 %361, %v287
        %v363 = vpop.permute.xlu0 %362
        %364 = vset.pattern.permute.xlu0 0
        %365 = vperm.xlu0 %364, %v288
        %v366 = vpop.permute.xlu0 %365
        %367 = vset.pattern.permute.xlu0 0
        %368 = vperm.xlu0 %367, %v289
        %v369 = vpop.permute.xlu0 %368
        %370 = vset.pattern.permute.xlu0 0
        %371 = vperm.xlu0 %370, %v290
        %v372 = vpop.permute.xlu0 %371
        %373 = vset.pattern.permute.xlu0 0
        %374 = vperm.xlu0 %373, %v291
        %v375 = vpop.permute.xlu0 %374
        %376 = vset.pattern.permute.xlu0 0
        %377 = vperm.xlu0 %376, %v292
        %v378 = vpop.permute.xlu0 %377
        %379 = vset.pattern.permute.xlu0 0
        %380 = vperm.xlu0 %379, %v293
        %v381 = vpop.permute.xlu0 %380
        %382 = vset.pattern.permute.xlu0 0
        %383 = vperm.xlu0 %382, %v294
        %v384 = vpop.permute.xlu0 %383
        %385 = vset.pattern.permute.xlu0 0
        %386 = vperm.xlu0 %385, %v295
        %v387 = vpop.permute.xlu0 %386
        %388 = vset.pattern.permute.xlu0 0
        %389 = vperm.xlu0 %388, %v296
        %v390 = vpop.permute.xlu0 %389
        %391 = vset.pattern.permute.xlu0 0
        %392 = vperm.xlu0 %391, %v297
        %v393 = vpop.permute.xlu0 %392
        %394 = vset.pattern.permute.xlu0 0
        %395 = vperm.xlu0 %394, %v298
        %v396 = vpop.permute.xlu0 %395
        %397 = vset.pattern.permute.xlu0 0
        %398 = vperm.xlu0 %397, %v299
        %v399 = vpop.permute.xlu0 %398
        %400 = vset.pattern.permute.xlu0 0
        %401 = vperm.xlu0 %400, %v300
        %v402 = vpop.permute.xlu0 %401
        %403 = vset.pattern.permute.xlu0 0
        %404 = vperm.xlu0 %403, %v301
        %v405 = vpop.permute.xlu0 %404
        %406 = vset.pattern.permute.xlu0 0
        %407 = vperm.xlu0 %406, %v302
        %v408 = vpop.permute.xlu0 %407
        %409 = vset.pattern.permute.xlu0 0
        %410 = vperm.xlu0 %409, %v303
        %v411 = vpop.permute.xlu0 %410
        %412 = vset.pattern.permute.xlu0 0
        %413 = vperm.xlu0 %412, %v304
        %v414 = vpop.permute.xlu0 %413
        %415 = vset.pattern.permute.xlu0 0
        %416 = vperm.xlu0 %415, %v305
        %v417 = vpop.permute.xlu0 %416
        %418 = vset.pattern.permute.xlu0 0
        %419 = vperm.xlu0 %418, %v306
        %v420 = vpop.permute.xlu0 %419
        %421 = vset.pattern.permute.xlu0 0
        %422 = vperm.xlu0 %421, %v307
        %v423 = vpop.permute.xlu0 %422
        %424 = vset.pattern.permute.xlu0 0
        %425 = vperm.xlu0 %424, %v308
        %v426 = vpop.permute.xlu0 %425
        %427 = vset.pattern.permute.xlu0 0
        %428 = vperm.xlu0 %427, %v309
        %v429 = vpop.permute.xlu0 %428
        %430 = vset.pattern.permute.xlu0 0
        %431 = vperm.xlu0 %430, %v310
        %v432 = vpop.permute.xlu0 %431
        %433 = vset.pattern.permute.xlu0 0
        %434 = vperm.xlu0 %433, %v311
        %v435 = vpop.permute.xlu0 %434
        %436 = vset.pattern.permute.xlu0 0
        %437 = vperm.xlu0 %436, %v312
        %v438 = vpop.permute.xlu0 %437
        %439 = vset.pattern.permute.xlu0 0
        %440 = vperm.xlu0 %439, %v313
        %v441 = vpop.permute.xlu0 %440
        %442 = vset.pattern.permute.xlu0 0
        %443 = vperm.xlu0 %442, %v314
        %v444 = vpop.permute.xlu0 %443
        %445 = vset.pattern.permute.xlu0 0
        %446 = vperm.xlu0 %445, %v315
        %v447 = vpop.permute.xlu0 %446
        %448 = vset.pattern.permute.xlu0 0
        %449 = vperm.xlu0 %448, %v316
        %v450 = vpop.permute.xlu0 %449
        %451 = vset.pattern.permute.xlu0 0
        %452 = vperm.xlu0 %451, %v317
        %v453 = vpop.permute.xlu0 %452
        %454 = vset.pattern.permute.xlu0 0
        %455 = vperm.xlu0 %454, %v318
        %v456 = vpop.permute.xlu0 %455
        %457 = vset.pattern.permute.xlu0 0
        %458 = vperm.xlu0 %457, %v319
        %v459 = vpop.permute.xlu0 %458
        %460 = vset.pattern.permute.xlu0 0
        %461 = vperm.xlu0 %460, %v320
        %v462 = vpop.permute.xlu0 %461
        %463 = vset.pattern.permute.xlu0 0
        %464 = vperm.xlu0 %463, %v321
        %v465 = vpop.permute.xlu0 %464
        %466 = vset.pattern.permute.xlu0 0
        %467 = vperm.xlu0 %466, %v322
        %v468 = vpop.permute.xlu0 %467
        %469 = vset.pattern.permute.xlu0 0
        %470 = vperm.xlu0 %469, %v323
        %v471 = vpop.permute.xlu0 %470
        %472 = vset.pattern.permute.xlu0 0
        %473 = vperm.xlu0 %472, %v324
        %v474 = vpop.permute.xlu0 %473
        %475 = vset.pattern.permute.xlu0 0
        %476 = vperm.xlu0 %475, %v325
        %v477 = vpop.permute.xlu0 %476
        %478 = vset.pattern.permute.xlu0 0
        %479 = vperm.xlu0 %478, %v326
        %v480 = vpop.permute.xlu0 %479
        %481 = vset.pattern.permute.xlu0 0
        %482 = vperm.xlu0 %481, %v327
        %v483 = vpop.permute.xlu0 %482
        %484 = vset.pattern.permute.xlu0 0
        %485 = vperm.xlu0 %484, %v328
        %v486 = vpop.permute.xlu0 %485
        %487 = vset.pattern.permute.xlu0 0
        %488 = vperm.xlu0 %487, %v329
        %v489 = vpop.permute.xlu0 %488
        %490 = vset.pattern.permute.xlu0 0
        %491 = vperm.xlu0 %490, %v330
        %v492 = vpop.permute.xlu0 %491
        %493 = vset.pattern.permute.xlu0 0
        %494 = vperm.xlu0 %493, %v331
        %v495 = vpop.permute.xlu0 %494
        %496 = vset.pattern.permute.xlu0 0
        %497 = vperm.xlu0 %496, %v332
        %v498 = vpop.permute.xlu0 %497
        %499 = vset.pattern.permute.xlu0 0
        %500 = vperm.xlu0 %499, %v333
        %v501 = vpop.permute.xlu0 %500
        %502 = vset.pattern.permute.xlu0 0
        %503 = vperm.xlu0 %502, %v334
        %v504 = vpop.permute.xlu0 %503
        %505 = vset.pattern.permute.xlu0 0
        %506 = vperm.xlu0 %505, %v335
        %v507 = vpop.permute.xlu0 %506
        %508 = vset.pattern.permute.xlu0 0
        %509 = vperm.xlu0 %508, %v336
        %v510 = vpop.permute.xlu0 %509
        %511 = vset.pattern.permute.xlu0 0
        %512 = vperm.xlu0 %511, %v337
        %v513 = vpop.permute.xlu0 %512
        %514 = vset.pattern.permute.xlu0 0
        %515 = vperm.xlu0 %514, %v338
        %v516 = vpop.permute.xlu0 %515
        %517 = vset.pattern.permute.xlu0 0
        %518 = vperm.xlu0 %517, %v339
        %v519 = vpop.permute.xlu0 %518
        %520 = vset.pattern.permute.xlu0 0
        %521 = vperm.xlu0 %520, %v340
        %v522 = vpop.permute.xlu0 %521
        %523 = vset.pattern.permute.xlu0 0
        %524 = vperm.xlu0 %523, %v341
        %v525 = vpop.permute.xlu0 %524
        %526 = vset.pattern.permute.xlu0 0
        %527 = vperm.xlu0 %526, %v342
        %v528 = vpop.permute.xlu0 %527
        %529 = vset.pattern.permute.xlu0 0
        %530 = vperm.xlu0 %529, %v343
        %v531 = vpop.permute.xlu0 %530
        %532 = vset.pattern.permute.xlu0 0
        %533 = vperm.xlu0 %532, %v344
        %v534 = vpop.permute.xlu0 %533
        %535 = vset.pattern.permute.xlu0 0
        %536 = vperm.xlu0 %535, %v345
        %v537 = vpop.permute.xlu0 %536
        %vm538 = vcmp.eq.s32.totalorder %v348, %v281
        %vm539 = vcmp.eq.s32.totalorder %v351, %v281
        %vm540 = vcmp.eq.s32.totalorder %v354, %v281
        %vm541 = vcmp.eq.s32.totalorder %v357, %v281
        %vm542 = vcmp.eq.s32.totalorder %v360, %v281
        %vm543 = vcmp.eq.s32.totalorder %v363, %v281
        %vm544 = vcmp.eq.s32.totalorder %v366, %v281
        %vm545 = vcmp.eq.s32.totalorder %v369, %v281
        %vm546 = vcmp.eq.s32.totalorder %v372, %v281
        %vm547 = vcmp.eq.s32.totalorder %v375, %v281
        %vm548 = vcmp.eq.s32.totalorder %v378, %v281
        %vm549 = vcmp.eq.s32.totalorder %v381, %v281
        %vm550 = vcmp.eq.s32.totalorder %v384, %v281
        %vm551 = vcmp.eq.s32.totalorder %v387, %v281
        %vm552 = vcmp.eq.s32.totalorder %v390, %v281
        %vm553 = vcmp.eq.s32.totalorder %v393, %v281
        %vm554 = vcmp.eq.s32.totalorder %v396, %v281
        %vm555 = vcmp.eq.s32.totalorder %v399, %v281
        %vm556 = vcmp.eq.s32.totalorder %v402, %v281
        %vm557 = vcmp.eq.s32.totalorder %v405, %v281
        %vm558 = vcmp.eq.s32.totalorder %v408, %v281
        %vm559 = vcmp.eq.s32.totalorder %v411, %v281
        %vm560 = vcmp.eq.s32.totalorder %v414, %v281
        %vm561 = vcmp.eq.s32.totalorder %v417, %v281
        %vm562 = vcmp.eq.s32.totalorder %v420, %v281
        %vm563 = vcmp.eq.s32.totalorder %v423, %v281
        %vm564 = vcmp.eq.s32.totalorder %v426, %v281
        %vm565 = vcmp.eq.s32.totalorder %v429, %v281
        %vm566 = vcmp.eq.s32.totalorder %v432, %v281
        %vm567 = vcmp.eq.s32.totalorder %v435, %v281
        %vm568 = vcmp.eq.s32.totalorder %v438, %v281
        %vm569 = vcmp.eq.s32.totalorder %v441, %v281
        %vm570 = vcmp.eq.s32.totalorder %v444, %v281
        %vm571 = vcmp.eq.s32.totalorder %v447, %v281
        %vm572 = vcmp.eq.s32.totalorder %v450, %v281
        %vm573 = vcmp.eq.s32.totalorder %v453, %v281
        %vm574 = vcmp.eq.s32.totalorder %v456, %v281
        %vm575 = vcmp.eq.s32.totalorder %v459, %v281
        %vm576 = vcmp.eq.s32.totalorder %v462, %v281
        %vm577 = vcmp.eq.s32.totalorder %v465, %v281
        %vm578 = vcmp.eq.s32.totalorder %v468, %v281
        %vm579 = vcmp.eq.s32.totalorder %v471, %v281
        %vm580 = vcmp.eq.s32.totalorder %v474, %v281
        %vm581 = vcmp.eq.s32.totalorder %v477, %v281
        %vm582 = vcmp.eq.s32.totalorder %v480, %v281
        %vm583 = vcmp.eq.s32.totalorder %v483, %v281
        %vm584 = vcmp.eq.s32.totalorder %v486, %v281
        %vm585 = vcmp.eq.s32.totalorder %v489, %v281
        %vm586 = vcmp.eq.s32.totalorder %v492, %v281
        %vm587 = vcmp.eq.s32.totalorder %v495, %v281
        %vm588 = vcmp.eq.s32.totalorder %v498, %v281
        %vm589 = vcmp.eq.s32.totalorder %v501, %v281
        %vm590 = vcmp.eq.s32.totalorder %v504, %v281
        %vm591 = vcmp.eq.s32.totalorder %v507, %v281
        %vm592 = vcmp.eq.s32.totalorder %v510, %v281
        %vm593 = vcmp.eq.s32.totalorder %v513, %v281
        %vm594 = vcmp.eq.s32.totalorder %v516, %v281
        %vm595 = vcmp.eq.s32.totalorder %v519, %v281
        %vm596 = vcmp.eq.s32.totalorder %v522, %v281
        %vm597 = vcmp.eq.s32.totalorder %v525, %v281
        %vm598 = vcmp.eq.s32.totalorder %v528, %v281
        %vm599 = vcmp.eq.s32.totalorder %v531, %v281
        %vm600 = vcmp.eq.s32.totalorder %v534, %v281
        %vm601 = vcmp.eq.s32.totalorder %v537, %v281
        %v602 = vsel %vm538, 1, 0
        %v603 = vsel %vm539, 1, 0
        %v604 = vsel %vm540, 1, 0
        %v605 = vsel %vm541, 1, 0
        %v606 = vsel %vm542, 1, 0
        %v607 = vsel %vm543, 1, 0
        %v608 = vsel %vm544, 1, 0
        %v609 = vsel %vm545, 1, 0
        %v610 = vsel %vm546, 1, 0
        %v611 = vsel %vm547, 1, 0
        %v612 = vsel %vm548, 1, 0
        %v613 = vsel %vm549, 1, 0
        %v614 = vsel %vm550, 1, 0
        %v615 = vsel %vm551, 1, 0
        %v616 = vsel %vm552, 1, 0
        %v617 = vsel %vm553, 1, 0
        %v618 = vsel %vm554, 1, 0
        %v619 = vsel %vm555, 1, 0
        %v620 = vsel %vm556, 1, 0
        %v621 = vsel %vm557, 1, 0
        %v622 = vsel %vm558, 1, 0
        %v623 = vsel %vm559, 1, 0
        %v624 = vsel %vm560, 1, 0
        %v625 = vsel %vm561, 1, 0
        %v626 = vsel %vm562, 1, 0
        %v627 = vsel %vm563, 1, 0
        %v628 = vsel %vm564, 1, 0
        %v629 = vsel %vm565, 1, 0
        %v630 = vsel %vm566, 1, 0
        %v631 = vsel %vm567, 1, 0
        %v632 = vsel %vm568, 1, 0
        %v633 = vsel %vm569, 1, 0
        %v634 = vsel %vm570, 1, 0
        %v635 = vsel %vm571, 1, 0
        %v636 = vsel %vm572, 1, 0
        %v637 = vsel %vm573, 1, 0
        %v638 = vsel %vm574, 1, 0
        %v639 = vsel %vm575, 1, 0
        %v640 = vsel %vm576, 1, 0
        %v641 = vsel %vm577, 1, 0
        %v642 = vsel %vm578, 1, 0
        %v643 = vsel %vm579, 1, 0
        %v644 = vsel %vm580, 1, 0
        %v645 = vsel %vm581, 1, 0
        %v646 = vsel %vm582, 1, 0
        %v647 = vsel %vm583, 1, 0
        %v648 = vsel %vm584, 1, 0
        %v649 = vsel %vm585, 1, 0
        %v650 = vsel %vm586, 1, 0
        %v651 = vsel %vm587, 1, 0
        %v652 = vsel %vm588, 1, 0
        %v653 = vsel %vm589, 1, 0
        %v654 = vsel %vm590, 1, 0
        %v655 = vsel %vm591, 1, 0
        %v656 = vsel %vm592, 1, 0
        %v657 = vsel %vm593, 1, 0
        %v658 = vsel %vm594, 1, 0
        %v659 = vsel %vm595, 1, 0
        %v660 = vsel %vm596, 1, 0
        %v661 = vsel %vm597, 1, 0
        %v662 = vsel %vm598, 1, 0
        %v663 = vsel %vm599, 1, 0
        %v664 = vsel %vm600, 1, 0
        %v665 = vsel %vm601, 1, 0
        %v666 = vcvt.s32.f32 %v602
        %v667 = vcvt.s32.f32 %v603
        %v668 = vcvt.s32.f32 %v604
        %v669 = vcvt.s32.f32 %v605
        %v670 = vcvt.s32.f32 %v606
        %v671 = vcvt.s32.f32 %v607
        %v672 = vcvt.s32.f32 %v608
        %v673 = vcvt.s32.f32 %v609
        %v674 = vcvt.s32.f32 %v610
        %v675 = vcvt.s32.f32 %v611
        %v676 = vcvt.s32.f32 %v612
        %v677 = vcvt.s32.f32 %v613
        %v678 = vcvt.s32.f32 %v614
        %v679 = vcvt.s32.f32 %v615
        %v680 = vcvt.s32.f32 %v616
        %v681 = vcvt.s32.f32 %v617
        %v682 = vcvt.s32.f32 %v618
        %v683 = vcvt.s32.f32 %v619
        %v684 = vcvt.s32.f32 %v620
        %v685 = vcvt.s32.f32 %v621
        %v686 = vcvt.s32.f32 %v622
        %v687 = vcvt.s32.f32 %v623
        %v688 = vcvt.s32.f32 %v624
        %v689 = vcvt.s32.f32 %v625
        %v690 = vcvt.s32.f32 %v626
        %v691 = vcvt.s32.f32 %v627
        %v692 = vcvt.s32.f32 %v628
        %v693 = vcvt.s32.f32 %v629
        %v694 = vcvt.s32.f32 %v630
        %v695 = vcvt.s32.f32 %v631
        %v696 = vcvt.s32.f32 %v632
        %v697 = vcvt.s32.f32 %v633
        %v698 = vcvt.s32.f32 %v634
        %v699 = vcvt.s32.f32 %v635
        %v700 = vcvt.s32.f32 %v636
        %v701 = vcvt.s32.f32 %v637
        %v702 = vcvt.s32.f32 %v638
        %v703 = vcvt.s32.f32 %v639
        %v704 = vcvt.s32.f32 %v640
        %v705 = vcvt.s32.f32 %v641
        %v706 = vcvt.s32.f32 %v642
        %v707 = vcvt.s32.f32 %v643
        %v708 = vcvt.s32.f32 %v644
        %v709 = vcvt.s32.f32 %v645
        %v710 = vcvt.s32.f32 %v646
        %v711 = vcvt.s32.f32 %v647
        %v712 = vcvt.s32.f32 %v648
        %v713 = vcvt.s32.f32 %v649
        %v714 = vcvt.s32.f32 %v650
        %v715 = vcvt.s32.f32 %v651
        %v716 = vcvt.s32.f32 %v652
        %v717 = vcvt.s32.f32 %v653
        %v718 = vcvt.s32.f32 %v654
        %v719 = vcvt.s32.f32 %v655
        %v720 = vcvt.s32.f32 %v656
        %v721 = vcvt.s32.f32 %v657
        %v722 = vcvt.s32.f32 %v658
        %v723 = vcvt.s32.f32 %v659
        %v724 = vcvt.s32.f32 %v660
        %v725 = vcvt.s32.f32 %v661
        %v726 = vcvt.s32.f32 %v662
        %v727 = vcvt.s32.f32 %v663
        %v728 = vcvt.s32.f32 %v664
        %v729 = vcvt.s32.f32 %v665
        %v730 = vpack.c.bf16 %v667, %v666
        %v731 = vpack.c.bf16 %v669, %v668
        %v732 = vpack.c.bf16 %v671, %v670
        %v733 = vpack.c.bf16 %v673, %v672
        %v734 = vpack.c.bf16 %v675, %v674
        %v735 = vpack.c.bf16 %v677, %v676
        %v736 = vpack.c.bf16 %v679, %v678
        %v737 = vpack.c.bf16 %v681, %v680
        %v738 = vpack.c.bf16 %v683, %v682
        %v739 = vpack.c.bf16 %v685, %v684
        %v740 = vpack.c.bf16 %v687, %v686
        %v741 = vpack.c.bf16 %v689, %v688
        %v742 = vpack.c.bf16 %v691, %v690
        %v743 = vpack.c.bf16 %v693, %v692
        %v744 = vpack.c.bf16 %v695, %v694
        %v745 = vpack.c.bf16 %v697, %v696
        %v746 = vpack.c.bf16 %v699, %v698
        %v747 = vpack.c.bf16 %v701, %v700
        %v748 = vpack.c.bf16 %v703, %v702
        %v749 = vpack.c.bf16 %v705, %v704
        %v750 = vpack.c.bf16 %v707, %v706
        %v751 = vpack.c.bf16 %v709, %v708
        %v752 = vpack.c.bf16 %v711, %v710
        %v753 = vpack.c.bf16 %v713, %v712
        %v754 = vpack.c.bf16 %v715, %v714
        %v755 = vpack.c.bf16 %v717, %v716
        %v756 = vpack.c.bf16 %v719, %v718
        %v757 = vpack.c.bf16 %v721, %v720
        %v758 = vpack.c.bf16 %v723, %v722
        %v759 = vpack.c.bf16 %v725, %v724
        %v760 = vpack.c.bf16 %v727, %v726
        %v761 = vpack.c.bf16 %v729, %v728
        %v762 = vld [vmem:[%s267] sm:$0xff]
        %v763 = vld [vmem:[%s267 + $0x8] sm:$0xff]
        %v764 = vld [vmem:[%s267 + $0x10] sm:$0xff]
        %v765 = vld [vmem:[%s267 + $0x18] sm:$0xff]
        %v766 = vld [vmem:[%s267 + $0x20] sm:$0xff]
        %v767 = vld [vmem:[%s267 + $0x28] sm:$0xff]
        %v768 = vld [vmem:[%s267 + $0x30] sm:$0xff]
        %v769 = vld [vmem:[%s267 + $0x38] sm:$0xff]
        %v770 = vld [vmem:[%s267 + $0x40] sm:$0xff]
        %v771 = vld [vmem:[%s267 + $0x48] sm:$0xff]
        %v772 = vld [vmem:[%s267 + $0x50] sm:$0xff]
        %v773 = vld [vmem:[%s267 + $0x58] sm:$0xff]
        %v774 = vld [vmem:[%s267 + $0x60] sm:$0xff]
        %v775 = vld [vmem:[%s267 + $0x68] sm:$0xff]
        %v776 = vld [vmem:[%s267 + $0x70] sm:$0xff]
        %v777 = vld [vmem:[%s267 + $0x78] sm:$0xff]
        %v778 = vld [vmem:[%s267 + $0x80] sm:$0xff]
        %v779 = vld [vmem:[%s267 + $0x88] sm:$0xff]
        %v780 = vld [vmem:[%s267 + $0x90] sm:$0xff]
        %v781 = vld [vmem:[%s267 + $0x98] sm:$0xff]
        %v782 = vld [vmem:[%s267 + $0xa0] sm:$0xff]
        %v783 = vld [vmem:[%s267 + $0xa8] sm:$0xff]
        %v784 = vld [vmem:[%s267 + $0xb0] sm:$0xff]
        %v785 = vld [vmem:[%s267 + $0xb8] sm:$0xff]
        %v786 = vld [vmem:[%s267 + $0xc0] sm:$0xff]
        %v787 = vld [vmem:[%s267 + $0xc8] sm:$0xff]
        %v788 = vld [vmem:[%s267 + $0xd0] sm:$0xff]
        %v789 = vld [vmem:[%s267 + $0xd8] sm:$0xff]
        %v790 = vld [vmem:[%s267 + $0xe0] sm:$0xff]
        %v791 = vld [vmem:[%s267 + $0xe8] sm:$0xff]
        %v792 = vld [vmem:[%s267 + $0xf0] sm:$0xff]
        %v793 = vld [vmem:[%s267 + $0xf8] sm:$0xff]
        %v794 = vld [vmem:[%s267 + $0x100] sm:$0xff]
        %v795 = vld [vmem:[%s267 + $0x108] sm:$0xff]
        %v796 = vld [vmem:[%s267 + $0x110] sm:$0xff]
        %v797 = vld [vmem:[%s267 + $0x118] sm:$0xff]
        %v798 = vld [vmem:[%s267 + $0x120] sm:$0xff]
        %v799 = vld [vmem:[%s267 + $0x128] sm:$0xff]
        %v800 = vld [vmem:[%s267 + $0x130] sm:$0xff]
        %v801 = vld [vmem:[%s267 + $0x138] sm:$0xff]
        %v802 = vld [vmem:[%s267 + $0x140] sm:$0xff]
        %v803 = vld [vmem:[%s267 + $0x148] sm:$0xff]
        %v804 = vld [vmem:[%s267 + $0x150] sm:$0xff]
        %v805 = vld [vmem:[%s267 + $0x158] sm:$0xff]
        %v806 = vld [vmem:[%s267 + $0x160] sm:$0xff]
        %v807 = vld [vmem:[%s267 + $0x168] sm:$0xff]
        %v808 = vld [vmem:[%s267 + $0x170] sm:$0xff]
        %v809 = vld [vmem:[%s267 + $0x178] sm:$0xff]
        %v810 = vld [vmem:[%s267 + $0x180] sm:$0xff]
        %v811 = vld [vmem:[%s267 + $0x188] sm:$0xff]
        %v812 = vld [vmem:[%s267 + $0x190] sm:$0xff]
        %v813 = vld [vmem:[%s267 + $0x198] sm:$0xff]
        %v814 = vld [vmem:[%s267 + $0x1a0] sm:$0xff]
        %v815 = vld [vmem:[%s267 + $0x1a8] sm:$0xff]
        %v816 = vld [vmem:[%s267 + $0x1b0] sm:$0xff]
        %v817 = vld [vmem:[%s267 + $0x1b8] sm:$0xff]
        %v818 = vld [vmem:[%s267 + $0x1c0] sm:$0xff]
        %v819 = vld [vmem:[%s267 + $0x1c8] sm:$0xff]
        %v820 = vld [vmem:[%s267 + $0x1d0] sm:$0xff]
        %v821 = vld [vmem:[%s267 + $0x1d8] sm:$0xff]
        %v822 = vld [vmem:[%s267 + $0x1e0] sm:$0xff]
        %v823 = vld [vmem:[%s267 + $0x1e8] sm:$0xff]
        %v824 = vld [vmem:[%s267 + $0x1f0] sm:$0xff]
        %v825 = vld [vmem:[%s267 + $0x1f8] sm:$0xff]
        %826 = vset.pattern.permute.xlu0 0
        %827 = vperm.xlu0 %826, %v762
        %v828 = vpop.permute.xlu0 %827
        %829 = vset.pattern.permute.xlu0 0
        %830 = vperm.xlu0 %829, %v763
        %v831 = vpop.permute.xlu0 %830
        %832 = vset.pattern.permute.xlu0 0
        %833 = vperm.xlu0 %832, %v764
        %v834 = vpop.permute.xlu0 %833
        %835 = vset.pattern.permute.xlu0 0
        %836 = vperm.xlu0 %835, %v765
        %v837 = vpop.permute.xlu0 %836
        %838 = vset.pattern.permute.xlu0 0
        %839 = vperm.xlu0 %838, %v766
        %v840 = vpop.permute.xlu0 %839
        %841 = vset.pattern.permute.xlu0 0
        %842 = vperm.xlu0 %841, %v767
        %v843 = vpop.permute.xlu0 %842
        %844 = vset.pattern.permute.xlu0 0
        %845 = vperm.xlu0 %844, %v768
        %v846 = vpop.permute.xlu0 %845
        %847 = vset.pattern.permute.xlu0 0
        %848 = vperm.xlu0 %847, %v769
        %v849 = vpop.permute.xlu0 %848
        %850 = vset.pattern.permute.xlu0 0
        %851 = vperm.xlu0 %850, %v770
        %v852 = vpop.permute.xlu0 %851
        %853 = vset.pattern.permute.xlu0 0
        %854 = vperm.xlu0 %853, %v771
        %v855 = vpop.permute.xlu0 %854
        %856 = vset.pattern.permute.xlu0 0
        %857 = vperm.xlu0 %856, %v772
        %v858 = vpop.permute.xlu0 %857
        %859 = vset.pattern.permute.xlu0 0
        %860 = vperm.xlu0 %859, %v773
        %v861 = vpop.permute.xlu0 %860
        %862 = vset.pattern.permute.xlu0 0
        %863 = vperm.xlu0 %862, %v774
        %v864 = vpop.permute.xlu0 %863
        %865 = vset.pattern.permute.xlu0 0
        %866 = vperm.xlu0 %865, %v775
        %v867 = vpop.permute.xlu0 %866
        %868 = vset.pattern.permute.xlu0 0
        %869 = vperm.xlu0 %868, %v776
        %v870 = vpop.permute.xlu0 %869
        %871 = vset.pattern.permute.xlu0 0
        %872 = vperm.xlu0 %871, %v777
        %v873 = vpop.permute.xlu0 %872
        %874 = vset.pattern.permute.xlu0 0
        %875 = vperm.xlu0 %874, %v778
        %v876 = vpop.permute.xlu0 %875
        %877 = vset.pattern.permute.xlu0 0
        %878 = vperm.xlu0 %877, %v779
        %v879 = vpop.permute.xlu0 %878
        %880 = vset.pattern.permute.xlu0 0
        %881 = vperm.xlu0 %880, %v780
        %v882 = vpop.permute.xlu0 %881
        %883 = vset.pattern.permute.xlu0 0
        %884 = vperm.xlu0 %883, %v781
        %v885 = vpop.permute.xlu0 %884
        %886 = vset.pattern.permute.xlu0 0
        %887 = vperm.xlu0 %886, %v782
        %v888 = vpop.permute.xlu0 %887
        %889 = vset.pattern.permute.xlu0 0
        %890 = vperm.xlu0 %889, %v783
        %v891 = vpop.permute.xlu0 %890
        %892 = vset.pattern.permute.xlu0 0
        %893 = vperm.xlu0 %892, %v784
        %v894 = vpop.permute.xlu0 %893
        %895 = vset.pattern.permute.xlu0 0
        %896 = vperm.xlu0 %895, %v785
        %v897 = vpop.permute.xlu0 %896
        %898 = vset.pattern.permute.xlu0 0
        %899 = vperm.xlu0 %898, %v786
        %v900 = vpop.permute.xlu0 %899
        %901 = vset.pattern.permute.xlu0 0
        %902 = vperm.xlu0 %901, %v787
        %v903 = vpop.permute.xlu0 %902
        %904 = vset.pattern.permute.xlu0 0
        %905 = vperm.xlu0 %904, %v788
        %v906 = vpop.permute.xlu0 %905
        %907 = vset.pattern.permute.xlu0 0
        %908 = vperm.xlu0 %907, %v789
        %v909 = vpop.permute.xlu0 %908
        %910 = vset.pattern.permute.xlu0 0
        %911 = vperm.xlu0 %910, %v790
        %v912 = vpop.permute.xlu0 %911
        %913 = vset.pattern.permute.xlu0 0
        %914 = vperm.xlu0 %913, %v791
        %v915 = vpop.permute.xlu0 %914
        %916 = vset.pattern.permute.xlu0 0
        %917 = vperm.xlu0 %916, %v792
        %v918 = vpop.permute.xlu0 %917
        %919 = vset.pattern.permute.xlu0 0
        %920 = vperm.xlu0 %919, %v793
        %v921 = vpop.permute.xlu0 %920
        %922 = vset.pattern.permute.xlu0 0
        %923 = vperm.xlu0 %922, %v794
        %v924 = vpop.permute.xlu0 %923
        %925 = vset.pattern.permute.xlu0 0
        %926 = vperm.xlu0 %925, %v795
        %v927 = vpop.permute.xlu0 %926
        %928 = vset.pattern.permute.xlu0 0
        %929 = vperm.xlu0 %928, %v796
        %v930 = vpop.permute.xlu0 %929
        %931 = vset.pattern.permute.xlu0 0
        %932 = vperm.xlu0 %931, %v797
        %v933 = vpop.permute.xlu0 %932
        %934 = vset.pattern.permute.xlu0 0
        %935 = vperm.xlu0 %934, %v798
        %v936 = vpop.permute.xlu0 %935
        %937 = vset.pattern.permute.xlu0 0
        %938 = vperm.xlu0 %937, %v799
        %v939 = vpop.permute.xlu0 %938
        %940 = vset.pattern.permute.xlu0 0
        %941 = vperm.xlu0 %940, %v800
        %v942 = vpop.permute.xlu0 %941
        %943 = vset.pattern.permute.xlu0 0
        %944 = vperm.xlu0 %943, %v801
        %v945 = vpop.permute.xlu0 %944
        %946 = vset.pattern.permute.xlu0 0
        %947 = vperm.xlu0 %946, %v802
        %v948 = vpop.permute.xlu0 %947
        %949 = vset.pattern.permute.xlu0 0
        %950 = vperm.xlu0 %949, %v803
        %v951 = vpop.permute.xlu0 %950
        %952 = vset.pattern.permute.xlu0 0
        %953 = vperm.xlu0 %952, %v804
        %v954 = vpop.permute.xlu0 %953
        %955 = vset.pattern.permute.xlu0 0
        %956 = vperm.xlu0 %955, %v805
        %v957 = vpop.permute.xlu0 %956
        %958 = vset.pattern.permute.xlu0 0
        %959 = vperm.xlu0 %958, %v806
        %v960 = vpop.permute.xlu0 %959
        %961 = vset.pattern.permute.xlu0 0
        %962 = vperm.xlu0 %961, %v807
        %v963 = vpop.permute.xlu0 %962
        %964 = vset.pattern.permute.xlu0 0
        %965 = vperm.xlu0 %964, %v808
        %v966 = vpop.permute.xlu0 %965
        %967 = vset.pattern.permute.xlu0 0
        %968 = vperm.xlu0 %967, %v809
        %v969 = vpop.permute.xlu0 %968
        %970 = vset.pattern.permute.xlu0 0
        %971 = vperm.xlu0 %970, %v810
        %v972 = vpop.permute.xlu0 %971
        %973 = vset.pattern.permute.xlu0 0
        %974 = vperm.xlu0 %973, %v811
        %v975 = vpop.permute.xlu0 %974
        %976 = vset.pattern.permute.xlu0 0
        %977 = vperm.xlu0 %976, %v812
        %v978 = vpop.permute.xlu0 %977
        %979 = vset.pattern.permute.xlu0 0
        %980 = vperm.xlu0 %979, %v813
        %v981 = vpop.permute.xlu0 %980
        %982 = vset.pattern.permute.xlu0 0
        %983 = vperm.xlu0 %982, %v814
        %v984 = vpop.permute.xlu0 %983
        %985 = vset.pattern.permute.xlu0 0
        %986 = vperm.xlu0 %985, %v815
        %v987 = vpop.permute.xlu0 %986
        %988 = vset.pattern.permute.xlu0 0
        %989 = vperm.xlu0 %988, %v816
        %v990 = vpop.permute.xlu0 %989
        %991 = vset.pattern.permute.xlu0 0
        %992 = vperm.xlu0 %991, %v817
        %v993 = vpop.permute.xlu0 %992
        %994 = vset.pattern.permute.xlu0 0
        %995 = vperm.xlu0 %994, %v818
        %v996 = vpop.permute.xlu0 %995
        %997 = vset.pattern.permute.xlu0 0
        %998 = vperm.xlu0 %997, %v819
        %v999 = vpop.permute.xlu0 %998
        %1000 = vset.pattern.permute.xlu0 0
        %1001 = vperm.xlu0 %1000, %v820
        %v1002 = vpop.permute.xlu0 %1001
        %1003 = vset.pattern.permute.xlu0 0
        %1004 = vperm.xlu0 %1003, %v821
        %v1005 = vpop.permute.xlu0 %1004
        %1006 = vset.pattern.permute.xlu0 0
        %1007 = vperm.xlu0 %1006, %v822
        %v1008 = vpop.permute.xlu0 %1007
        %1009 = vset.pattern.permute.xlu0 0
        %1010 = vperm.xlu0 %1009, %v823
        %v1011 = vpop.permute.xlu0 %1010
        %1012 = vset.pattern.permute.xlu0 0
        %1013 = vperm.xlu0 %1012, %v824
        %v1014 = vpop.permute.xlu0 %1013
        %1015 = vset.pattern.permute.xlu0 0
        %1016 = vperm.xlu0 %1015, %v825
        %v1017 = vpop.permute.xlu0 %1016
        %vm1018 = vcmp.eq.s32.totalorder %v828, %v281
        %vm1019 = vcmp.eq.s32.totalorder %v831, %v281
        %vm1020 = vcmp.eq.s32.totalorder %v834, %v281
        %vm1021 = vcmp.eq.s32.totalorder %v837, %v281
        %vm1022 = vcmp.eq.s32.totalorder %v840, %v281
        %vm1023 = vcmp.eq.s32.totalorder %v843, %v281
        %vm1024 = vcmp.eq.s32.totalorder %v846, %v281
        %vm1025 = vcmp.eq.s32.totalorder %v849, %v281
        %vm1026 = vcmp.eq.s32.totalorder %v852, %v281
        %vm1027 = vcmp.eq.s32.totalorder %v855, %v281
        %vm1028 = vcmp.eq.s32.totalorder %v858, %v281
        %vm1029 = vcmp.eq.s32.totalorder %v861, %v281
        %vm1030 = vcmp.eq.s32.totalorder %v864, %v281
        %vm1031 = vcmp.eq.s32.totalorder %v867, %v281
        %vm1032 = vcmp.eq.s32.totalorder %v870, %v281
        %vm1033 = vcmp.eq.s32.totalorder %v873, %v281
        %vm1034 = vcmp.eq.s32.totalorder %v876, %v281
        %vm1035 = vcmp.eq.s32.totalorder %v879, %v281
        %vm1036 = vcmp.eq.s32.totalorder %v882, %v281
        %vm1037 = vcmp.eq.s32.totalorder %v885, %v281
        %vm1038 = vcmp.eq.s32.totalorder %v888, %v281
        %vm1039 = vcmp.eq.s32.totalorder %v891, %v281
        %vm1040 = vcmp.eq.s32.totalorder %v894, %v281
        %vm1041 = vcmp.eq.s32.totalorder %v897, %v281
        %vm1042 = vcmp.eq.s32.totalorder %v900, %v281
        %vm1043 = vcmp.eq.s32.totalorder %v903, %v281
        %vm1044 = vcmp.eq.s32.totalorder %v906, %v281
        %vm1045 = vcmp.eq.s32.totalorder %v909, %v281
        %vm1046 = vcmp.eq.s32.totalorder %v912, %v281
        %vm1047 = vcmp.eq.s32.totalorder %v915, %v281
        %vm1048 = vcmp.eq.s32.totalorder %v918, %v281
        %vm1049 = vcmp.eq.s32.totalorder %v921, %v281
        %vm1050 = vcmp.eq.s32.totalorder %v924, %v281
        %vm1051 = vcmp.eq.s32.totalorder %v927, %v281
        %vm1052 = vcmp.eq.s32.totalorder %v930, %v281
        %vm1053 = vcmp.eq.s32.totalorder %v933, %v281
        %vm1054 = vcmp.eq.s32.totalorder %v936, %v281
        %vm1055 = vcmp.eq.s32.totalorder %v939, %v281
        %vm1056 = vcmp.eq.s32.totalorder %v942, %v281
        %vm1057 = vcmp.eq.s32.totalorder %v945, %v281
        %vm1058 = vcmp.eq.s32.totalorder %v948, %v281
        %vm1059 = vcmp.eq.s32.totalorder %v951, %v281
        %vm1060 = vcmp.eq.s32.totalorder %v954, %v281
        %vm1061 = vcmp.eq.s32.totalorder %v957, %v281
        %vm1062 = vcmp.eq.s32.totalorder %v960, %v281
        %vm1063 = vcmp.eq.s32.totalorder %v963, %v281
        %vm1064 = vcmp.eq.s32.totalorder %v966, %v281
        %vm1065 = vcmp.eq.s32.totalorder %v969, %v281
        %vm1066 = vcmp.eq.s32.totalorder %v972, %v281
        %vm1067 = vcmp.eq.s32.totalorder %v975, %v281
        %vm1068 = vcmp.eq.s32.totalorder %v978, %v281
        %vm1069 = vcmp.eq.s32.totalorder %v981, %v281
        %vm1070 = vcmp.eq.s32.totalorder %v984, %v281
        %vm1071 = vcmp.eq.s32.totalorder %v987, %v281
        %vm1072 = vcmp.eq.s32.totalorder %v990, %v281
        %vm1073 = vcmp.eq.s32.totalorder %v993, %v281
        %vm1074 = vcmp.eq.s32.totalorder %v996, %v281
        %vm1075 = vcmp.eq.s32.totalorder %v999, %v281
        %vm1076 = vcmp.eq.s32.totalorder %v1002, %v281
        %vm1077 = vcmp.eq.s32.totalorder %v1005, %v281
        %vm1078 = vcmp.eq.s32.totalorder %v1008, %v281
        %vm1079 = vcmp.eq.s32.totalorder %v1011, %v281
        %vm1080 = vcmp.eq.s32.totalorder %v1014, %v281
        %vm1081 = vcmp.eq.s32.totalorder %v1017, %v281
        %v1082 = vsel %vm1018, 1, 0
        %v1083 = vsel %vm1019, 1, 0
        %v1084 = vsel %vm1020, 1, 0
        %v1085 = vsel %vm1021, 1, 0
        %v1086 = vsel %vm1022, 1, 0
        %v1087 = vsel %vm1023, 1, 0
        %v1088 = vsel %vm1024, 1, 0
        %v1089 = vsel %vm1025, 1, 0
        %v1090 = vsel %vm1026, 1, 0
        %v1091 = vsel %vm1027, 1, 0
        %v1092 = vsel %vm1028, 1, 0
        %v1093 = vsel %vm1029, 1, 0
        %v1094 = vsel %vm1030, 1, 0
        %v1095 = vsel %vm1031, 1, 0
        %v1096 = vsel %vm1032, 1, 0
        %v1097 = vsel %vm1033, 1, 0
        %v1098 = vsel %vm1034, 1, 0
        %v1099 = vsel %vm1035, 1, 0
        %v1100 = vsel %vm1036, 1, 0
        %v1101 = vsel %vm1037, 1, 0
        %v1102 = vsel %vm1038, 1, 0
        %v1103 = vsel %vm1039, 1, 0
        %v1104 = vsel %vm1040, 1, 0
        %v1105 = vsel %vm1041, 1, 0
        %v1106 = vsel %vm1042, 1, 0
        %v1107 = vsel %vm1043, 1, 0
        %v1108 = vsel %vm1044, 1, 0
        %v1109 = vsel %vm1045, 1, 0
        %v1110 = vsel %vm1046, 1, 0
        %v1111 = vsel %vm1047, 1, 0
        %v1112 = vsel %vm1048, 1, 0
        %v1113 = vsel %vm1049, 1, 0
        %v1114 = vsel %vm1050, 1, 0
        %v1115 = vsel %vm1051, 1, 0
        %v1116 = vsel %vm1052, 1, 0
        %v1117 = vsel %vm1053, 1, 0
        %v1118 = vsel %vm1054, 1, 0
        %v1119 = vsel %vm1055, 1, 0
        %v1120 = vsel %vm1056, 1, 0
        %v1121 = vsel %vm1057, 1, 0
        %v1122 = vsel %vm1058, 1, 0
        %v1123 = vsel %vm1059, 1, 0
        %v1124 = vsel %vm1060, 1, 0
        %v1125 = vsel %vm1061, 1, 0
        %v1126 = vsel %vm1062, 1, 0
        %v1127 = vsel %vm1063, 1, 0
        %v1128 = vsel %vm1064, 1, 0
        %v1129 = vsel %vm1065, 1, 0
        %v1130 = vsel %vm1066, 1, 0
        %v1131 = vsel %vm1067, 1, 0
        %v1132 = vsel %vm1068, 1, 0
        %v1133 = vsel %vm1069, 1, 0
        %v1134 = vsel %vm1070, 1, 0
        %v1135 = vsel %vm1071, 1, 0
        %v1136 = vsel %vm1072, 1, 0
        %v1137 = vsel %vm1073, 1, 0
        %v1138 = vsel %vm1074, 1, 0
        %v1139 = vsel %vm1075, 1, 0
        %v1140 = vsel %vm1076, 1, 0
        %v1141 = vsel %vm1077, 1, 0
        %v1142 = vsel %vm1078, 1, 0
        %v1143 = vsel %vm1079, 1, 0
        %v1144 = vsel %vm1080, 1, 0
        %v1145 = vsel %vm1081, 1, 0
        %v1146 = vcvt.s32.f32 %v1082
        %v1147 = vcvt.s32.f32 %v1083
        %v1148 = vcvt.s32.f32 %v1084
        %v1149 = vcvt.s32.f32 %v1085
        %v1150 = vcvt.s32.f32 %v1086
        %v1151 = vcvt.s32.f32 %v1087
        %v1152 = vcvt.s32.f32 %v1088
        %v1153 = vcvt.s32.f32 %v1089
        %v1154 = vcvt.s32.f32 %v1090
        %v1155 = vcvt.s32.f32 %v1091
        %v1156 = vcvt.s32.f32 %v1092
        %v1157 = vcvt.s32.f32 %v1093
        %v1158 = vcvt.s32.f32 %v1094
        %v1159 = vcvt.s32.f32 %v1095
        %v1160 = vcvt.s32.f32 %v1096
        %v1161 = vcvt.s32.f32 %v1097
        %v1162 = vcvt.s32.f32 %v1098
        %v1163 = vcvt.s32.f32 %v1099
        %v1164 = vcvt.s32.f32 %v1100
        %v1165 = vcvt.s32.f32 %v1101
        %v1166 = vcvt.s32.f32 %v1102
        %v1167 = vcvt.s32.f32 %v1103
        %v1168 = vcvt.s32.f32 %v1104
        %v1169 = vcvt.s32.f32 %v1105
        %v1170 = vcvt.s32.f32 %v1106
        %v1171 = vcvt.s32.f32 %v1107
        %v1172 = vcvt.s32.f32 %v1108
        %v1173 = vcvt.s32.f32 %v1109
        %v1174 = vcvt.s32.f32 %v1110
        %v1175 = vcvt.s32.f32 %v1111
        %v1176 = vcvt.s32.f32 %v1112
        %v1177 = vcvt.s32.f32 %v1113
        %v1178 = vcvt.s32.f32 %v1114
        %v1179 = vcvt.s32.f32 %v1115
        %v1180 = vcvt.s32.f32 %v1116
        %v1181 = vcvt.s32.f32 %v1117
        %v1182 = vcvt.s32.f32 %v1118
        %v1183 = vcvt.s32.f32 %v1119
        %v1184 = vcvt.s32.f32 %v1120
        %v1185 = vcvt.s32.f32 %v1121
        %v1186 = vcvt.s32.f32 %v1122
        %v1187 = vcvt.s32.f32 %v1123
        %v1188 = vcvt.s32.f32 %v1124
        %v1189 = vcvt.s32.f32 %v1125
        %v1190 = vcvt.s32.f32 %v1126
        %v1191 = vcvt.s32.f32 %v1127
        %v1192 = vcvt.s32.f32 %v1128
        %v1193 = vcvt.s32.f32 %v1129
        %v1194 = vcvt.s32.f32 %v1130
        %v1195 = vcvt.s32.f32 %v1131
        %v1196 = vcvt.s32.f32 %v1132
        %v1197 = vcvt.s32.f32 %v1133
        %v1198 = vcvt.s32.f32 %v1134
        %v1199 = vcvt.s32.f32 %v1135
        %v1200 = vcvt.s32.f32 %v1136
        %v1201 = vcvt.s32.f32 %v1137
        %v1202 = vcvt.s32.f32 %v1138
        %v1203 = vcvt.s32.f32 %v1139
        %v1204 = vcvt.s32.f32 %v1140
        %v1205 = vcvt.s32.f32 %v1141
        %v1206 = vcvt.s32.f32 %v1142
        %v1207 = vcvt.s32.f32 %v1143
        %v1208 = vcvt.s32.f32 %v1144
        %v1209 = vcvt.s32.f32 %v1145
        %v1210 = vpack.c.bf16 %v1147, %v1146
        %v1211 = vpack.c.bf16 %v1149, %v1148
        %v1212 = vpack.c.bf16 %v1151, %v1150
        %v1213 = vpack.c.bf16 %v1153, %v1152
        %v1214 = vpack.c.bf16 %v1155, %v1154
        %v1215 = vpack.c.bf16 %v1157, %v1156
        %v1216 = vpack.c.bf16 %v1159, %v1158
        %v1217 = vpack.c.bf16 %v1161, %v1160
        %v1218 = vpack.c.bf16 %v1163, %v1162
        %v1219 = vpack.c.bf16 %v1165, %v1164
        %v1220 = vpack.c.bf16 %v1167, %v1166
        %v1221 = vpack.c.bf16 %v1169, %v1168
        %v1222 = vpack.c.bf16 %v1171, %v1170
        %v1223 = vpack.c.bf16 %v1173, %v1172
        %v1224 = vpack.c.bf16 %v1175, %v1174
        %v1225 = vpack.c.bf16 %v1177, %v1176
        %v1226 = vpack.c.bf16 %v1179, %v1178
        %v1227 = vpack.c.bf16 %v1181, %v1180
        %v1228 = vpack.c.bf16 %v1183, %v1182
        %v1229 = vpack.c.bf16 %v1185, %v1184
        %v1230 = vpack.c.bf16 %v1187, %v1186
        %v1231 = vpack.c.bf16 %v1189, %v1188
        %v1232 = vpack.c.bf16 %v1191, %v1190
        %v1233 = vpack.c.bf16 %v1193, %v1192
        %v1234 = vpack.c.bf16 %v1195, %v1194
        %v1235 = vpack.c.bf16 %v1197, %v1196
        %v1236 = vpack.c.bf16 %v1199, %v1198
        %v1237 = vpack.c.bf16 %v1201, %v1200
        %v1238 = vpack.c.bf16 %v1203, %v1202
        %v1239 = vpack.c.bf16 %v1205, %v1204
        %v1240 = vpack.c.bf16 %v1207, %v1206
        %v1241 = vpack.c.bf16 %v1209, %v1208
        %v1242 = vld [vmem:[%s261] sm:$0xff]
        %v1243 = vld [vmem:[%s261 + $0x8] sm:$0xff]
        %v1244 = vld [vmem:[%s261 + $0x10] sm:$0xff]
        %v1245 = vld [vmem:[%s261 + $0x18] sm:$0xff]
        %v1246 = vld [vmem:[%s261 + $0x20] sm:$0xff]
        %v1247 = vld [vmem:[%s261 + $0x28] sm:$0xff]
        %v1248 = vld [vmem:[%s261 + $0x30] sm:$0xff]
        %v1249 = vld [vmem:[%s261 + $0x38] sm:$0xff]
        %v1250 = vld [vmem:[%s261 + $0x40] sm:$0xff]
        %v1251 = vld [vmem:[%s261 + $0x48] sm:$0xff]
        %v1252 = vld [vmem:[%s261 + $0x50] sm:$0xff]
        %v1253 = vld [vmem:[%s261 + $0x58] sm:$0xff]
        %v1254 = vld [vmem:[%s261 + $0x60] sm:$0xff]
        %v1255 = vld [vmem:[%s261 + $0x68] sm:$0xff]
        %v1256 = vld [vmem:[%s261 + $0x70] sm:$0xff]
        %v1257 = vld [vmem:[%s261 + $0x78] sm:$0xff]
        %v1258 = vld [vmem:[%s261 + $0x80] sm:$0xff]
        %v1259 = vld [vmem:[%s261 + $0x88] sm:$0xff]
        %v1260 = vld [vmem:[%s261 + $0x90] sm:$0xff]
        %v1261 = vld [vmem:[%s261 + $0x98] sm:$0xff]
        %v1262 = vld [vmem:[%s261 + $0xa0] sm:$0xff]
        %v1263 = vld [vmem:[%s261 + $0xa8] sm:$0xff]
        %v1264 = vld [vmem:[%s261 + $0xb0] sm:$0xff]
        %v1265 = vld [vmem:[%s261 + $0xb8] sm:$0xff]
        %v1266 = vld [vmem:[%s261 + $0xc0] sm:$0xff]
        %v1267 = vld [vmem:[%s261 + $0xc8] sm:$0xff]
        %v1268 = vld [vmem:[%s261 + $0xd0] sm:$0xff]
        %v1269 = vld [vmem:[%s261 + $0xd8] sm:$0xff]
        %v1270 = vld [vmem:[%s261 + $0xe0] sm:$0xff]
        %v1271 = vld [vmem:[%s261 + $0xe8] sm:$0xff]
        %v1272 = vld [vmem:[%s261 + $0xf0] sm:$0xff]
        %v1273 = vld [vmem:[%s261 + $0xf8] sm:$0xff]
        %v1274 = vld [vmem:[%s261 + $0x100] sm:$0xff]
        %v1275 = vld [vmem:[%s261 + $0x108] sm:$0xff]
        %v1276 = vld [vmem:[%s261 + $0x110] sm:$0xff]
        %v1277 = vld [vmem:[%s261 + $0x118] sm:$0xff]
        %v1278 = vld [vmem:[%s261 + $0x120] sm:$0xff]
        %v1279 = vld [vmem:[%s261 + $0x128] sm:$0xff]
        %v1280 = vld [vmem:[%s261 + $0x130] sm:$0xff]
        %v1281 = vld [vmem:[%s261 + $0x138] sm:$0xff]
        %v1282 = vld [vmem:[%s261 + $0x140] sm:$0xff]
        %v1283 = vld [vmem:[%s261 + $0x148] sm:$0xff]
        %v1284 = vld [vmem:[%s261 + $0x150] sm:$0xff]
        %v1285 = vld [vmem:[%s261 + $0x158] sm:$0xff]
        %v1286 = vld [vmem:[%s261 + $0x160] sm:$0xff]
        %v1287 = vld [vmem:[%s261 + $0x168] sm:$0xff]
        %v1288 = vld [vmem:[%s261 + $0x170] sm:$0xff]
        %v1289 = vld [vmem:[%s261 + $0x178] sm:$0xff]
        %v1290 = vld [vmem:[%s261 + $0x180] sm:$0xff]
        %v1291 = vld [vmem:[%s261 + $0x188] sm:$0xff]
        %v1292 = vld [vmem:[%s261 + $0x190] sm:$0xff]
        %v1293 = vld [vmem:[%s261 + $0x198] sm:$0xff]
        %v1294 = vld [vmem:[%s261 + $0x1a0] sm:$0xff]
        %v1295 = vld [vmem:[%s261 + $0x1a8] sm:$0xff]
        %v1296 = vld [vmem:[%s261 + $0x1b0] sm:$0xff]
        %v1297 = vld [vmem:[%s261 + $0x1b8] sm:$0xff]
        %v1298 = vld [vmem:[%s261 + $0x1c0] sm:$0xff]
        %v1299 = vld [vmem:[%s261 + $0x1c8] sm:$0xff]
        %v1300 = vld [vmem:[%s261 + $0x1d0] sm:$0xff]
        %v1301 = vld [vmem:[%s261 + $0x1d8] sm:$0xff]
        %v1302 = vld [vmem:[%s261 + $0x1e0] sm:$0xff]
        %v1303 = vld [vmem:[%s261 + $0x1e8] sm:$0xff]
        %v1304 = vld [vmem:[%s261 + $0x1f0] sm:$0xff]
        %v1305 = vld [vmem:[%s261 + $0x1f8] sm:$0xff]
        %1306 = vset.pattern.permute.xlu0 0
        %1307 = vperm.xlu0 %1306, %v1242
        %v1308 = vpop.permute.xlu0 %1307
        %1309 = vset.pattern.permute.xlu0 0
        %1310 = vperm.xlu0 %1309, %v1243
        %v1311 = vpop.permute.xlu0 %1310
        %1312 = vset.pattern.permute.xlu0 0
        %1313 = vperm.xlu0 %1312, %v1244
        %v1314 = vpop.permute.xlu0 %1313
        %1315 = vset.pattern.permute.xlu0 0
        %1316 = vperm.xlu0 %1315, %v1245
        %v1317 = vpop.permute.xlu0 %1316
        %1318 = vset.pattern.permute.xlu0 0
        %1319 = vperm.xlu0 %1318, %v1246
        %v1320 = vpop.permute.xlu0 %1319
        %1321 = vset.pattern.permute.xlu0 0
        %1322 = vperm.xlu0 %1321, %v1247
        %v1323 = vpop.permute.xlu0 %1322
        %1324 = vset.pattern.permute.xlu0 0
        %1325 = vperm.xlu0 %1324, %v1248
        %v1326 = vpop.permute.xlu0 %1325
        %1327 = vset.pattern.permute.xlu0 0
        %1328 = vperm.xlu0 %1327, %v1249
        %v1329 = vpop.permute.xlu0 %1328
        %1330 = vset.pattern.permute.xlu0 0
        %1331 = vperm.xlu0 %1330, %v1250
        %v1332 = vpop.permute.xlu0 %1331
        %1333 = vset.pattern.permute.xlu0 0
        %1334 = vperm.xlu0 %1333, %v1251
        %v1335 = vpop.permute.xlu0 %1334
        %1336 = vset.pattern.permute.xlu0 0
        %1337 = vperm.xlu0 %1336, %v1252
        %v1338 = vpop.permute.xlu0 %1337
        %1339 = vset.pattern.permute.xlu0 0
        %1340 = vperm.xlu0 %1339, %v1253
        %v1341 = vpop.permute.xlu0 %1340
        %1342 = vset.pattern.permute.xlu0 0
        %1343 = vperm.xlu0 %1342, %v1254
        %v1344 = vpop.permute.xlu0 %1343
        %1345 = vset.pattern.permute.xlu0 0
        %1346 = vperm.xlu0 %1345, %v1255
        %v1347 = vpop.permute.xlu0 %1346
        %1348 = vset.pattern.permute.xlu0 0
        %1349 = vperm.xlu0 %1348, %v1256
        %v1350 = vpop.permute.xlu0 %1349
        %1351 = vset.pattern.permute.xlu0 0
        %1352 = vperm.xlu0 %1351, %v1257
        %v1353 = vpop.permute.xlu0 %1352
        %1354 = vset.pattern.permute.xlu0 0
        %1355 = vperm.xlu0 %1354, %v1258
        %v1356 = vpop.permute.xlu0 %1355
        %1357 = vset.pattern.permute.xlu0 0
        %1358 = vperm.xlu0 %1357, %v1259
        %v1359 = vpop.permute.xlu0 %1358
        %1360 = vset.pattern.permute.xlu0 0
        %1361 = vperm.xlu0 %1360, %v1260
        %v1362 = vpop.permute.xlu0 %1361
        %1363 = vset.pattern.permute.xlu0 0
        %1364 = vperm.xlu0 %1363, %v1261
        %v1365 = vpop.permute.xlu0 %1364
        %1366 = vset.pattern.permute.xlu0 0
        %1367 = vperm.xlu0 %1366, %v1262
        %v1368 = vpop.permute.xlu0 %1367
        %1369 = vset.pattern.permute.xlu0 0
        %1370 = vperm.xlu0 %1369, %v1263
        %v1371 = vpop.permute.xlu0 %1370
        %1372 = vset.pattern.permute.xlu0 0
        %1373 = vperm.xlu0 %1372, %v1264
        %v1374 = vpop.permute.xlu0 %1373
        %1375 = vset.pattern.permute.xlu0 0
        %1376 = vperm.xlu0 %1375, %v1265
        %v1377 = vpop.permute.xlu0 %1376
        %1378 = vset.pattern.permute.xlu0 0
        %1379 = vperm.xlu0 %1378, %v1266
        %v1380 = vpop.permute.xlu0 %1379
        %1381 = vset.pattern.permute.xlu0 0
        %1382 = vperm.xlu0 %1381, %v1267
        %v1383 = vpop.permute.xlu0 %1382
        %1384 = vset.pattern.permute.xlu0 0
        %1385 = vperm.xlu0 %1384, %v1268
        %v1386 = vpop.permute.xlu0 %1385
        %1387 = vset.pattern.permute.xlu0 0
        %1388 = vperm.xlu0 %1387, %v1269
        %v1389 = vpop.permute.xlu0 %1388
        %1390 = vset.pattern.permute.xlu0 0
        %1391 = vperm.xlu0 %1390, %v1270
        %v1392 = vpop.permute.xlu0 %1391
        %1393 = vset.pattern.permute.xlu0 0
        %1394 = vperm.xlu0 %1393, %v1271
        %v1395 = vpop.permute.xlu0 %1394
        %1396 = vset.pattern.permute.xlu0 0
        %1397 = vperm.xlu0 %1396, %v1272
        %v1398 = vpop.permute.xlu0 %1397
        %1399 = vset.pattern.permute.xlu0 0
        %1400 = vperm.xlu0 %1399, %v1273
        %v1401 = vpop.permute.xlu0 %1400
        %1402 = vset.pattern.permute.xlu0 0
        %1403 = vperm.xlu0 %1402, %v1274
        %v1404 = vpop.permute.xlu0 %1403
        %1405 = vset.pattern.permute.xlu0 0
        %1406 = vperm.xlu0 %1405, %v1275
        %v1407 = vpop.permute.xlu0 %1406
        %1408 = vset.pattern.permute.xlu0 0
        %1409 = vperm.xlu0 %1408, %v1276
        %v1410 = vpop.permute.xlu0 %1409
        %1411 = vset.pattern.permute.xlu0 0
        %1412 = vperm.xlu0 %1411, %v1277
        %v1413 = vpop.permute.xlu0 %1412
        %1414 = vset.pattern.permute.xlu0 0
        %1415 = vperm.xlu0 %1414, %v1278
        %v1416 = vpop.permute.xlu0 %1415
        %1417 = vset.pattern.permute.xlu0 0
        %1418 = vperm.xlu0 %1417, %v1279
        %v1419 = vpop.permute.xlu0 %1418
        %1420 = vset.pattern.permute.xlu0 0
        %1421 = vperm.xlu0 %1420, %v1280
        %v1422 = vpop.permute.xlu0 %1421
        %1423 = vset.pattern.permute.xlu0 0
        %1424 = vperm.xlu0 %1423, %v1281
        %v1425 = vpop.permute.xlu0 %1424
        %1426 = vset.pattern.permute.xlu0 0
        %1427 = vperm.xlu0 %1426, %v1282
        %v1428 = vpop.permute.xlu0 %1427
        %1429 = vset.pattern.permute.xlu0 0
        %1430 = vperm.xlu0 %1429, %v1283
        %v1431 = vpop.permute.xlu0 %1430
        %1432 = vset.pattern.permute.xlu0 0
        %1433 = vperm.xlu0 %1432, %v1284
        %v1434 = vpop.permute.xlu0 %1433
        %1435 = vset.pattern.permute.xlu0 0
        %1436 = vperm.xlu0 %1435, %v1285
        %v1437 = vpop.permute.xlu0 %1436
        %1438 = vset.pattern.permute.xlu0 0
        %1439 = vperm.xlu0 %1438, %v1286
        %v1440 = vpop.permute.xlu0 %1439
        %1441 = vset.pattern.permute.xlu0 0
        %1442 = vperm.xlu0 %1441, %v1287
        %v1443 = vpop.permute.xlu0 %1442
        %1444 = vset.pattern.permute.xlu0 0
        %1445 = vperm.xlu0 %1444, %v1288
        %v1446 = vpop.permute.xlu0 %1445
        %1447 = vset.pattern.permute.xlu0 0
        %1448 = vperm.xlu0 %1447, %v1289
        %v1449 = vpop.permute.xlu0 %1448
        %1450 = vset.pattern.permute.xlu0 0
        %1451 = vperm.xlu0 %1450, %v1290
        %v1452 = vpop.permute.xlu0 %1451
        %1453 = vset.pattern.permute.xlu0 0
        %1454 = vperm.xlu0 %1453, %v1291
        %v1455 = vpop.permute.xlu0 %1454
        %1456 = vset.pattern.permute.xlu0 0
        %1457 = vperm.xlu0 %1456, %v1292
        %v1458 = vpop.permute.xlu0 %1457
        %1459 = vset.pattern.permute.xlu0 0
        %1460 = vperm.xlu0 %1459, %v1293
        %v1461 = vpop.permute.xlu0 %1460
        %1462 = vset.pattern.permute.xlu0 0
        %1463 = vperm.xlu0 %1462, %v1294
        %v1464 = vpop.permute.xlu0 %1463
        %1465 = vset.pattern.permute.xlu0 0
        %1466 = vperm.xlu0 %1465, %v1295
        %v1467 = vpop.permute.xlu0 %1466
        %1468 = vset.pattern.permute.xlu0 0
        %1469 = vperm.xlu0 %1468, %v1296
        %v1470 = vpop.permute.xlu0 %1469
        %1471 = vset.pattern.permute.xlu0 0
        %1472 = vperm.xlu0 %1471, %v1297
        %v1473 = vpop.permute.xlu0 %1472
        %1474 = vset.pattern.permute.xlu0 0
        %1475 = vperm.xlu0 %1474, %v1298
        %v1476 = vpop.permute.xlu0 %1475
        %1477 = vset.pattern.permute.xlu0 0
        %1478 = vperm.xlu0 %1477, %v1299
        %v1479 = vpop.permute.xlu0 %1478
        %1480 = vset.pattern.permute.xlu0 0
        %1481 = vperm.xlu0 %1480, %v1300
        %v1482 = vpop.permute.xlu0 %1481
        %1483 = vset.pattern.permute.xlu0 0
        %1484 = vperm.xlu0 %1483, %v1301
        %v1485 = vpop.permute.xlu0 %1484
        %1486 = vset.pattern.permute.xlu0 0
        %1487 = vperm.xlu0 %1486, %v1302
        %v1488 = vpop.permute.xlu0 %1487
        %1489 = vset.pattern.permute.xlu0 0
        %1490 = vperm.xlu0 %1489, %v1303
        %v1491 = vpop.permute.xlu0 %1490
        %1492 = vset.pattern.permute.xlu0 0
        %1493 = vperm.xlu0 %1492, %v1304
        %v1494 = vpop.permute.xlu0 %1493
        %1495 = vset.pattern.permute.xlu0 0
        %1496 = vperm.xlu0 %1495, %v1305
        %v1497 = vpop.permute.xlu0 %1496
        %vm1498 = vcmp.eq.s32.totalorder %v1308, %v281
        %vm1499 = vcmp.eq.s32.totalorder %v1311, %v281
        %vm1500 = vcmp.eq.s32.totalorder %v1314, %v281
        %vm1501 = vcmp.eq.s32.totalorder %v1317, %v281
        %vm1502 = vcmp.eq.s32.totalorder %v1320, %v281
        %vm1503 = vcmp.eq.s32.totalorder %v1323, %v281
        %vm1504 = vcmp.eq.s32.totalorder %v1326, %v281
        %vm1505 = vcmp.eq.s32.totalorder %v1329, %v281
        %vm1506 = vcmp.eq.s32.totalorder %v1332, %v281
        %vm1507 = vcmp.eq.s32.totalorder %v1335, %v281
        %vm1508 = vcmp.eq.s32.totalorder %v1338, %v281
        %vm1509 = vcmp.eq.s32.totalorder %v1341, %v281
        %vm1510 = vcmp.eq.s32.totalorder %v1344, %v281
        %vm1511 = vcmp.eq.s32.totalorder %v1347, %v281
        %vm1512 = vcmp.eq.s32.totalorder %v1350, %v281
        %vm1513 = vcmp.eq.s32.totalorder %v1353, %v281
        %vm1514 = vcmp.eq.s32.totalorder %v1356, %v281
        %vm1515 = vcmp.eq.s32.totalorder %v1359, %v281
        %vm1516 = vcmp.eq.s32.totalorder %v1362, %v281
        %vm1517 = vcmp.eq.s32.totalorder %v1365, %v281
        %vm1518 = vcmp.eq.s32.totalorder %v1368, %v281
        %vm1519 = vcmp.eq.s32.totalorder %v1371, %v281
        %vm1520 = vcmp.eq.s32.totalorder %v1374, %v281
        %vm1521 = vcmp.eq.s32.totalorder %v1377, %v281
        %vm1522 = vcmp.eq.s32.totalorder %v1380, %v281
        %vm1523 = vcmp.eq.s32.totalorder %v1383, %v281
        %vm1524 = vcmp.eq.s32.totalorder %v1386, %v281
        %vm1525 = vcmp.eq.s32.totalorder %v1389, %v281
        %vm1526 = vcmp.eq.s32.totalorder %v1392, %v281
        %vm1527 = vcmp.eq.s32.totalorder %v1395, %v281
        %vm1528 = vcmp.eq.s32.totalorder %v1398, %v281
        %vm1529 = vcmp.eq.s32.totalorder %v1401, %v281
        %vm1530 = vcmp.eq.s32.totalorder %v1404, %v281
        %vm1531 = vcmp.eq.s32.totalorder %v1407, %v281
        %vm1532 = vcmp.eq.s32.totalorder %v1410, %v281
        %vm1533 = vcmp.eq.s32.totalorder %v1413, %v281
        %vm1534 = vcmp.eq.s32.totalorder %v1416, %v281
        %vm1535 = vcmp.eq.s32.totalorder %v1419, %v281
        %vm1536 = vcmp.eq.s32.totalorder %v1422, %v281
        %vm1537 = vcmp.eq.s32.totalorder %v1425, %v281
        %vm1538 = vcmp.eq.s32.totalorder %v1428, %v281
        %vm1539 = vcmp.eq.s32.totalorder %v1431, %v281
        %vm1540 = vcmp.eq.s32.totalorder %v1434, %v281
        %vm1541 = vcmp.eq.s32.totalorder %v1437, %v281
        %vm1542 = vcmp.eq.s32.totalorder %v1440, %v281
        %vm1543 = vcmp.eq.s32.totalorder %v1443, %v281
        %vm1544 = vcmp.eq.s32.totalorder %v1446, %v281
        %vm1545 = vcmp.eq.s32.totalorder %v1449, %v281
        %vm1546 = vcmp.eq.s32.totalorder %v1452, %v281
        %vm1547 = vcmp.eq.s32.totalorder %v1455, %v281
        %vm1548 = vcmp.eq.s32.totalorder %v1458, %v281
        %vm1549 = vcmp.eq.s32.totalorder %v1461, %v281
        %vm1550 = vcmp.eq.s32.totalorder %v1464, %v281
        %vm1551 = vcmp.eq.s32.totalorder %v1467, %v281
        %vm1552 = vcmp.eq.s32.totalorder %v1470, %v281
        %vm1553 = vcmp.eq.s32.totalorder %v1473, %v281
        %vm1554 = vcmp.eq.s32.totalorder %v1476, %v281
        %vm1555 = vcmp.eq.s32.totalorder %v1479, %v281
        %vm1556 = vcmp.eq.s32.totalorder %v1482, %v281
        %vm1557 = vcmp.eq.s32.totalorder %v1485, %v281
        %vm1558 = vcmp.eq.s32.totalorder %v1488, %v281
        %vm1559 = vcmp.eq.s32.totalorder %v1491, %v281
        %vm1560 = vcmp.eq.s32.totalorder %v1494, %v281
        %vm1561 = vcmp.eq.s32.totalorder %v1497, %v281
        %v1562 = vsel %vm1498, 1, 0
        %v1563 = vsel %vm1499, 1, 0
        %v1564 = vsel %vm1500, 1, 0
        %v1565 = vsel %vm1501, 1, 0
        %v1566 = vsel %vm1502, 1, 0
        %v1567 = vsel %vm1503, 1, 0
        %v1568 = vsel %vm1504, 1, 0
        %v1569 = vsel %vm1505, 1, 0
        %v1570 = vsel %vm1506, 1, 0
        %v1571 = vsel %vm1507, 1, 0
        %v1572 = vsel %vm1508, 1, 0
        %v1573 = vsel %vm1509, 1, 0
        %v1574 = vsel %vm1510, 1, 0
        %v1575 = vsel %vm1511, 1, 0
        %v1576 = vsel %vm1512, 1, 0
        %v1577 = vsel %vm1513, 1, 0
        %v1578 = vsel %vm1514, 1, 0
        %v1579 = vsel %vm1515, 1, 0
        %v1580 = vsel %vm1516, 1, 0
        %v1581 = vsel %vm1517, 1, 0
        %v1582 = vsel %vm1518, 1, 0
        %v1583 = vsel %vm1519, 1, 0
        %v1584 = vsel %vm1520, 1, 0
        %v1585 = vsel %vm1521, 1, 0
        %v1586 = vsel %vm1522, 1, 0
        %v1587 = vsel %vm1523, 1, 0
        %v1588 = vsel %vm1524, 1, 0
        %v1589 = vsel %vm1525, 1, 0
        %v1590 = vsel %vm1526, 1, 0
        %v1591 = vsel %vm1527, 1, 0
        %v1592 = vsel %vm1528, 1, 0
        %v1593 = vsel %vm1529, 1, 0
        %v1594 = vsel %vm1530, 1, 0
        %v1595 = vsel %vm1531, 1, 0
        %v1596 = vsel %vm1532, 1, 0
        %v1597 = vsel %vm1533, 1, 0
        %v1598 = vsel %vm1534, 1, 0
        %v1599 = vsel %vm1535, 1, 0
        %v1600 = vsel %vm1536, 1, 0
        %v1601 = vsel %vm1537, 1, 0
        %v1602 = vsel %vm1538, 1, 0
        %v1603 = vsel %vm1539, 1, 0
        %v1604 = vsel %vm1540, 1, 0
        %v1605 = vsel %vm1541, 1, 0
        %v1606 = vsel %vm1542, 1, 0
        %v1607 = vsel %vm1543, 1, 0
        %v1608 = vsel %vm1544, 1, 0
        %v1609 = vsel %vm1545, 1, 0
        %v1610 = vsel %vm1546, 1, 0
        %v1611 = vsel %vm1547, 1, 0
        %v1612 = vsel %vm1548, 1, 0
        %v1613 = vsel %vm1549, 1, 0
        %v1614 = vsel %vm1550, 1, 0
        %v1615 = vsel %vm1551, 1, 0
        %v1616 = vsel %vm1552, 1, 0
        %v1617 = vsel %vm1553, 1, 0
        %v1618 = vsel %vm1554, 1, 0
        %v1619 = vsel %vm1555, 1, 0
        %v1620 = vsel %vm1556, 1, 0
        %v1621 = vsel %vm1557, 1, 0
        %v1622 = vsel %vm1558, 1, 0
        %v1623 = vsel %vm1559, 1, 0
        %v1624 = vsel %vm1560, 1, 0
        %v1625 = vsel %vm1561, 1, 0
        %v1626 = vcvt.s32.f32 %v1562
        %v1627 = vcvt.s32.f32 %v1563
        %v1628 = vcvt.s32.f32 %v1564
        %v1629 = vcvt.s32.f32 %v1565
        %v1630 = vcvt.s32.f32 %v1566
        %v1631 = vcvt.s32.f32 %v1567
        %v1632 = vcvt.s32.f32 %v1568
        %v1633 = vcvt.s32.f32 %v1569
        %v1634 = vcvt.s32.f32 %v1570
        %v1635 = vcvt.s32.f32 %v1571
        %v1636 = vcvt.s32.f32 %v1572
        %v1637 = vcvt.s32.f32 %v1573
        %v1638 = vcvt.s32.f32 %v1574
        %v1639 = vcvt.s32.f32 %v1575
        %v1640 = vcvt.s32.f32 %v1576
        %v1641 = vcvt.s32.f32 %v1577
        %v1642 = vcvt.s32.f32 %v1578
        %v1643 = vcvt.s32.f32 %v1579
        %v1644 = vcvt.s32.f32 %v1580
        %v1645 = vcvt.s32.f32 %v1581
        %v1646 = vcvt.s32.f32 %v1582
        %v1647 = vcvt.s32.f32 %v1583
        %v1648 = vcvt.s32.f32 %v1584
        %v1649 = vcvt.s32.f32 %v1585
        %v1650 = vcvt.s32.f32 %v1586
        %v1651 = vcvt.s32.f32 %v1587
        %v1652 = vcvt.s32.f32 %v1588
        %v1653 = vcvt.s32.f32 %v1589
        %v1654 = vcvt.s32.f32 %v1590
        %v1655 = vcvt.s32.f32 %v1591
        %v1656 = vcvt.s32.f32 %v1592
        %v1657 = vcvt.s32.f32 %v1593
        %v1658 = vcvt.s32.f32 %v1594
        %v1659 = vcvt.s32.f32 %v1595
        %v1660 = vcvt.s32.f32 %v1596
        %v1661 = vcvt.s32.f32 %v1597
        %v1662 = vcvt.s32.f32 %v1598
        %v1663 = vcvt.s32.f32 %v1599
        %v1664 = vcvt.s32.f32 %v1600
        %v1665 = vcvt.s32.f32 %v1601
        %v1666 = vcvt.s32.f32 %v1602
        %v1667 = vcvt.s32.f32 %v1603
        %v1668 = vcvt.s32.f32 %v1604
        %v1669 = vcvt.s32.f32 %v1605
        %v1670 = vcvt.s32.f32 %v1606
        %v1671 = vcvt.s32.f32 %v1607
        %v1672 = vcvt.s32.f32 %v1608
        %v1673 = vcvt.s32.f32 %v1609
        %v1674 = vcvt.s32.f32 %v1610
        %v1675 = vcvt.s32.f32 %v1611
        %v1676 = vcvt.s32.f32 %v1612
        %v1677 = vcvt.s32.f32 %v1613
        %v1678 = vcvt.s32.f32 %v1614
        %v1679 = vcvt.s32.f32 %v1615
        %v1680 = vcvt.s32.f32 %v1616
        %v1681 = vcvt.s32.f32 %v1617
        %v1682 = vcvt.s32.f32 %v1618
        %v1683 = vcvt.s32.f32 %v1619
        %v1684 = vcvt.s32.f32 %v1620
        %v1685 = vcvt.s32.f32 %v1621
        %v1686 = vcvt.s32.f32 %v1622
        %v1687 = vcvt.s32.f32 %v1623
        %v1688 = vcvt.s32.f32 %v1624
        %v1689 = vcvt.s32.f32 %v1625
        %v1690 = vpack.c.bf16 %v1627, %v1626
        %v1691 = vpack.c.bf16 %v1629, %v1628
        %v1692 = vpack.c.bf16 %v1631, %v1630
        %v1693 = vpack.c.bf16 %v1633, %v1632
        %v1694 = vpack.c.bf16 %v1635, %v1634
        %v1695 = vpack.c.bf16 %v1637, %v1636
        %v1696 = vpack.c.bf16 %v1639, %v1638
        %v1697 = vpack.c.bf16 %v1641, %v1640
        %v1698 = vpack.c.bf16 %v1643, %v1642
        %v1699 = vpack.c.bf16 %v1645, %v1644
        %v1700 = vpack.c.bf16 %v1647, %v1646
        %v1701 = vpack.c.bf16 %v1649, %v1648
        %v1702 = vpack.c.bf16 %v1651, %v1650
        %v1703 = vpack.c.bf16 %v1653, %v1652
        %v1704 = vpack.c.bf16 %v1655, %v1654
        %v1705 = vpack.c.bf16 %v1657, %v1656
        %v1706 = vpack.c.bf16 %v1659, %v1658
        %v1707 = vpack.c.bf16 %v1661, %v1660
        %v1708 = vpack.c.bf16 %v1663, %v1662
        %v1709 = vpack.c.bf16 %v1665, %v1664
        %v1710 = vpack.c.bf16 %v1667, %v1666
        %v1711 = vpack.c.bf16 %v1669, %v1668
        %v1712 = vpack.c.bf16 %v1671, %v1670
        %v1713 = vpack.c.bf16 %v1673, %v1672
        %v1714 = vpack.c.bf16 %v1675, %v1674
        %v1715 = vpack.c.bf16 %v1677, %v1676
        %v1716 = vpack.c.bf16 %v1679, %v1678
        %v1717 = vpack.c.bf16 %v1681, %v1680
        %v1718 = vpack.c.bf16 %v1683, %v1682
        %v1719 = vpack.c.bf16 %v1685, %v1684
        %v1720 = vpack.c.bf16 %v1687, %v1686
        %v1721 = vpack.c.bf16 %v1689, %v1688
        %v1730 = vunpack.c.l.b16 %v270
        %v1731 = vunpack.c.l.b16 %v271
        %v1732 = vunpack.c.l.b16 %v272
        %v1733 = vunpack.c.l.b16 %v273
        %v1734 = vunpack.c.l.b16 %v274
        %v1735 = vunpack.c.l.b16 %v275
        %v1736 = vunpack.c.l.b16 %v276
        %v1737 = vunpack.c.l.b16 %v277
        %v1738 = vpack.c.b16 %v1731, %v1730
        %v1739 = vpack.c.b16 %v1733, %v1732
        %v1740 = vpack.c.b16 %v1735, %v1734
        %v1741 = vpack.c.b16 %v1737, %v1736
        %vm1746 = vcmask 523264
        %v1748 = vsel %vm1746, %v730, 0
        %v1751 = vsel %vm1746, %v731, 0
        %v1754 = vsel %vm1746, %v732, 0
        %v1757 = vsel %vm1746, %v733, 0
        %v1760 = vsel %vm1746, %v734, 0
        %v1763 = vsel %vm1746, %v735, 0
        %v1766 = vsel %vm1746, %v736, 0
        %v1769 = vsel %vm1746, %v737, 0
        %v1772 = vsel %vm1746, %v738, 0
        %v1775 = vsel %vm1746, %v739, 0
        %v1778 = vsel %vm1746, %v740, 0
        %v1781 = vsel %vm1746, %v741, 0
        %v1784 = vsel %vm1746, %v742, 0
        %v1787 = vsel %vm1746, %v743, 0
        %v1790 = vsel %vm1746, %v744, 0
        %v1793 = vsel %vm1746, %v745, 0
        %v1796 = vsel %vm1746, %v746, 0
        %v1799 = vsel %vm1746, %v747, 0
        %v1802 = vsel %vm1746, %v748, 0
        %v1805 = vsel %vm1746, %v749, 0
        %v1808 = vsel %vm1746, %v750, 0
        %v1811 = vsel %vm1746, %v751, 0
        %v1814 = vsel %vm1746, %v752, 0
        %v1817 = vsel %vm1746, %v753, 0
        %v1820 = vsel %vm1746, %v754, 0
        %v1823 = vsel %vm1746, %v755, 0
        %v1826 = vsel %vm1746, %v756, 0
        %v1829 = vsel %vm1746, %v757, 0
        %v1832 = vsel %vm1746, %v758, 0
        %v1835 = vsel %vm1746, %v759, 0
        %v1838 = vsel %vm1746, %v760, 0
        %v1841 = vsel %vm1746, %v761, 0
        %1843 = vmatprep.subr.bf16.mxu0 0
        %1844 = vmatpush1.bf16.msra.mxu0 0
        %1845 = vmatprep.subr.bf16.mxu0 0
        %1846 = vmatpush1.bf16.msra.mxu0 0
        %1847 = vmatprep.subr.bf16.mxu0 0
        %1848 = vmatpush1.bf16.msra.mxu0 0
        %1849 = vmatprep.subr.bf16.mxu0 0
        %1850 = vmatpush1.bf16.msra.mxu0 0
        %1851 = vmatprep.subr.bf16.mxu0 0
        %1852 = vmatpush1.bf16.msra.mxu0 %v1741
        %1853 = vmatprep.subr.bf16.mxu0 0
        %1854 = vmatpush1.bf16.msra.mxu0 %v1740
        %1855 = vmatprep.subr.bf16.mxu0 0
        %1856 = vmatpush1.bf16.msra.mxu0 %v1739
        %1857 = vmatprep.subr.bf16.mxu0 0
        %1858 = vmatpush1.bf16.msra.mxu0 %v1738
        %1859 = vmatprep.subr.bf16.mxu0 0
        %1860 = vmatpush2.bf16.msra.mxu0 0
        %1861 = vmatprep.subr.bf16.mxu0 0
        %1862 = vmatpush2.bf16.msra.mxu0 0
        %1863 = vmatprep.subr.bf16.mxu0 0
        %1864 = vmatpush2.bf16.msra.mxu0 0
        %1865 = vmatprep.subr.bf16.mxu0 0
        %1866 = vmatpush2.bf16.msra.mxu0 0
        %1867 = vmatprep.subr.bf16.mxu0 0
        %1868 = vmatpush2.bf16.msra.mxu0 0
        %1869 = vmatprep.subr.bf16.mxu0 0
        %1870 = vmatpush2.bf16.msra.mxu0 0
        %1871 = vmatprep.subr.bf16.mxu0 0
        %1872 = vmatpush2.bf16.msra.mxu0 0
        %1873 = vmatprep.subr.bf16.mxu0 0
        %1874 = vmatpush2.bf16.msra.mxu0 0
        %1875 = vmatprep.mubr.bf16.mxu0 0
        %1876 = vmatmul.mubr.bf16.gmra.mxu0 %v1748
        %v1877 = vpop.f32.mrf.mxu0
        %v1878 = vadd.f32 0.0, %v1877
        %v1879 = vpop.f32.mrf.mxu0
        %v1880 = vpop.f32.mrf.mxu0
        %v1881 = vadd.f32 0.0, %v1880
        %v1882 = vpop.f32.mrf.mxu0
        %1883 = vmatprep.mubr.bf16.mxu0 0
        %1884 = vmatmul.mubr.bf16.gmra.mxu0 %v1751
        %v1885 = vpop.f32.mrf.mxu0
        %v1886 = vadd.f32 0.0, %v1885
        %v1887 = vpop.f32.mrf.mxu0
        %v1888 = vpop.f32.mrf.mxu0
        %v1889 = vadd.f32 0.0, %v1888
        %v1890 = vpop.f32.mrf.mxu0
        %1891 = vmatprep.mubr.bf16.mxu0 0
        %1892 = vmatmul.mubr.bf16.gmra.mxu0 %v1754
        %v1893 = vpop.f32.mrf.mxu0
        %v1894 = vadd.f32 0.0, %v1893
        %v1895 = vpop.f32.mrf.mxu0
        %v1896 = vpop.f32.mrf.mxu0
        %v1897 = vadd.f32 0.0, %v1896
        %v1898 = vpop.f32.mrf.mxu0
        %1899 = vmatprep.mubr.bf16.mxu0 0
        %1900 = vmatmul.mubr.bf16.gmra.mxu0 %v1757
        %v1901 = vpop.f32.mrf.mxu0
        %v1902 = vadd.f32 0.0, %v1901
        %v1903 = vpop.f32.mrf.mxu0
        %v1904 = vpop.f32.mrf.mxu0
        %v1905 = vadd.f32 0.0, %v1904
        %v1906 = vpop.f32.mrf.mxu0
        %1907 = vmatprep.mubr.bf16.mxu0 0
        %1908 = vmatmul.mubr.bf16.gmra.mxu0 %v1760
        %v1909 = vpop.f32.mrf.mxu0
        %v1910 = vadd.f32 0.0, %v1909
        %v1911 = vpop.f32.mrf.mxu0
        %v1912 = vpop.f32.mrf.mxu0
        %v1913 = vadd.f32 0.0, %v1912
        %v1914 = vpop.f32.mrf.mxu0
        %1915 = vmatprep.mubr.bf16.mxu0 0
        %1916 = vmatmul.mubr.bf16.gmra.mxu0 %v1763
        %v1917 = vpop.f32.mrf.mxu0
        %v1918 = vadd.f32 0.0, %v1917
        %v1919 = vpop.f32.mrf.mxu0
        %v1920 = vpop.f32.mrf.mxu0
        %v1921 = vadd.f32 0.0, %v1920
        %v1922 = vpop.f32.mrf.mxu0
        %1923 = vmatprep.mubr.bf16.mxu0 0
        %1924 = vmatmul.mubr.bf16.gmra.mxu0 %v1766
        %v1925 = vpop.f32.mrf.mxu0
        %v1926 = vadd.f32 0.0, %v1925
        %v1927 = vpop.f32.mrf.mxu0
        %v1928 = vpop.f32.mrf.mxu0
        %v1929 = vadd.f32 0.0, %v1928
        %v1930 = vpop.f32.mrf.mxu0
        %1931 = vmatprep.mubr.bf16.mxu0 0
        %1932 = vmatmul.mubr.bf16.gmra.mxu0 %v1769
        %v1933 = vpop.f32.mrf.mxu0
        %v1934 = vadd.f32 0.0, %v1933
        %v1935 = vpop.f32.mrf.mxu0
        %v1936 = vpop.f32.mrf.mxu0
        %v1937 = vadd.f32 0.0, %v1936
        %v1938 = vpop.f32.mrf.mxu0
        %1939 = vmatprep.mubr.bf16.mxu0 0
        %1940 = vmatmul.mubr.bf16.gmra.mxu0 %v1772
        %v1941 = vpop.f32.mrf.mxu0
        %v1942 = vadd.f32 0.0, %v1941
        %v1943 = vpop.f32.mrf.mxu0
        %v1944 = vpop.f32.mrf.mxu0
        %v1945 = vadd.f32 0.0, %v1944
        %v1946 = vpop.f32.mrf.mxu0
        %1947 = vmatprep.mubr.bf16.mxu0 0
        %1948 = vmatmul.mubr.bf16.gmra.mxu0 %v1775
        %v1949 = vpop.f32.mrf.mxu0
        %v1950 = vadd.f32 0.0, %v1949
        %v1951 = vpop.f32.mrf.mxu0
        %v1952 = vpop.f32.mrf.mxu0
        %v1953 = vadd.f32 0.0, %v1952
        %v1954 = vpop.f32.mrf.mxu0
        %1955 = vmatprep.mubr.bf16.mxu0 0
        %1956 = vmatmul.mubr.bf16.gmra.mxu0 %v1778
        %v1957 = vpop.f32.mrf.mxu0
        %v1958 = vadd.f32 0.0, %v1957
        %v1959 = vpop.f32.mrf.mxu0
        %v1960 = vpop.f32.mrf.mxu0
        %v1961 = vadd.f32 0.0, %v1960
        %v1962 = vpop.f32.mrf.mxu0
        %1963 = vmatprep.mubr.bf16.mxu0 0
        %1964 = vmatmul.mubr.bf16.gmra.mxu0 %v1781
        %v1965 = vpop.f32.mrf.mxu0
        %v1966 = vadd.f32 0.0, %v1965
        %v1967 = vpop.f32.mrf.mxu0
        %v1968 = vpop.f32.mrf.mxu0
        %v1969 = vadd.f32 0.0, %v1968
        %v1970 = vpop.f32.mrf.mxu0
        %1971 = vmatprep.mubr.bf16.mxu0 0
        %1972 = vmatmul.mubr.bf16.gmra.mxu0 %v1784
        %v1973 = vpop.f32.mrf.mxu0
        %v1974 = vadd.f32 0.0, %v1973
        %v1975 = vpop.f32.mrf.mxu0
        %v1976 = vpop.f32.mrf.mxu0
        %v1977 = vadd.f32 0.0, %v1976
        %v1978 = vpop.f32.mrf.mxu0
        %1979 = vmatprep.mubr.bf16.mxu0 0
        %1980 = vmatmul.mubr.bf16.gmra.mxu0 %v1787
        %v1981 = vpop.f32.mrf.mxu0
        %v1982 = vadd.f32 0.0, %v1981
        %v1983 = vpop.f32.mrf.mxu0
        %v1984 = vpop.f32.mrf.mxu0
        %v1985 = vadd.f32 0.0, %v1984
        %v1986 = vpop.f32.mrf.mxu0
        %1987 = vmatprep.mubr.bf16.mxu0 0
        %1988 = vmatmul.mubr.bf16.gmra.mxu0 %v1790
        %v1989 = vpop.f32.mrf.mxu0
        %v1990 = vadd.f32 0.0, %v1989
        %v1991 = vpop.f32.mrf.mxu0
        %v1992 = vpop.f32.mrf.mxu0
        %v1993 = vadd.f32 0.0, %v1992
        %v1994 = vpop.f32.mrf.mxu0
        %1995 = vmatprep.mubr.bf16.mxu0 0
        %1996 = vmatmul.mubr.bf16.gmra.mxu0 %v1793
        %v1997 = vpop.f32.mrf.mxu0
        %v1998 = vadd.f32 0.0, %v1997
        %v1999 = vpop.f32.mrf.mxu0
        %v2000 = vpop.f32.mrf.mxu0
        %v2001 = vadd.f32 0.0, %v2000
        %v2002 = vpop.f32.mrf.mxu0
        %2003 = vmatprep.mubr.bf16.mxu0 0
        %2004 = vmatmul.mubr.bf16.gmra.mxu0 %v1796
        %v2005 = vpop.f32.mrf.mxu0
        %v2006 = vadd.f32 0.0, %v2005
        %v2007 = vpop.f32.mrf.mxu0
        %v2008 = vpop.f32.mrf.mxu0
        %v2009 = vadd.f32 0.0, %v2008
        %v2010 = vpop.f32.mrf.mxu0
        %2011 = vmatprep.mubr.bf16.mxu0 0
        %2012 = vmatmul.mubr.bf16.gmra.mxu0 %v1799
        %v2013 = vpop.f32.mrf.mxu0
        %v2014 = vadd.f32 0.0, %v2013
        %v2015 = vpop.f32.mrf.mxu0
        %v2016 = vpop.f32.mrf.mxu0
        %v2017 = vadd.f32 0.0, %v2016
        %v2018 = vpop.f32.mrf.mxu0
        %2019 = vmatprep.mubr.bf16.mxu0 0
        %2020 = vmatmul.mubr.bf16.gmra.mxu0 %v1802
        %v2021 = vpop.f32.mrf.mxu0
        %v2022 = vadd.f32 0.0, %v2021
        %v2023 = vpop.f32.mrf.mxu0
        %v2024 = vpop.f32.mrf.mxu0
        %v2025 = vadd.f32 0.0, %v2024
        %v2026 = vpop.f32.mrf.mxu0
        %2027 = vmatprep.mubr.bf16.mxu0 0
        %2028 = vmatmul.mubr.bf16.gmra.mxu0 %v1805
        %v2029 = vpop.f32.mrf.mxu0
        %v2030 = vadd.f32 0.0, %v2029
        %v2031 = vpop.f32.mrf.mxu0
        %v2032 = vpop.f32.mrf.mxu0
        %v2033 = vadd.f32 0.0, %v2032
        %v2034 = vpop.f32.mrf.mxu0
        %2035 = vmatprep.mubr.bf16.mxu0 0
        %2036 = vmatmul.mubr.bf16.gmra.mxu0 %v1808
        %v2037 = vpop.f32.mrf.mxu0
        %v2038 = vadd.f32 0.0, %v2037
        %v2039 = vpop.f32.mrf.mxu0
        %v2040 = vpop.f32.mrf.mxu0
        %v2041 = vadd.f32 0.0, %v2040
        %v2042 = vpop.f32.mrf.mxu0
        %2043 = vmatprep.mubr.bf16.mxu0 0
        %2044 = vmatmul.mubr.bf16.gmra.mxu0 %v1811
        %v2045 = vpop.f32.mrf.mxu0
        %v2046 = vadd.f32 0.0, %v2045
        %v2047 = vpop.f32.mrf.mxu0
        %v2048 = vpop.f32.mrf.mxu0
        %v2049 = vadd.f32 0.0, %v2048
        %v2050 = vpop.f32.mrf.mxu0
        %2051 = vmatprep.mubr.bf16.mxu0 0
        %2052 = vmatmul.mubr.bf16.gmra.mxu0 %v1814
        %v2053 = vpop.f32.mrf.mxu0
        %v2054 = vadd.f32 0.0, %v2053
        %v2055 = vpop.f32.mrf.mxu0
        %v2056 = vpop.f32.mrf.mxu0
        %v2057 = vadd.f32 0.0, %v2056
        %v2058 = vpop.f32.mrf.mxu0
        %2059 = vmatprep.mubr.bf16.mxu0 0
        %2060 = vmatmul.mubr.bf16.gmra.mxu0 %v1817
        %v2061 = vpop.f32.mrf.mxu0
        %v2062 = vadd.f32 0.0, %v2061
        %v2063 = vpop.f32.mrf.mxu0
        %v2064 = vpop.f32.mrf.mxu0
        %v2065 = vadd.f32 0.0, %v2064
        %v2066 = vpop.f32.mrf.mxu0
        %2067 = vmatprep.mubr.bf16.mxu0 0
        %2068 = vmatmul.mubr.bf16.gmra.mxu0 %v1820
        %v2069 = vpop.f32.mrf.mxu0
        %v2070 = vadd.f32 0.0, %v2069
        %v2071 = vpop.f32.mrf.mxu0
        %v2072 = vpop.f32.mrf.mxu0
        %v2073 = vadd.f32 0.0, %v2072
        %v2074 = vpop.f32.mrf.mxu0
        %2075 = vmatprep.mubr.bf16.mxu0 0
        %2076 = vmatmul.mubr.bf16.gmra.mxu0 %v1823
        %v2077 = vpop.f32.mrf.mxu0
        %v2078 = vadd.f32 0.0, %v2077
        %v2079 = vpop.f32.mrf.mxu0
        %v2080 = vpop.f32.mrf.mxu0
        %v2081 = vadd.f32 0.0, %v2080
        %v2082 = vpop.f32.mrf.mxu0
        %2083 = vmatprep.mubr.bf16.mxu0 0
        %2084 = vmatmul.mubr.bf16.gmra.mxu0 %v1826
        %v2085 = vpop.f32.mrf.mxu0
        %v2086 = vadd.f32 0.0, %v2085
        %v2087 = vpop.f32.mrf.mxu0
        %v2088 = vpop.f32.mrf.mxu0
        %v2089 = vadd.f32 0.0, %v2088
        %v2090 = vpop.f32.mrf.mxu0
        %2091 = vmatprep.mubr.bf16.mxu0 0
        %2092 = vmatmul.mubr.bf16.gmra.mxu0 %v1829
        %v2093 = vpop.f32.mrf.mxu0
        %v2094 = vadd.f32 0.0, %v2093
        %v2095 = vpop.f32.mrf.mxu0
        %v2096 = vpop.f32.mrf.mxu0
        %v2097 = vadd.f32 0.0, %v2096
        %v2098 = vpop.f32.mrf.mxu0
        %2099 = vmatprep.mubr.bf16.mxu0 0
        %2100 = vmatmul.mubr.bf16.gmra.mxu0 %v1832
        %v2101 = vpop.f32.mrf.mxu0
        %v2102 = vadd.f32 0.0, %v2101
        %v2103 = vpop.f32.mrf.mxu0
        %v2104 = vpop.f32.mrf.mxu0
        %v2105 = vadd.f32 0.0, %v2104
        %v2106 = vpop.f32.mrf.mxu0
        %2107 = vmatprep.mubr.bf16.mxu0 0
        %2108 = vmatmul.mubr.bf16.gmra.mxu0 %v1835
        %v2109 = vpop.f32.mrf.mxu0
        %v2110 = vadd.f32 0.0, %v2109
        %v2111 = vpop.f32.mrf.mxu0
        %v2112 = vpop.f32.mrf.mxu0
        %v2113 = vadd.f32 0.0, %v2112
        %v2114 = vpop.f32.mrf.mxu0
        %2115 = vmatprep.mubr.bf16.mxu0 0
        %2116 = vmatmul.mubr.bf16.gmra.mxu0 %v1838
        %v2117 = vpop.f32.mrf.mxu0
        %v2118 = vadd.f32 0.0, %v2117
        %v2119 = vpop.f32.mrf.mxu0
        %v2120 = vpop.f32.mrf.mxu0
        %v2121 = vadd.f32 0.0, %v2120
        %v2122 = vpop.f32.mrf.mxu0
        %2123 = vmatprep.mubr.bf16.mxu0 0
        %2124 = vmatmul.mubr.bf16.gmra.mxu0 %v1841
        %v2125 = vpop.f32.mrf.mxu0
        %v2126 = vadd.f32 0.0, %v2125
        %v2127 = vpop.f32.mrf.mxu0
        %v2128 = vpop.f32.mrf.mxu0
        %v2129 = vadd.f32 0.0, %v2128
        %v2130 = vpop.f32.mrf.mxu0
        %2131 = vdwg.mxu0
        %v2134 = vunpack.c.l.b16 %v278
        %v2135 = vunpack.c.l.b16 %v279
        %v2136 = vpack.c.b16 %v2135, %v2134
        %vm2138 = vcmask 130048
        %v2140 = vsel %vm2138, %v1690, 0
        %v2143 = vsel %vm2138, %v1691, 0
        %v2146 = vsel %vm2138, %v1692, 0
        %v2149 = vsel %vm2138, %v1693, 0
        %v2152 = vsel %vm2138, %v1694, 0
        %v2155 = vsel %vm2138, %v1695, 0
        %v2158 = vsel %vm2138, %v1696, 0
        %v2161 = vsel %vm2138, %v1697, 0
        %v2164 = vsel %vm2138, %v1698, 0
        %v2167 = vsel %vm2138, %v1699, 0
        %v2170 = vsel %vm2138, %v1700, 0
        %v2173 = vsel %vm2138, %v1701, 0
        %v2176 = vsel %vm2138, %v1702, 0
        %v2179 = vsel %vm2138, %v1703, 0
        %v2182 = vsel %vm2138, %v1704, 0
        %v2185 = vsel %vm2138, %v1705, 0
        %v2188 = vsel %vm2138, %v1706, 0
        %v2191 = vsel %vm2138, %v1707, 0
        %v2194 = vsel %vm2138, %v1708, 0
        %v2197 = vsel %vm2138, %v1709, 0
        %v2200 = vsel %vm2138, %v1710, 0
        %v2203 = vsel %vm2138, %v1711, 0
        %v2206 = vsel %vm2138, %v1712, 0
        %v2209 = vsel %vm2138, %v1713, 0
        %v2212 = vsel %vm2138, %v1714, 0
        %v2215 = vsel %vm2138, %v1715, 0
        %v2218 = vsel %vm2138, %v1716, 0
        %v2221 = vsel %vm2138, %v1717, 0
        %v2224 = vsel %vm2138, %v1718, 0
        %v2227 = vsel %vm2138, %v1719, 0
        %v2230 = vsel %vm2138, %v1720, 0
        %v2233 = vsel %vm2138, %v1721, 0
        %2235 = vmatprep.subr.bf16.mxu0 0
        %2236 = vmatpush1.bf16.msra.mxu0 0
        %2237 = vmatprep.subr.bf16.mxu0 0
        %2238 = vmatpush1.bf16.msra.mxu0 0
        %2239 = vmatprep.subr.bf16.mxu0 0
        %2240 = vmatpush1.bf16.msra.mxu0 0
        %2241 = vmatprep.subr.bf16.mxu0 0
        %2242 = vmatpush1.bf16.msra.mxu0 0
        %2243 = vmatprep.subr.bf16.mxu0 0
        %2244 = vmatpush1.bf16.msra.mxu0 0
        %2245 = vmatprep.subr.bf16.mxu0 0
        %2246 = vmatpush1.bf16.msra.mxu0 0
        %2247 = vmatprep.subr.bf16.mxu0 0
        %2248 = vmatpush1.bf16.msra.mxu0 0
        %2249 = vmatprep.subr.bf16.mxu0 0
        %2250 = vmatpush1.bf16.msra.mxu0 %v2136
        %2251 = vmatprep.subr.bf16.mxu0 0
        %2252 = vmatpush2.bf16.msra.mxu0 0
        %2253 = vmatprep.subr.bf16.mxu0 0
        %2254 = vmatpush2.bf16.msra.mxu0 0
        %2255 = vmatprep.subr.bf16.mxu0 0
        %2256 = vmatpush2.bf16.msra.mxu0 0
        %2257 = vmatprep.subr.bf16.mxu0 0
        %2258 = vmatpush2.bf16.msra.mxu0 0
        %2259 = vmatprep.subr.bf16.mxu0 0
        %2260 = vmatpush2.bf16.msra.mxu0 0
        %2261 = vmatprep.subr.bf16.mxu0 0
        %2262 = vmatpush2.bf16.msra.mxu0 0
        %2263 = vmatprep.subr.bf16.mxu0 0
        %2264 = vmatpush2.bf16.msra.mxu0 0
        %2265 = vmatprep.subr.bf16.mxu0 0
        %2266 = vmatpush2.bf16.msra.mxu0 0
        %2267 = vmatprep.mubr.bf16.mxu0 0
        %2268 = vmatmul.mubr.bf16.gmra.mxu0 %v2140
        %v2269 = vpop.f32.mrf.mxu0
        %v2270 = vadd.f32 0.0, %v2269
        %v2271 = vpop.f32.mrf.mxu0
        %v2272 = vpop.f32.mrf.mxu0
        %v2273 = vadd.f32 0.0, %v2272
        %v2274 = vpop.f32.mrf.mxu0
        %2275 = vmatprep.mubr.bf16.mxu0 0
        %2276 = vmatmul.mubr.bf16.gmra.mxu0 %v2143
        %v2277 = vpop.f32.mrf.mxu0
        %v2278 = vadd.f32 0.0, %v2277
        %v2279 = vpop.f32.mrf.mxu0
        %v2280 = vpop.f32.mrf.mxu0
        %v2281 = vadd.f32 0.0, %v2280
        %v2282 = vpop.f32.mrf.mxu0
        %2283 = vmatprep.mubr.bf16.mxu0 0
        %2284 = vmatmul.mubr.bf16.gmra.mxu0 %v2146
        %v2285 = vpop.f32.mrf.mxu0
        %v2286 = vadd.f32 0.0, %v2285
        %v2287 = vpop.f32.mrf.mxu0
        %v2288 = vpop.f32.mrf.mxu0
        %v2289 = vadd.f32 0.0, %v2288
        %v2290 = vpop.f32.mrf.mxu0
        %2291 = vmatprep.mubr.bf16.mxu0 0
        %2292 = vmatmul.mubr.bf16.gmra.mxu0 %v2149
        %v2293 = vpop.f32.mrf.mxu0
        %v2294 = vadd.f32 0.0, %v2293
        %v2295 = vpop.f32.mrf.mxu0
        %v2296 = vpop.f32.mrf.mxu0
        %v2297 = vadd.f32 0.0, %v2296
        %v2298 = vpop.f32.mrf.mxu0
        %2299 = vmatprep.mubr.bf16.mxu0 0
        %2300 = vmatmul.mubr.bf16.gmra.mxu0 %v2152
        %v2301 = vpop.f32.mrf.mxu0
        %v2302 = vadd.f32 0.0, %v2301
        %v2303 = vpop.f32.mrf.mxu0
        %v2304 = vpop.f32.mrf.mxu0
        %v2305 = vadd.f32 0.0, %v2304
        %v2306 = vpop.f32.mrf.mxu0
        %2307 = vmatprep.mubr.bf16.mxu0 0
        %2308 = vmatmul.mubr.bf16.gmra.mxu0 %v2155
        %v2309 = vpop.f32.mrf.mxu0
        %v2310 = vadd.f32 0.0, %v2309
        %v2311 = vpop.f32.mrf.mxu0
        %v2312 = vpop.f32.mrf.mxu0
        %v2313 = vadd.f32 0.0, %v2312
        %v2314 = vpop.f32.mrf.mxu0
        %2315 = vmatprep.mubr.bf16.mxu0 0
        %2316 = vmatmul.mubr.bf16.gmra.mxu0 %v2158
        %v2317 = vpop.f32.mrf.mxu0
        %v2318 = vadd.f32 0.0, %v2317
        %v2319 = vpop.f32.mrf.mxu0
        %v2320 = vpop.f32.mrf.mxu0
        %v2321 = vadd.f32 0.0, %v2320
        %v2322 = vpop.f32.mrf.mxu0
        %2323 = vmatprep.mubr.bf16.mxu0 0
        %2324 = vmatmul.mubr.bf16.gmra.mxu0 %v2161
        %v2325 = vpop.f32.mrf.mxu0
        %v2326 = vadd.f32 0.0, %v2325
        %v2327 = vpop.f32.mrf.mxu0
        %v2328 = vpop.f32.mrf.mxu0
        %v2329 = vadd.f32 0.0, %v2328
        %v2330 = vpop.f32.mrf.mxu0
        %2331 = vmatprep.mubr.bf16.mxu0 0
        %2332 = vmatmul.mubr.bf16.gmra.mxu0 %v2164
        %v2333 = vpop.f32.mrf.mxu0
        %v2334 = vadd.f32 0.0, %v2333
        %v2335 = vpop.f32.mrf.mxu0
        %v2336 = vpop.f32.mrf.mxu0
        %v2337 = vadd.f32 0.0, %v2336
        %v2338 = vpop.f32.mrf.mxu0
        %2339 = vmatprep.mubr.bf16.mxu0 0
        %2340 = vmatmul.mubr.bf16.gmra.mxu0 %v2167
        %v2341 = vpop.f32.mrf.mxu0
        %v2342 = vadd.f32 0.0, %v2341
        %v2343 = vpop.f32.mrf.mxu0
        %v2344 = vpop.f32.mrf.mxu0
        %v2345 = vadd.f32 0.0, %v2344
        %v2346 = vpop.f32.mrf.mxu0
        %2347 = vmatprep.mubr.bf16.mxu0 0
        %2348 = vmatmul.mubr.bf16.gmra.mxu0 %v2170
        %v2349 = vpop.f32.mrf.mxu0
        %v2350 = vadd.f32 0.0, %v2349
        %v2351 = vpop.f32.mrf.mxu0
        %v2352 = vpop.f32.mrf.mxu0
        %v2353 = vadd.f32 0.0, %v2352
        %v2354 = vpop.f32.mrf.mxu0
        %2355 = vmatprep.mubr.bf16.mxu0 0
        %2356 = vmatmul.mubr.bf16.gmra.mxu0 %v2173
        %v2357 = vpop.f32.mrf.mxu0
        %v2358 = vadd.f32 0.0, %v2357
        %v2359 = vpop.f32.mrf.mxu0
        %v2360 = vpop.f32.mrf.mxu0
        %v2361 = vadd.f32 0.0, %v2360
        %v2362 = vpop.f32.mrf.mxu0
        %2363 = vmatprep.mubr.bf16.mxu0 0
        %2364 = vmatmul.mubr.bf16.gmra.mxu0 %v2176
        %v2365 = vpop.f32.mrf.mxu0
        %v2366 = vadd.f32 0.0, %v2365
        %v2367 = vpop.f32.mrf.mxu0
        %v2368 = vpop.f32.mrf.mxu0
        %v2369 = vadd.f32 0.0, %v2368
        %v2370 = vpop.f32.mrf.mxu0
        %2371 = vmatprep.mubr.bf16.mxu0 0
        %2372 = vmatmul.mubr.bf16.gmra.mxu0 %v2179
        %v2373 = vpop.f32.mrf.mxu0
        %v2374 = vadd.f32 0.0, %v2373
        %v2375 = vpop.f32.mrf.mxu0
        %v2376 = vpop.f32.mrf.mxu0
        %v2377 = vadd.f32 0.0, %v2376
        %v2378 = vpop.f32.mrf.mxu0
        %2379 = vmatprep.mubr.bf16.mxu0 0
        %2380 = vmatmul.mubr.bf16.gmra.mxu0 %v2182
        %v2381 = vpop.f32.mrf.mxu0
        %v2382 = vadd.f32 0.0, %v2381
        %v2383 = vpop.f32.mrf.mxu0
        %v2384 = vpop.f32.mrf.mxu0
        %v2385 = vadd.f32 0.0, %v2384
        %v2386 = vpop.f32.mrf.mxu0
        %2387 = vmatprep.mubr.bf16.mxu0 0
        %2388 = vmatmul.mubr.bf16.gmra.mxu0 %v2185
        %v2389 = vpop.f32.mrf.mxu0
        %v2390 = vadd.f32 0.0, %v2389
        %v2391 = vpop.f32.mrf.mxu0
        %v2392 = vpop.f32.mrf.mxu0
        %v2393 = vadd.f32 0.0, %v2392
        %v2394 = vpop.f32.mrf.mxu0
        %2395 = vmatprep.mubr.bf16.mxu0 0
        %2396 = vmatmul.mubr.bf16.gmra.mxu0 %v2188
        %v2397 = vpop.f32.mrf.mxu0
        %v2398 = vadd.f32 0.0, %v2397
        %v2399 = vpop.f32.mrf.mxu0
        %v2400 = vpop.f32.mrf.mxu0
        %v2401 = vadd.f32 0.0, %v2400
        %v2402 = vpop.f32.mrf.mxu0
        %2403 = vmatprep.mubr.bf16.mxu0 0
        %2404 = vmatmul.mubr.bf16.gmra.mxu0 %v2191
        %v2405 = vpop.f32.mrf.mxu0
        %v2406 = vadd.f32 0.0, %v2405
        %v2407 = vpop.f32.mrf.mxu0
        %v2408 = vpop.f32.mrf.mxu0
        %v2409 = vadd.f32 0.0, %v2408
        %v2410 = vpop.f32.mrf.mxu0
        %2411 = vmatprep.mubr.bf16.mxu0 0
        %2412 = vmatmul.mubr.bf16.gmra.mxu0 %v2194
        %v2413 = vpop.f32.mrf.mxu0
        %v2414 = vadd.f32 0.0, %v2413
        %v2415 = vpop.f32.mrf.mxu0
        %v2416 = vpop.f32.mrf.mxu0
        %v2417 = vadd.f32 0.0, %v2416
        %v2418 = vpop.f32.mrf.mxu0
        %2419 = vmatprep.mubr.bf16.mxu0 0
        %2420 = vmatmul.mubr.bf16.gmra.mxu0 %v2197
        %v2421 = vpop.f32.mrf.mxu0
        %v2422 = vadd.f32 0.0, %v2421
        %v2423 = vpop.f32.mrf.mxu0
        %v2424 = vpop.f32.mrf.mxu0
        %v2425 = vadd.f32 0.0, %v2424
        %v2426 = vpop.f32.mrf.mxu0
        %2427 = vmatprep.mubr.bf16.mxu0 0
        %2428 = vmatmul.mubr.bf16.gmra.mxu0 %v2200
        %v2429 = vpop.f32.mrf.mxu0
        %v2430 = vadd.f32 0.0, %v2429
        %v2431 = vpop.f32.mrf.mxu0
        %v2432 = vpop.f32.mrf.mxu0
        %v2433 = vadd.f32 0.0, %v2432
        %v2434 = vpop.f32.mrf.mxu0
        %2435 = vmatprep.mubr.bf16.mxu0 0
        %2436 = vmatmul.mubr.bf16.gmra.mxu0 %v2203
        %v2437 = vpop.f32.mrf.mxu0
        %v2438 = vadd.f32 0.0, %v2437
        %v2439 = vpop.f32.mrf.mxu0
        %v2440 = vpop.f32.mrf.mxu0
        %v2441 = vadd.f32 0.0, %v2440
        %v2442 = vpop.f32.mrf.mxu0
        %2443 = vmatprep.mubr.bf16.mxu0 0
        %2444 = vmatmul.mubr.bf16.gmra.mxu0 %v2206
        %v2445 = vpop.f32.mrf.mxu0
        %v2446 = vadd.f32 0.0, %v2445
        %v2447 = vpop.f32.mrf.mxu0
        %v2448 = vpop.f32.mrf.mxu0
        %v2449 = vadd.f32 0.0, %v2448
        %v2450 = vpop.f32.mrf.mxu0
        %2451 = vmatprep.mubr.bf16.mxu0 0
        %2452 = vmatmul.mubr.bf16.gmra.mxu0 %v2209
        %v2453 = vpop.f32.mrf.mxu0
        %v2454 = vadd.f32 0.0, %v2453
        %v2455 = vpop.f32.mrf.mxu0
        %v2456 = vpop.f32.mrf.mxu0
        %v2457 = vadd.f32 0.0, %v2456
        %v2458 = vpop.f32.mrf.mxu0
        %2459 = vmatprep.mubr.bf16.mxu0 0
        %2460 = vmatmul.mubr.bf16.gmra.mxu0 %v2212
        %v2461 = vpop.f32.mrf.mxu0
        %v2462 = vadd.f32 0.0, %v2461
        %v2463 = vpop.f32.mrf.mxu0
        %v2464 = vpop.f32.mrf.mxu0
        %v2465 = vadd.f32 0.0, %v2464
        %v2466 = vpop.f32.mrf.mxu0
        %2467 = vmatprep.mubr.bf16.mxu0 0
        %2468 = vmatmul.mubr.bf16.gmra.mxu0 %v2215
        %v2469 = vpop.f32.mrf.mxu0
        %v2470 = vadd.f32 0.0, %v2469
        %v2471 = vpop.f32.mrf.mxu0
        %v2472 = vpop.f32.mrf.mxu0
        %v2473 = vadd.f32 0.0, %v2472
        %v2474 = vpop.f32.mrf.mxu0
        %2475 = vmatprep.mubr.bf16.mxu0 0
        %2476 = vmatmul.mubr.bf16.gmra.mxu0 %v2218
        %v2477 = vpop.f32.mrf.mxu0
        %v2478 = vadd.f32 0.0, %v2477
        %v2479 = vpop.f32.mrf.mxu0
        %v2480 = vpop.f32.mrf.mxu0
        %v2481 = vadd.f32 0.0, %v2480
        %v2482 = vpop.f32.mrf.mxu0
        %2483 = vmatprep.mubr.bf16.mxu0 0
        %2484 = vmatmul.mubr.bf16.gmra.mxu0 %v2221
        %v2485 = vpop.f32.mrf.mxu0
        %v2486 = vadd.f32 0.0, %v2485
        %v2487 = vpop.f32.mrf.mxu0
        %v2488 = vpop.f32.mrf.mxu0
        %v2489 = vadd.f32 0.0, %v2488
        %v2490 = vpop.f32.mrf.mxu0
        %2491 = vmatprep.mubr.bf16.mxu0 0
        %2492 = vmatmul.mubr.bf16.gmra.mxu0 %v2224
        %v2493 = vpop.f32.mrf.mxu0
        %v2494 = vadd.f32 0.0, %v2493
        %v2495 = vpop.f32.mrf.mxu0
        %v2496 = vpop.f32.mrf.mxu0
        %v2497 = vadd.f32 0.0, %v2496
        %v2498 = vpop.f32.mrf.mxu0
        %2499 = vmatprep.mubr.bf16.mxu0 0
        %2500 = vmatmul.mubr.bf16.gmra.mxu0 %v2227
        %v2501 = vpop.f32.mrf.mxu0
        %v2502 = vadd.f32 0.0, %v2501
        %v2503 = vpop.f32.mrf.mxu0
        %v2504 = vpop.f32.mrf.mxu0
        %v2505 = vadd.f32 0.0, %v2504
        %v2506 = vpop.f32.mrf.mxu0
        %2507 = vmatprep.mubr.bf16.mxu0 0
        %2508 = vmatmul.mubr.bf16.gmra.mxu0 %v2230
        %v2509 = vpop.f32.mrf.mxu0
        %v2510 = vadd.f32 0.0, %v2509
        %v2511 = vpop.f32.mrf.mxu0
        %v2512 = vpop.f32.mrf.mxu0
        %v2513 = vadd.f32 0.0, %v2512
        %v2514 = vpop.f32.mrf.mxu0
        %2515 = vmatprep.mubr.bf16.mxu0 0
        %2516 = vmatmul.mubr.bf16.gmra.mxu0 %v2233
        %v2517 = vpop.f32.mrf.mxu0
        %v2518 = vadd.f32 0.0, %v2517
        %v2519 = vpop.f32.mrf.mxu0
        %v2520 = vpop.f32.mrf.mxu0
        %v2521 = vadd.f32 0.0, %v2520
        %v2522 = vpop.f32.mrf.mxu0
        %2523 = vdwg.mxu0
        %v2525 = vsel %vm1746, %v1210, 0
        %v2528 = vsel %vm1746, %v1211, 0
        %v2531 = vsel %vm1746, %v1212, 0
        %v2534 = vsel %vm1746, %v1213, 0
        %v2537 = vsel %vm1746, %v1214, 0
        %v2540 = vsel %vm1746, %v1215, 0
        %v2543 = vsel %vm1746, %v1216, 0
        %v2546 = vsel %vm1746, %v1217, 0
        %v2549 = vsel %vm1746, %v1218, 0
        %v2552 = vsel %vm1746, %v1219, 0
        %v2555 = vsel %vm1746, %v1220, 0
        %v2558 = vsel %vm1746, %v1221, 0
        %v2561 = vsel %vm1746, %v1222, 0
        %v2564 = vsel %vm1746, %v1223, 0
        %v2567 = vsel %vm1746, %v1224, 0
        %v2570 = vsel %vm1746, %v1225, 0
        %v2573 = vsel %vm1746, %v1226, 0
        %v2576 = vsel %vm1746, %v1227, 0
        %v2579 = vsel %vm1746, %v1228, 0
        %v2582 = vsel %vm1746, %v1229, 0
        %v2585 = vsel %vm1746, %v1230, 0
        %v2588 = vsel %vm1746, %v1231, 0
        %v2591 = vsel %vm1746, %v1232, 0
        %v2594 = vsel %vm1746, %v1233, 0
        %v2597 = vsel %vm1746, %v1234, 0
        %v2600 = vsel %vm1746, %v1235, 0
        %v2603 = vsel %vm1746, %v1236, 0
        %v2606 = vsel %vm1746, %v1237, 0
        %v2609 = vsel %vm1746, %v1238, 0
        %v2612 = vsel %vm1746, %v1239, 0
        %v2615 = vsel %vm1746, %v1240, 0
        %v2618 = vsel %vm1746, %v1241, 0
        %2620 = vmatprep.subr.bf16.mxu0 0
        %2621 = vmatpush1.bf16.msra.mxu0 0
        %2622 = vmatprep.subr.bf16.mxu0 0
        %2623 = vmatpush1.bf16.msra.mxu0 0
        %2624 = vmatprep.subr.bf16.mxu0 0
        %2625 = vmatpush1.bf16.msra.mxu0 0
        %2626 = vmatprep.subr.bf16.mxu0 0
        %2627 = vmatpush1.bf16.msra.mxu0 0
        %2628 = vmatprep.subr.bf16.mxu0 0
        %2629 = vmatpush1.bf16.msra.mxu0 %v1741
        %2630 = vmatprep.subr.bf16.mxu0 0
        %2631 = vmatpush1.bf16.msra.mxu0 %v1740
        %2632 = vmatprep.subr.bf16.mxu0 0
        %2633 = vmatpush1.bf16.msra.mxu0 %v1739
        %2634 = vmatprep.subr.bf16.mxu0 0
        %2635 = vmatpush1.bf16.msra.mxu0 %v1738
        %2636 = vmatprep.subr.bf16.mxu0 0
        %2637 = vmatpush2.bf16.msra.mxu0 0
        %2638 = vmatprep.subr.bf16.mxu0 0
        %2639 = vmatpush2.bf16.msra.mxu0 0
        %2640 = vmatprep.subr.bf16.mxu0 0
        %2641 = vmatpush2.bf16.msra.mxu0 0
        %2642 = vmatprep.subr.bf16.mxu0 0
        %2643 = vmatpush2.bf16.msra.mxu0 0
        %2644 = vmatprep.subr.bf16.mxu0 0
        %2645 = vmatpush2.bf16.msra.mxu0 0
        %2646 = vmatprep.subr.bf16.mxu0 0
        %2647 = vmatpush2.bf16.msra.mxu0 0
        %2648 = vmatprep.subr.bf16.mxu0 0
        %2649 = vmatpush2.bf16.msra.mxu0 0
        %2650 = vmatprep.subr.bf16.mxu0 0
        %2651 = vmatpush2.bf16.msra.mxu0 0
        %2652 = vmatprep.mubr.bf16.mxu0 0
        %2653 = vmatmul.mubr.bf16.gmra.mxu0 %v2525
        %v2654 = vpop.f32.mrf.mxu0
        %v2655 = vadd.f32 0.0, %v2654
        %v2656 = vpop.f32.mrf.mxu0
        %v2657 = vpop.f32.mrf.mxu0
        %v2658 = vadd.f32 0.0, %v2657
        %v2659 = vpop.f32.mrf.mxu0
        %2660 = vmatprep.mubr.bf16.mxu0 0
        %2661 = vmatmul.mubr.bf16.gmra.mxu0 %v2528
        %v2662 = vpop.f32.mrf.mxu0
        %v2663 = vadd.f32 0.0, %v2662
        %v2664 = vpop.f32.mrf.mxu0
        %v2665 = vpop.f32.mrf.mxu0
        %v2666 = vadd.f32 0.0, %v2665
        %v2667 = vpop.f32.mrf.mxu0
        %2668 = vmatprep.mubr.bf16.mxu0 0
        %2669 = vmatmul.mubr.bf16.gmra.mxu0 %v2531
        %v2670 = vpop.f32.mrf.mxu0
        %v2671 = vadd.f32 0.0, %v2670
        %v2672 = vpop.f32.mrf.mxu0
        %v2673 = vpop.f32.mrf.mxu0
        %v2674 = vadd.f32 0.0, %v2673
        %v2675 = vpop.f32.mrf.mxu0
        %2676 = vmatprep.mubr.bf16.mxu0 0
        %2677 = vmatmul.mubr.bf16.gmra.mxu0 %v2534
        %v2678 = vpop.f32.mrf.mxu0
        %v2679 = vadd.f32 0.0, %v2678
        %v2680 = vpop.f32.mrf.mxu0
        %v2681 = vpop.f32.mrf.mxu0
        %v2682 = vadd.f32 0.0, %v2681
        %v2683 = vpop.f32.mrf.mxu0
        %2684 = vmatprep.mubr.bf16.mxu0 0
        %2685 = vmatmul.mubr.bf16.gmra.mxu0 %v2537
        %v2686 = vpop.f32.mrf.mxu0
        %v2687 = vadd.f32 0.0, %v2686
        %v2688 = vpop.f32.mrf.mxu0
        %v2689 = vpop.f32.mrf.mxu0
        %v2690 = vadd.f32 0.0, %v2689
        %v2691 = vpop.f32.mrf.mxu0
        %2692 = vmatprep.mubr.bf16.mxu0 0
        %2693 = vmatmul.mubr.bf16.gmra.mxu0 %v2540
        %v2694 = vpop.f32.mrf.mxu0
        %v2695 = vadd.f32 0.0, %v2694
        %v2696 = vpop.f32.mrf.mxu0
        %v2697 = vpop.f32.mrf.mxu0
        %v2698 = vadd.f32 0.0, %v2697
        %v2699 = vpop.f32.mrf.mxu0
        %2700 = vmatprep.mubr.bf16.mxu0 0
        %2701 = vmatmul.mubr.bf16.gmra.mxu0 %v2543
        %v2702 = vpop.f32.mrf.mxu0
        %v2703 = vadd.f32 0.0, %v2702
        %v2704 = vpop.f32.mrf.mxu0
        %v2705 = vpop.f32.mrf.mxu0
        %v2706 = vadd.f32 0.0, %v2705
        %v2707 = vpop.f32.mrf.mxu0
        %2708 = vmatprep.mubr.bf16.mxu0 0
        %2709 = vmatmul.mubr.bf16.gmra.mxu0 %v2546
        %v2710 = vpop.f32.mrf.mxu0
        %v2711 = vadd.f32 0.0, %v2710
        %v2712 = vpop.f32.mrf.mxu0
        %v2713 = vpop.f32.mrf.mxu0
        %v2714 = vadd.f32 0.0, %v2713
        %v2715 = vpop.f32.mrf.mxu0
        %2716 = vmatprep.mubr.bf16.mxu0 0
        %2717 = vmatmul.mubr.bf16.gmra.mxu0 %v2549
        %v2718 = vpop.f32.mrf.mxu0
        %v2719 = vadd.f32 0.0, %v2718
        %v2720 = vpop.f32.mrf.mxu0
        %v2721 = vpop.f32.mrf.mxu0
        %v2722 = vadd.f32 0.0, %v2721
        %v2723 = vpop.f32.mrf.mxu0
        %2724 = vmatprep.mubr.bf16.mxu0 0
        %2725 = vmatmul.mubr.bf16.gmra.mxu0 %v2552
        %v2726 = vpop.f32.mrf.mxu0
        %v2727 = vadd.f32 0.0, %v2726
        %v2728 = vpop.f32.mrf.mxu0
        %v2729 = vpop.f32.mrf.mxu0
        %v2730 = vadd.f32 0.0, %v2729
        %v2731 = vpop.f32.mrf.mxu0
        %2732 = vmatprep.mubr.bf16.mxu0 0
        %2733 = vmatmul.mubr.bf16.gmra.mxu0 %v2555
        %v2734 = vpop.f32.mrf.mxu0
        %v2735 = vadd.f32 0.0, %v2734
        %v2736 = vpop.f32.mrf.mxu0
        %v2737 = vpop.f32.mrf.mxu0
        %v2738 = vadd.f32 0.0, %v2737
        %v2739 = vpop.f32.mrf.mxu0
        %2740 = vmatprep.mubr.bf16.mxu0 0
        %2741 = vmatmul.mubr.bf16.gmra.mxu0 %v2558
        %v2742 = vpop.f32.mrf.mxu0
        %v2743 = vadd.f32 0.0, %v2742
        %v2744 = vpop.f32.mrf.mxu0
        %v2745 = vpop.f32.mrf.mxu0
        %v2746 = vadd.f32 0.0, %v2745
        %v2747 = vpop.f32.mrf.mxu0
        %2748 = vmatprep.mubr.bf16.mxu0 0
        %2749 = vmatmul.mubr.bf16.gmra.mxu0 %v2561
        %v2750 = vpop.f32.mrf.mxu0
        %v2751 = vadd.f32 0.0, %v2750
        %v2752 = vpop.f32.mrf.mxu0
        %v2753 = vpop.f32.mrf.mxu0
        %v2754 = vadd.f32 0.0, %v2753
        %v2755 = vpop.f32.mrf.mxu0
        %2756 = vmatprep.mubr.bf16.mxu0 0
        %2757 = vmatmul.mubr.bf16.gmra.mxu0 %v2564
        %v2758 = vpop.f32.mrf.mxu0
        %v2759 = vadd.f32 0.0, %v2758
        %v2760 = vpop.f32.mrf.mxu0
        %v2761 = vpop.f32.mrf.mxu0
        %v2762 = vadd.f32 0.0, %v2761
        %v2763 = vpop.f32.mrf.mxu0
        %2764 = vmatprep.mubr.bf16.mxu0 0
        %2765 = vmatmul.mubr.bf16.gmra.mxu0 %v2567
        %v2766 = vpop.f32.mrf.mxu0
        %v2767 = vadd.f32 0.0, %v2766
        %v2768 = vpop.f32.mrf.mxu0
        %v2769 = vpop.f32.mrf.mxu0
        %v2770 = vadd.f32 0.0, %v2769
        %v2771 = vpop.f32.mrf.mxu0
        %2772 = vmatprep.mubr.bf16.mxu0 0
        %2773 = vmatmul.mubr.bf16.gmra.mxu0 %v2570
        %v2774 = vpop.f32.mrf.mxu0
        %v2775 = vadd.f32 0.0, %v2774
        %v2776 = vpop.f32.mrf.mxu0
        %v2777 = vpop.f32.mrf.mxu0
        %v2778 = vadd.f32 0.0, %v2777
        %v2779 = vpop.f32.mrf.mxu0
        %2780 = vmatprep.mubr.bf16.mxu0 0
        %2781 = vmatmul.mubr.bf16.gmra.mxu0 %v2573
        %v2782 = vpop.f32.mrf.mxu0
        %v2783 = vadd.f32 0.0, %v2782
        %v2784 = vpop.f32.mrf.mxu0
        %v2785 = vpop.f32.mrf.mxu0
        %v2786 = vadd.f32 0.0, %v2785
        %v2787 = vpop.f32.mrf.mxu0
        %2788 = vmatprep.mubr.bf16.mxu0 0
        %2789 = vmatmul.mubr.bf16.gmra.mxu0 %v2576
        %v2790 = vpop.f32.mrf.mxu0
        %v2791 = vadd.f32 0.0, %v2790
        %v2792 = vpop.f32.mrf.mxu0
        %v2793 = vpop.f32.mrf.mxu0
        %v2794 = vadd.f32 0.0, %v2793
        %v2795 = vpop.f32.mrf.mxu0
        %2796 = vmatprep.mubr.bf16.mxu0 0
        %2797 = vmatmul.mubr.bf16.gmra.mxu0 %v2579
        %v2798 = vpop.f32.mrf.mxu0
        %v2799 = vadd.f32 0.0, %v2798
        %v2800 = vpop.f32.mrf.mxu0
        %v2801 = vpop.f32.mrf.mxu0
        %v2802 = vadd.f32 0.0, %v2801
        %v2803 = vpop.f32.mrf.mxu0
        %2804 = vmatprep.mubr.bf16.mxu0 0
        %2805 = vmatmul.mubr.bf16.gmra.mxu0 %v2582
        %v2806 = vpop.f32.mrf.mxu0
        %v2807 = vadd.f32 0.0, %v2806
        %v2808 = vpop.f32.mrf.mxu0
        %v2809 = vpop.f32.mrf.mxu0
        %v2810 = vadd.f32 0.0, %v2809
        %v2811 = vpop.f32.mrf.mxu0
        %2812 = vmatprep.mubr.bf16.mxu0 0
        %2813 = vmatmul.mubr.bf16.gmra.mxu0 %v2585
        %v2814 = vpop.f32.mrf.mxu0
        %v2815 = vadd.f32 0.0, %v2814
        %v2816 = vpop.f32.mrf.mxu0
        %v2817 = vpop.f32.mrf.mxu0
        %v2818 = vadd.f32 0.0, %v2817
        %v2819 = vpop.f32.mrf.mxu0
        %2820 = vmatprep.mubr.bf16.mxu0 0
        %2821 = vmatmul.mubr.bf16.gmra.mxu0 %v2588
        %v2822 = vpop.f32.mrf.mxu0
        %v2823 = vadd.f32 0.0, %v2822
        %v2824 = vpop.f32.mrf.mxu0
        %v2825 = vpop.f32.mrf.mxu0
        %v2826 = vadd.f32 0.0, %v2825
        %v2827 = vpop.f32.mrf.mxu0
        %2828 = vmatprep.mubr.bf16.mxu0 0
        %2829 = vmatmul.mubr.bf16.gmra.mxu0 %v2591
        %v2830 = vpop.f32.mrf.mxu0
        %v2831 = vadd.f32 0.0, %v2830
        %v2832 = vpop.f32.mrf.mxu0
        %v2833 = vpop.f32.mrf.mxu0
        %v2834 = vadd.f32 0.0, %v2833
        %v2835 = vpop.f32.mrf.mxu0
        %2836 = vmatprep.mubr.bf16.mxu0 0
        %2837 = vmatmul.mubr.bf16.gmra.mxu0 %v2594
        %v2838 = vpop.f32.mrf.mxu0
        %v2839 = vadd.f32 0.0, %v2838
        %v2840 = vpop.f32.mrf.mxu0
        %v2841 = vpop.f32.mrf.mxu0
        %v2842 = vadd.f32 0.0, %v2841
        %v2843 = vpop.f32.mrf.mxu0
        %2844 = vmatprep.mubr.bf16.mxu0 0
        %2845 = vmatmul.mubr.bf16.gmra.mxu0 %v2597
        %v2846 = vpop.f32.mrf.mxu0
        %v2847 = vadd.f32 0.0, %v2846
        %v2848 = vpop.f32.mrf.mxu0
        %v2849 = vpop.f32.mrf.mxu0
        %v2850 = vadd.f32 0.0, %v2849
        %v2851 = vpop.f32.mrf.mxu0
        %2852 = vmatprep.mubr.bf16.mxu0 0
        %2853 = vmatmul.mubr.bf16.gmra.mxu0 %v2600
        %v2854 = vpop.f32.mrf.mxu0
        %v2855 = vadd.f32 0.0, %v2854
        %v2856 = vpop.f32.mrf.mxu0
        %v2857 = vpop.f32.mrf.mxu0
        %v2858 = vadd.f32 0.0, %v2857
        %v2859 = vpop.f32.mrf.mxu0
        %2860 = vmatprep.mubr.bf16.mxu0 0
        %2861 = vmatmul.mubr.bf16.gmra.mxu0 %v2603
        %v2862 = vpop.f32.mrf.mxu0
        %v2863 = vadd.f32 0.0, %v2862
        %v2864 = vpop.f32.mrf.mxu0
        %v2865 = vpop.f32.mrf.mxu0
        %v2866 = vadd.f32 0.0, %v2865
        %v2867 = vpop.f32.mrf.mxu0
        %2868 = vmatprep.mubr.bf16.mxu0 0
        %2869 = vmatmul.mubr.bf16.gmra.mxu0 %v2606
        %v2870 = vpop.f32.mrf.mxu0
        %v2871 = vadd.f32 0.0, %v2870
        %v2872 = vpop.f32.mrf.mxu0
        %v2873 = vpop.f32.mrf.mxu0
        %v2874 = vadd.f32 0.0, %v2873
        %v2875 = vpop.f32.mrf.mxu0
        %2876 = vmatprep.mubr.bf16.mxu0 0
        %2877 = vmatmul.mubr.bf16.gmra.mxu0 %v2609
        %v2878 = vpop.f32.mrf.mxu0
        %v2879 = vadd.f32 0.0, %v2878
        %v2880 = vpop.f32.mrf.mxu0
        %v2881 = vpop.f32.mrf.mxu0
        %v2882 = vadd.f32 0.0, %v2881
        %v2883 = vpop.f32.mrf.mxu0
        %2884 = vmatprep.mubr.bf16.mxu0 0
        %2885 = vmatmul.mubr.bf16.gmra.mxu0 %v2612
        %v2886 = vpop.f32.mrf.mxu0
        %v2887 = vadd.f32 0.0, %v2886
        %v2888 = vpop.f32.mrf.mxu0
        %v2889 = vpop.f32.mrf.mxu0
        %v2890 = vadd.f32 0.0, %v2889
        %v2891 = vpop.f32.mrf.mxu0
        %2892 = vmatprep.mubr.bf16.mxu0 0
        %2893 = vmatmul.mubr.bf16.gmra.mxu0 %v2615
        %v2894 = vpop.f32.mrf.mxu0
        %v2895 = vadd.f32 0.0, %v2894
        %v2896 = vpop.f32.mrf.mxu0
        %v2897 = vpop.f32.mrf.mxu0
        %v2898 = vadd.f32 0.0, %v2897
        %v2899 = vpop.f32.mrf.mxu0
        %2900 = vmatprep.mubr.bf16.mxu0 0
        %2901 = vmatmul.mubr.bf16.gmra.mxu0 %v2618
        %v2902 = vpop.f32.mrf.mxu0
        %v2903 = vadd.f32 0.0, %v2902
        %v2904 = vpop.f32.mrf.mxu0
        %v2905 = vpop.f32.mrf.mxu0
        %v2906 = vadd.f32 0.0, %v2905
        %v2907 = vpop.f32.mrf.mxu0
        %2908 = vdwg.mxu0
        %v2909 = vmul.f32 %v1878, %v2270
        %v2910 = vmul.f32 %v1881, %v2273
        %v2911 = vmul.f32 %v1886, %v2278
        %v2912 = vmul.f32 %v1889, %v2281
        %v2913 = vmul.f32 %v1894, %v2286
        %v2914 = vmul.f32 %v1897, %v2289
        %v2915 = vmul.f32 %v1902, %v2294
        %v2916 = vmul.f32 %v1905, %v2297
        %v2917 = vmul.f32 %v1910, %v2302
        %v2918 = vmul.f32 %v1913, %v2305
        %v2919 = vmul.f32 %v1918, %v2310
        %v2920 = vmul.f32 %v1921, %v2313
        %v2921 = vmul.f32 %v1926, %v2318
        %v2922 = vmul.f32 %v1929, %v2321
        %v2923 = vmul.f32 %v1934, %v2326
        %v2924 = vmul.f32 %v1937, %v2329
        %v2925 = vmul.f32 %v1942, %v2334
        %v2926 = vmul.f32 %v1945, %v2337
        %v2927 = vmul.f32 %v1950, %v2342
        %v2928 = vmul.f32 %v1953, %v2345
        %v2929 = vmul.f32 %v1958, %v2350
        %v2930 = vmul.f32 %v1961, %v2353
        %v2931 = vmul.f32 %v1966, %v2358
        %v2932 = vmul.f32 %v1969, %v2361
        %v2933 = vmul.f32 %v1974, %v2366
        %v2934 = vmul.f32 %v1977, %v2369
        %v2935 = vmul.f32 %v1982, %v2374
        %v2936 = vmul.f32 %v1985, %v2377
        %v2937 = vmul.f32 %v1990, %v2382
        %v2938 = vmul.f32 %v1993, %v2385
        %v2939 = vmul.f32 %v1998, %v2390
        %v2940 = vmul.f32 %v2001, %v2393
        %v2941 = vmul.f32 %v2006, %v2398
        %v2942 = vmul.f32 %v2009, %v2401
        %v2943 = vmul.f32 %v2014, %v2406
        %v2944 = vmul.f32 %v2017, %v2409
        %v2945 = vmul.f32 %v2022, %v2414
        %v2946 = vmul.f32 %v2025, %v2417
        %v2947 = vmul.f32 %v2030, %v2422
        %v2948 = vmul.f32 %v2033, %v2425
        %v2949 = vmul.f32 %v2038, %v2430
        %v2950 = vmul.f32 %v2041, %v2433
        %v2951 = vmul.f32 %v2046, %v2438
        %v2952 = vmul.f32 %v2049, %v2441
        %v2953 = vmul.f32 %v2054, %v2446
        %v2954 = vmul.f32 %v2057, %v2449
        %v2955 = vmul.f32 %v2062, %v2454
        %v2956 = vmul.f32 %v2065, %v2457
        %v2957 = vmul.f32 %v2070, %v2462
        %v2958 = vmul.f32 %v2073, %v2465
        %v2959 = vmul.f32 %v2078, %v2470
        %v2960 = vmul.f32 %v2081, %v2473
        %v2961 = vmul.f32 %v2086, %v2478
        %v2962 = vmul.f32 %v2089, %v2481
        %v2963 = vmul.f32 %v2094, %v2486
        %v2964 = vmul.f32 %v2097, %v2489
        %v2965 = vmul.f32 %v2102, %v2494
        %v2966 = vmul.f32 %v2105, %v2497
        %v2967 = vmul.f32 %v2110, %v2502
        %v2968 = vmul.f32 %v2113, %v2505
        %v2969 = vmul.f32 %v2118, %v2510
        %v2970 = vmul.f32 %v2121, %v2513
        %v2971 = vmul.f32 %v2126, %v2518
        %v2972 = vmul.f32 %v2129, %v2521
        %v2973 = vmul.f32 %v2909, %v2655
        %v2974 = vmul.f32 %v2910, %v2658
        %v2975 = vmul.f32 %v2911, %v2663
        %v2976 = vmul.f32 %v2912, %v2666
        %v2977 = vmul.f32 %v2913, %v2671
        %v2978 = vmul.f32 %v2914, %v2674
        %v2979 = vmul.f32 %v2915, %v2679
        %v2980 = vmul.f32 %v2916, %v2682
        %v2981 = vmul.f32 %v2917, %v2687
        %v2982 = vmul.f32 %v2918, %v2690
        %v2983 = vmul.f32 %v2919, %v2695
        %v2984 = vmul.f32 %v2920, %v2698
        %v2985 = vmul.f32 %v2921, %v2703
        %v2986 = vmul.f32 %v2922, %v2706
        %v2987 = vmul.f32 %v2923, %v2711
        %v2988 = vmul.f32 %v2924, %v2714
        %v2989 = vmul.f32 %v2925, %v2719
        %v2990 = vmul.f32 %v2926, %v2722
        %v2991 = vmul.f32 %v2927, %v2727
        %v2992 = vmul.f32 %v2928, %v2730
        %v2993 = vmul.f32 %v2929, %v2735
        %v2994 = vmul.f32 %v2930, %v2738
        %v2995 = vmul.f32 %v2931, %v2743
        %v2996 = vmul.f32 %v2932, %v2746
        %v2997 = vmul.f32 %v2933, %v2751
        %v2998 = vmul.f32 %v2934, %v2754
        %v2999 = vmul.f32 %v2935, %v2759
        %v3000 = vmul.f32 %v2936, %v2762
        %v3001 = vmul.f32 %v2937, %v2767
        %v3002 = vmul.f32 %v2938, %v2770
        %v3003 = vmul.f32 %v2939, %v2775
        %v3004 = vmul.f32 %v2940, %v2778
        %v3005 = vmul.f32 %v2941, %v2783
        %v3006 = vmul.f32 %v2942, %v2786
        %v3007 = vmul.f32 %v2943, %v2791
        %v3008 = vmul.f32 %v2944, %v2794
        %v3009 = vmul.f32 %v2945, %v2799
        %v3010 = vmul.f32 %v2946, %v2802
        %v3011 = vmul.f32 %v2947, %v2807
        %v3012 = vmul.f32 %v2948, %v2810
        %v3013 = vmul.f32 %v2949, %v2815
        %v3014 = vmul.f32 %v2950, %v2818
        %v3015 = vmul.f32 %v2951, %v2823
        %v3016 = vmul.f32 %v2952, %v2826
        %v3017 = vmul.f32 %v2953, %v2831
        %v3018 = vmul.f32 %v2954, %v2834
        %v3019 = vmul.f32 %v2955, %v2839
        %v3020 = vmul.f32 %v2956, %v2842
        %v3021 = vmul.f32 %v2957, %v2847
        %v3022 = vmul.f32 %v2958, %v2850
        %v3023 = vmul.f32 %v2959, %v2855
        %v3024 = vmul.f32 %v2960, %v2858
        %v3025 = vmul.f32 %v2961, %v2863
        %v3026 = vmul.f32 %v2962, %v2866
        %v3027 = vmul.f32 %v2963, %v2871
        %v3028 = vmul.f32 %v2964, %v2874
        %v3029 = vmul.f32 %v2965, %v2879
        %v3030 = vmul.f32 %v2966, %v2882
        %v3031 = vmul.f32 %v2967, %v2887
        %v3032 = vmul.f32 %v2968, %v2890
        %v3033 = vmul.f32 %v2969, %v2895
        %v3034 = vmul.f32 %v2970, %v2898
        %v3035 = vmul.f32 %v2971, %v2903
        %v3036 = vmul.f32 %v2972, %v2906
        %3037 = vadd.xlane.f32.xlu0 %v2973
        %v3038 = vpop.xlane.xlu0 %3037
        %3039 = vadd.xlane.f32.xlu0 %v2974
        %v3040 = vpop.xlane.xlu0 %3039
        %3041 = vadd.xlane.f32.xlu0 %v2975
        %v3042 = vpop.xlane.xlu0 %3041
        %3043 = vadd.xlane.f32.xlu0 %v2976
        %v3044 = vpop.xlane.xlu0 %3043
        %3045 = vadd.xlane.f32.xlu0 %v2977
        %v3046 = vpop.xlane.xlu0 %3045
        %3047 = vadd.xlane.f32.xlu0 %v2978
        %v3048 = vpop.xlane.xlu0 %3047
        %3049 = vadd.xlane.f32.xlu0 %v2979
        %v3050 = vpop.xlane.xlu0 %3049
        %3051 = vadd.xlane.f32.xlu0 %v2980
        %v3052 = vpop.xlane.xlu0 %3051
        %3053 = vadd.xlane.f32.xlu0 %v2981
        %v3054 = vpop.xlane.xlu0 %3053
        %3055 = vadd.xlane.f32.xlu0 %v2982
        %v3056 = vpop.xlane.xlu0 %3055
        %3057 = vadd.xlane.f32.xlu0 %v2983
        %v3058 = vpop.xlane.xlu0 %3057
        %3059 = vadd.xlane.f32.xlu0 %v2984
        %v3060 = vpop.xlane.xlu0 %3059
        %3061 = vadd.xlane.f32.xlu0 %v2985
        %v3062 = vpop.xlane.xlu0 %3061
        %3063 = vadd.xlane.f32.xlu0 %v2986
        %v3064 = vpop.xlane.xlu0 %3063
        %3065 = vadd.xlane.f32.xlu0 %v2987
        %v3066 = vpop.xlane.xlu0 %3065
        %3067 = vadd.xlane.f32.xlu0 %v2988
        %v3068 = vpop.xlane.xlu0 %3067
        %3069 = vadd.xlane.f32.xlu0 %v2989
        %v3070 = vpop.xlane.xlu0 %3069
        %3071 = vadd.xlane.f32.xlu0 %v2990
        %v3072 = vpop.xlane.xlu0 %3071
        %3073 = vadd.xlane.f32.xlu0 %v2991
        %v3074 = vpop.xlane.xlu0 %3073
        %3075 = vadd.xlane.f32.xlu0 %v2992
        %v3076 = vpop.xlane.xlu0 %3075
        %3077 = vadd.xlane.f32.xlu0 %v2993
        %v3078 = vpop.xlane.xlu0 %3077
        %3079 = vadd.xlane.f32.xlu0 %v2994
        %v3080 = vpop.xlane.xlu0 %3079
        %3081 = vadd.xlane.f32.xlu0 %v2995
        %v3082 = vpop.xlane.xlu0 %3081
        %3083 = vadd.xlane.f32.xlu0 %v2996
        %v3084 = vpop.xlane.xlu0 %3083
        %3085 = vadd.xlane.f32.xlu0 %v2997
        %v3086 = vpop.xlane.xlu0 %3085
        %3087 = vadd.xlane.f32.xlu0 %v2998
        %v3088 = vpop.xlane.xlu0 %3087
        %3089 = vadd.xlane.f32.xlu0 %v2999
        %v3090 = vpop.xlane.xlu0 %3089
        %3091 = vadd.xlane.f32.xlu0 %v3000
        %v3092 = vpop.xlane.xlu0 %3091
        %3093 = vadd.xlane.f32.xlu0 %v3001
        %v3094 = vpop.xlane.xlu0 %3093
        %3095 = vadd.xlane.f32.xlu0 %v3002
        %v3096 = vpop.xlane.xlu0 %3095
        %3097 = vadd.xlane.f32.xlu0 %v3003
        %v3098 = vpop.xlane.xlu0 %3097
        %3099 = vadd.xlane.f32.xlu0 %v3004
        %v3100 = vpop.xlane.xlu0 %3099
        %3101 = vadd.xlane.f32.xlu0 %v3005
        %v3102 = vpop.xlane.xlu0 %3101
        %3103 = vadd.xlane.f32.xlu0 %v3006
        %v3104 = vpop.xlane.xlu0 %3103
        %3105 = vadd.xlane.f32.xlu0 %v3007
        %v3106 = vpop.xlane.xlu0 %3105
        %3107 = vadd.xlane.f32.xlu0 %v3008
        %v3108 = vpop.xlane.xlu0 %3107
        %3109 = vadd.xlane.f32.xlu0 %v3009
        %v3110 = vpop.xlane.xlu0 %3109
        %3111 = vadd.xlane.f32.xlu0 %v3010
        %v3112 = vpop.xlane.xlu0 %3111
        %3113 = vadd.xlane.f32.xlu0 %v3011
        %v3114 = vpop.xlane.xlu0 %3113
        %3115 = vadd.xlane.f32.xlu0 %v3012
        %v3116 = vpop.xlane.xlu0 %3115
        %3117 = vadd.xlane.f32.xlu0 %v3013
        %v3118 = vpop.xlane.xlu0 %3117
        %3119 = vadd.xlane.f32.xlu0 %v3014
        %v3120 = vpop.xlane.xlu0 %3119
        %3121 = vadd.xlane.f32.xlu0 %v3015
        %v3122 = vpop.xlane.xlu0 %3121
        %3123 = vadd.xlane.f32.xlu0 %v3016
        %v3124 = vpop.xlane.xlu0 %3123
        %3125 = vadd.xlane.f32.xlu0 %v3017
        %v3126 = vpop.xlane.xlu0 %3125
        %3127 = vadd.xlane.f32.xlu0 %v3018
        %v3128 = vpop.xlane.xlu0 %3127
        %3129 = vadd.xlane.f32.xlu0 %v3019
        %v3130 = vpop.xlane.xlu0 %3129
        %3131 = vadd.xlane.f32.xlu0 %v3020
        %v3132 = vpop.xlane.xlu0 %3131
        %3133 = vadd.xlane.f32.xlu0 %v3021
        %v3134 = vpop.xlane.xlu0 %3133
        %3135 = vadd.xlane.f32.xlu0 %v3022
        %v3136 = vpop.xlane.xlu0 %3135
        %3137 = vadd.xlane.f32.xlu0 %v3023
        %v3138 = vpop.xlane.xlu0 %3137
        %3139 = vadd.xlane.f32.xlu0 %v3024
        %v3140 = vpop.xlane.xlu0 %3139
        %3141 = vadd.xlane.f32.xlu0 %v3025
        %v3142 = vpop.xlane.xlu0 %3141
        %3143 = vadd.xlane.f32.xlu0 %v3026
        %v3144 = vpop.xlane.xlu0 %3143
        %3145 = vadd.xlane.f32.xlu0 %v3027
        %v3146 = vpop.xlane.xlu0 %3145
        %3147 = vadd.xlane.f32.xlu0 %v3028
        %v3148 = vpop.xlane.xlu0 %3147
        %3149 = vadd.xlane.f32.xlu0 %v3029
        %v3150 = vpop.xlane.xlu0 %3149
        %3151 = vadd.xlane.f32.xlu0 %v3030
        %v3152 = vpop.xlane.xlu0 %3151
        %3153 = vadd.xlane.f32.xlu0 %v3031
        %v3154 = vpop.xlane.xlu0 %3153
        %3155 = vadd.xlane.f32.xlu0 %v3032
        %v3156 = vpop.xlane.xlu0 %3155
        %3157 = vadd.xlane.f32.xlu0 %v3033
        %v3158 = vpop.xlane.xlu0 %3157
        %3159 = vadd.xlane.f32.xlu0 %v3034
        %v3160 = vpop.xlane.xlu0 %3159
        %3161 = vadd.xlane.f32.xlu0 %v3035
        %v3162 = vpop.xlane.xlu0 %3161
        %3163 = vadd.xlane.f32.xlu0 %v3036
        %v3164 = vpop.xlane.xlu0 %3163
        %v3229 = vlaneseq
        %v3230 = vshrl.u32 %v3229, 7
        %v3231 = vsub.s32 0, %v3230
        %v3232 = vrot.slane %v3038, %v3231
        %v3233 = vlaneseq
        %v3234 = vshrl.u32 %v3233, 7
        %v3235 = vsub.s32 1, %v3234
        %v3236 = vrot.slane %v3038, %v3235
        %v3237 = vlaneseq
        %v3238 = vshrl.u32 %v3237, 7
        %v3239 = vsub.s32 2, %v3238
        %v3240 = vrot.slane %v3038, %v3239
        %v3241 = vlaneseq
        %v3242 = vshrl.u32 %v3241, 7
        %v3243 = vsub.s32 3, %v3242
        %v3244 = vrot.slane %v3038, %v3243
        %v3245 = vlaneseq
        %v3246 = vshrl.u32 %v3245, 7
        %v3247 = vsub.s32 4, %v3246
        %v3248 = vrot.slane %v3038, %v3247
        %v3249 = vlaneseq
        %v3250 = vshrl.u32 %v3249, 7
        %v3251 = vsub.s32 5, %v3250
        %v3252 = vrot.slane %v3038, %v3251
        %v3253 = vlaneseq
        %v3254 = vshrl.u32 %v3253, 7
        %v3255 = vsub.s32 6, %v3254
        %v3256 = vrot.slane %v3038, %v3255
        %v3257 = vlaneseq
        %v3258 = vshrl.u32 %v3257, 7
        %v3259 = vsub.s32 7, %v3258
        %v3260 = vrot.slane %v3038, %v3259
        %v3261 = vlaneseq
        %v3262 = vshrl.u32 %v3261, 7
        %v3263 = vsub.s32 0, %v3262
        %v3264 = vrot.slane %v3040, %v3263
        %v3265 = vlaneseq
        %v3266 = vshrl.u32 %v3265, 7
        %v3267 = vsub.s32 1, %v3266
        %v3268 = vrot.slane %v3040, %v3267
        %v3269 = vlaneseq
        %v3270 = vshrl.u32 %v3269, 7
        %v3271 = vsub.s32 2, %v3270
        %v3272 = vrot.slane %v3040, %v3271
        %v3273 = vlaneseq
        %v3274 = vshrl.u32 %v3273, 7
        %v3275 = vsub.s32 3, %v3274
        %v3276 = vrot.slane %v3040, %v3275
        %v3277 = vlaneseq
        %v3278 = vshrl.u32 %v3277, 7
        %v3279 = vsub.s32 4, %v3278
        %v3280 = vrot.slane %v3040, %v3279
        %v3281 = vlaneseq
        %v3282 = vshrl.u32 %v3281, 7
        %v3283 = vsub.s32 5, %v3282
        %v3284 = vrot.slane %v3040, %v3283
        %v3285 = vlaneseq
        %v3286 = vshrl.u32 %v3285, 7
        %v3287 = vsub.s32 6, %v3286
        %v3288 = vrot.slane %v3040, %v3287
        %v3289 = vlaneseq
        %v3290 = vshrl.u32 %v3289, 7
        %v3291 = vsub.s32 7, %v3290
        %v3292 = vrot.slane %v3040, %v3291
        %v3293 = vlaneseq
        %v3294 = vshrl.u32 %v3293, 7
        %v3295 = vsub.s32 0, %v3294
        %v3296 = vrot.slane %v3042, %v3295
        %v3297 = vlaneseq
        %v3298 = vshrl.u32 %v3297, 7
        %v3299 = vsub.s32 1, %v3298
        %v3300 = vrot.slane %v3042, %v3299
        %v3301 = vlaneseq
        %v3302 = vshrl.u32 %v3301, 7
        %v3303 = vsub.s32 2, %v3302
        %v3304 = vrot.slane %v3042, %v3303
        %v3305 = vlaneseq
        %v3306 = vshrl.u32 %v3305, 7
        %v3307 = vsub.s32 3, %v3306
        %v3308 = vrot.slane %v3042, %v3307
        %v3309 = vlaneseq
        %v3310 = vshrl.u32 %v3309, 7
        %v3311 = vsub.s32 4, %v3310
        %v3312 = vrot.slane %v3042, %v3311
        %v3313 = vlaneseq
        %v3314 = vshrl.u32 %v3313, 7
        %v3315 = vsub.s32 5, %v3314
        %v3316 = vrot.slane %v3042, %v3315
        %v3317 = vlaneseq
        %v3318 = vshrl.u32 %v3317, 7
        %v3319 = vsub.s32 6, %v3318
        %v3320 = vrot.slane %v3042, %v3319
        %v3321 = vlaneseq
        %v3322 = vshrl.u32 %v3321, 7
        %v3323 = vsub.s32 7, %v3322
        %v3324 = vrot.slane %v3042, %v3323
        %v3325 = vlaneseq
        %v3326 = vshrl.u32 %v3325, 7
        %v3327 = vsub.s32 0, %v3326
        %v3328 = vrot.slane %v3044, %v3327
        %v3329 = vlaneseq
        %v3330 = vshrl.u32 %v3329, 7
        %v3331 = vsub.s32 1, %v3330
        %v3332 = vrot.slane %v3044, %v3331
        %v3333 = vlaneseq
        %v3334 = vshrl.u32 %v3333, 7
        %v3335 = vsub.s32 2, %v3334
        %v3336 = vrot.slane %v3044, %v3335
        %v3337 = vlaneseq
        %v3338 = vshrl.u32 %v3337, 7
        %v3339 = vsub.s32 3, %v3338
        %v3340 = vrot.slane %v3044, %v3339
        %v3341 = vlaneseq
        %v3342 = vshrl.u32 %v3341, 7
        %v3343 = vsub.s32 4, %v3342
        %v3344 = vrot.slane %v3044, %v3343
        %v3345 = vlaneseq
        %v3346 = vshrl.u32 %v3345, 7
        %v3347 = vsub.s32 5, %v3346
        %v3348 = vrot.slane %v3044, %v3347
        %v3349 = vlaneseq
        %v3350 = vshrl.u32 %v3349, 7
        %v3351 = vsub.s32 6, %v3350
        %v3352 = vrot.slane %v3044, %v3351
        %v3353 = vlaneseq
        %v3354 = vshrl.u32 %v3353, 7
        %v3355 = vsub.s32 7, %v3354
        %v3356 = vrot.slane %v3044, %v3355
        %v3357 = vlaneseq
        %v3358 = vshrl.u32 %v3357, 7
        %v3359 = vsub.s32 0, %v3358
        %v3360 = vrot.slane %v3046, %v3359
        %v3361 = vlaneseq
        %v3362 = vshrl.u32 %v3361, 7
        %v3363 = vsub.s32 1, %v3362
        %v3364 = vrot.slane %v3046, %v3363
        %v3365 = vlaneseq
        %v3366 = vshrl.u32 %v3365, 7
        %v3367 = vsub.s32 2, %v3366
        %v3368 = vrot.slane %v3046, %v3367
        %v3369 = vlaneseq
        %v3370 = vshrl.u32 %v3369, 7
        %v3371 = vsub.s32 3, %v3370
        %v3372 = vrot.slane %v3046, %v3371
        %v3373 = vlaneseq
        %v3374 = vshrl.u32 %v3373, 7
        %v3375 = vsub.s32 4, %v3374
        %v3376 = vrot.slane %v3046, %v3375
        %v3377 = vlaneseq
        %v3378 = vshrl.u32 %v3377, 7
        %v3379 = vsub.s32 5, %v3378
        %v3380 = vrot.slane %v3046, %v3379
        %v3381 = vlaneseq
        %v3382 = vshrl.u32 %v3381, 7
        %v3383 = vsub.s32 6, %v3382
        %v3384 = vrot.slane %v3046, %v3383
        %v3385 = vlaneseq
        %v3386 = vshrl.u32 %v3385, 7
        %v3387 = vsub.s32 7, %v3386
        %v3388 = vrot.slane %v3046, %v3387
        %v3389 = vlaneseq
        %v3390 = vshrl.u32 %v3389, 7
        %v3391 = vsub.s32 0, %v3390
        %v3392 = vrot.slane %v3048, %v3391
        %v3393 = vlaneseq
        %v3394 = vshrl.u32 %v3393, 7
        %v3395 = vsub.s32 1, %v3394
        %v3396 = vrot.slane %v3048, %v3395
        %v3397 = vlaneseq
        %v3398 = vshrl.u32 %v3397, 7
        %v3399 = vsub.s32 2, %v3398
        %v3400 = vrot.slane %v3048, %v3399
        %v3401 = vlaneseq
        %v3402 = vshrl.u32 %v3401, 7
        %v3403 = vsub.s32 3, %v3402
        %v3404 = vrot.slane %v3048, %v3403
        %v3405 = vlaneseq
        %v3406 = vshrl.u32 %v3405, 7
        %v3407 = vsub.s32 4, %v3406
        %v3408 = vrot.slane %v3048, %v3407
        %v3409 = vlaneseq
        %v3410 = vshrl.u32 %v3409, 7
        %v3411 = vsub.s32 5, %v3410
        %v3412 = vrot.slane %v3048, %v3411
        %v3413 = vlaneseq
        %v3414 = vshrl.u32 %v3413, 7
        %v3415 = vsub.s32 6, %v3414
        %v3416 = vrot.slane %v3048, %v3415
        %v3417 = vlaneseq
        %v3418 = vshrl.u32 %v3417, 7
        %v3419 = vsub.s32 7, %v3418
        %v3420 = vrot.slane %v3048, %v3419
        %v3421 = vlaneseq
        %v3422 = vshrl.u32 %v3421, 7
        %v3423 = vsub.s32 0, %v3422
        %v3424 = vrot.slane %v3050, %v3423
        %v3425 = vlaneseq
        %v3426 = vshrl.u32 %v3425, 7
        %v3427 = vsub.s32 1, %v3426
        %v3428 = vrot.slane %v3050, %v3427
        %v3429 = vlaneseq
        %v3430 = vshrl.u32 %v3429, 7
        %v3431 = vsub.s32 2, %v3430
        %v3432 = vrot.slane %v3050, %v3431
        %v3433 = vlaneseq
        %v3434 = vshrl.u32 %v3433, 7
        %v3435 = vsub.s32 3, %v3434
        %v3436 = vrot.slane %v3050, %v3435
        %v3437 = vlaneseq
        %v3438 = vshrl.u32 %v3437, 7
        %v3439 = vsub.s32 4, %v3438
        %v3440 = vrot.slane %v3050, %v3439
        %v3441 = vlaneseq
        %v3442 = vshrl.u32 %v3441, 7
        %v3443 = vsub.s32 5, %v3442
        %v3444 = vrot.slane %v3050, %v3443
        %v3445 = vlaneseq
        %v3446 = vshrl.u32 %v3445, 7
        %v3447 = vsub.s32 6, %v3446
        %v3448 = vrot.slane %v3050, %v3447
        %v3449 = vlaneseq
        %v3450 = vshrl.u32 %v3449, 7
        %v3451 = vsub.s32 7, %v3450
        %v3452 = vrot.slane %v3050, %v3451
        %v3453 = vlaneseq
        %v3454 = vshrl.u32 %v3453, 7
        %v3455 = vsub.s32 0, %v3454
        %v3456 = vrot.slane %v3052, %v3455
        %v3457 = vlaneseq
        %v3458 = vshrl.u32 %v3457, 7
        %v3459 = vsub.s32 1, %v3458
        %v3460 = vrot.slane %v3052, %v3459
        %v3461 = vlaneseq
        %v3462 = vshrl.u32 %v3461, 7
        %v3463 = vsub.s32 2, %v3462
        %v3464 = vrot.slane %v3052, %v3463
        %v3465 = vlaneseq
        %v3466 = vshrl.u32 %v3465, 7
        %v3467 = vsub.s32 3, %v3466
        %v3468 = vrot.slane %v3052, %v3467
        %v3469 = vlaneseq
        %v3470 = vshrl.u32 %v3469, 7
        %v3471 = vsub.s32 4, %v3470
        %v3472 = vrot.slane %v3052, %v3471
        %v3473 = vlaneseq
        %v3474 = vshrl.u32 %v3473, 7
        %v3475 = vsub.s32 5, %v3474
        %v3476 = vrot.slane %v3052, %v3475
        %v3477 = vlaneseq
        %v3478 = vshrl.u32 %v3477, 7
        %v3479 = vsub.s32 6, %v3478
        %v3480 = vrot.slane %v3052, %v3479
        %v3481 = vlaneseq
        %v3482 = vshrl.u32 %v3481, 7
        %v3483 = vsub.s32 7, %v3482
        %v3484 = vrot.slane %v3052, %v3483
        %v3485 = vlaneseq
        %v3486 = vshrl.u32 %v3485, 7
        %v3487 = vsub.s32 0, %v3486
        %v3488 = vrot.slane %v3054, %v3487
        %v3489 = vlaneseq
        %v3490 = vshrl.u32 %v3489, 7
        %v3491 = vsub.s32 1, %v3490
        %v3492 = vrot.slane %v3054, %v3491
        %v3493 = vlaneseq
        %v3494 = vshrl.u32 %v3493, 7
        %v3495 = vsub.s32 2, %v3494
        %v3496 = vrot.slane %v3054, %v3495
        %v3497 = vlaneseq
        %v3498 = vshrl.u32 %v3497, 7
        %v3499 = vsub.s32 3, %v3498
        %v3500 = vrot.slane %v3054, %v3499
        %v3501 = vlaneseq
        %v3502 = vshrl.u32 %v3501, 7
        %v3503 = vsub.s32 4, %v3502
        %v3504 = vrot.slane %v3054, %v3503
        %v3505 = vlaneseq
        %v3506 = vshrl.u32 %v3505, 7
        %v3507 = vsub.s32 5, %v3506
        %v3508 = vrot.slane %v3054, %v3507
        %v3509 = vlaneseq
        %v3510 = vshrl.u32 %v3509, 7
        %v3511 = vsub.s32 6, %v3510
        %v3512 = vrot.slane %v3054, %v3511
        %v3513 = vlaneseq
        %v3514 = vshrl.u32 %v3513, 7
        %v3515 = vsub.s32 7, %v3514
        %v3516 = vrot.slane %v3054, %v3515
        %v3517 = vlaneseq
        %v3518 = vshrl.u32 %v3517, 7
        %v3519 = vsub.s32 0, %v3518
        %v3520 = vrot.slane %v3056, %v3519
        %v3521 = vlaneseq
        %v3522 = vshrl.u32 %v3521, 7
        %v3523 = vsub.s32 1, %v3522
        %v3524 = vrot.slane %v3056, %v3523
        %v3525 = vlaneseq
        %v3526 = vshrl.u32 %v3525, 7
        %v3527 = vsub.s32 2, %v3526
        %v3528 = vrot.slane %v3056, %v3527
        %v3529 = vlaneseq
        %v3530 = vshrl.u32 %v3529, 7
        %v3531 = vsub.s32 3, %v3530
        %v3532 = vrot.slane %v3056, %v3531
        %v3533 = vlaneseq
        %v3534 = vshrl.u32 %v3533, 7
        %v3535 = vsub.s32 4, %v3534
        %v3536 = vrot.slane %v3056, %v3535
        %v3537 = vlaneseq
        %v3538 = vshrl.u32 %v3537, 7
        %v3539 = vsub.s32 5, %v3538
        %v3540 = vrot.slane %v3056, %v3539
        %v3541 = vlaneseq
        %v3542 = vshrl.u32 %v3541, 7
        %v3543 = vsub.s32 6, %v3542
        %v3544 = vrot.slane %v3056, %v3543
        %v3545 = vlaneseq
        %v3546 = vshrl.u32 %v3545, 7
        %v3547 = vsub.s32 7, %v3546
        %v3548 = vrot.slane %v3056, %v3547
        %v3549 = vlaneseq
        %v3550 = vshrl.u32 %v3549, 7
        %v3551 = vsub.s32 0, %v3550
        %v3552 = vrot.slane %v3058, %v3551
        %v3553 = vlaneseq
        %v3554 = vshrl.u32 %v3553, 7
        %v3555 = vsub.s32 1, %v3554
        %v3556 = vrot.slane %v3058, %v3555
        %v3557 = vlaneseq
        %v3558 = vshrl.u32 %v3557, 7
        %v3559 = vsub.s32 2, %v3558
        %v3560 = vrot.slane %v3058, %v3559
        %v3561 = vlaneseq
        %v3562 = vshrl.u32 %v3561, 7
        %v3563 = vsub.s32 3, %v3562
        %v3564 = vrot.slane %v3058, %v3563
        %v3565 = vlaneseq
        %v3566 = vshrl.u32 %v3565, 7
        %v3567 = vsub.s32 4, %v3566
        %v3568 = vrot.slane %v3058, %v3567
        %v3569 = vlaneseq
        %v3570 = vshrl.u32 %v3569, 7
        %v3571 = vsub.s32 5, %v3570
        %v3572 = vrot.slane %v3058, %v3571
        %v3573 = vlaneseq
        %v3574 = vshrl.u32 %v3573, 7
        %v3575 = vsub.s32 6, %v3574
        %v3576 = vrot.slane %v3058, %v3575
        %v3577 = vlaneseq
        %v3578 = vshrl.u32 %v3577, 7
        %v3579 = vsub.s32 7, %v3578
        %v3580 = vrot.slane %v3058, %v3579
        %v3581 = vlaneseq
        %v3582 = vshrl.u32 %v3581, 7
        %v3583 = vsub.s32 0, %v3582
        %v3584 = vrot.slane %v3060, %v3583
        %v3585 = vlaneseq
        %v3586 = vshrl.u32 %v3585, 7
        %v3587 = vsub.s32 1, %v3586
        %v3588 = vrot.slane %v3060, %v3587
        %v3589 = vlaneseq
        %v3590 = vshrl.u32 %v3589, 7
        %v3591 = vsub.s32 2, %v3590
        %v3592 = vrot.slane %v3060, %v3591
        %v3593 = vlaneseq
        %v3594 = vshrl.u32 %v3593, 7
        %v3595 = vsub.s32 3, %v3594
        %v3596 = vrot.slane %v3060, %v3595
        %v3597 = vlaneseq
        %v3598 = vshrl.u32 %v3597, 7
        %v3599 = vsub.s32 4, %v3598
        %v3600 = vrot.slane %v3060, %v3599
        %v3601 = vlaneseq
        %v3602 = vshrl.u32 %v3601, 7
        %v3603 = vsub.s32 5, %v3602
        %v3604 = vrot.slane %v3060, %v3603
        %v3605 = vlaneseq
        %v3606 = vshrl.u32 %v3605, 7
        %v3607 = vsub.s32 6, %v3606
        %v3608 = vrot.slane %v3060, %v3607
        %v3609 = vlaneseq
        %v3610 = vshrl.u32 %v3609, 7
        %v3611 = vsub.s32 7, %v3610
        %v3612 = vrot.slane %v3060, %v3611
        %v3613 = vlaneseq
        %v3614 = vshrl.u32 %v3613, 7
        %v3615 = vsub.s32 0, %v3614
        %v3616 = vrot.slane %v3062, %v3615
        %v3617 = vlaneseq
        %v3618 = vshrl.u32 %v3617, 7
        %v3619 = vsub.s32 1, %v3618
        %v3620 = vrot.slane %v3062, %v3619
        %v3621 = vlaneseq
        %v3622 = vshrl.u32 %v3621, 7
        %v3623 = vsub.s32 2, %v3622
        %v3624 = vrot.slane %v3062, %v3623
        %v3625 = vlaneseq
        %v3626 = vshrl.u32 %v3625, 7
        %v3627 = vsub.s32 3, %v3626
        %v3628 = vrot.slane %v3062, %v3627
        %v3629 = vlaneseq
        %v3630 = vshrl.u32 %v3629, 7
        %v3631 = vsub.s32 4, %v3630
        %v3632 = vrot.slane %v3062, %v3631
        %v3633 = vlaneseq
        %v3634 = vshrl.u32 %v3633, 7
        %v3635 = vsub.s32 5, %v3634
        %v3636 = vrot.slane %v3062, %v3635
        %v3637 = vlaneseq
        %v3638 = vshrl.u32 %v3637, 7
        %v3639 = vsub.s32 6, %v3638
        %v3640 = vrot.slane %v3062, %v3639
        %v3641 = vlaneseq
        %v3642 = vshrl.u32 %v3641, 7
        %v3643 = vsub.s32 7, %v3642
        %v3644 = vrot.slane %v3062, %v3643
        %v3645 = vlaneseq
        %v3646 = vshrl.u32 %v3645, 7
        %v3647 = vsub.s32 0, %v3646
        %v3648 = vrot.slane %v3064, %v3647
        %v3649 = vlaneseq
        %v3650 = vshrl.u32 %v3649, 7
        %v3651 = vsub.s32 1, %v3650
        %v3652 = vrot.slane %v3064, %v3651
        %v3653 = vlaneseq
        %v3654 = vshrl.u32 %v3653, 7
        %v3655 = vsub.s32 2, %v3654
        %v3656 = vrot.slane %v3064, %v3655
        %v3657 = vlaneseq
        %v3658 = vshrl.u32 %v3657, 7
        %v3659 = vsub.s32 3, %v3658
        %v3660 = vrot.slane %v3064, %v3659
        %v3661 = vlaneseq
        %v3662 = vshrl.u32 %v3661, 7
        %v3663 = vsub.s32 4, %v3662
        %v3664 = vrot.slane %v3064, %v3663
        %v3665 = vlaneseq
        %v3666 = vshrl.u32 %v3665, 7
        %v3667 = vsub.s32 5, %v3666
        %v3668 = vrot.slane %v3064, %v3667
        %v3669 = vlaneseq
        %v3670 = vshrl.u32 %v3669, 7
        %v3671 = vsub.s32 6, %v3670
        %v3672 = vrot.slane %v3064, %v3671
        %v3673 = vlaneseq
        %v3674 = vshrl.u32 %v3673, 7
        %v3675 = vsub.s32 7, %v3674
        %v3676 = vrot.slane %v3064, %v3675
        %v3677 = vlaneseq
        %v3678 = vshrl.u32 %v3677, 7
        %v3679 = vsub.s32 0, %v3678
        %v3680 = vrot.slane %v3066, %v3679
        %v3681 = vlaneseq
        %v3682 = vshrl.u32 %v3681, 7
        %v3683 = vsub.s32 1, %v3682
        %v3684 = vrot.slane %v3066, %v3683
        %v3685 = vlaneseq
        %v3686 = vshrl.u32 %v3685, 7
        %v3687 = vsub.s32 2, %v3686
        %v3688 = vrot.slane %v3066, %v3687
        %v3689 = vlaneseq
        %v3690 = vshrl.u32 %v3689, 7
        %v3691 = vsub.s32 3, %v3690
        %v3692 = vrot.slane %v3066, %v3691
        %v3693 = vlaneseq
        %v3694 = vshrl.u32 %v3693, 7
        %v3695 = vsub.s32 4, %v3694
        %v3696 = vrot.slane %v3066, %v3695
        %v3697 = vlaneseq
        %v3698 = vshrl.u32 %v3697, 7
        %v3699 = vsub.s32 5, %v3698
        %v3700 = vrot.slane %v3066, %v3699
        %v3701 = vlaneseq
        %v3702 = vshrl.u32 %v3701, 7
        %v3703 = vsub.s32 6, %v3702
        %v3704 = vrot.slane %v3066, %v3703
        %v3705 = vlaneseq
        %v3706 = vshrl.u32 %v3705, 7
        %v3707 = vsub.s32 7, %v3706
        %v3708 = vrot.slane %v3066, %v3707
        %v3709 = vlaneseq
        %v3710 = vshrl.u32 %v3709, 7
        %v3711 = vsub.s32 0, %v3710
        %v3712 = vrot.slane %v3068, %v3711
        %v3713 = vlaneseq
        %v3714 = vshrl.u32 %v3713, 7
        %v3715 = vsub.s32 1, %v3714
        %v3716 = vrot.slane %v3068, %v3715
        %v3717 = vlaneseq
        %v3718 = vshrl.u32 %v3717, 7
        %v3719 = vsub.s32 2, %v3718
        %v3720 = vrot.slane %v3068, %v3719
        %v3721 = vlaneseq
        %v3722 = vshrl.u32 %v3721, 7
        %v3723 = vsub.s32 3, %v3722
        %v3724 = vrot.slane %v3068, %v3723
        %v3725 = vlaneseq
        %v3726 = vshrl.u32 %v3725, 7
        %v3727 = vsub.s32 4, %v3726
        %v3728 = vrot.slane %v3068, %v3727
        %v3729 = vlaneseq
        %v3730 = vshrl.u32 %v3729, 7
        %v3731 = vsub.s32 5, %v3730
        %v3732 = vrot.slane %v3068, %v3731
        %v3733 = vlaneseq
        %v3734 = vshrl.u32 %v3733, 7
        %v3735 = vsub.s32 6, %v3734
        %v3736 = vrot.slane %v3068, %v3735
        %v3737 = vlaneseq
        %v3738 = vshrl.u32 %v3737, 7
        %v3739 = vsub.s32 7, %v3738
        %v3740 = vrot.slane %v3068, %v3739
        %v3741 = vlaneseq
        %v3742 = vshrl.u32 %v3741, 7
        %v3743 = vsub.s32 0, %v3742
        %v3744 = vrot.slane %v3070, %v3743
        %v3745 = vlaneseq
        %v3746 = vshrl.u32 %v3745, 7
        %v3747 = vsub.s32 1, %v3746
        %v3748 = vrot.slane %v3070, %v3747
        %v3749 = vlaneseq
        %v3750 = vshrl.u32 %v3749, 7
        %v3751 = vsub.s32 2, %v3750
        %v3752 = vrot.slane %v3070, %v3751
        %v3753 = vlaneseq
        %v3754 = vshrl.u32 %v3753, 7
        %v3755 = vsub.s32 3, %v3754
        %v3756 = vrot.slane %v3070, %v3755
        %v3757 = vlaneseq
        %v3758 = vshrl.u32 %v3757, 7
        %v3759 = vsub.s32 4, %v3758
        %v3760 = vrot.slane %v3070, %v3759
        %v3761 = vlaneseq
        %v3762 = vshrl.u32 %v3761, 7
        %v3763 = vsub.s32 5, %v3762
        %v3764 = vrot.slane %v3070, %v3763
        %v3765 = vlaneseq
        %v3766 = vshrl.u32 %v3765, 7
        %v3767 = vsub.s32 6, %v3766
        %v3768 = vrot.slane %v3070, %v3767
        %v3769 = vlaneseq
        %v3770 = vshrl.u32 %v3769, 7
        %v3771 = vsub.s32 7, %v3770
        %v3772 = vrot.slane %v3070, %v3771
        %v3773 = vlaneseq
        %v3774 = vshrl.u32 %v3773, 7
        %v3775 = vsub.s32 0, %v3774
        %v3776 = vrot.slane %v3072, %v3775
        %v3777 = vlaneseq
        %v3778 = vshrl.u32 %v3777, 7
        %v3779 = vsub.s32 1, %v3778
        %v3780 = vrot.slane %v3072, %v3779
        %v3781 = vlaneseq
        %v3782 = vshrl.u32 %v3781, 7
        %v3783 = vsub.s32 2, %v3782
        %v3784 = vrot.slane %v3072, %v3783
        %v3785 = vlaneseq
        %v3786 = vshrl.u32 %v3785, 7
        %v3787 = vsub.s32 3, %v3786
        %v3788 = vrot.slane %v3072, %v3787
        %v3789 = vlaneseq
        %v3790 = vshrl.u32 %v3789, 7
        %v3791 = vsub.s32 4, %v3790
        %v3792 = vrot.slane %v3072, %v3791
        %v3793 = vlaneseq
        %v3794 = vshrl.u32 %v3793, 7
        %v3795 = vsub.s32 5, %v3794
        %v3796 = vrot.slane %v3072, %v3795
        %v3797 = vlaneseq
        %v3798 = vshrl.u32 %v3797, 7
        %v3799 = vsub.s32 6, %v3798
        %v3800 = vrot.slane %v3072, %v3799
        %v3801 = vlaneseq
        %v3802 = vshrl.u32 %v3801, 7
        %v3803 = vsub.s32 7, %v3802
        %v3804 = vrot.slane %v3072, %v3803
        %v3805 = vlaneseq
        %v3806 = vshrl.u32 %v3805, 7
        %v3807 = vsub.s32 0, %v3806
        %v3808 = vrot.slane %v3074, %v3807
        %v3809 = vlaneseq
        %v3810 = vshrl.u32 %v3809, 7
        %v3811 = vsub.s32 1, %v3810
        %v3812 = vrot.slane %v3074, %v3811
        %v3813 = vlaneseq
        %v3814 = vshrl.u32 %v3813, 7
        %v3815 = vsub.s32 2, %v3814
        %v3816 = vrot.slane %v3074, %v3815
        %v3817 = vlaneseq
        %v3818 = vshrl.u32 %v3817, 7
        %v3819 = vsub.s32 3, %v3818
        %v3820 = vrot.slane %v3074, %v3819
        %v3821 = vlaneseq
        %v3822 = vshrl.u32 %v3821, 7
        %v3823 = vsub.s32 4, %v3822
        %v3824 = vrot.slane %v3074, %v3823
        %v3825 = vlaneseq
        %v3826 = vshrl.u32 %v3825, 7
        %v3827 = vsub.s32 5, %v3826
        %v3828 = vrot.slane %v3074, %v3827
        %v3829 = vlaneseq
        %v3830 = vshrl.u32 %v3829, 7
        %v3831 = vsub.s32 6, %v3830
        %v3832 = vrot.slane %v3074, %v3831
        %v3833 = vlaneseq
        %v3834 = vshrl.u32 %v3833, 7
        %v3835 = vsub.s32 7, %v3834
        %v3836 = vrot.slane %v3074, %v3835
        %v3837 = vlaneseq
        %v3838 = vshrl.u32 %v3837, 7
        %v3839 = vsub.s32 0, %v3838
        %v3840 = vrot.slane %v3076, %v3839
        %v3841 = vlaneseq
        %v3842 = vshrl.u32 %v3841, 7
        %v3843 = vsub.s32 1, %v3842
        %v3844 = vrot.slane %v3076, %v3843
        %v3845 = vlaneseq
        %v3846 = vshrl.u32 %v3845, 7
        %v3847 = vsub.s32 2, %v3846
        %v3848 = vrot.slane %v3076, %v3847
        %v3849 = vlaneseq
        %v3850 = vshrl.u32 %v3849, 7
        %v3851 = vsub.s32 3, %v3850
        %v3852 = vrot.slane %v3076, %v3851
        %v3853 = vlaneseq
        %v3854 = vshrl.u32 %v3853, 7
        %v3855 = vsub.s32 4, %v3854
        %v3856 = vrot.slane %v3076, %v3855
        %v3857 = vlaneseq
        %v3858 = vshrl.u32 %v3857, 7
        %v3859 = vsub.s32 5, %v3858
        %v3860 = vrot.slane %v3076, %v3859
        %v3861 = vlaneseq
        %v3862 = vshrl.u32 %v3861, 7
        %v3863 = vsub.s32 6, %v3862
        %v3864 = vrot.slane %v3076, %v3863
        %v3865 = vlaneseq
        %v3866 = vshrl.u32 %v3865, 7
        %v3867 = vsub.s32 7, %v3866
        %v3868 = vrot.slane %v3076, %v3867
        %v3869 = vlaneseq
        %v3870 = vshrl.u32 %v3869, 7
        %v3871 = vsub.s32 0, %v3870
        %v3872 = vrot.slane %v3078, %v3871
        %v3873 = vlaneseq
        %v3874 = vshrl.u32 %v3873, 7
        %v3875 = vsub.s32 1, %v3874
        %v3876 = vrot.slane %v3078, %v3875
        %v3877 = vlaneseq
        %v3878 = vshrl.u32 %v3877, 7
        %v3879 = vsub.s32 2, %v3878
        %v3880 = vrot.slane %v3078, %v3879
        %v3881 = vlaneseq
        %v3882 = vshrl.u32 %v3881, 7
        %v3883 = vsub.s32 3, %v3882
        %v3884 = vrot.slane %v3078, %v3883
        %v3885 = vlaneseq
        %v3886 = vshrl.u32 %v3885, 7
        %v3887 = vsub.s32 4, %v3886
        %v3888 = vrot.slane %v3078, %v3887
        %v3889 = vlaneseq
        %v3890 = vshrl.u32 %v3889, 7
        %v3891 = vsub.s32 5, %v3890
        %v3892 = vrot.slane %v3078, %v3891
        %v3893 = vlaneseq
        %v3894 = vshrl.u32 %v3893, 7
        %v3895 = vsub.s32 6, %v3894
        %v3896 = vrot.slane %v3078, %v3895
        %v3897 = vlaneseq
        %v3898 = vshrl.u32 %v3897, 7
        %v3899 = vsub.s32 7, %v3898
        %v3900 = vrot.slane %v3078, %v3899
        %v3901 = vlaneseq
        %v3902 = vshrl.u32 %v3901, 7
        %v3903 = vsub.s32 0, %v3902
        %v3904 = vrot.slane %v3080, %v3903
        %v3905 = vlaneseq
        %v3906 = vshrl.u32 %v3905, 7
        %v3907 = vsub.s32 1, %v3906
        %v3908 = vrot.slane %v3080, %v3907
        %v3909 = vlaneseq
        %v3910 = vshrl.u32 %v3909, 7
        %v3911 = vsub.s32 2, %v3910
        %v3912 = vrot.slane %v3080, %v3911
        %v3913 = vlaneseq
        %v3914 = vshrl.u32 %v3913, 7
        %v3915 = vsub.s32 3, %v3914
        %v3916 = vrot.slane %v3080, %v3915
        %v3917 = vlaneseq
        %v3918 = vshrl.u32 %v3917, 7
        %v3919 = vsub.s32 4, %v3918
        %v3920 = vrot.slane %v3080, %v3919
        %v3921 = vlaneseq
        %v3922 = vshrl.u32 %v3921, 7
        %v3923 = vsub.s32 5, %v3922
        %v3924 = vrot.slane %v3080, %v3923
        %v3925 = vlaneseq
        %v3926 = vshrl.u32 %v3925, 7
        %v3927 = vsub.s32 6, %v3926
        %v3928 = vrot.slane %v3080, %v3927
        %v3929 = vlaneseq
        %v3930 = vshrl.u32 %v3929, 7
        %v3931 = vsub.s32 7, %v3930
        %v3932 = vrot.slane %v3080, %v3931
        %v3933 = vlaneseq
        %v3934 = vshrl.u32 %v3933, 7
        %v3935 = vsub.s32 0, %v3934
        %v3936 = vrot.slane %v3082, %v3935
        %v3937 = vlaneseq
        %v3938 = vshrl.u32 %v3937, 7
        %v3939 = vsub.s32 1, %v3938
        %v3940 = vrot.slane %v3082, %v3939
        %v3941 = vlaneseq
        %v3942 = vshrl.u32 %v3941, 7
        %v3943 = vsub.s32 2, %v3942
        %v3944 = vrot.slane %v3082, %v3943
        %v3945 = vlaneseq
        %v3946 = vshrl.u32 %v3945, 7
        %v3947 = vsub.s32 3, %v3946
        %v3948 = vrot.slane %v3082, %v3947
        %v3949 = vlaneseq
        %v3950 = vshrl.u32 %v3949, 7
        %v3951 = vsub.s32 4, %v3950
        %v3952 = vrot.slane %v3082, %v3951
        %v3953 = vlaneseq
        %v3954 = vshrl.u32 %v3953, 7
        %v3955 = vsub.s32 5, %v3954
        %v3956 = vrot.slane %v3082, %v3955
        %v3957 = vlaneseq
        %v3958 = vshrl.u32 %v3957, 7
        %v3959 = vsub.s32 6, %v3958
        %v3960 = vrot.slane %v3082, %v3959
        %v3961 = vlaneseq
        %v3962 = vshrl.u32 %v3961, 7
        %v3963 = vsub.s32 7, %v3962
        %v3964 = vrot.slane %v3082, %v3963
        %v3965 = vlaneseq
        %v3966 = vshrl.u32 %v3965, 7
        %v3967 = vsub.s32 0, %v3966
        %v3968 = vrot.slane %v3084, %v3967
        %v3969 = vlaneseq
        %v3970 = vshrl.u32 %v3969, 7
        %v3971 = vsub.s32 1, %v3970
        %v3972 = vrot.slane %v3084, %v3971
        %v3973 = vlaneseq
        %v3974 = vshrl.u32 %v3973, 7
        %v3975 = vsub.s32 2, %v3974
        %v3976 = vrot.slane %v3084, %v3975
        %v3977 = vlaneseq
        %v3978 = vshrl.u32 %v3977, 7
        %v3979 = vsub.s32 3, %v3978
        %v3980 = vrot.slane %v3084, %v3979
        %v3981 = vlaneseq
        %v3982 = vshrl.u32 %v3981, 7
        %v3983 = vsub.s32 4, %v3982
        %v3984 = vrot.slane %v3084, %v3983
        %v3985 = vlaneseq
        %v3986 = vshrl.u32 %v3985, 7
        %v3987 = vsub.s32 5, %v3986
        %v3988 = vrot.slane %v3084, %v3987
        %v3989 = vlaneseq
        %v3990 = vshrl.u32 %v3989, 7
        %v3991 = vsub.s32 6, %v3990
        %v3992 = vrot.slane %v3084, %v3991
        %v3993 = vlaneseq
        %v3994 = vshrl.u32 %v3993, 7
        %v3995 = vsub.s32 7, %v3994
        %v3996 = vrot.slane %v3084, %v3995
        %v3997 = vlaneseq
        %v3998 = vshrl.u32 %v3997, 7
        %v3999 = vsub.s32 0, %v3998
        %v4000 = vrot.slane %v3086, %v3999
        %v4001 = vlaneseq
        %v4002 = vshrl.u32 %v4001, 7
        %v4003 = vsub.s32 1, %v4002
        %v4004 = vrot.slane %v3086, %v4003
        %v4005 = vlaneseq
        %v4006 = vshrl.u32 %v4005, 7
        %v4007 = vsub.s32 2, %v4006
        %v4008 = vrot.slane %v3086, %v4007
        %v4009 = vlaneseq
        %v4010 = vshrl.u32 %v4009, 7
        %v4011 = vsub.s32 3, %v4010
        %v4012 = vrot.slane %v3086, %v4011
        %v4013 = vlaneseq
        %v4014 = vshrl.u32 %v4013, 7
        %v4015 = vsub.s32 4, %v4014
        %v4016 = vrot.slane %v3086, %v4015
        %v4017 = vlaneseq
        %v4018 = vshrl.u32 %v4017, 7
        %v4019 = vsub.s32 5, %v4018
        %v4020 = vrot.slane %v3086, %v4019
        %v4021 = vlaneseq
        %v4022 = vshrl.u32 %v4021, 7
        %v4023 = vsub.s32 6, %v4022
        %v4024 = vrot.slane %v3086, %v4023
        %v4025 = vlaneseq
        %v4026 = vshrl.u32 %v4025, 7
        %v4027 = vsub.s32 7, %v4026
        %v4028 = vrot.slane %v3086, %v4027
        %v4029 = vlaneseq
        %v4030 = vshrl.u32 %v4029, 7
        %v4031 = vsub.s32 0, %v4030
        %v4032 = vrot.slane %v3088, %v4031
        %v4033 = vlaneseq
        %v4034 = vshrl.u32 %v4033, 7
        %v4035 = vsub.s32 1, %v4034
        %v4036 = vrot.slane %v3088, %v4035
        %v4037 = vlaneseq
        %v4038 = vshrl.u32 %v4037, 7
        %v4039 = vsub.s32 2, %v4038
        %v4040 = vrot.slane %v3088, %v4039
        %v4041 = vlaneseq
        %v4042 = vshrl.u32 %v4041, 7
        %v4043 = vsub.s32 3, %v4042
        %v4044 = vrot.slane %v3088, %v4043
        %v4045 = vlaneseq
        %v4046 = vshrl.u32 %v4045, 7
        %v4047 = vsub.s32 4, %v4046
        %v4048 = vrot.slane %v3088, %v4047
        %v4049 = vlaneseq
        %v4050 = vshrl.u32 %v4049, 7
        %v4051 = vsub.s32 5, %v4050
        %v4052 = vrot.slane %v3088, %v4051
        %v4053 = vlaneseq
        %v4054 = vshrl.u32 %v4053, 7
        %v4055 = vsub.s32 6, %v4054
        %v4056 = vrot.slane %v3088, %v4055
        %v4057 = vlaneseq
        %v4058 = vshrl.u32 %v4057, 7
        %v4059 = vsub.s32 7, %v4058
        %v4060 = vrot.slane %v3088, %v4059
        %v4061 = vlaneseq
        %v4062 = vshrl.u32 %v4061, 7
        %v4063 = vsub.s32 0, %v4062
        %v4064 = vrot.slane %v3090, %v4063
        %v4065 = vlaneseq
        %v4066 = vshrl.u32 %v4065, 7
        %v4067 = vsub.s32 1, %v4066
        %v4068 = vrot.slane %v3090, %v4067
        %v4069 = vlaneseq
        %v4070 = vshrl.u32 %v4069, 7
        %v4071 = vsub.s32 2, %v4070
        %v4072 = vrot.slane %v3090, %v4071
        %v4073 = vlaneseq
        %v4074 = vshrl.u32 %v4073, 7
        %v4075 = vsub.s32 3, %v4074
        %v4076 = vrot.slane %v3090, %v4075
        %v4077 = vlaneseq
        %v4078 = vshrl.u32 %v4077, 7
        %v4079 = vsub.s32 4, %v4078
        %v4080 = vrot.slane %v3090, %v4079
        %v4081 = vlaneseq
        %v4082 = vshrl.u32 %v4081, 7
        %v4083 = vsub.s32 5, %v4082
        %v4084 = vrot.slane %v3090, %v4083
        %v4085 = vlaneseq
        %v4086 = vshrl.u32 %v4085, 7
        %v4087 = vsub.s32 6, %v4086
        %v4088 = vrot.slane %v3090, %v4087
        %v4089 = vlaneseq
        %v4090 = vshrl.u32 %v4089, 7
        %v4091 = vsub.s32 7, %v4090
        %v4092 = vrot.slane %v3090, %v4091
        %v4093 = vlaneseq
        %v4094 = vshrl.u32 %v4093, 7
        %v4095 = vsub.s32 0, %v4094
        %v4096 = vrot.slane %v3092, %v4095
        %v4097 = vlaneseq
        %v4098 = vshrl.u32 %v4097, 7
        %v4099 = vsub.s32 1, %v4098
        %v4100 = vrot.slane %v3092, %v4099
        %v4101 = vlaneseq
        %v4102 = vshrl.u32 %v4101, 7
        %v4103 = vsub.s32 2, %v4102
        %v4104 = vrot.slane %v3092, %v4103
        %v4105 = vlaneseq
        %v4106 = vshrl.u32 %v4105, 7
        %v4107 = vsub.s32 3, %v4106
        %v4108 = vrot.slane %v3092, %v4107
        %v4109 = vlaneseq
        %v4110 = vshrl.u32 %v4109, 7
        %v4111 = vsub.s32 4, %v4110
        %v4112 = vrot.slane %v3092, %v4111
        %v4113 = vlaneseq
        %v4114 = vshrl.u32 %v4113, 7
        %v4115 = vsub.s32 5, %v4114
        %v4116 = vrot.slane %v3092, %v4115
        %v4117 = vlaneseq
        %v4118 = vshrl.u32 %v4117, 7
        %v4119 = vsub.s32 6, %v4118
        %v4120 = vrot.slane %v3092, %v4119
        %v4121 = vlaneseq
        %v4122 = vshrl.u32 %v4121, 7
        %v4123 = vsub.s32 7, %v4122
        %v4124 = vrot.slane %v3092, %v4123
        %v4125 = vlaneseq
        %v4126 = vshrl.u32 %v4125, 7
        %v4127 = vsub.s32 0, %v4126
        %v4128 = vrot.slane %v3094, %v4127
        %v4129 = vlaneseq
        %v4130 = vshrl.u32 %v4129, 7
        %v4131 = vsub.s32 1, %v4130
        %v4132 = vrot.slane %v3094, %v4131
        %v4133 = vlaneseq
        %v4134 = vshrl.u32 %v4133, 7
        %v4135 = vsub.s32 2, %v4134
        %v4136 = vrot.slane %v3094, %v4135
        %v4137 = vlaneseq
        %v4138 = vshrl.u32 %v4137, 7
        %v4139 = vsub.s32 3, %v4138
        %v4140 = vrot.slane %v3094, %v4139
        %v4141 = vlaneseq
        %v4142 = vshrl.u32 %v4141, 7
        %v4143 = vsub.s32 4, %v4142
        %v4144 = vrot.slane %v3094, %v4143
        %v4145 = vlaneseq
        %v4146 = vshrl.u32 %v4145, 7
        %v4147 = vsub.s32 5, %v4146
        %v4148 = vrot.slane %v3094, %v4147
        %v4149 = vlaneseq
        %v4150 = vshrl.u32 %v4149, 7
        %v4151 = vsub.s32 6, %v4150
        %v4152 = vrot.slane %v3094, %v4151
        %v4153 = vlaneseq
        %v4154 = vshrl.u32 %v4153, 7
        %v4155 = vsub.s32 7, %v4154
        %v4156 = vrot.slane %v3094, %v4155
        %v4157 = vlaneseq
        %v4158 = vshrl.u32 %v4157, 7
        %v4159 = vsub.s32 0, %v4158
        %v4160 = vrot.slane %v3096, %v4159
        %v4161 = vlaneseq
        %v4162 = vshrl.u32 %v4161, 7
        %v4163 = vsub.s32 1, %v4162
        %v4164 = vrot.slane %v3096, %v4163
        %v4165 = vlaneseq
        %v4166 = vshrl.u32 %v4165, 7
        %v4167 = vsub.s32 2, %v4166
        %v4168 = vrot.slane %v3096, %v4167
        %v4169 = vlaneseq
        %v4170 = vshrl.u32 %v4169, 7
        %v4171 = vsub.s32 3, %v4170
        %v4172 = vrot.slane %v3096, %v4171
        %v4173 = vlaneseq
        %v4174 = vshrl.u32 %v4173, 7
        %v4175 = vsub.s32 4, %v4174
        %v4176 = vrot.slane %v3096, %v4175
        %v4177 = vlaneseq
        %v4178 = vshrl.u32 %v4177, 7
        %v4179 = vsub.s32 5, %v4178
        %v4180 = vrot.slane %v3096, %v4179
        %v4181 = vlaneseq
        %v4182 = vshrl.u32 %v4181, 7
        %v4183 = vsub.s32 6, %v4182
        %v4184 = vrot.slane %v3096, %v4183
        %v4185 = vlaneseq
        %v4186 = vshrl.u32 %v4185, 7
        %v4187 = vsub.s32 7, %v4186
        %v4188 = vrot.slane %v3096, %v4187
        %v4189 = vlaneseq
        %v4190 = vshrl.u32 %v4189, 7
        %v4191 = vsub.s32 0, %v4190
        %v4192 = vrot.slane %v3098, %v4191
        %v4193 = vlaneseq
        %v4194 = vshrl.u32 %v4193, 7
        %v4195 = vsub.s32 1, %v4194
        %v4196 = vrot.slane %v3098, %v4195
        %v4197 = vlaneseq
        %v4198 = vshrl.u32 %v4197, 7
        %v4199 = vsub.s32 2, %v4198
        %v4200 = vrot.slane %v3098, %v4199
        %v4201 = vlaneseq
        %v4202 = vshrl.u32 %v4201, 7
        %v4203 = vsub.s32 3, %v4202
        %v4204 = vrot.slane %v3098, %v4203
        %v4205 = vlaneseq
        %v4206 = vshrl.u32 %v4205, 7
        %v4207 = vsub.s32 4, %v4206
        %v4208 = vrot.slane %v3098, %v4207
        %v4209 = vlaneseq
        %v4210 = vshrl.u32 %v4209, 7
        %v4211 = vsub.s32 5, %v4210
        %v4212 = vrot.slane %v3098, %v4211
        %v4213 = vlaneseq
        %v4214 = vshrl.u32 %v4213, 7
        %v4215 = vsub.s32 6, %v4214
        %v4216 = vrot.slane %v3098, %v4215
        %v4217 = vlaneseq
        %v4218 = vshrl.u32 %v4217, 7
        %v4219 = vsub.s32 7, %v4218
        %v4220 = vrot.slane %v3098, %v4219
        %v4221 = vlaneseq
        %v4222 = vshrl.u32 %v4221, 7
        %v4223 = vsub.s32 0, %v4222
        %v4224 = vrot.slane %v3100, %v4223
        %v4225 = vlaneseq
        %v4226 = vshrl.u32 %v4225, 7
        %v4227 = vsub.s32 1, %v4226
        %v4228 = vrot.slane %v3100, %v4227
        %v4229 = vlaneseq
        %v4230 = vshrl.u32 %v4229, 7
        %v4231 = vsub.s32 2, %v4230
        %v4232 = vrot.slane %v3100, %v4231
        %v4233 = vlaneseq
        %v4234 = vshrl.u32 %v4233, 7
        %v4235 = vsub.s32 3, %v4234
        %v4236 = vrot.slane %v3100, %v4235
        %v4237 = vlaneseq
        %v4238 = vshrl.u32 %v4237, 7
        %v4239 = vsub.s32 4, %v4238
        %v4240 = vrot.slane %v3100, %v4239
        %v4241 = vlaneseq
        %v4242 = vshrl.u32 %v4241, 7
        %v4243 = vsub.s32 5, %v4242
        %v4244 = vrot.slane %v3100, %v4243
        %v4245 = vlaneseq
        %v4246 = vshrl.u32 %v4245, 7
        %v4247 = vsub.s32 6, %v4246
        %v4248 = vrot.slane %v3100, %v4247
        %v4249 = vlaneseq
        %v4250 = vshrl.u32 %v4249, 7
        %v4251 = vsub.s32 7, %v4250
        %v4252 = vrot.slane %v3100, %v4251
        %v4253 = vlaneseq
        %v4254 = vshrl.u32 %v4253, 7
        %v4255 = vsub.s32 0, %v4254
        %v4256 = vrot.slane %v3102, %v4255
        %v4257 = vlaneseq
        %v4258 = vshrl.u32 %v4257, 7
        %v4259 = vsub.s32 1, %v4258
        %v4260 = vrot.slane %v3102, %v4259
        %v4261 = vlaneseq
        %v4262 = vshrl.u32 %v4261, 7
        %v4263 = vsub.s32 2, %v4262
        %v4264 = vrot.slane %v3102, %v4263
        %v4265 = vlaneseq
        %v4266 = vshrl.u32 %v4265, 7
        %v4267 = vsub.s32 3, %v4266
        %v4268 = vrot.slane %v3102, %v4267
        %v4269 = vlaneseq
        %v4270 = vshrl.u32 %v4269, 7
        %v4271 = vsub.s32 4, %v4270
        %v4272 = vrot.slane %v3102, %v4271
        %v4273 = vlaneseq
        %v4274 = vshrl.u32 %v4273, 7
        %v4275 = vsub.s32 5, %v4274
        %v4276 = vrot.slane %v3102, %v4275
        %v4277 = vlaneseq
        %v4278 = vshrl.u32 %v4277, 7
        %v4279 = vsub.s32 6, %v4278
        %v4280 = vrot.slane %v3102, %v4279
        %v4281 = vlaneseq
        %v4282 = vshrl.u32 %v4281, 7
        %v4283 = vsub.s32 7, %v4282
        %v4284 = vrot.slane %v3102, %v4283
        %v4285 = vlaneseq
        %v4286 = vshrl.u32 %v4285, 7
        %v4287 = vsub.s32 0, %v4286
        %v4288 = vrot.slane %v3104, %v4287
        %v4289 = vlaneseq
        %v4290 = vshrl.u32 %v4289, 7
        %v4291 = vsub.s32 1, %v4290
        %v4292 = vrot.slane %v3104, %v4291
        %v4293 = vlaneseq
        %v4294 = vshrl.u32 %v4293, 7
        %v4295 = vsub.s32 2, %v4294
        %v4296 = vrot.slane %v3104, %v4295
        %v4297 = vlaneseq
        %v4298 = vshrl.u32 %v4297, 7
        %v4299 = vsub.s32 3, %v4298
        %v4300 = vrot.slane %v3104, %v4299
        %v4301 = vlaneseq
        %v4302 = vshrl.u32 %v4301, 7
        %v4303 = vsub.s32 4, %v4302
        %v4304 = vrot.slane %v3104, %v4303
        %v4305 = vlaneseq
        %v4306 = vshrl.u32 %v4305, 7
        %v4307 = vsub.s32 5, %v4306
        %v4308 = vrot.slane %v3104, %v4307
        %v4309 = vlaneseq
        %v4310 = vshrl.u32 %v4309, 7
        %v4311 = vsub.s32 6, %v4310
        %v4312 = vrot.slane %v3104, %v4311
        %v4313 = vlaneseq
        %v4314 = vshrl.u32 %v4313, 7
        %v4315 = vsub.s32 7, %v4314
        %v4316 = vrot.slane %v3104, %v4315
        %v4317 = vlaneseq
        %v4318 = vshrl.u32 %v4317, 7
        %v4319 = vsub.s32 0, %v4318
        %v4320 = vrot.slane %v3106, %v4319
        %v4321 = vlaneseq
        %v4322 = vshrl.u32 %v4321, 7
        %v4323 = vsub.s32 1, %v4322
        %v4324 = vrot.slane %v3106, %v4323
        %v4325 = vlaneseq
        %v4326 = vshrl.u32 %v4325, 7
        %v4327 = vsub.s32 2, %v4326
        %v4328 = vrot.slane %v3106, %v4327
        %v4329 = vlaneseq
        %v4330 = vshrl.u32 %v4329, 7
        %v4331 = vsub.s32 3, %v4330
        %v4332 = vrot.slane %v3106, %v4331
        %v4333 = vlaneseq
        %v4334 = vshrl.u32 %v4333, 7
        %v4335 = vsub.s32 4, %v4334
        %v4336 = vrot.slane %v3106, %v4335
        %v4337 = vlaneseq
        %v4338 = vshrl.u32 %v4337, 7
        %v4339 = vsub.s32 5, %v4338
        %v4340 = vrot.slane %v3106, %v4339
        %v4341 = vlaneseq
        %v4342 = vshrl.u32 %v4341, 7
        %v4343 = vsub.s32 6, %v4342
        %v4344 = vrot.slane %v3106, %v4343
        %v4345 = vlaneseq
        %v4346 = vshrl.u32 %v4345, 7
        %v4347 = vsub.s32 7, %v4346
        %v4348 = vrot.slane %v3106, %v4347
        %v4349 = vlaneseq
        %v4350 = vshrl.u32 %v4349, 7
        %v4351 = vsub.s32 0, %v4350
        %v4352 = vrot.slane %v3108, %v4351
        %v4353 = vlaneseq
        %v4354 = vshrl.u32 %v4353, 7
        %v4355 = vsub.s32 1, %v4354
        %v4356 = vrot.slane %v3108, %v4355
        %v4357 = vlaneseq
        %v4358 = vshrl.u32 %v4357, 7
        %v4359 = vsub.s32 2, %v4358
        %v4360 = vrot.slane %v3108, %v4359
        %v4361 = vlaneseq
        %v4362 = vshrl.u32 %v4361, 7
        %v4363 = vsub.s32 3, %v4362
        %v4364 = vrot.slane %v3108, %v4363
        %v4365 = vlaneseq
        %v4366 = vshrl.u32 %v4365, 7
        %v4367 = vsub.s32 4, %v4366
        %v4368 = vrot.slane %v3108, %v4367
        %v4369 = vlaneseq
        %v4370 = vshrl.u32 %v4369, 7
        %v4371 = vsub.s32 5, %v4370
        %v4372 = vrot.slane %v3108, %v4371
        %v4373 = vlaneseq
        %v4374 = vshrl.u32 %v4373, 7
        %v4375 = vsub.s32 6, %v4374
        %v4376 = vrot.slane %v3108, %v4375
        %v4377 = vlaneseq
        %v4378 = vshrl.u32 %v4377, 7
        %v4379 = vsub.s32 7, %v4378
        %v4380 = vrot.slane %v3108, %v4379
        %v4381 = vlaneseq
        %v4382 = vshrl.u32 %v4381, 7
        %v4383 = vsub.s32 0, %v4382
        %v4384 = vrot.slane %v3110, %v4383
        %v4385 = vlaneseq
        %v4386 = vshrl.u32 %v4385, 7
        %v4387 = vsub.s32 1, %v4386
        %v4388 = vrot.slane %v3110, %v4387
        %v4389 = vlaneseq
        %v4390 = vshrl.u32 %v4389, 7
        %v4391 = vsub.s32 2, %v4390
        %v4392 = vrot.slane %v3110, %v4391
        %v4393 = vlaneseq
        %v4394 = vshrl.u32 %v4393, 7
        %v4395 = vsub.s32 3, %v4394
        %v4396 = vrot.slane %v3110, %v4395
        %v4397 = vlaneseq
        %v4398 = vshrl.u32 %v4397, 7
        %v4399 = vsub.s32 4, %v4398
        %v4400 = vrot.slane %v3110, %v4399
        %v4401 = vlaneseq
        %v4402 = vshrl.u32 %v4401, 7
        %v4403 = vsub.s32 5, %v4402
        %v4404 = vrot.slane %v3110, %v4403
        %v4405 = vlaneseq
        %v4406 = vshrl.u32 %v4405, 7
        %v4407 = vsub.s32 6, %v4406
        %v4408 = vrot.slane %v3110, %v4407
        %v4409 = vlaneseq
        %v4410 = vshrl.u32 %v4409, 7
        %v4411 = vsub.s32 7, %v4410
        %v4412 = vrot.slane %v3110, %v4411
        %v4413 = vlaneseq
        %v4414 = vshrl.u32 %v4413, 7
        %v4415 = vsub.s32 0, %v4414
        %v4416 = vrot.slane %v3112, %v4415
        %v4417 = vlaneseq
        %v4418 = vshrl.u32 %v4417, 7
        %v4419 = vsub.s32 1, %v4418
        %v4420 = vrot.slane %v3112, %v4419
        %v4421 = vlaneseq
        %v4422 = vshrl.u32 %v4421, 7
        %v4423 = vsub.s32 2, %v4422
        %v4424 = vrot.slane %v3112, %v4423
        %v4425 = vlaneseq
        %v4426 = vshrl.u32 %v4425, 7
        %v4427 = vsub.s32 3, %v4426
        %v4428 = vrot.slane %v3112, %v4427
        %v4429 = vlaneseq
        %v4430 = vshrl.u32 %v4429, 7
        %v4431 = vsub.s32 4, %v4430
        %v4432 = vrot.slane %v3112, %v4431
        %v4433 = vlaneseq
        %v4434 = vshrl.u32 %v4433, 7
        %v4435 = vsub.s32 5, %v4434
        %v4436 = vrot.slane %v3112, %v4435
        %v4437 = vlaneseq
        %v4438 = vshrl.u32 %v4437, 7
        %v4439 = vsub.s32 6, %v4438
        %v4440 = vrot.slane %v3112, %v4439
        %v4441 = vlaneseq
        %v4442 = vshrl.u32 %v4441, 7
        %v4443 = vsub.s32 7, %v4442
        %v4444 = vrot.slane %v3112, %v4443
        %v4445 = vlaneseq
        %v4446 = vshrl.u32 %v4445, 7
        %v4447 = vsub.s32 0, %v4446
        %v4448 = vrot.slane %v3114, %v4447
        %v4449 = vlaneseq
        %v4450 = vshrl.u32 %v4449, 7
        %v4451 = vsub.s32 1, %v4450
        %v4452 = vrot.slane %v3114, %v4451
        %v4453 = vlaneseq
        %v4454 = vshrl.u32 %v4453, 7
        %v4455 = vsub.s32 2, %v4454
        %v4456 = vrot.slane %v3114, %v4455
        %v4457 = vlaneseq
        %v4458 = vshrl.u32 %v4457, 7
        %v4459 = vsub.s32 3, %v4458
        %v4460 = vrot.slane %v3114, %v4459
        %v4461 = vlaneseq
        %v4462 = vshrl.u32 %v4461, 7
        %v4463 = vsub.s32 4, %v4462
        %v4464 = vrot.slane %v3114, %v4463
        %v4465 = vlaneseq
        %v4466 = vshrl.u32 %v4465, 7
        %v4467 = vsub.s32 5, %v4466
        %v4468 = vrot.slane %v3114, %v4467
        %v4469 = vlaneseq
        %v4470 = vshrl.u32 %v4469, 7
        %v4471 = vsub.s32 6, %v4470
        %v4472 = vrot.slane %v3114, %v4471
        %v4473 = vlaneseq
        %v4474 = vshrl.u32 %v4473, 7
        %v4475 = vsub.s32 7, %v4474
        %v4476 = vrot.slane %v3114, %v4475
        %v4477 = vlaneseq
        %v4478 = vshrl.u32 %v4477, 7
        %v4479 = vsub.s32 0, %v4478
        %v4480 = vrot.slane %v3116, %v4479
        %v4481 = vlaneseq
        %v4482 = vshrl.u32 %v4481, 7
        %v4483 = vsub.s32 1, %v4482
        %v4484 = vrot.slane %v3116, %v4483
        %v4485 = vlaneseq
        %v4486 = vshrl.u32 %v4485, 7
        %v4487 = vsub.s32 2, %v4486
        %v4488 = vrot.slane %v3116, %v4487
        %v4489 = vlaneseq
        %v4490 = vshrl.u32 %v4489, 7
        %v4491 = vsub.s32 3, %v4490
        %v4492 = vrot.slane %v3116, %v4491
        %v4493 = vlaneseq
        %v4494 = vshrl.u32 %v4493, 7
        %v4495 = vsub.s32 4, %v4494
        %v4496 = vrot.slane %v3116, %v4495
        %v4497 = vlaneseq
        %v4498 = vshrl.u32 %v4497, 7
        %v4499 = vsub.s32 5, %v4498
        %v4500 = vrot.slane %v3116, %v4499
        %v4501 = vlaneseq
        %v4502 = vshrl.u32 %v4501, 7
        %v4503 = vsub.s32 6, %v4502
        %v4504 = vrot.slane %v3116, %v4503
        %v4505 = vlaneseq
        %v4506 = vshrl.u32 %v4505, 7
        %v4507 = vsub.s32 7, %v4506
        %v4508 = vrot.slane %v3116, %v4507
        %v4509 = vlaneseq
        %v4510 = vshrl.u32 %v4509, 7
        %v4511 = vsub.s32 0, %v4510
        %v4512 = vrot.slane %v3118, %v4511
        %v4513 = vlaneseq
        %v4514 = vshrl.u32 %v4513, 7
        %v4515 = vsub.s32 1, %v4514
        %v4516 = vrot.slane %v3118, %v4515
        %v4517 = vlaneseq
        %v4518 = vshrl.u32 %v4517, 7
        %v4519 = vsub.s32 2, %v4518
        %v4520 = vrot.slane %v3118, %v4519
        %v4521 = vlaneseq
        %v4522 = vshrl.u32 %v4521, 7
        %v4523 = vsub.s32 3, %v4522
        %v4524 = vrot.slane %v3118, %v4523
        %v4525 = vlaneseq
        %v4526 = vshrl.u32 %v4525, 7
        %v4527 = vsub.s32 4, %v4526
        %v4528 = vrot.slane %v3118, %v4527
        %v4529 = vlaneseq
        %v4530 = vshrl.u32 %v4529, 7
        %v4531 = vsub.s32 5, %v4530
        %v4532 = vrot.slane %v3118, %v4531
        %v4533 = vlaneseq
        %v4534 = vshrl.u32 %v4533, 7
        %v4535 = vsub.s32 6, %v4534
        %v4536 = vrot.slane %v3118, %v4535
        %v4537 = vlaneseq
        %v4538 = vshrl.u32 %v4537, 7
        %v4539 = vsub.s32 7, %v4538
        %v4540 = vrot.slane %v3118, %v4539
        %v4541 = vlaneseq
        %v4542 = vshrl.u32 %v4541, 7
        %v4543 = vsub.s32 0, %v4542
        %v4544 = vrot.slane %v3120, %v4543
        %v4545 = vlaneseq
        %v4546 = vshrl.u32 %v4545, 7
        %v4547 = vsub.s32 1, %v4546
        %v4548 = vrot.slane %v3120, %v4547
        %v4549 = vlaneseq
        %v4550 = vshrl.u32 %v4549, 7
        %v4551 = vsub.s32 2, %v4550
        %v4552 = vrot.slane %v3120, %v4551
        %v4553 = vlaneseq
        %v4554 = vshrl.u32 %v4553, 7
        %v4555 = vsub.s32 3, %v4554
        %v4556 = vrot.slane %v3120, %v4555
        %v4557 = vlaneseq
        %v4558 = vshrl.u32 %v4557, 7
        %v4559 = vsub.s32 4, %v4558
        %v4560 = vrot.slane %v3120, %v4559
        %v4561 = vlaneseq
        %v4562 = vshrl.u32 %v4561, 7
        %v4563 = vsub.s32 5, %v4562
        %v4564 = vrot.slane %v3120, %v4563
        %v4565 = vlaneseq
        %v4566 = vshrl.u32 %v4565, 7
        %v4567 = vsub.s32 6, %v4566
        %v4568 = vrot.slane %v3120, %v4567
        %v4569 = vlaneseq
        %v4570 = vshrl.u32 %v4569, 7
        %v4571 = vsub.s32 7, %v4570
        %v4572 = vrot.slane %v3120, %v4571
        %v4573 = vlaneseq
        %v4574 = vshrl.u32 %v4573, 7
        %v4575 = vsub.s32 0, %v4574
        %v4576 = vrot.slane %v3122, %v4575
        %v4577 = vlaneseq
        %v4578 = vshrl.u32 %v4577, 7
        %v4579 = vsub.s32 1, %v4578
        %v4580 = vrot.slane %v3122, %v4579
        %v4581 = vlaneseq
        %v4582 = vshrl.u32 %v4581, 7
        %v4583 = vsub.s32 2, %v4582
        %v4584 = vrot.slane %v3122, %v4583
        %v4585 = vlaneseq
        %v4586 = vshrl.u32 %v4585, 7
        %v4587 = vsub.s32 3, %v4586
        %v4588 = vrot.slane %v3122, %v4587
        %v4589 = vlaneseq
        %v4590 = vshrl.u32 %v4589, 7
        %v4591 = vsub.s32 4, %v4590
        %v4592 = vrot.slane %v3122, %v4591
        %v4593 = vlaneseq
        %v4594 = vshrl.u32 %v4593, 7
        %v4595 = vsub.s32 5, %v4594
        %v4596 = vrot.slane %v3122, %v4595
        %v4597 = vlaneseq
        %v4598 = vshrl.u32 %v4597, 7
        %v4599 = vsub.s32 6, %v4598
        %v4600 = vrot.slane %v3122, %v4599
        %v4601 = vlaneseq
        %v4602 = vshrl.u32 %v4601, 7
        %v4603 = vsub.s32 7, %v4602
        %v4604 = vrot.slane %v3122, %v4603
        %v4605 = vlaneseq
        %v4606 = vshrl.u32 %v4605, 7
        %v4607 = vsub.s32 0, %v4606
        %v4608 = vrot.slane %v3124, %v4607
        %v4609 = vlaneseq
        %v4610 = vshrl.u32 %v4609, 7
        %v4611 = vsub.s32 1, %v4610
        %v4612 = vrot.slane %v3124, %v4611
        %v4613 = vlaneseq
        %v4614 = vshrl.u32 %v4613, 7
        %v4615 = vsub.s32 2, %v4614
        %v4616 = vrot.slane %v3124, %v4615
        %v4617 = vlaneseq
        %v4618 = vshrl.u32 %v4617, 7
        %v4619 = vsub.s32 3, %v4618
        %v4620 = vrot.slane %v3124, %v4619
        %v4621 = vlaneseq
        %v4622 = vshrl.u32 %v4621, 7
        %v4623 = vsub.s32 4, %v4622
        %v4624 = vrot.slane %v3124, %v4623
        %v4625 = vlaneseq
        %v4626 = vshrl.u32 %v4625, 7
        %v4627 = vsub.s32 5, %v4626
        %v4628 = vrot.slane %v3124, %v4627
        %v4629 = vlaneseq
        %v4630 = vshrl.u32 %v4629, 7
        %v4631 = vsub.s32 6, %v4630
        %v4632 = vrot.slane %v3124, %v4631
        %v4633 = vlaneseq
        %v4634 = vshrl.u32 %v4633, 7
        %v4635 = vsub.s32 7, %v4634
        %v4636 = vrot.slane %v3124, %v4635
        %v4637 = vlaneseq
        %v4638 = vshrl.u32 %v4637, 7
        %v4639 = vsub.s32 0, %v4638
        %v4640 = vrot.slane %v3126, %v4639
        %v4641 = vlaneseq
        %v4642 = vshrl.u32 %v4641, 7
        %v4643 = vsub.s32 1, %v4642
        %v4644 = vrot.slane %v3126, %v4643
        %v4645 = vlaneseq
        %v4646 = vshrl.u32 %v4645, 7
        %v4647 = vsub.s32 2, %v4646
        %v4648 = vrot.slane %v3126, %v4647
        %v4649 = vlaneseq
        %v4650 = vshrl.u32 %v4649, 7
        %v4651 = vsub.s32 3, %v4650
        %v4652 = vrot.slane %v3126, %v4651
        %v4653 = vlaneseq
        %v4654 = vshrl.u32 %v4653, 7
        %v4655 = vsub.s32 4, %v4654
        %v4656 = vrot.slane %v3126, %v4655
        %v4657 = vlaneseq
        %v4658 = vshrl.u32 %v4657, 7
        %v4659 = vsub.s32 5, %v4658
        %v4660 = vrot.slane %v3126, %v4659
        %v4661 = vlaneseq
        %v4662 = vshrl.u32 %v4661, 7
        %v4663 = vsub.s32 6, %v4662
        %v4664 = vrot.slane %v3126, %v4663
        %v4665 = vlaneseq
        %v4666 = vshrl.u32 %v4665, 7
        %v4667 = vsub.s32 7, %v4666
        %v4668 = vrot.slane %v3126, %v4667
        %v4669 = vlaneseq
        %v4670 = vshrl.u32 %v4669, 7
        %v4671 = vsub.s32 0, %v4670
        %v4672 = vrot.slane %v3128, %v4671
        %v4673 = vlaneseq
        %v4674 = vshrl.u32 %v4673, 7
        %v4675 = vsub.s32 1, %v4674
        %v4676 = vrot.slane %v3128, %v4675
        %v4677 = vlaneseq
        %v4678 = vshrl.u32 %v4677, 7
        %v4679 = vsub.s32 2, %v4678
        %v4680 = vrot.slane %v3128, %v4679
        %v4681 = vlaneseq
        %v4682 = vshrl.u32 %v4681, 7
        %v4683 = vsub.s32 3, %v4682
        %v4684 = vrot.slane %v3128, %v4683
        %v4685 = vlaneseq
        %v4686 = vshrl.u32 %v4685, 7
        %v4687 = vsub.s32 4, %v4686
        %v4688 = vrot.slane %v3128, %v4687
        %v4689 = vlaneseq
        %v4690 = vshrl.u32 %v4689, 7
        %v4691 = vsub.s32 5, %v4690
        %v4692 = vrot.slane %v3128, %v4691
        %v4693 = vlaneseq
        %v4694 = vshrl.u32 %v4693, 7
        %v4695 = vsub.s32 6, %v4694
        %v4696 = vrot.slane %v3128, %v4695
        %v4697 = vlaneseq
        %v4698 = vshrl.u32 %v4697, 7
        %v4699 = vsub.s32 7, %v4698
        %v4700 = vrot.slane %v3128, %v4699
        %v4701 = vlaneseq
        %v4702 = vshrl.u32 %v4701, 7
        %v4703 = vsub.s32 0, %v4702
        %v4704 = vrot.slane %v3130, %v4703
        %v4705 = vlaneseq
        %v4706 = vshrl.u32 %v4705, 7
        %v4707 = vsub.s32 1, %v4706
        %v4708 = vrot.slane %v3130, %v4707
        %v4709 = vlaneseq
        %v4710 = vshrl.u32 %v4709, 7
        %v4711 = vsub.s32 2, %v4710
        %v4712 = vrot.slane %v3130, %v4711
        %v4713 = vlaneseq
        %v4714 = vshrl.u32 %v4713, 7
        %v4715 = vsub.s32 3, %v4714
        %v4716 = vrot.slane %v3130, %v4715
        %v4717 = vlaneseq
        %v4718 = vshrl.u32 %v4717, 7
        %v4719 = vsub.s32 4, %v4718
        %v4720 = vrot.slane %v3130, %v4719
        %v4721 = vlaneseq
        %v4722 = vshrl.u32 %v4721, 7
        %v4723 = vsub.s32 5, %v4722
        %v4724 = vrot.slane %v3130, %v4723
        %v4725 = vlaneseq
        %v4726 = vshrl.u32 %v4725, 7
        %v4727 = vsub.s32 6, %v4726
        %v4728 = vrot.slane %v3130, %v4727
        %v4729 = vlaneseq
        %v4730 = vshrl.u32 %v4729, 7
        %v4731 = vsub.s32 7, %v4730
        %v4732 = vrot.slane %v3130, %v4731
        %v4733 = vlaneseq
        %v4734 = vshrl.u32 %v4733, 7
        %v4735 = vsub.s32 0, %v4734
        %v4736 = vrot.slane %v3132, %v4735
        %v4737 = vlaneseq
        %v4738 = vshrl.u32 %v4737, 7
        %v4739 = vsub.s32 1, %v4738
        %v4740 = vrot.slane %v3132, %v4739
        %v4741 = vlaneseq
        %v4742 = vshrl.u32 %v4741, 7
        %v4743 = vsub.s32 2, %v4742
        %v4744 = vrot.slane %v3132, %v4743
        %v4745 = vlaneseq
        %v4746 = vshrl.u32 %v4745, 7
        %v4747 = vsub.s32 3, %v4746
        %v4748 = vrot.slane %v3132, %v4747
        %v4749 = vlaneseq
        %v4750 = vshrl.u32 %v4749, 7
        %v4751 = vsub.s32 4, %v4750
        %v4752 = vrot.slane %v3132, %v4751
        %v4753 = vlaneseq
        %v4754 = vshrl.u32 %v4753, 7
        %v4755 = vsub.s32 5, %v4754
        %v4756 = vrot.slane %v3132, %v4755
        %v4757 = vlaneseq
        %v4758 = vshrl.u32 %v4757, 7
        %v4759 = vsub.s32 6, %v4758
        %v4760 = vrot.slane %v3132, %v4759
        %v4761 = vlaneseq
        %v4762 = vshrl.u32 %v4761, 7
        %v4763 = vsub.s32 7, %v4762
        %v4764 = vrot.slane %v3132, %v4763
        %v4765 = vlaneseq
        %v4766 = vshrl.u32 %v4765, 7
        %v4767 = vsub.s32 0, %v4766
        %v4768 = vrot.slane %v3134, %v4767
        %v4769 = vlaneseq
        %v4770 = vshrl.u32 %v4769, 7
        %v4771 = vsub.s32 1, %v4770
        %v4772 = vrot.slane %v3134, %v4771
        %v4773 = vlaneseq
        %v4774 = vshrl.u32 %v4773, 7
        %v4775 = vsub.s32 2, %v4774
        %v4776 = vrot.slane %v3134, %v4775
        %v4777 = vlaneseq
        %v4778 = vshrl.u32 %v4777, 7
        %v4779 = vsub.s32 3, %v4778
        %v4780 = vrot.slane %v3134, %v4779
        %v4781 = vlaneseq
        %v4782 = vshrl.u32 %v4781, 7
        %v4783 = vsub.s32 4, %v4782
        %v4784 = vrot.slane %v3134, %v4783
        %v4785 = vlaneseq
        %v4786 = vshrl.u32 %v4785, 7
        %v4787 = vsub.s32 5, %v4786
        %v4788 = vrot.slane %v3134, %v4787
        %v4789 = vlaneseq
        %v4790 = vshrl.u32 %v4789, 7
        %v4791 = vsub.s32 6, %v4790
        %v4792 = vrot.slane %v3134, %v4791
        %v4793 = vlaneseq
        %v4794 = vshrl.u32 %v4793, 7
        %v4795 = vsub.s32 7, %v4794
        %v4796 = vrot.slane %v3134, %v4795
        %v4797 = vlaneseq
        %v4798 = vshrl.u32 %v4797, 7
        %v4799 = vsub.s32 0, %v4798
        %v4800 = vrot.slane %v3136, %v4799
        %v4801 = vlaneseq
        %v4802 = vshrl.u32 %v4801, 7
        %v4803 = vsub.s32 1, %v4802
        %v4804 = vrot.slane %v3136, %v4803
        %v4805 = vlaneseq
        %v4806 = vshrl.u32 %v4805, 7
        %v4807 = vsub.s32 2, %v4806
        %v4808 = vrot.slane %v3136, %v4807
        %v4809 = vlaneseq
        %v4810 = vshrl.u32 %v4809, 7
        %v4811 = vsub.s32 3, %v4810
        %v4812 = vrot.slane %v3136, %v4811
        %v4813 = vlaneseq
        %v4814 = vshrl.u32 %v4813, 7
        %v4815 = vsub.s32 4, %v4814
        %v4816 = vrot.slane %v3136, %v4815
        %v4817 = vlaneseq
        %v4818 = vshrl.u32 %v4817, 7
        %v4819 = vsub.s32 5, %v4818
        %v4820 = vrot.slane %v3136, %v4819
        %v4821 = vlaneseq
        %v4822 = vshrl.u32 %v4821, 7
        %v4823 = vsub.s32 6, %v4822
        %v4824 = vrot.slane %v3136, %v4823
        %v4825 = vlaneseq
        %v4826 = vshrl.u32 %v4825, 7
        %v4827 = vsub.s32 7, %v4826
        %v4828 = vrot.slane %v3136, %v4827
        %v4829 = vlaneseq
        %v4830 = vshrl.u32 %v4829, 7
        %v4831 = vsub.s32 0, %v4830
        %v4832 = vrot.slane %v3138, %v4831
        %v4833 = vlaneseq
        %v4834 = vshrl.u32 %v4833, 7
        %v4835 = vsub.s32 1, %v4834
        %v4836 = vrot.slane %v3138, %v4835
        %v4837 = vlaneseq
        %v4838 = vshrl.u32 %v4837, 7
        %v4839 = vsub.s32 2, %v4838
        %v4840 = vrot.slane %v3138, %v4839
        %v4841 = vlaneseq
        %v4842 = vshrl.u32 %v4841, 7
        %v4843 = vsub.s32 3, %v4842
        %v4844 = vrot.slane %v3138, %v4843
        %v4845 = vlaneseq
        %v4846 = vshrl.u32 %v4845, 7
        %v4847 = vsub.s32 4, %v4846
        %v4848 = vrot.slane %v3138, %v4847
        %v4849 = vlaneseq
        %v4850 = vshrl.u32 %v4849, 7
        %v4851 = vsub.s32 5, %v4850
        %v4852 = vrot.slane %v3138, %v4851
        %v4853 = vlaneseq
        %v4854 = vshrl.u32 %v4853, 7
        %v4855 = vsub.s32 6, %v4854
        %v4856 = vrot.slane %v3138, %v4855
        %v4857 = vlaneseq
        %v4858 = vshrl.u32 %v4857, 7
        %v4859 = vsub.s32 7, %v4858
        %v4860 = vrot.slane %v3138, %v4859
        %v4861 = vlaneseq
        %v4862 = vshrl.u32 %v4861, 7
        %v4863 = vsub.s32 0, %v4862
        %v4864 = vrot.slane %v3140, %v4863
        %v4865 = vlaneseq
        %v4866 = vshrl.u32 %v4865, 7
        %v4867 = vsub.s32 1, %v4866
        %v4868 = vrot.slane %v3140, %v4867
        %v4869 = vlaneseq
        %v4870 = vshrl.u32 %v4869, 7
        %v4871 = vsub.s32 2, %v4870
        %v4872 = vrot.slane %v3140, %v4871
        %v4873 = vlaneseq
        %v4874 = vshrl.u32 %v4873, 7
        %v4875 = vsub.s32 3, %v4874
        %v4876 = vrot.slane %v3140, %v4875
        %v4877 = vlaneseq
        %v4878 = vshrl.u32 %v4877, 7
        %v4879 = vsub.s32 4, %v4878
        %v4880 = vrot.slane %v3140, %v4879
        %v4881 = vlaneseq
        %v4882 = vshrl.u32 %v4881, 7
        %v4883 = vsub.s32 5, %v4882
        %v4884 = vrot.slane %v3140, %v4883
        %v4885 = vlaneseq
        %v4886 = vshrl.u32 %v4885, 7
        %v4887 = vsub.s32 6, %v4886
        %v4888 = vrot.slane %v3140, %v4887
        %v4889 = vlaneseq
        %v4890 = vshrl.u32 %v4889, 7
        %v4891 = vsub.s32 7, %v4890
        %v4892 = vrot.slane %v3140, %v4891
        %v4893 = vlaneseq
        %v4894 = vshrl.u32 %v4893, 7
        %v4895 = vsub.s32 0, %v4894
        %v4896 = vrot.slane %v3142, %v4895
        %v4897 = vlaneseq
        %v4898 = vshrl.u32 %v4897, 7
        %v4899 = vsub.s32 1, %v4898
        %v4900 = vrot.slane %v3142, %v4899
        %v4901 = vlaneseq
        %v4902 = vshrl.u32 %v4901, 7
        %v4903 = vsub.s32 2, %v4902
        %v4904 = vrot.slane %v3142, %v4903
        %v4905 = vlaneseq
        %v4906 = vshrl.u32 %v4905, 7
        %v4907 = vsub.s32 3, %v4906
        %v4908 = vrot.slane %v3142, %v4907
        %v4909 = vlaneseq
        %v4910 = vshrl.u32 %v4909, 7
        %v4911 = vsub.s32 4, %v4910
        %v4912 = vrot.slane %v3142, %v4911
        %v4913 = vlaneseq
        %v4914 = vshrl.u32 %v4913, 7
        %v4915 = vsub.s32 5, %v4914
        %v4916 = vrot.slane %v3142, %v4915
        %v4917 = vlaneseq
        %v4918 = vshrl.u32 %v4917, 7
        %v4919 = vsub.s32 6, %v4918
        %v4920 = vrot.slane %v3142, %v4919
        %v4921 = vlaneseq
        %v4922 = vshrl.u32 %v4921, 7
        %v4923 = vsub.s32 7, %v4922
        %v4924 = vrot.slane %v3142, %v4923
        %v4925 = vlaneseq
        %v4926 = vshrl.u32 %v4925, 7
        %v4927 = vsub.s32 0, %v4926
        %v4928 = vrot.slane %v3144, %v4927
        %v4929 = vlaneseq
        %v4930 = vshrl.u32 %v4929, 7
        %v4931 = vsub.s32 1, %v4930
        %v4932 = vrot.slane %v3144, %v4931
        %v4933 = vlaneseq
        %v4934 = vshrl.u32 %v4933, 7
        %v4935 = vsub.s32 2, %v4934
        %v4936 = vrot.slane %v3144, %v4935
        %v4937 = vlaneseq
        %v4938 = vshrl.u32 %v4937, 7
        %v4939 = vsub.s32 3, %v4938
        %v4940 = vrot.slane %v3144, %v4939
        %v4941 = vlaneseq
        %v4942 = vshrl.u32 %v4941, 7
        %v4943 = vsub.s32 4, %v4942
        %v4944 = vrot.slane %v3144, %v4943
        %v4945 = vlaneseq
        %v4946 = vshrl.u32 %v4945, 7
        %v4947 = vsub.s32 5, %v4946
        %v4948 = vrot.slane %v3144, %v4947
        %v4949 = vlaneseq
        %v4950 = vshrl.u32 %v4949, 7
        %v4951 = vsub.s32 6, %v4950
        %v4952 = vrot.slane %v3144, %v4951
        %v4953 = vlaneseq
        %v4954 = vshrl.u32 %v4953, 7
        %v4955 = vsub.s32 7, %v4954
        %v4956 = vrot.slane %v3144, %v4955
        %v4957 = vlaneseq
        %v4958 = vshrl.u32 %v4957, 7
        %v4959 = vsub.s32 0, %v4958
        %v4960 = vrot.slane %v3146, %v4959
        %v4961 = vlaneseq
        %v4962 = vshrl.u32 %v4961, 7
        %v4963 = vsub.s32 1, %v4962
        %v4964 = vrot.slane %v3146, %v4963
        %v4965 = vlaneseq
        %v4966 = vshrl.u32 %v4965, 7
        %v4967 = vsub.s32 2, %v4966
        %v4968 = vrot.slane %v3146, %v4967
        %v4969 = vlaneseq
        %v4970 = vshrl.u32 %v4969, 7
        %v4971 = vsub.s32 3, %v4970
        %v4972 = vrot.slane %v3146, %v4971
        %v4973 = vlaneseq
        %v4974 = vshrl.u32 %v4973, 7
        %v4975 = vsub.s32 4, %v4974
        %v4976 = vrot.slane %v3146, %v4975
        %v4977 = vlaneseq
        %v4978 = vshrl.u32 %v4977, 7
        %v4979 = vsub.s32 5, %v4978
        %v4980 = vrot.slane %v3146, %v4979
        %v4981 = vlaneseq
        %v4982 = vshrl.u32 %v4981, 7
        %v4983 = vsub.s32 6, %v4982
        %v4984 = vrot.slane %v3146, %v4983
        %v4985 = vlaneseq
        %v4986 = vshrl.u32 %v4985, 7
        %v4987 = vsub.s32 7, %v4986
        %v4988 = vrot.slane %v3146, %v4987
        %v4989 = vlaneseq
        %v4990 = vshrl.u32 %v4989, 7
        %v4991 = vsub.s32 0, %v4990
        %v4992 = vrot.slane %v3148, %v4991
        %v4993 = vlaneseq
        %v4994 = vshrl.u32 %v4993, 7
        %v4995 = vsub.s32 1, %v4994
        %v4996 = vrot.slane %v3148, %v4995
        %v4997 = vlaneseq
        %v4998 = vshrl.u32 %v4997, 7
        %v4999 = vsub.s32 2, %v4998
        %v5000 = vrot.slane %v3148, %v4999
        %v5001 = vlaneseq
        %v5002 = vshrl.u32 %v5001, 7
        %v5003 = vsub.s32 3, %v5002
        %v5004 = vrot.slane %v3148, %v5003
        %v5005 = vlaneseq
        %v5006 = vshrl.u32 %v5005, 7
        %v5007 = vsub.s32 4, %v5006
        %v5008 = vrot.slane %v3148, %v5007
        %v5009 = vlaneseq
        %v5010 = vshrl.u32 %v5009, 7
        %v5011 = vsub.s32 5, %v5010
        %v5012 = vrot.slane %v3148, %v5011
        %v5013 = vlaneseq
        %v5014 = vshrl.u32 %v5013, 7
        %v5015 = vsub.s32 6, %v5014
        %v5016 = vrot.slane %v3148, %v5015
        %v5017 = vlaneseq
        %v5018 = vshrl.u32 %v5017, 7
        %v5019 = vsub.s32 7, %v5018
        %v5020 = vrot.slane %v3148, %v5019
        %v5021 = vlaneseq
        %v5022 = vshrl.u32 %v5021, 7
        %v5023 = vsub.s32 0, %v5022
        %v5024 = vrot.slane %v3150, %v5023
        %v5025 = vlaneseq
        %v5026 = vshrl.u32 %v5025, 7
        %v5027 = vsub.s32 1, %v5026
        %v5028 = vrot.slane %v3150, %v5027
        %v5029 = vlaneseq
        %v5030 = vshrl.u32 %v5029, 7
        %v5031 = vsub.s32 2, %v5030
        %v5032 = vrot.slane %v3150, %v5031
        %v5033 = vlaneseq
        %v5034 = vshrl.u32 %v5033, 7
        %v5035 = vsub.s32 3, %v5034
        %v5036 = vrot.slane %v3150, %v5035
        %v5037 = vlaneseq
        %v5038 = vshrl.u32 %v5037, 7
        %v5039 = vsub.s32 4, %v5038
        %v5040 = vrot.slane %v3150, %v5039
        %v5041 = vlaneseq
        %v5042 = vshrl.u32 %v5041, 7
        %v5043 = vsub.s32 5, %v5042
        %v5044 = vrot.slane %v3150, %v5043
        %v5045 = vlaneseq
        %v5046 = vshrl.u32 %v5045, 7
        %v5047 = vsub.s32 6, %v5046
        %v5048 = vrot.slane %v3150, %v5047
        %v5049 = vlaneseq
        %v5050 = vshrl.u32 %v5049, 7
        %v5051 = vsub.s32 7, %v5050
        %v5052 = vrot.slane %v3150, %v5051
        %v5053 = vlaneseq
        %v5054 = vshrl.u32 %v5053, 7
        %v5055 = vsub.s32 0, %v5054
        %v5056 = vrot.slane %v3152, %v5055
        %v5057 = vlaneseq
        %v5058 = vshrl.u32 %v5057, 7
        %v5059 = vsub.s32 1, %v5058
        %v5060 = vrot.slane %v3152, %v5059
        %v5061 = vlaneseq
        %v5062 = vshrl.u32 %v5061, 7
        %v5063 = vsub.s32 2, %v5062
        %v5064 = vrot.slane %v3152, %v5063
        %v5065 = vlaneseq
        %v5066 = vshrl.u32 %v5065, 7
        %v5067 = vsub.s32 3, %v5066
        %v5068 = vrot.slane %v3152, %v5067
        %v5069 = vlaneseq
        %v5070 = vshrl.u32 %v5069, 7
        %v5071 = vsub.s32 4, %v5070
        %v5072 = vrot.slane %v3152, %v5071
        %v5073 = vlaneseq
        %v5074 = vshrl.u32 %v5073, 7
        %v5075 = vsub.s32 5, %v5074
        %v5076 = vrot.slane %v3152, %v5075
        %v5077 = vlaneseq
        %v5078 = vshrl.u32 %v5077, 7
        %v5079 = vsub.s32 6, %v5078
        %v5080 = vrot.slane %v3152, %v5079
        %v5081 = vlaneseq
        %v5082 = vshrl.u32 %v5081, 7
        %v5083 = vsub.s32 7, %v5082
        %v5084 = vrot.slane %v3152, %v5083
        %v5085 = vlaneseq
        %v5086 = vshrl.u32 %v5085, 7
        %v5087 = vsub.s32 0, %v5086
        %v5088 = vrot.slane %v3154, %v5087
        %v5089 = vlaneseq
        %v5090 = vshrl.u32 %v5089, 7
        %v5091 = vsub.s32 1, %v5090
        %v5092 = vrot.slane %v3154, %v5091
        %v5093 = vlaneseq
        %v5094 = vshrl.u32 %v5093, 7
        %v5095 = vsub.s32 2, %v5094
        %v5096 = vrot.slane %v3154, %v5095
        %v5097 = vlaneseq
        %v5098 = vshrl.u32 %v5097, 7
        %v5099 = vsub.s32 3, %v5098
        %v5100 = vrot.slane %v3154, %v5099
        %v5101 = vlaneseq
        %v5102 = vshrl.u32 %v5101, 7
        %v5103 = vsub.s32 4, %v5102
        %v5104 = vrot.slane %v3154, %v5103
        %v5105 = vlaneseq
        %v5106 = vshrl.u32 %v5105, 7
        %v5107 = vsub.s32 5, %v5106
        %v5108 = vrot.slane %v3154, %v5107
        %v5109 = vlaneseq
        %v5110 = vshrl.u32 %v5109, 7
        %v5111 = vsub.s32 6, %v5110
        %v5112 = vrot.slane %v3154, %v5111
        %v5113 = vlaneseq
        %v5114 = vshrl.u32 %v5113, 7
        %v5115 = vsub.s32 7, %v5114
        %v5116 = vrot.slane %v3154, %v5115
        %v5117 = vlaneseq
        %v5118 = vshrl.u32 %v5117, 7
        %v5119 = vsub.s32 0, %v5118
        %v5120 = vrot.slane %v3156, %v5119
        %v5121 = vlaneseq
        %v5122 = vshrl.u32 %v5121, 7
        %v5123 = vsub.s32 1, %v5122
        %v5124 = vrot.slane %v3156, %v5123
        %v5125 = vlaneseq
        %v5126 = vshrl.u32 %v5125, 7
        %v5127 = vsub.s32 2, %v5126
        %v5128 = vrot.slane %v3156, %v5127
        %v5129 = vlaneseq
        %v5130 = vshrl.u32 %v5129, 7
        %v5131 = vsub.s32 3, %v5130
        %v5132 = vrot.slane %v3156, %v5131
        %v5133 = vlaneseq
        %v5134 = vshrl.u32 %v5133, 7
        %v5135 = vsub.s32 4, %v5134
        %v5136 = vrot.slane %v3156, %v5135
        %v5137 = vlaneseq
        %v5138 = vshrl.u32 %v5137, 7
        %v5139 = vsub.s32 5, %v5138
        %v5140 = vrot.slane %v3156, %v5139
        %v5141 = vlaneseq
        %v5142 = vshrl.u32 %v5141, 7
        %v5143 = vsub.s32 6, %v5142
        %v5144 = vrot.slane %v3156, %v5143
        %v5145 = vlaneseq
        %v5146 = vshrl.u32 %v5145, 7
        %v5147 = vsub.s32 7, %v5146
        %v5148 = vrot.slane %v3156, %v5147
        %v5149 = vlaneseq
        %v5150 = vshrl.u32 %v5149, 7
        %v5151 = vsub.s32 0, %v5150
        %v5152 = vrot.slane %v3158, %v5151
        %v5153 = vlaneseq
        %v5154 = vshrl.u32 %v5153, 7
        %v5155 = vsub.s32 1, %v5154
        %v5156 = vrot.slane %v3158, %v5155
        %v5157 = vlaneseq
        %v5158 = vshrl.u32 %v5157, 7
        %v5159 = vsub.s32 2, %v5158
        %v5160 = vrot.slane %v3158, %v5159
        %v5161 = vlaneseq
        %v5162 = vshrl.u32 %v5161, 7
        %v5163 = vsub.s32 3, %v5162
        %v5164 = vrot.slane %v3158, %v5163
        %v5165 = vlaneseq
        %v5166 = vshrl.u32 %v5165, 7
        %v5167 = vsub.s32 4, %v5166
        %v5168 = vrot.slane %v3158, %v5167
        %v5169 = vlaneseq
        %v5170 = vshrl.u32 %v5169, 7
        %v5171 = vsub.s32 5, %v5170
        %v5172 = vrot.slane %v3158, %v5171
        %v5173 = vlaneseq
        %v5174 = vshrl.u32 %v5173, 7
        %v5175 = vsub.s32 6, %v5174
        %v5176 = vrot.slane %v3158, %v5175
        %v5177 = vlaneseq
        %v5178 = vshrl.u32 %v5177, 7
        %v5179 = vsub.s32 7, %v5178
        %v5180 = vrot.slane %v3158, %v5179
        %v5181 = vlaneseq
        %v5182 = vshrl.u32 %v5181, 7
        %v5183 = vsub.s32 0, %v5182
        %v5184 = vrot.slane %v3160, %v5183
        %v5185 = vlaneseq
        %v5186 = vshrl.u32 %v5185, 7
        %v5187 = vsub.s32 1, %v5186
        %v5188 = vrot.slane %v3160, %v5187
        %v5189 = vlaneseq
        %v5190 = vshrl.u32 %v5189, 7
        %v5191 = vsub.s32 2, %v5190
        %v5192 = vrot.slane %v3160, %v5191
        %v5193 = vlaneseq
        %v5194 = vshrl.u32 %v5193, 7
        %v5195 = vsub.s32 3, %v5194
        %v5196 = vrot.slane %v3160, %v5195
        %v5197 = vlaneseq
        %v5198 = vshrl.u32 %v5197, 7
        %v5199 = vsub.s32 4, %v5198
        %v5200 = vrot.slane %v3160, %v5199
        %v5201 = vlaneseq
        %v5202 = vshrl.u32 %v5201, 7
        %v5203 = vsub.s32 5, %v5202
        %v5204 = vrot.slane %v3160, %v5203
        %v5205 = vlaneseq
        %v5206 = vshrl.u32 %v5205, 7
        %v5207 = vsub.s32 6, %v5206
        %v5208 = vrot.slane %v3160, %v5207
        %v5209 = vlaneseq
        %v5210 = vshrl.u32 %v5209, 7
        %v5211 = vsub.s32 7, %v5210
        %v5212 = vrot.slane %v3160, %v5211
        %v5213 = vlaneseq
        %v5214 = vshrl.u32 %v5213, 7
        %v5215 = vsub.s32 0, %v5214
        %v5216 = vrot.slane %v3162, %v5215
        %v5217 = vlaneseq
        %v5218 = vshrl.u32 %v5217, 7
        %v5219 = vsub.s32 1, %v5218
        %v5220 = vrot.slane %v3162, %v5219
        %v5221 = vlaneseq
        %v5222 = vshrl.u32 %v5221, 7
        %v5223 = vsub.s32 2, %v5222
        %v5224 = vrot.slane %v3162, %v5223
        %v5225 = vlaneseq
        %v5226 = vshrl.u32 %v5225, 7
        %v5227 = vsub.s32 3, %v5226
        %v5228 = vrot.slane %v3162, %v5227
        %v5229 = vlaneseq
        %v5230 = vshrl.u32 %v5229, 7
        %v5231 = vsub.s32 4, %v5230
        %v5232 = vrot.slane %v3162, %v5231
        %v5233 = vlaneseq
        %v5234 = vshrl.u32 %v5233, 7
        %v5235 = vsub.s32 5, %v5234
        %v5236 = vrot.slane %v3162, %v5235
        %v5237 = vlaneseq
        %v5238 = vshrl.u32 %v5237, 7
        %v5239 = vsub.s32 6, %v5238
        %v5240 = vrot.slane %v3162, %v5239
        %v5241 = vlaneseq
        %v5242 = vshrl.u32 %v5241, 7
        %v5243 = vsub.s32 7, %v5242
        %v5244 = vrot.slane %v3162, %v5243
        %v5245 = vlaneseq
        %v5246 = vshrl.u32 %v5245, 7
        %v5247 = vsub.s32 0, %v5246
        %v5248 = vrot.slane %v3164, %v5247
        %v5249 = vlaneseq
        %v5250 = vshrl.u32 %v5249, 7
        %v5251 = vsub.s32 1, %v5250
        %v5252 = vrot.slane %v3164, %v5251
        %v5253 = vlaneseq
        %v5254 = vshrl.u32 %v5253, 7
        %v5255 = vsub.s32 2, %v5254
        %v5256 = vrot.slane %v3164, %v5255
        %v5257 = vlaneseq
        %v5258 = vshrl.u32 %v5257, 7
        %v5259 = vsub.s32 3, %v5258
        %v5260 = vrot.slane %v3164, %v5259
        %v5261 = vlaneseq
        %v5262 = vshrl.u32 %v5261, 7
        %v5263 = vsub.s32 4, %v5262
        %v5264 = vrot.slane %v3164, %v5263
        %v5265 = vlaneseq
        %v5266 = vshrl.u32 %v5265, 7
        %v5267 = vsub.s32 5, %v5266
        %v5268 = vrot.slane %v3164, %v5267
        %v5269 = vlaneseq
        %v5270 = vshrl.u32 %v5269, 7
        %v5271 = vsub.s32 6, %v5270
        %v5272 = vrot.slane %v3164, %v5271
        %v5273 = vlaneseq
        %v5274 = vshrl.u32 %v5273, 7
        %v5275 = vsub.s32 7, %v5274
        %v5276 = vrot.slane %v3164, %v5275
        %v5277 = vcombine.low %v3232, %v3236
        %v5278 = vcombine.low %v3240, %v3244
        %v5279 = vcombine.low %v3248, %v3252
        %v5280 = vcombine.low %v3256, %v3260
        %v5282 = vunpack.c.l.s4 1966171168
        %v5283 = vunpack.c.0.s8 %v5282
        %v5284 = vlaneseq
        %v5285 = vshrl.u32 %v5284, 7
        %v5286 = vsub.s32 %v5283, %v5285
        %v5287 = vrot.slane %v5277, %v5286
        %v5289 = vunpack.c.l.s4 1966171168
        %v5290 = vunpack.c.0.s8 %v5289
        %v5291 = vlaneseq
        %v5292 = vshrl.u32 %v5291, 7
        %v5293 = vsub.s32 %v5290, %v5292
        %v5294 = vrot.slane %v5278, %v5293
        %v5296 = vunpack.c.l.s4 1966171168
        %v5297 = vunpack.c.0.s8 %v5296
        %v5298 = vlaneseq
        %v5299 = vshrl.u32 %v5298, 7
        %v5300 = vsub.s32 %v5297, %v5299
        %v5301 = vrot.slane %v5279, %v5300
        %v5303 = vunpack.c.l.s4 1966171168
        %v5304 = vunpack.c.0.s8 %v5303
        %v5305 = vlaneseq
        %v5306 = vshrl.u32 %v5305, 7
        %v5307 = vsub.s32 %v5304, %v5306
        %v5308 = vrot.slane %v5280, %v5307
        %v5309 = vcombine.low %v5287, %v5294
        %v5310 = vcombine.low %v5301, %v5308
        %v5312 = vunpack.c.l.s4 1966171168
        %v5313 = vunpack.c.0.s8 %v5312
        %v5314 = vlaneseq
        %v5315 = vshrl.u32 %v5314, 7
        %v5316 = vsub.s32 %v5313, %v5315
        %v5317 = vrot.slane %v5309, %v5316
        %v5319 = vunpack.c.l.s4 1966171168
        %v5320 = vunpack.c.0.s8 %v5319
        %v5321 = vlaneseq
        %v5322 = vshrl.u32 %v5321, 7
        %v5323 = vsub.s32 %v5320, %v5322
        %v5324 = vrot.slane %v5310, %v5323
        %v5325 = vcombine.low %v5317, %v5324
        %v5326 = vcombine.low %v3264, %v3268
        %v5327 = vcombine.low %v3272, %v3276
        %v5328 = vcombine.low %v3280, %v3284
        %v5329 = vcombine.low %v3288, %v3292
        %v5331 = vunpack.c.l.s4 1966171168
        %v5332 = vunpack.c.0.s8 %v5331
        %v5333 = vlaneseq
        %v5334 = vshrl.u32 %v5333, 7
        %v5335 = vsub.s32 %v5332, %v5334
        %v5336 = vrot.slane %v5326, %v5335
        %v5338 = vunpack.c.l.s4 1966171168
        %v5339 = vunpack.c.0.s8 %v5338
        %v5340 = vlaneseq
        %v5341 = vshrl.u32 %v5340, 7
        %v5342 = vsub.s32 %v5339, %v5341
        %v5343 = vrot.slane %v5327, %v5342
        %v5345 = vunpack.c.l.s4 1966171168
        %v5346 = vunpack.c.0.s8 %v5345
        %v5347 = vlaneseq
        %v5348 = vshrl.u32 %v5347, 7
        %v5349 = vsub.s32 %v5346, %v5348
        %v5350 = vrot.slane %v5328, %v5349
        %v5352 = vunpack.c.l.s4 1966171168
        %v5353 = vunpack.c.0.s8 %v5352
        %v5354 = vlaneseq
        %v5355 = vshrl.u32 %v5354, 7
        %v5356 = vsub.s32 %v5353, %v5355
        %v5357 = vrot.slane %v5329, %v5356
        %v5358 = vcombine.low %v5336, %v5343
        %v5359 = vcombine.low %v5350, %v5357
        %v5361 = vunpack.c.l.s4 1966171168
        %v5362 = vunpack.c.0.s8 %v5361
        %v5363 = vlaneseq
        %v5364 = vshrl.u32 %v5363, 7
        %v5365 = vsub.s32 %v5362, %v5364
        %v5366 = vrot.slane %v5358, %v5365
        %v5368 = vunpack.c.l.s4 1966171168
        %v5369 = vunpack.c.0.s8 %v5368
        %v5370 = vlaneseq
        %v5371 = vshrl.u32 %v5370, 7
        %v5372 = vsub.s32 %v5369, %v5371
        %v5373 = vrot.slane %v5359, %v5372
        %v5374 = vcombine.low %v5366, %v5373
        %v5375 = vcombine.low %v3296, %v3300
        %v5376 = vcombine.low %v3304, %v3308
        %v5377 = vcombine.low %v3312, %v3316
        %v5378 = vcombine.low %v3320, %v3324
        %v5380 = vunpack.c.l.s4 1966171168
        %v5381 = vunpack.c.0.s8 %v5380
        %v5382 = vlaneseq
        %v5383 = vshrl.u32 %v5382, 7
        %v5384 = vsub.s32 %v5381, %v5383
        %v5385 = vrot.slane %v5375, %v5384
        %v5387 = vunpack.c.l.s4 1966171168
        %v5388 = vunpack.c.0.s8 %v5387
        %v5389 = vlaneseq
        %v5390 = vshrl.u32 %v5389, 7
        %v5391 = vsub.s32 %v5388, %v5390
        %v5392 = vrot.slane %v5376, %v5391
        %v5394 = vunpack.c.l.s4 1966171168
        %v5395 = vunpack.c.0.s8 %v5394
        %v5396 = vlaneseq
        %v5397 = vshrl.u32 %v5396, 7
        %v5398 = vsub.s32 %v5395, %v5397
        %v5399 = vrot.slane %v5377, %v5398
        %v5401 = vunpack.c.l.s4 1966171168
        %v5402 = vunpack.c.0.s8 %v5401
        %v5403 = vlaneseq
        %v5404 = vshrl.u32 %v5403, 7
        %v5405 = vsub.s32 %v5402, %v5404
        %v5406 = vrot.slane %v5378, %v5405
        %v5407 = vcombine.low %v5385, %v5392
        %v5408 = vcombine.low %v5399, %v5406
        %v5410 = vunpack.c.l.s4 1966171168
        %v5411 = vunpack.c.0.s8 %v5410
        %v5412 = vlaneseq
        %v5413 = vshrl.u32 %v5412, 7
        %v5414 = vsub.s32 %v5411, %v5413
        %v5415 = vrot.slane %v5407, %v5414
        %v5417 = vunpack.c.l.s4 1966171168
        %v5418 = vunpack.c.0.s8 %v5417
        %v5419 = vlaneseq
        %v5420 = vshrl.u32 %v5419, 7
        %v5421 = vsub.s32 %v5418, %v5420
        %v5422 = vrot.slane %v5408, %v5421
        %v5423 = vcombine.low %v5415, %v5422
        %v5424 = vcombine.low %v3328, %v3332
        %v5425 = vcombine.low %v3336, %v3340
        %v5426 = vcombine.low %v3344, %v3348
        %v5427 = vcombine.low %v3352, %v3356
        %v5429 = vunpack.c.l.s4 1966171168
        %v5430 = vunpack.c.0.s8 %v5429
        %v5431 = vlaneseq
        %v5432 = vshrl.u32 %v5431, 7
        %v5433 = vsub.s32 %v5430, %v5432
        %v5434 = vrot.slane %v5424, %v5433
        %v5436 = vunpack.c.l.s4 1966171168
        %v5437 = vunpack.c.0.s8 %v5436
        %v5438 = vlaneseq
        %v5439 = vshrl.u32 %v5438, 7
        %v5440 = vsub.s32 %v5437, %v5439
        %v5441 = vrot.slane %v5425, %v5440
        %v5443 = vunpack.c.l.s4 1966171168
        %v5444 = vunpack.c.0.s8 %v5443
        %v5445 = vlaneseq
        %v5446 = vshrl.u32 %v5445, 7
        %v5447 = vsub.s32 %v5444, %v5446
        %v5448 = vrot.slane %v5426, %v5447
        %v5450 = vunpack.c.l.s4 1966171168
        %v5451 = vunpack.c.0.s8 %v5450
        %v5452 = vlaneseq
        %v5453 = vshrl.u32 %v5452, 7
        %v5454 = vsub.s32 %v5451, %v5453
        %v5455 = vrot.slane %v5427, %v5454
        %v5456 = vcombine.low %v5434, %v5441
        %v5457 = vcombine.low %v5448, %v5455
        %v5459 = vunpack.c.l.s4 1966171168
        %v5460 = vunpack.c.0.s8 %v5459
        %v5461 = vlaneseq
        %v5462 = vshrl.u32 %v5461, 7
        %v5463 = vsub.s32 %v5460, %v5462
        %v5464 = vrot.slane %v5456, %v5463
        %v5466 = vunpack.c.l.s4 1966171168
        %v5467 = vunpack.c.0.s8 %v5466
        %v5468 = vlaneseq
        %v5469 = vshrl.u32 %v5468, 7
        %v5470 = vsub.s32 %v5467, %v5469
        %v5471 = vrot.slane %v5457, %v5470
        %v5472 = vcombine.low %v5464, %v5471
        %v5473 = vcombine.low %v3360, %v3364
        %v5474 = vcombine.low %v3368, %v3372
        %v5475 = vcombine.low %v3376, %v3380
        %v5476 = vcombine.low %v3384, %v3388
        %v5478 = vunpack.c.l.s4 1966171168
        %v5479 = vunpack.c.0.s8 %v5478
        %v5480 = vlaneseq
        %v5481 = vshrl.u32 %v5480, 7
        %v5482 = vsub.s32 %v5479, %v5481
        %v5483 = vrot.slane %v5473, %v5482
        %v5485 = vunpack.c.l.s4 1966171168
        %v5486 = vunpack.c.0.s8 %v5485
        %v5487 = vlaneseq
        %v5488 = vshrl.u32 %v5487, 7
        %v5489 = vsub.s32 %v5486, %v5488
        %v5490 = vrot.slane %v5474, %v5489
        %v5492 = vunpack.c.l.s4 1966171168
        %v5493 = vunpack.c.0.s8 %v5492
        %v5494 = vlaneseq
        %v5495 = vshrl.u32 %v5494, 7
        %v5496 = vsub.s32 %v5493, %v5495
        %v5497 = vrot.slane %v5475, %v5496
        %v5499 = vunpack.c.l.s4 1966171168
        %v5500 = vunpack.c.0.s8 %v5499
        %v5501 = vlaneseq
        %v5502 = vshrl.u32 %v5501, 7
        %v5503 = vsub.s32 %v5500, %v5502
        %v5504 = vrot.slane %v5476, %v5503
        %v5505 = vcombine.low %v5483, %v5490
        %v5506 = vcombine.low %v5497, %v5504
        %v5508 = vunpack.c.l.s4 1966171168
        %v5509 = vunpack.c.0.s8 %v5508
        %v5510 = vlaneseq
        %v5511 = vshrl.u32 %v5510, 7
        %v5512 = vsub.s32 %v5509, %v5511
        %v5513 = vrot.slane %v5505, %v5512
        %v5515 = vunpack.c.l.s4 1966171168
        %v5516 = vunpack.c.0.s8 %v5515
        %v5517 = vlaneseq
        %v5518 = vshrl.u32 %v5517, 7
        %v5519 = vsub.s32 %v5516, %v5518
        %v5520 = vrot.slane %v5506, %v5519
        %v5521 = vcombine.low %v5513, %v5520
        %v5522 = vcombine.low %v3392, %v3396
        %v5523 = vcombine.low %v3400, %v3404
        %v5524 = vcombine.low %v3408, %v3412
        %v5525 = vcombine.low %v3416, %v3420
        %v5527 = vunpack.c.l.s4 1966171168
        %v5528 = vunpack.c.0.s8 %v5527
        %v5529 = vlaneseq
        %v5530 = vshrl.u32 %v5529, 7
        %v5531 = vsub.s32 %v5528, %v5530
        %v5532 = vrot.slane %v5522, %v5531
        %v5534 = vunpack.c.l.s4 1966171168
        %v5535 = vunpack.c.0.s8 %v5534
        %v5536 = vlaneseq
        %v5537 = vshrl.u32 %v5536, 7
        %v5538 = vsub.s32 %v5535, %v5537
        %v5539 = vrot.slane %v5523, %v5538
        %v5541 = vunpack.c.l.s4 1966171168
        %v5542 = vunpack.c.0.s8 %v5541
        %v5543 = vlaneseq
        %v5544 = vshrl.u32 %v5543, 7
        %v5545 = vsub.s32 %v5542, %v5544
        %v5546 = vrot.slane %v5524, %v5545
        %v5548 = vunpack.c.l.s4 1966171168
        %v5549 = vunpack.c.0.s8 %v5548
        %v5550 = vlaneseq
        %v5551 = vshrl.u32 %v5550, 7
        %v5552 = vsub.s32 %v5549, %v5551
        %v5553 = vrot.slane %v5525, %v5552
        %v5554 = vcombine.low %v5532, %v5539
        %v5555 = vcombine.low %v5546, %v5553
        %v5557 = vunpack.c.l.s4 1966171168
        %v5558 = vunpack.c.0.s8 %v5557
        %v5559 = vlaneseq
        %v5560 = vshrl.u32 %v5559, 7
        %v5561 = vsub.s32 %v5558, %v5560
        %v5562 = vrot.slane %v5554, %v5561
        %v5564 = vunpack.c.l.s4 1966171168
        %v5565 = vunpack.c.0.s8 %v5564
        %v5566 = vlaneseq
        %v5567 = vshrl.u32 %v5566, 7
        %v5568 = vsub.s32 %v5565, %v5567
        %v5569 = vrot.slane %v5555, %v5568
        %v5570 = vcombine.low %v5562, %v5569
        %v5571 = vcombine.low %v3424, %v3428
        %v5572 = vcombine.low %v3432, %v3436
        %v5573 = vcombine.low %v3440, %v3444
        %v5574 = vcombine.low %v3448, %v3452
        %v5576 = vunpack.c.l.s4 1966171168
        %v5577 = vunpack.c.0.s8 %v5576
        %v5578 = vlaneseq
        %v5579 = vshrl.u32 %v5578, 7
        %v5580 = vsub.s32 %v5577, %v5579
        %v5581 = vrot.slane %v5571, %v5580
        %v5583 = vunpack.c.l.s4 1966171168
        %v5584 = vunpack.c.0.s8 %v5583
        %v5585 = vlaneseq
        %v5586 = vshrl.u32 %v5585, 7
        %v5587 = vsub.s32 %v5584, %v5586
        %v5588 = vrot.slane %v5572, %v5587
        %v5590 = vunpack.c.l.s4 1966171168
        %v5591 = vunpack.c.0.s8 %v5590
        %v5592 = vlaneseq
        %v5593 = vshrl.u32 %v5592, 7
        %v5594 = vsub.s32 %v5591, %v5593
        %v5595 = vrot.slane %v5573, %v5594
        %v5597 = vunpack.c.l.s4 1966171168
        %v5598 = vunpack.c.0.s8 %v5597
        %v5599 = vlaneseq
        %v5600 = vshrl.u32 %v5599, 7
        %v5601 = vsub.s32 %v5598, %v5600
        %v5602 = vrot.slane %v5574, %v5601
        %v5603 = vcombine.low %v5581, %v5588
        %v5604 = vcombine.low %v5595, %v5602
        %v5606 = vunpack.c.l.s4 1966171168
        %v5607 = vunpack.c.0.s8 %v5606
        %v5608 = vlaneseq
        %v5609 = vshrl.u32 %v5608, 7
        %v5610 = vsub.s32 %v5607, %v5609
        %v5611 = vrot.slane %v5603, %v5610
        %v5613 = vunpack.c.l.s4 1966171168
        %v5614 = vunpack.c.0.s8 %v5613
        %v5615 = vlaneseq
        %v5616 = vshrl.u32 %v5615, 7
        %v5617 = vsub.s32 %v5614, %v5616
        %v5618 = vrot.slane %v5604, %v5617
        %v5619 = vcombine.low %v5611, %v5618
        %v5620 = vcombine.low %v3456, %v3460
        %v5621 = vcombine.low %v3464, %v3468
        %v5622 = vcombine.low %v3472, %v3476
        %v5623 = vcombine.low %v3480, %v3484
        %v5625 = vunpack.c.l.s4 1966171168
        %v5626 = vunpack.c.0.s8 %v5625
        %v5627 = vlaneseq
        %v5628 = vshrl.u32 %v5627, 7
        %v5629 = vsub.s32 %v5626, %v5628
        %v5630 = vrot.slane %v5620, %v5629
        %v5632 = vunpack.c.l.s4 1966171168
        %v5633 = vunpack.c.0.s8 %v5632
        %v5634 = vlaneseq
        %v5635 = vshrl.u32 %v5634, 7
        %v5636 = vsub.s32 %v5633, %v5635
        %v5637 = vrot.slane %v5621, %v5636
        %v5639 = vunpack.c.l.s4 1966171168
        %v5640 = vunpack.c.0.s8 %v5639
        %v5641 = vlaneseq
        %v5642 = vshrl.u32 %v5641, 7
        %v5643 = vsub.s32 %v5640, %v5642
        %v5644 = vrot.slane %v5622, %v5643
        %v5646 = vunpack.c.l.s4 1966171168
        %v5647 = vunpack.c.0.s8 %v5646
        %v5648 = vlaneseq
        %v5649 = vshrl.u32 %v5648, 7
        %v5650 = vsub.s32 %v5647, %v5649
        %v5651 = vrot.slane %v5623, %v5650
        %v5652 = vcombine.low %v5630, %v5637
        %v5653 = vcombine.low %v5644, %v5651
        %v5655 = vunpack.c.l.s4 1966171168
        %v5656 = vunpack.c.0.s8 %v5655
        %v5657 = vlaneseq
        %v5658 = vshrl.u32 %v5657, 7
        %v5659 = vsub.s32 %v5656, %v5658
        %v5660 = vrot.slane %v5652, %v5659
        %v5662 = vunpack.c.l.s4 1966171168
        %v5663 = vunpack.c.0.s8 %v5662
        %v5664 = vlaneseq
        %v5665 = vshrl.u32 %v5664, 7
        %v5666 = vsub.s32 %v5663, %v5665
        %v5667 = vrot.slane %v5653, %v5666
        %v5668 = vcombine.low %v5660, %v5667
        %v5669 = vcombine.low %v3488, %v3492
        %v5670 = vcombine.low %v3496, %v3500
        %v5671 = vcombine.low %v3504, %v3508
        %v5672 = vcombine.low %v3512, %v3516
        %v5674 = vunpack.c.l.s4 1966171168
        %v5675 = vunpack.c.0.s8 %v5674
        %v5676 = vlaneseq
        %v5677 = vshrl.u32 %v5676, 7
        %v5678 = vsub.s32 %v5675, %v5677
        %v5679 = vrot.slane %v5669, %v5678
        %v5681 = vunpack.c.l.s4 1966171168
        %v5682 = vunpack.c.0.s8 %v5681
        %v5683 = vlaneseq
        %v5684 = vshrl.u32 %v5683, 7
        %v5685 = vsub.s32 %v5682, %v5684
        %v5686 = vrot.slane %v5670, %v5685
        %v5688 = vunpack.c.l.s4 1966171168
        %v5689 = vunpack.c.0.s8 %v5688
        %v5690 = vlaneseq
        %v5691 = vshrl.u32 %v5690, 7
        %v5692 = vsub.s32 %v5689, %v5691
        %v5693 = vrot.slane %v5671, %v5692
        %v5695 = vunpack.c.l.s4 1966171168
        %v5696 = vunpack.c.0.s8 %v5695
        %v5697 = vlaneseq
        %v5698 = vshrl.u32 %v5697, 7
        %v5699 = vsub.s32 %v5696, %v5698
        %v5700 = vrot.slane %v5672, %v5699
        %v5701 = vcombine.low %v5679, %v5686
        %v5702 = vcombine.low %v5693, %v5700
        %v5704 = vunpack.c.l.s4 1966171168
        %v5705 = vunpack.c.0.s8 %v5704
        %v5706 = vlaneseq
        %v5707 = vshrl.u32 %v5706, 7
        %v5708 = vsub.s32 %v5705, %v5707
        %v5709 = vrot.slane %v5701, %v5708
        %v5711 = vunpack.c.l.s4 1966171168
        %v5712 = vunpack.c.0.s8 %v5711
        %v5713 = vlaneseq
        %v5714 = vshrl.u32 %v5713, 7
        %v5715 = vsub.s32 %v5712, %v5714
        %v5716 = vrot.slane %v5702, %v5715
        %v5717 = vcombine.low %v5709, %v5716
        %v5718 = vcombine.low %v3520, %v3524
        %v5719 = vcombine.low %v3528, %v3532
        %v5720 = vcombine.low %v3536, %v3540
        %v5721 = vcombine.low %v3544, %v3548
        %v5723 = vunpack.c.l.s4 1966171168
        %v5724 = vunpack.c.0.s8 %v5723
        %v5725 = vlaneseq
        %v5726 = vshrl.u32 %v5725, 7
        %v5727 = vsub.s32 %v5724, %v5726
        %v5728 = vrot.slane %v5718, %v5727
        %v5730 = vunpack.c.l.s4 1966171168
        %v5731 = vunpack.c.0.s8 %v5730
        %v5732 = vlaneseq
        %v5733 = vshrl.u32 %v5732, 7
        %v5734 = vsub.s32 %v5731, %v5733
        %v5735 = vrot.slane %v5719, %v5734
        %v5737 = vunpack.c.l.s4 1966171168
        %v5738 = vunpack.c.0.s8 %v5737
        %v5739 = vlaneseq
        %v5740 = vshrl.u32 %v5739, 7
        %v5741 = vsub.s32 %v5738, %v5740
        %v5742 = vrot.slane %v5720, %v5741
        %v5744 = vunpack.c.l.s4 1966171168
        %v5745 = vunpack.c.0.s8 %v5744
        %v5746 = vlaneseq
        %v5747 = vshrl.u32 %v5746, 7
        %v5748 = vsub.s32 %v5745, %v5747
        %v5749 = vrot.slane %v5721, %v5748
        %v5750 = vcombine.low %v5728, %v5735
        %v5751 = vcombine.low %v5742, %v5749
        %v5753 = vunpack.c.l.s4 1966171168
        %v5754 = vunpack.c.0.s8 %v5753
        %v5755 = vlaneseq
        %v5756 = vshrl.u32 %v5755, 7
        %v5757 = vsub.s32 %v5754, %v5756
        %v5758 = vrot.slane %v5750, %v5757
        %v5760 = vunpack.c.l.s4 1966171168
        %v5761 = vunpack.c.0.s8 %v5760
        %v5762 = vlaneseq
        %v5763 = vshrl.u32 %v5762, 7
        %v5764 = vsub.s32 %v5761, %v5763
        %v5765 = vrot.slane %v5751, %v5764
        %v5766 = vcombine.low %v5758, %v5765
        %v5767 = vcombine.low %v3552, %v3556
        %v5768 = vcombine.low %v3560, %v3564
        %v5769 = vcombine.low %v3568, %v3572
        %v5770 = vcombine.low %v3576, %v3580
        %v5772 = vunpack.c.l.s4 1966171168
        %v5773 = vunpack.c.0.s8 %v5772
        %v5774 = vlaneseq
        %v5775 = vshrl.u32 %v5774, 7
        %v5776 = vsub.s32 %v5773, %v5775
        %v5777 = vrot.slane %v5767, %v5776
        %v5779 = vunpack.c.l.s4 1966171168
        %v5780 = vunpack.c.0.s8 %v5779
        %v5781 = vlaneseq
        %v5782 = vshrl.u32 %v5781, 7
        %v5783 = vsub.s32 %v5780, %v5782
        %v5784 = vrot.slane %v5768, %v5783
        %v5786 = vunpack.c.l.s4 1966171168
        %v5787 = vunpack.c.0.s8 %v5786
        %v5788 = vlaneseq
        %v5789 = vshrl.u32 %v5788, 7
        %v5790 = vsub.s32 %v5787, %v5789
        %v5791 = vrot.slane %v5769, %v5790
        %v5793 = vunpack.c.l.s4 1966171168
        %v5794 = vunpack.c.0.s8 %v5793
        %v5795 = vlaneseq
        %v5796 = vshrl.u32 %v5795, 7
        %v5797 = vsub.s32 %v5794, %v5796
        %v5798 = vrot.slane %v5770, %v5797
        %v5799 = vcombine.low %v5777, %v5784
        %v5800 = vcombine.low %v5791, %v5798
        %v5802 = vunpack.c.l.s4 1966171168
        %v5803 = vunpack.c.0.s8 %v5802
        %v5804 = vlaneseq
        %v5805 = vshrl.u32 %v5804, 7
        %v5806 = vsub.s32 %v5803, %v5805
        %v5807 = vrot.slane %v5799, %v5806
        %v5809 = vunpack.c.l.s4 1966171168
        %v5810 = vunpack.c.0.s8 %v5809
        %v5811 = vlaneseq
        %v5812 = vshrl.u32 %v5811, 7
        %v5813 = vsub.s32 %v5810, %v5812
        %v5814 = vrot.slane %v5800, %v5813
        %v5815 = vcombine.low %v5807, %v5814
        %v5816 = vcombine.low %v3584, %v3588
        %v5817 = vcombine.low %v3592, %v3596
        %v5818 = vcombine.low %v3600, %v3604
        %v5819 = vcombine.low %v3608, %v3612
        %v5821 = vunpack.c.l.s4 1966171168
        %v5822 = vunpack.c.0.s8 %v5821
        %v5823 = vlaneseq
        %v5824 = vshrl.u32 %v5823, 7
        %v5825 = vsub.s32 %v5822, %v5824
        %v5826 = vrot.slane %v5816, %v5825
        %v5828 = vunpack.c.l.s4 1966171168
        %v5829 = vunpack.c.0.s8 %v5828
        %v5830 = vlaneseq
        %v5831 = vshrl.u32 %v5830, 7
        %v5832 = vsub.s32 %v5829, %v5831
        %v5833 = vrot.slane %v5817, %v5832
        %v5835 = vunpack.c.l.s4 1966171168
        %v5836 = vunpack.c.0.s8 %v5835
        %v5837 = vlaneseq
        %v5838 = vshrl.u32 %v5837, 7
        %v5839 = vsub.s32 %v5836, %v5838
        %v5840 = vrot.slane %v5818, %v5839
        %v5842 = vunpack.c.l.s4 1966171168
        %v5843 = vunpack.c.0.s8 %v5842
        %v5844 = vlaneseq
        %v5845 = vshrl.u32 %v5844, 7
        %v5846 = vsub.s32 %v5843, %v5845
        %v5847 = vrot.slane %v5819, %v5846
        %v5848 = vcombine.low %v5826, %v5833
        %v5849 = vcombine.low %v5840, %v5847
        %v5851 = vunpack.c.l.s4 1966171168
        %v5852 = vunpack.c.0.s8 %v5851
        %v5853 = vlaneseq
        %v5854 = vshrl.u32 %v5853, 7
        %v5855 = vsub.s32 %v5852, %v5854
        %v5856 = vrot.slane %v5848, %v5855
        %v5858 = vunpack.c.l.s4 1966171168
        %v5859 = vunpack.c.0.s8 %v5858
        %v5860 = vlaneseq
        %v5861 = vshrl.u32 %v5860, 7
        %v5862 = vsub.s32 %v5859, %v5861
        %v5863 = vrot.slane %v5849, %v5862
        %v5864 = vcombine.low %v5856, %v5863
        %v5865 = vcombine.low %v3616, %v3620
        %v5866 = vcombine.low %v3624, %v3628
        %v5867 = vcombine.low %v3632, %v3636
        %v5868 = vcombine.low %v3640, %v3644
        %v5870 = vunpack.c.l.s4 1966171168
        %v5871 = vunpack.c.0.s8 %v5870
        %v5872 = vlaneseq
        %v5873 = vshrl.u32 %v5872, 7
        %v5874 = vsub.s32 %v5871, %v5873
        %v5875 = vrot.slane %v5865, %v5874
        %v5877 = vunpack.c.l.s4 1966171168
        %v5878 = vunpack.c.0.s8 %v5877
        %v5879 = vlaneseq
        %v5880 = vshrl.u32 %v5879, 7
        %v5881 = vsub.s32 %v5878, %v5880
        %v5882 = vrot.slane %v5866, %v5881
        %v5884 = vunpack.c.l.s4 1966171168
        %v5885 = vunpack.c.0.s8 %v5884
        %v5886 = vlaneseq
        %v5887 = vshrl.u32 %v5886, 7
        %v5888 = vsub.s32 %v5885, %v5887
        %v5889 = vrot.slane %v5867, %v5888
        %v5891 = vunpack.c.l.s4 1966171168
        %v5892 = vunpack.c.0.s8 %v5891
        %v5893 = vlaneseq
        %v5894 = vshrl.u32 %v5893, 7
        %v5895 = vsub.s32 %v5892, %v5894
        %v5896 = vrot.slane %v5868, %v5895
        %v5897 = vcombine.low %v5875, %v5882
        %v5898 = vcombine.low %v5889, %v5896
        %v5900 = vunpack.c.l.s4 1966171168
        %v5901 = vunpack.c.0.s8 %v5900
        %v5902 = vlaneseq
        %v5903 = vshrl.u32 %v5902, 7
        %v5904 = vsub.s32 %v5901, %v5903
        %v5905 = vrot.slane %v5897, %v5904
        %v5907 = vunpack.c.l.s4 1966171168
        %v5908 = vunpack.c.0.s8 %v5907
        %v5909 = vlaneseq
        %v5910 = vshrl.u32 %v5909, 7
        %v5911 = vsub.s32 %v5908, %v5910
        %v5912 = vrot.slane %v5898, %v5911
        %v5913 = vcombine.low %v5905, %v5912
        %v5914 = vcombine.low %v3648, %v3652
        %v5915 = vcombine.low %v3656, %v3660
        %v5916 = vcombine.low %v3664, %v3668
        %v5917 = vcombine.low %v3672, %v3676
        %v5919 = vunpack.c.l.s4 1966171168
        %v5920 = vunpack.c.0.s8 %v5919
        %v5921 = vlaneseq
        %v5922 = vshrl.u32 %v5921, 7
        %v5923 = vsub.s32 %v5920, %v5922
        %v5924 = vrot.slane %v5914, %v5923
        %v5926 = vunpack.c.l.s4 1966171168
        %v5927 = vunpack.c.0.s8 %v5926
        %v5928 = vlaneseq
        %v5929 = vshrl.u32 %v5928, 7
        %v5930 = vsub.s32 %v5927, %v5929
        %v5931 = vrot.slane %v5915, %v5930
        %v5933 = vunpack.c.l.s4 1966171168
        %v5934 = vunpack.c.0.s8 %v5933
        %v5935 = vlaneseq
        %v5936 = vshrl.u32 %v5935, 7
        %v5937 = vsub.s32 %v5934, %v5936
        %v5938 = vrot.slane %v5916, %v5937
        %v5940 = vunpack.c.l.s4 1966171168
        %v5941 = vunpack.c.0.s8 %v5940
        %v5942 = vlaneseq
        %v5943 = vshrl.u32 %v5942, 7
        %v5944 = vsub.s32 %v5941, %v5943
        %v5945 = vrot.slane %v5917, %v5944
        %v5946 = vcombine.low %v5924, %v5931
        %v5947 = vcombine.low %v5938, %v5945
        %v5949 = vunpack.c.l.s4 1966171168
        %v5950 = vunpack.c.0.s8 %v5949
        %v5951 = vlaneseq
        %v5952 = vshrl.u32 %v5951, 7
        %v5953 = vsub.s32 %v5950, %v5952
        %v5954 = vrot.slane %v5946, %v5953
        %v5956 = vunpack.c.l.s4 1966171168
        %v5957 = vunpack.c.0.s8 %v5956
        %v5958 = vlaneseq
        %v5959 = vshrl.u32 %v5958, 7
        %v5960 = vsub.s32 %v5957, %v5959
        %v5961 = vrot.slane %v5947, %v5960
        %v5962 = vcombine.low %v5954, %v5961
        %v5963 = vcombine.low %v3680, %v3684
        %v5964 = vcombine.low %v3688, %v3692
        %v5965 = vcombine.low %v3696, %v3700
        %v5966 = vcombine.low %v3704, %v3708
        %v5968 = vunpack.c.l.s4 1966171168
        %v5969 = vunpack.c.0.s8 %v5968
        %v5970 = vlaneseq
        %v5971 = vshrl.u32 %v5970, 7
        %v5972 = vsub.s32 %v5969, %v5971
        %v5973 = vrot.slane %v5963, %v5972
        %v5975 = vunpack.c.l.s4 1966171168
        %v5976 = vunpack.c.0.s8 %v5975
        %v5977 = vlaneseq
        %v5978 = vshrl.u32 %v5977, 7
        %v5979 = vsub.s32 %v5976, %v5978
        %v5980 = vrot.slane %v5964, %v5979
        %v5982 = vunpack.c.l.s4 1966171168
        %v5983 = vunpack.c.0.s8 %v5982
        %v5984 = vlaneseq
        %v5985 = vshrl.u32 %v5984, 7
        %v5986 = vsub.s32 %v5983, %v5985
        %v5987 = vrot.slane %v5965, %v5986
        %v5989 = vunpack.c.l.s4 1966171168
        %v5990 = vunpack.c.0.s8 %v5989
        %v5991 = vlaneseq
        %v5992 = vshrl.u32 %v5991, 7
        %v5993 = vsub.s32 %v5990, %v5992
        %v5994 = vrot.slane %v5966, %v5993
        %v5995 = vcombine.low %v5973, %v5980
        %v5996 = vcombine.low %v5987, %v5994
        %v5998 = vunpack.c.l.s4 1966171168
        %v5999 = vunpack.c.0.s8 %v5998
        %v6000 = vlaneseq
        %v6001 = vshrl.u32 %v6000, 7
        %v6002 = vsub.s32 %v5999, %v6001
        %v6003 = vrot.slane %v5995, %v6002
        %v6005 = vunpack.c.l.s4 1966171168
        %v6006 = vunpack.c.0.s8 %v6005
        %v6007 = vlaneseq
        %v6008 = vshrl.u32 %v6007, 7
        %v6009 = vsub.s32 %v6006, %v6008
        %v6010 = vrot.slane %v5996, %v6009
        %v6011 = vcombine.low %v6003, %v6010
        %v6012 = vcombine.low %v3712, %v3716
        %v6013 = vcombine.low %v3720, %v3724
        %v6014 = vcombine.low %v3728, %v3732
        %v6015 = vcombine.low %v3736, %v3740
        %v6017 = vunpack.c.l.s4 1966171168
        %v6018 = vunpack.c.0.s8 %v6017
        %v6019 = vlaneseq
        %v6020 = vshrl.u32 %v6019, 7
        %v6021 = vsub.s32 %v6018, %v6020
        %v6022 = vrot.slane %v6012, %v6021
        %v6024 = vunpack.c.l.s4 1966171168
        %v6025 = vunpack.c.0.s8 %v6024
        %v6026 = vlaneseq
        %v6027 = vshrl.u32 %v6026, 7
        %v6028 = vsub.s32 %v6025, %v6027
        %v6029 = vrot.slane %v6013, %v6028
        %v6031 = vunpack.c.l.s4 1966171168
        %v6032 = vunpack.c.0.s8 %v6031
        %v6033 = vlaneseq
        %v6034 = vshrl.u32 %v6033, 7
        %v6035 = vsub.s32 %v6032, %v6034
        %v6036 = vrot.slane %v6014, %v6035
        %v6038 = vunpack.c.l.s4 1966171168
        %v6039 = vunpack.c.0.s8 %v6038
        %v6040 = vlaneseq
        %v6041 = vshrl.u32 %v6040, 7
        %v6042 = vsub.s32 %v6039, %v6041
        %v6043 = vrot.slane %v6015, %v6042
        %v6044 = vcombine.low %v6022, %v6029
        %v6045 = vcombine.low %v6036, %v6043
        %v6047 = vunpack.c.l.s4 1966171168
        %v6048 = vunpack.c.0.s8 %v6047
        %v6049 = vlaneseq
        %v6050 = vshrl.u32 %v6049, 7
        %v6051 = vsub.s32 %v6048, %v6050
        %v6052 = vrot.slane %v6044, %v6051
        %v6054 = vunpack.c.l.s4 1966171168
        %v6055 = vunpack.c.0.s8 %v6054
        %v6056 = vlaneseq
        %v6057 = vshrl.u32 %v6056, 7
        %v6058 = vsub.s32 %v6055, %v6057
        %v6059 = vrot.slane %v6045, %v6058
        %v6060 = vcombine.low %v6052, %v6059
        %v6061 = vcombine.low %v3744, %v3748
        %v6062 = vcombine.low %v3752, %v3756
        %v6063 = vcombine.low %v3760, %v3764
        %v6064 = vcombine.low %v3768, %v3772
        %v6066 = vunpack.c.l.s4 1966171168
        %v6067 = vunpack.c.0.s8 %v6066
        %v6068 = vlaneseq
        %v6069 = vshrl.u32 %v6068, 7
        %v6070 = vsub.s32 %v6067, %v6069
        %v6071 = vrot.slane %v6061, %v6070
        %v6073 = vunpack.c.l.s4 1966171168
        %v6074 = vunpack.c.0.s8 %v6073
        %v6075 = vlaneseq
        %v6076 = vshrl.u32 %v6075, 7
        %v6077 = vsub.s32 %v6074, %v6076
        %v6078 = vrot.slane %v6062, %v6077
        %v6080 = vunpack.c.l.s4 1966171168
        %v6081 = vunpack.c.0.s8 %v6080
        %v6082 = vlaneseq
        %v6083 = vshrl.u32 %v6082, 7
        %v6084 = vsub.s32 %v6081, %v6083
        %v6085 = vrot.slane %v6063, %v6084
        %v6087 = vunpack.c.l.s4 1966171168
        %v6088 = vunpack.c.0.s8 %v6087
        %v6089 = vlaneseq
        %v6090 = vshrl.u32 %v6089, 7
        %v6091 = vsub.s32 %v6088, %v6090
        %v6092 = vrot.slane %v6064, %v6091
        %v6093 = vcombine.low %v6071, %v6078
        %v6094 = vcombine.low %v6085, %v6092
        %v6096 = vunpack.c.l.s4 1966171168
        %v6097 = vunpack.c.0.s8 %v6096
        %v6098 = vlaneseq
        %v6099 = vshrl.u32 %v6098, 7
        %v6100 = vsub.s32 %v6097, %v6099
        %v6101 = vrot.slane %v6093, %v6100
        %v6103 = vunpack.c.l.s4 1966171168
        %v6104 = vunpack.c.0.s8 %v6103
        %v6105 = vlaneseq
        %v6106 = vshrl.u32 %v6105, 7
        %v6107 = vsub.s32 %v6104, %v6106
        %v6108 = vrot.slane %v6094, %v6107
        %v6109 = vcombine.low %v6101, %v6108
        %v6110 = vcombine.low %v3776, %v3780
        %v6111 = vcombine.low %v3784, %v3788
        %v6112 = vcombine.low %v3792, %v3796
        %v6113 = vcombine.low %v3800, %v3804
        %v6115 = vunpack.c.l.s4 1966171168
        %v6116 = vunpack.c.0.s8 %v6115
        %v6117 = vlaneseq
        %v6118 = vshrl.u32 %v6117, 7
        %v6119 = vsub.s32 %v6116, %v6118
        %v6120 = vrot.slane %v6110, %v6119
        %v6122 = vunpack.c.l.s4 1966171168
        %v6123 = vunpack.c.0.s8 %v6122
        %v6124 = vlaneseq
        %v6125 = vshrl.u32 %v6124, 7
        %v6126 = vsub.s32 %v6123, %v6125
        %v6127 = vrot.slane %v6111, %v6126
        %v6129 = vunpack.c.l.s4 1966171168
        %v6130 = vunpack.c.0.s8 %v6129
        %v6131 = vlaneseq
        %v6132 = vshrl.u32 %v6131, 7
        %v6133 = vsub.s32 %v6130, %v6132
        %v6134 = vrot.slane %v6112, %v6133
        %v6136 = vunpack.c.l.s4 1966171168
        %v6137 = vunpack.c.0.s8 %v6136
        %v6138 = vlaneseq
        %v6139 = vshrl.u32 %v6138, 7
        %v6140 = vsub.s32 %v6137, %v6139
        %v6141 = vrot.slane %v6113, %v6140
        %v6142 = vcombine.low %v6120, %v6127
        %v6143 = vcombine.low %v6134, %v6141
        %v6145 = vunpack.c.l.s4 1966171168
        %v6146 = vunpack.c.0.s8 %v6145
        %v6147 = vlaneseq
        %v6148 = vshrl.u32 %v6147, 7
        %v6149 = vsub.s32 %v6146, %v6148
        %v6150 = vrot.slane %v6142, %v6149
        %v6152 = vunpack.c.l.s4 1966171168
        %v6153 = vunpack.c.0.s8 %v6152
        %v6154 = vlaneseq
        %v6155 = vshrl.u32 %v6154, 7
        %v6156 = vsub.s32 %v6153, %v6155
        %v6157 = vrot.slane %v6143, %v6156
        %v6158 = vcombine.low %v6150, %v6157
        %v6159 = vcombine.low %v3808, %v3812
        %v6160 = vcombine.low %v3816, %v3820
        %v6161 = vcombine.low %v3824, %v3828
        %v6162 = vcombine.low %v3832, %v3836
        %v6164 = vunpack.c.l.s4 1966171168
        %v6165 = vunpack.c.0.s8 %v6164
        %v6166 = vlaneseq
        %v6167 = vshrl.u32 %v6166, 7
        %v6168 = vsub.s32 %v6165, %v6167
        %v6169 = vrot.slane %v6159, %v6168
        %v6171 = vunpack.c.l.s4 1966171168
        %v6172 = vunpack.c.0.s8 %v6171
        %v6173 = vlaneseq
        %v6174 = vshrl.u32 %v6173, 7
        %v6175 = vsub.s32 %v6172, %v6174
        %v6176 = vrot.slane %v6160, %v6175
        %v6178 = vunpack.c.l.s4 1966171168
        %v6179 = vunpack.c.0.s8 %v6178
        %v6180 = vlaneseq
        %v6181 = vshrl.u32 %v6180, 7
        %v6182 = vsub.s32 %v6179, %v6181
        %v6183 = vrot.slane %v6161, %v6182
        %v6185 = vunpack.c.l.s4 1966171168
        %v6186 = vunpack.c.0.s8 %v6185
        %v6187 = vlaneseq
        %v6188 = vshrl.u32 %v6187, 7
        %v6189 = vsub.s32 %v6186, %v6188
        %v6190 = vrot.slane %v6162, %v6189
        %v6191 = vcombine.low %v6169, %v6176
        %v6192 = vcombine.low %v6183, %v6190
        %v6194 = vunpack.c.l.s4 1966171168
        %v6195 = vunpack.c.0.s8 %v6194
        %v6196 = vlaneseq
        %v6197 = vshrl.u32 %v6196, 7
        %v6198 = vsub.s32 %v6195, %v6197
        %v6199 = vrot.slane %v6191, %v6198
        %v6201 = vunpack.c.l.s4 1966171168
        %v6202 = vunpack.c.0.s8 %v6201
        %v6203 = vlaneseq
        %v6204 = vshrl.u32 %v6203, 7
        %v6205 = vsub.s32 %v6202, %v6204
        %v6206 = vrot.slane %v6192, %v6205
        %v6207 = vcombine.low %v6199, %v6206
        %v6208 = vcombine.low %v3840, %v3844
        %v6209 = vcombine.low %v3848, %v3852
        %v6210 = vcombine.low %v3856, %v3860
        %v6211 = vcombine.low %v3864, %v3868
        %v6213 = vunpack.c.l.s4 1966171168
        %v6214 = vunpack.c.0.s8 %v6213
        %v6215 = vlaneseq
        %v6216 = vshrl.u32 %v6215, 7
        %v6217 = vsub.s32 %v6214, %v6216
        %v6218 = vrot.slane %v6208, %v6217
        %v6220 = vunpack.c.l.s4 1966171168
        %v6221 = vunpack.c.0.s8 %v6220
        %v6222 = vlaneseq
        %v6223 = vshrl.u32 %v6222, 7
        %v6224 = vsub.s32 %v6221, %v6223
        %v6225 = vrot.slane %v6209, %v6224
        %v6227 = vunpack.c.l.s4 1966171168
        %v6228 = vunpack.c.0.s8 %v6227
        %v6229 = vlaneseq
        %v6230 = vshrl.u32 %v6229, 7
        %v6231 = vsub.s32 %v6228, %v6230
        %v6232 = vrot.slane %v6210, %v6231
        %v6234 = vunpack.c.l.s4 1966171168
        %v6235 = vunpack.c.0.s8 %v6234
        %v6236 = vlaneseq
        %v6237 = vshrl.u32 %v6236, 7
        %v6238 = vsub.s32 %v6235, %v6237
        %v6239 = vrot.slane %v6211, %v6238
        %v6240 = vcombine.low %v6218, %v6225
        %v6241 = vcombine.low %v6232, %v6239
        %v6243 = vunpack.c.l.s4 1966171168
        %v6244 = vunpack.c.0.s8 %v6243
        %v6245 = vlaneseq
        %v6246 = vshrl.u32 %v6245, 7
        %v6247 = vsub.s32 %v6244, %v6246
        %v6248 = vrot.slane %v6240, %v6247
        %v6250 = vunpack.c.l.s4 1966171168
        %v6251 = vunpack.c.0.s8 %v6250
        %v6252 = vlaneseq
        %v6253 = vshrl.u32 %v6252, 7
        %v6254 = vsub.s32 %v6251, %v6253
        %v6255 = vrot.slane %v6241, %v6254
        %v6256 = vcombine.low %v6248, %v6255
        %v6257 = vcombine.low %v3872, %v3876
        %v6258 = vcombine.low %v3880, %v3884
        %v6259 = vcombine.low %v3888, %v3892
        %v6260 = vcombine.low %v3896, %v3900
        %v6262 = vunpack.c.l.s4 1966171168
        %v6263 = vunpack.c.0.s8 %v6262
        %v6264 = vlaneseq
        %v6265 = vshrl.u32 %v6264, 7
        %v6266 = vsub.s32 %v6263, %v6265
        %v6267 = vrot.slane %v6257, %v6266
        %v6269 = vunpack.c.l.s4 1966171168
        %v6270 = vunpack.c.0.s8 %v6269
        %v6271 = vlaneseq
        %v6272 = vshrl.u32 %v6271, 7
        %v6273 = vsub.s32 %v6270, %v6272
        %v6274 = vrot.slane %v6258, %v6273
        %v6276 = vunpack.c.l.s4 1966171168
        %v6277 = vunpack.c.0.s8 %v6276
        %v6278 = vlaneseq
        %v6279 = vshrl.u32 %v6278, 7
        %v6280 = vsub.s32 %v6277, %v6279
        %v6281 = vrot.slane %v6259, %v6280
        %v6283 = vunpack.c.l.s4 1966171168
        %v6284 = vunpack.c.0.s8 %v6283
        %v6285 = vlaneseq
        %v6286 = vshrl.u32 %v6285, 7
        %v6287 = vsub.s32 %v6284, %v6286
        %v6288 = vrot.slane %v6260, %v6287
        %v6289 = vcombine.low %v6267, %v6274
        %v6290 = vcombine.low %v6281, %v6288
        %v6292 = vunpack.c.l.s4 1966171168
        %v6293 = vunpack.c.0.s8 %v6292
        %v6294 = vlaneseq
        %v6295 = vshrl.u32 %v6294, 7
        %v6296 = vsub.s32 %v6293, %v6295
        %v6297 = vrot.slane %v6289, %v6296
        %v6299 = vunpack.c.l.s4 1966171168
        %v6300 = vunpack.c.0.s8 %v6299
        %v6301 = vlaneseq
        %v6302 = vshrl.u32 %v6301, 7
        %v6303 = vsub.s32 %v6300, %v6302
        %v6304 = vrot.slane %v6290, %v6303
        %v6305 = vcombine.low %v6297, %v6304
        %v6306 = vcombine.low %v3904, %v3908
        %v6307 = vcombine.low %v3912, %v3916
        %v6308 = vcombine.low %v3920, %v3924
        %v6309 = vcombine.low %v3928, %v3932
        %v6311 = vunpack.c.l.s4 1966171168
        %v6312 = vunpack.c.0.s8 %v6311
        %v6313 = vlaneseq
        %v6314 = vshrl.u32 %v6313, 7
        %v6315 = vsub.s32 %v6312, %v6314
        %v6316 = vrot.slane %v6306, %v6315
        %v6318 = vunpack.c.l.s4 1966171168
        %v6319 = vunpack.c.0.s8 %v6318
        %v6320 = vlaneseq
        %v6321 = vshrl.u32 %v6320, 7
        %v6322 = vsub.s32 %v6319, %v6321
        %v6323 = vrot.slane %v6307, %v6322
        %v6325 = vunpack.c.l.s4 1966171168
        %v6326 = vunpack.c.0.s8 %v6325
        %v6327 = vlaneseq
        %v6328 = vshrl.u32 %v6327, 7
        %v6329 = vsub.s32 %v6326, %v6328
        %v6330 = vrot.slane %v6308, %v6329
        %v6332 = vunpack.c.l.s4 1966171168
        %v6333 = vunpack.c.0.s8 %v6332
        %v6334 = vlaneseq
        %v6335 = vshrl.u32 %v6334, 7
        %v6336 = vsub.s32 %v6333, %v6335
        %v6337 = vrot.slane %v6309, %v6336
        %v6338 = vcombine.low %v6316, %v6323
        %v6339 = vcombine.low %v6330, %v6337
        %v6341 = vunpack.c.l.s4 1966171168
        %v6342 = vunpack.c.0.s8 %v6341
        %v6343 = vlaneseq
        %v6344 = vshrl.u32 %v6343, 7
        %v6345 = vsub.s32 %v6342, %v6344
        %v6346 = vrot.slane %v6338, %v6345
        %v6348 = vunpack.c.l.s4 1966171168
        %v6349 = vunpack.c.0.s8 %v6348
        %v6350 = vlaneseq
        %v6351 = vshrl.u32 %v6350, 7
        %v6352 = vsub.s32 %v6349, %v6351
        %v6353 = vrot.slane %v6339, %v6352
        %v6354 = vcombine.low %v6346, %v6353
        %v6355 = vcombine.low %v3936, %v3940
        %v6356 = vcombine.low %v3944, %v3948
        %v6357 = vcombine.low %v3952, %v3956
        %v6358 = vcombine.low %v3960, %v3964
        %v6360 = vunpack.c.l.s4 1966171168
        %v6361 = vunpack.c.0.s8 %v6360
        %v6362 = vlaneseq
        %v6363 = vshrl.u32 %v6362, 7
        %v6364 = vsub.s32 %v6361, %v6363
        %v6365 = vrot.slane %v6355, %v6364
        %v6367 = vunpack.c.l.s4 1966171168
        %v6368 = vunpack.c.0.s8 %v6367
        %v6369 = vlaneseq
        %v6370 = vshrl.u32 %v6369, 7
        %v6371 = vsub.s32 %v6368, %v6370
        %v6372 = vrot.slane %v6356, %v6371
        %v6374 = vunpack.c.l.s4 1966171168
        %v6375 = vunpack.c.0.s8 %v6374
        %v6376 = vlaneseq
        %v6377 = vshrl.u32 %v6376, 7
        %v6378 = vsub.s32 %v6375, %v6377
        %v6379 = vrot.slane %v6357, %v6378
        %v6381 = vunpack.c.l.s4 1966171168
        %v6382 = vunpack.c.0.s8 %v6381
        %v6383 = vlaneseq
        %v6384 = vshrl.u32 %v6383, 7
        %v6385 = vsub.s32 %v6382, %v6384
        %v6386 = vrot.slane %v6358, %v6385
        %v6387 = vcombine.low %v6365, %v6372
        %v6388 = vcombine.low %v6379, %v6386
        %v6390 = vunpack.c.l.s4 1966171168
        %v6391 = vunpack.c.0.s8 %v6390
        %v6392 = vlaneseq
        %v6393 = vshrl.u32 %v6392, 7
        %v6394 = vsub.s32 %v6391, %v6393
        %v6395 = vrot.slane %v6387, %v6394
        %v6397 = vunpack.c.l.s4 1966171168
        %v6398 = vunpack.c.0.s8 %v6397
        %v6399 = vlaneseq
        %v6400 = vshrl.u32 %v6399, 7
        %v6401 = vsub.s32 %v6398, %v6400
        %v6402 = vrot.slane %v6388, %v6401
        %v6403 = vcombine.low %v6395, %v6402
        %v6404 = vcombine.low %v3968, %v3972
        %v6405 = vcombine.low %v3976, %v3980
        %v6406 = vcombine.low %v3984, %v3988
        %v6407 = vcombine.low %v3992, %v3996
        %v6409 = vunpack.c.l.s4 1966171168
        %v6410 = vunpack.c.0.s8 %v6409
        %v6411 = vlaneseq
        %v6412 = vshrl.u32 %v6411, 7
        %v6413 = vsub.s32 %v6410, %v6412
        %v6414 = vrot.slane %v6404, %v6413
        %v6416 = vunpack.c.l.s4 1966171168
        %v6417 = vunpack.c.0.s8 %v6416
        %v6418 = vlaneseq
        %v6419 = vshrl.u32 %v6418, 7
        %v6420 = vsub.s32 %v6417, %v6419
        %v6421 = vrot.slane %v6405, %v6420
        %v6423 = vunpack.c.l.s4 1966171168
        %v6424 = vunpack.c.0.s8 %v6423
        %v6425 = vlaneseq
        %v6426 = vshrl.u32 %v6425, 7
        %v6427 = vsub.s32 %v6424, %v6426
        %v6428 = vrot.slane %v6406, %v6427
        %v6430 = vunpack.c.l.s4 1966171168
        %v6431 = vunpack.c.0.s8 %v6430
        %v6432 = vlaneseq
        %v6433 = vshrl.u32 %v6432, 7
        %v6434 = vsub.s32 %v6431, %v6433
        %v6435 = vrot.slane %v6407, %v6434
        %v6436 = vcombine.low %v6414, %v6421
        %v6437 = vcombine.low %v6428, %v6435
        %v6439 = vunpack.c.l.s4 1966171168
        %v6440 = vunpack.c.0.s8 %v6439
        %v6441 = vlaneseq
        %v6442 = vshrl.u32 %v6441, 7
        %v6443 = vsub.s32 %v6440, %v6442
        %v6444 = vrot.slane %v6436, %v6443
        %v6446 = vunpack.c.l.s4 1966171168
        %v6447 = vunpack.c.0.s8 %v6446
        %v6448 = vlaneseq
        %v6449 = vshrl.u32 %v6448, 7
        %v6450 = vsub.s32 %v6447, %v6449
        %v6451 = vrot.slane %v6437, %v6450
        %v6452 = vcombine.low %v6444, %v6451
        %v6453 = vcombine.low %v4000, %v4004
        %v6454 = vcombine.low %v4008, %v4012
        %v6455 = vcombine.low %v4016, %v4020
        %v6456 = vcombine.low %v4024, %v4028
        %v6458 = vunpack.c.l.s4 1966171168
        %v6459 = vunpack.c.0.s8 %v6458
        %v6460 = vlaneseq
        %v6461 = vshrl.u32 %v6460, 7
        %v6462 = vsub.s32 %v6459, %v6461
        %v6463 = vrot.slane %v6453, %v6462
        %v6465 = vunpack.c.l.s4 1966171168
        %v6466 = vunpack.c.0.s8 %v6465
        %v6467 = vlaneseq
        %v6468 = vshrl.u32 %v6467, 7
        %v6469 = vsub.s32 %v6466, %v6468
        %v6470 = vrot.slane %v6454, %v6469
        %v6472 = vunpack.c.l.s4 1966171168
        %v6473 = vunpack.c.0.s8 %v6472
        %v6474 = vlaneseq
        %v6475 = vshrl.u32 %v6474, 7
        %v6476 = vsub.s32 %v6473, %v6475
        %v6477 = vrot.slane %v6455, %v6476
        %v6479 = vunpack.c.l.s4 1966171168
        %v6480 = vunpack.c.0.s8 %v6479
        %v6481 = vlaneseq
        %v6482 = vshrl.u32 %v6481, 7
        %v6483 = vsub.s32 %v6480, %v6482
        %v6484 = vrot.slane %v6456, %v6483
        %v6485 = vcombine.low %v6463, %v6470
        %v6486 = vcombine.low %v6477, %v6484
        %v6488 = vunpack.c.l.s4 1966171168
        %v6489 = vunpack.c.0.s8 %v6488
        %v6490 = vlaneseq
        %v6491 = vshrl.u32 %v6490, 7
        %v6492 = vsub.s32 %v6489, %v6491
        %v6493 = vrot.slane %v6485, %v6492
        %v6495 = vunpack.c.l.s4 1966171168
        %v6496 = vunpack.c.0.s8 %v6495
        %v6497 = vlaneseq
        %v6498 = vshrl.u32 %v6497, 7
        %v6499 = vsub.s32 %v6496, %v6498
        %v6500 = vrot.slane %v6486, %v6499
        %v6501 = vcombine.low %v6493, %v6500
        %v6502 = vcombine.low %v4032, %v4036
        %v6503 = vcombine.low %v4040, %v4044
        %v6504 = vcombine.low %v4048, %v4052
        %v6505 = vcombine.low %v4056, %v4060
        %v6507 = vunpack.c.l.s4 1966171168
        %v6508 = vunpack.c.0.s8 %v6507
        %v6509 = vlaneseq
        %v6510 = vshrl.u32 %v6509, 7
        %v6511 = vsub.s32 %v6508, %v6510
        %v6512 = vrot.slane %v6502, %v6511
        %v6514 = vunpack.c.l.s4 1966171168
        %v6515 = vunpack.c.0.s8 %v6514
        %v6516 = vlaneseq
        %v6517 = vshrl.u32 %v6516, 7
        %v6518 = vsub.s32 %v6515, %v6517
        %v6519 = vrot.slane %v6503, %v6518
        %v6521 = vunpack.c.l.s4 1966171168
        %v6522 = vunpack.c.0.s8 %v6521
        %v6523 = vlaneseq
        %v6524 = vshrl.u32 %v6523, 7
        %v6525 = vsub.s32 %v6522, %v6524
        %v6526 = vrot.slane %v6504, %v6525
        %v6528 = vunpack.c.l.s4 1966171168
        %v6529 = vunpack.c.0.s8 %v6528
        %v6530 = vlaneseq
        %v6531 = vshrl.u32 %v6530, 7
        %v6532 = vsub.s32 %v6529, %v6531
        %v6533 = vrot.slane %v6505, %v6532
        %v6534 = vcombine.low %v6512, %v6519
        %v6535 = vcombine.low %v6526, %v6533
        %v6537 = vunpack.c.l.s4 1966171168
        %v6538 = vunpack.c.0.s8 %v6537
        %v6539 = vlaneseq
        %v6540 = vshrl.u32 %v6539, 7
        %v6541 = vsub.s32 %v6538, %v6540
        %v6542 = vrot.slane %v6534, %v6541
        %v6544 = vunpack.c.l.s4 1966171168
        %v6545 = vunpack.c.0.s8 %v6544
        %v6546 = vlaneseq
        %v6547 = vshrl.u32 %v6546, 7
        %v6548 = vsub.s32 %v6545, %v6547
        %v6549 = vrot.slane %v6535, %v6548
        %v6550 = vcombine.low %v6542, %v6549
        %v6551 = vcombine.low %v4064, %v4068
        %v6552 = vcombine.low %v4072, %v4076
        %v6553 = vcombine.low %v4080, %v4084
        %v6554 = vcombine.low %v4088, %v4092
        %v6556 = vunpack.c.l.s4 1966171168
        %v6557 = vunpack.c.0.s8 %v6556
        %v6558 = vlaneseq
        %v6559 = vshrl.u32 %v6558, 7
        %v6560 = vsub.s32 %v6557, %v6559
        %v6561 = vrot.slane %v6551, %v6560
        %v6563 = vunpack.c.l.s4 1966171168
        %v6564 = vunpack.c.0.s8 %v6563
        %v6565 = vlaneseq
        %v6566 = vshrl.u32 %v6565, 7
        %v6567 = vsub.s32 %v6564, %v6566
        %v6568 = vrot.slane %v6552, %v6567
        %v6570 = vunpack.c.l.s4 1966171168
        %v6571 = vunpack.c.0.s8 %v6570
        %v6572 = vlaneseq
        %v6573 = vshrl.u32 %v6572, 7
        %v6574 = vsub.s32 %v6571, %v6573
        %v6575 = vrot.slane %v6553, %v6574
        %v6577 = vunpack.c.l.s4 1966171168
        %v6578 = vunpack.c.0.s8 %v6577
        %v6579 = vlaneseq
        %v6580 = vshrl.u32 %v6579, 7
        %v6581 = vsub.s32 %v6578, %v6580
        %v6582 = vrot.slane %v6554, %v6581
        %v6583 = vcombine.low %v6561, %v6568
        %v6584 = vcombine.low %v6575, %v6582
        %v6586 = vunpack.c.l.s4 1966171168
        %v6587 = vunpack.c.0.s8 %v6586
        %v6588 = vlaneseq
        %v6589 = vshrl.u32 %v6588, 7
        %v6590 = vsub.s32 %v6587, %v6589
        %v6591 = vrot.slane %v6583, %v6590
        %v6593 = vunpack.c.l.s4 1966171168
        %v6594 = vunpack.c.0.s8 %v6593
        %v6595 = vlaneseq
        %v6596 = vshrl.u32 %v6595, 7
        %v6597 = vsub.s32 %v6594, %v6596
        %v6598 = vrot.slane %v6584, %v6597
        %v6599 = vcombine.low %v6591, %v6598
        %v6600 = vcombine.low %v4096, %v4100
        %v6601 = vcombine.low %v4104, %v4108
        %v6602 = vcombine.low %v4112, %v4116
        %v6603 = vcombine.low %v4120, %v4124
        %v6605 = vunpack.c.l.s4 1966171168
        %v6606 = vunpack.c.0.s8 %v6605
        %v6607 = vlaneseq
        %v6608 = vshrl.u32 %v6607, 7
        %v6609 = vsub.s32 %v6606, %v6608
        %v6610 = vrot.slane %v6600, %v6609
        %v6612 = vunpack.c.l.s4 1966171168
        %v6613 = vunpack.c.0.s8 %v6612
        %v6614 = vlaneseq
        %v6615 = vshrl.u32 %v6614, 7
        %v6616 = vsub.s32 %v6613, %v6615
        %v6617 = vrot.slane %v6601, %v6616
        %v6619 = vunpack.c.l.s4 1966171168
        %v6620 = vunpack.c.0.s8 %v6619
        %v6621 = vlaneseq
        %v6622 = vshrl.u32 %v6621, 7
        %v6623 = vsub.s32 %v6620, %v6622
        %v6624 = vrot.slane %v6602, %v6623
        %v6626 = vunpack.c.l.s4 1966171168
        %v6627 = vunpack.c.0.s8 %v6626
        %v6628 = vlaneseq
        %v6629 = vshrl.u32 %v6628, 7
        %v6630 = vsub.s32 %v6627, %v6629
        %v6631 = vrot.slane %v6603, %v6630
        %v6632 = vcombine.low %v6610, %v6617
        %v6633 = vcombine.low %v6624, %v6631
        %v6635 = vunpack.c.l.s4 1966171168
        %v6636 = vunpack.c.0.s8 %v6635
        %v6637 = vlaneseq
        %v6638 = vshrl.u32 %v6637, 7
        %v6639 = vsub.s32 %v6636, %v6638
        %v6640 = vrot.slane %v6632, %v6639
        %v6642 = vunpack.c.l.s4 1966171168
        %v6643 = vunpack.c.0.s8 %v6642
        %v6644 = vlaneseq
        %v6645 = vshrl.u32 %v6644, 7
        %v6646 = vsub.s32 %v6643, %v6645
        %v6647 = vrot.slane %v6633, %v6646
        %v6648 = vcombine.low %v6640, %v6647
        %v6649 = vcombine.low %v4128, %v4132
        %v6650 = vcombine.low %v4136, %v4140
        %v6651 = vcombine.low %v4144, %v4148
        %v6652 = vcombine.low %v4152, %v4156
        %v6654 = vunpack.c.l.s4 1966171168
        %v6655 = vunpack.c.0.s8 %v6654
        %v6656 = vlaneseq
        %v6657 = vshrl.u32 %v6656, 7
        %v6658 = vsub.s32 %v6655, %v6657
        %v6659 = vrot.slane %v6649, %v6658
        %v6661 = vunpack.c.l.s4 1966171168
        %v6662 = vunpack.c.0.s8 %v6661
        %v6663 = vlaneseq
        %v6664 = vshrl.u32 %v6663, 7
        %v6665 = vsub.s32 %v6662, %v6664
        %v6666 = vrot.slane %v6650, %v6665
        %v6668 = vunpack.c.l.s4 1966171168
        %v6669 = vunpack.c.0.s8 %v6668
        %v6670 = vlaneseq
        %v6671 = vshrl.u32 %v6670, 7
        %v6672 = vsub.s32 %v6669, %v6671
        %v6673 = vrot.slane %v6651, %v6672
        %v6675 = vunpack.c.l.s4 1966171168
        %v6676 = vunpack.c.0.s8 %v6675
        %v6677 = vlaneseq
        %v6678 = vshrl.u32 %v6677, 7
        %v6679 = vsub.s32 %v6676, %v6678
        %v6680 = vrot.slane %v6652, %v6679
        %v6681 = vcombine.low %v6659, %v6666
        %v6682 = vcombine.low %v6673, %v6680
        %v6684 = vunpack.c.l.s4 1966171168
        %v6685 = vunpack.c.0.s8 %v6684
        %v6686 = vlaneseq
        %v6687 = vshrl.u32 %v6686, 7
        %v6688 = vsub.s32 %v6685, %v6687
        %v6689 = vrot.slane %v6681, %v6688
        %v6691 = vunpack.c.l.s4 1966171168
        %v6692 = vunpack.c.0.s8 %v6691
        %v6693 = vlaneseq
        %v6694 = vshrl.u32 %v6693, 7
        %v6695 = vsub.s32 %v6692, %v6694
        %v6696 = vrot.slane %v6682, %v6695
        %v6697 = vcombine.low %v6689, %v6696
        %v6698 = vcombine.low %v4160, %v4164
        %v6699 = vcombine.low %v4168, %v4172
        %v6700 = vcombine.low %v4176, %v4180
        %v6701 = vcombine.low %v4184, %v4188
        %v6703 = vunpack.c.l.s4 1966171168
        %v6704 = vunpack.c.0.s8 %v6703
        %v6705 = vlaneseq
        %v6706 = vshrl.u32 %v6705, 7
        %v6707 = vsub.s32 %v6704, %v6706
        %v6708 = vrot.slane %v6698, %v6707
        %v6710 = vunpack.c.l.s4 1966171168
        %v6711 = vunpack.c.0.s8 %v6710
        %v6712 = vlaneseq
        %v6713 = vshrl.u32 %v6712, 7
        %v6714 = vsub.s32 %v6711, %v6713
        %v6715 = vrot.slane %v6699, %v6714
        %v6717 = vunpack.c.l.s4 1966171168
        %v6718 = vunpack.c.0.s8 %v6717
        %v6719 = vlaneseq
        %v6720 = vshrl.u32 %v6719, 7
        %v6721 = vsub.s32 %v6718, %v6720
        %v6722 = vrot.slane %v6700, %v6721
        %v6724 = vunpack.c.l.s4 1966171168
        %v6725 = vunpack.c.0.s8 %v6724
        %v6726 = vlaneseq
        %v6727 = vshrl.u32 %v6726, 7
        %v6728 = vsub.s32 %v6725, %v6727
        %v6729 = vrot.slane %v6701, %v6728
        %v6730 = vcombine.low %v6708, %v6715
        %v6731 = vcombine.low %v6722, %v6729
        %v6733 = vunpack.c.l.s4 1966171168
        %v6734 = vunpack.c.0.s8 %v6733
        %v6735 = vlaneseq
        %v6736 = vshrl.u32 %v6735, 7
        %v6737 = vsub.s32 %v6734, %v6736
        %v6738 = vrot.slane %v6730, %v6737
        %v6740 = vunpack.c.l.s4 1966171168
        %v6741 = vunpack.c.0.s8 %v6740
        %v6742 = vlaneseq
        %v6743 = vshrl.u32 %v6742, 7
        %v6744 = vsub.s32 %v6741, %v6743
        %v6745 = vrot.slane %v6731, %v6744
        %v6746 = vcombine.low %v6738, %v6745
        %v6747 = vcombine.low %v4192, %v4196
        %v6748 = vcombine.low %v4200, %v4204
        %v6749 = vcombine.low %v4208, %v4212
        %v6750 = vcombine.low %v4216, %v4220
        %v6752 = vunpack.c.l.s4 1966171168
        %v6753 = vunpack.c.0.s8 %v6752
        %v6754 = vlaneseq
        %v6755 = vshrl.u32 %v6754, 7
        %v6756 = vsub.s32 %v6753, %v6755
        %v6757 = vrot.slane %v6747, %v6756
        %v6759 = vunpack.c.l.s4 1966171168
        %v6760 = vunpack.c.0.s8 %v6759
        %v6761 = vlaneseq
        %v6762 = vshrl.u32 %v6761, 7
        %v6763 = vsub.s32 %v6760, %v6762
        %v6764 = vrot.slane %v6748, %v6763
        %v6766 = vunpack.c.l.s4 1966171168
        %v6767 = vunpack.c.0.s8 %v6766
        %v6768 = vlaneseq
        %v6769 = vshrl.u32 %v6768, 7
        %v6770 = vsub.s32 %v6767, %v6769
        %v6771 = vrot.slane %v6749, %v6770
        %v6773 = vunpack.c.l.s4 1966171168
        %v6774 = vunpack.c.0.s8 %v6773
        %v6775 = vlaneseq
        %v6776 = vshrl.u32 %v6775, 7
        %v6777 = vsub.s32 %v6774, %v6776
        %v6778 = vrot.slane %v6750, %v6777
        %v6779 = vcombine.low %v6757, %v6764
        %v6780 = vcombine.low %v6771, %v6778
        %v6782 = vunpack.c.l.s4 1966171168
        %v6783 = vunpack.c.0.s8 %v6782
        %v6784 = vlaneseq
        %v6785 = vshrl.u32 %v6784, 7
        %v6786 = vsub.s32 %v6783, %v6785
        %v6787 = vrot.slane %v6779, %v6786
        %v6789 = vunpack.c.l.s4 1966171168
        %v6790 = vunpack.c.0.s8 %v6789
        %v6791 = vlaneseq
        %v6792 = vshrl.u32 %v6791, 7
        %v6793 = vsub.s32 %v6790, %v6792
        %v6794 = vrot.slane %v6780, %v6793
        %v6795 = vcombine.low %v6787, %v6794
        %v6796 = vcombine.low %v4224, %v4228
        %v6797 = vcombine.low %v4232, %v4236
        %v6798 = vcombine.low %v4240, %v4244
        %v6799 = vcombine.low %v4248, %v4252
        %v6801 = vunpack.c.l.s4 1966171168
        %v6802 = vunpack.c.0.s8 %v6801
        %v6803 = vlaneseq
        %v6804 = vshrl.u32 %v6803, 7
        %v6805 = vsub.s32 %v6802, %v6804
        %v6806 = vrot.slane %v6796, %v6805
        %v6808 = vunpack.c.l.s4 1966171168
        %v6809 = vunpack.c.0.s8 %v6808
        %v6810 = vlaneseq
        %v6811 = vshrl.u32 %v6810, 7
        %v6812 = vsub.s32 %v6809, %v6811
        %v6813 = vrot.slane %v6797, %v6812
        %v6815 = vunpack.c.l.s4 1966171168
        %v6816 = vunpack.c.0.s8 %v6815
        %v6817 = vlaneseq
        %v6818 = vshrl.u32 %v6817, 7
        %v6819 = vsub.s32 %v6816, %v6818
        %v6820 = vrot.slane %v6798, %v6819
        %v6822 = vunpack.c.l.s4 1966171168
        %v6823 = vunpack.c.0.s8 %v6822
        %v6824 = vlaneseq
        %v6825 = vshrl.u32 %v6824, 7
        %v6826 = vsub.s32 %v6823, %v6825
        %v6827 = vrot.slane %v6799, %v6826
        %v6828 = vcombine.low %v6806, %v6813
        %v6829 = vcombine.low %v6820, %v6827
        %v6831 = vunpack.c.l.s4 1966171168
        %v6832 = vunpack.c.0.s8 %v6831
        %v6833 = vlaneseq
        %v6834 = vshrl.u32 %v6833, 7
        %v6835 = vsub.s32 %v6832, %v6834
        %v6836 = vrot.slane %v6828, %v6835
        %v6838 = vunpack.c.l.s4 1966171168
        %v6839 = vunpack.c.0.s8 %v6838
        %v6840 = vlaneseq
        %v6841 = vshrl.u32 %v6840, 7
        %v6842 = vsub.s32 %v6839, %v6841
        %v6843 = vrot.slane %v6829, %v6842
        %v6844 = vcombine.low %v6836, %v6843
        %v6845 = vcombine.low %v4256, %v4260
        %v6846 = vcombine.low %v4264, %v4268
        %v6847 = vcombine.low %v4272, %v4276
        %v6848 = vcombine.low %v4280, %v4284
        %v6850 = vunpack.c.l.s4 1966171168
        %v6851 = vunpack.c.0.s8 %v6850
        %v6852 = vlaneseq
        %v6853 = vshrl.u32 %v6852, 7
        %v6854 = vsub.s32 %v6851, %v6853
        %v6855 = vrot.slane %v6845, %v6854
        %v6857 = vunpack.c.l.s4 1966171168
        %v6858 = vunpack.c.0.s8 %v6857
        %v6859 = vlaneseq
        %v6860 = vshrl.u32 %v6859, 7
        %v6861 = vsub.s32 %v6858, %v6860
        %v6862 = vrot.slane %v6846, %v6861
        %v6864 = vunpack.c.l.s4 1966171168
        %v6865 = vunpack.c.0.s8 %v6864
        %v6866 = vlaneseq
        %v6867 = vshrl.u32 %v6866, 7
        %v6868 = vsub.s32 %v6865, %v6867
        %v6869 = vrot.slane %v6847, %v6868
        %v6871 = vunpack.c.l.s4 1966171168
        %v6872 = vunpack.c.0.s8 %v6871
        %v6873 = vlaneseq
        %v6874 = vshrl.u32 %v6873, 7
        %v6875 = vsub.s32 %v6872, %v6874
        %v6876 = vrot.slane %v6848, %v6875
        %v6877 = vcombine.low %v6855, %v6862
        %v6878 = vcombine.low %v6869, %v6876
        %v6880 = vunpack.c.l.s4 1966171168
        %v6881 = vunpack.c.0.s8 %v6880
        %v6882 = vlaneseq
        %v6883 = vshrl.u32 %v6882, 7
        %v6884 = vsub.s32 %v6881, %v6883
        %v6885 = vrot.slane %v6877, %v6884
        %v6887 = vunpack.c.l.s4 1966171168
        %v6888 = vunpack.c.0.s8 %v6887
        %v6889 = vlaneseq
        %v6890 = vshrl.u32 %v6889, 7
        %v6891 = vsub.s32 %v6888, %v6890
        %v6892 = vrot.slane %v6878, %v6891
        %v6893 = vcombine.low %v6885, %v6892
        %v6894 = vcombine.low %v4288, %v4292
        %v6895 = vcombine.low %v4296, %v4300
        %v6896 = vcombine.low %v4304, %v4308
        %v6897 = vcombine.low %v4312, %v4316
        %v6899 = vunpack.c.l.s4 1966171168
        %v6900 = vunpack.c.0.s8 %v6899
        %v6901 = vlaneseq
        %v6902 = vshrl.u32 %v6901, 7
        %v6903 = vsub.s32 %v6900, %v6902
        %v6904 = vrot.slane %v6894, %v6903
        %v6906 = vunpack.c.l.s4 1966171168
        %v6907 = vunpack.c.0.s8 %v6906
        %v6908 = vlaneseq
        %v6909 = vshrl.u32 %v6908, 7
        %v6910 = vsub.s32 %v6907, %v6909
        %v6911 = vrot.slane %v6895, %v6910
        %v6913 = vunpack.c.l.s4 1966171168
        %v6914 = vunpack.c.0.s8 %v6913
        %v6915 = vlaneseq
        %v6916 = vshrl.u32 %v6915, 7
        %v6917 = vsub.s32 %v6914, %v6916
        %v6918 = vrot.slane %v6896, %v6917
        %v6920 = vunpack.c.l.s4 1966171168
        %v6921 = vunpack.c.0.s8 %v6920
        %v6922 = vlaneseq
        %v6923 = vshrl.u32 %v6922, 7
        %v6924 = vsub.s32 %v6921, %v6923
        %v6925 = vrot.slane %v6897, %v6924
        %v6926 = vcombine.low %v6904, %v6911
        %v6927 = vcombine.low %v6918, %v6925
        %v6929 = vunpack.c.l.s4 1966171168
        %v6930 = vunpack.c.0.s8 %v6929
        %v6931 = vlaneseq
        %v6932 = vshrl.u32 %v6931, 7
        %v6933 = vsub.s32 %v6930, %v6932
        %v6934 = vrot.slane %v6926, %v6933
        %v6936 = vunpack.c.l.s4 1966171168
        %v6937 = vunpack.c.0.s8 %v6936
        %v6938 = vlaneseq
        %v6939 = vshrl.u32 %v6938, 7
        %v6940 = vsub.s32 %v6937, %v6939
        %v6941 = vrot.slane %v6927, %v6940
        %v6942 = vcombine.low %v6934, %v6941
        %v6943 = vcombine.low %v4320, %v4324
        %v6944 = vcombine.low %v4328, %v4332
        %v6945 = vcombine.low %v4336, %v4340
        %v6946 = vcombine.low %v4344, %v4348
        %v6948 = vunpack.c.l.s4 1966171168
        %v6949 = vunpack.c.0.s8 %v6948
        %v6950 = vlaneseq
        %v6951 = vshrl.u32 %v6950, 7
        %v6952 = vsub.s32 %v6949, %v6951
        %v6953 = vrot.slane %v6943, %v6952
        %v6955 = vunpack.c.l.s4 1966171168
        %v6956 = vunpack.c.0.s8 %v6955
        %v6957 = vlaneseq
        %v6958 = vshrl.u32 %v6957, 7
        %v6959 = vsub.s32 %v6956, %v6958
        %v6960 = vrot.slane %v6944, %v6959
        %v6962 = vunpack.c.l.s4 1966171168
        %v6963 = vunpack.c.0.s8 %v6962
        %v6964 = vlaneseq
        %v6965 = vshrl.u32 %v6964, 7
        %v6966 = vsub.s32 %v6963, %v6965
        %v6967 = vrot.slane %v6945, %v6966
        %v6969 = vunpack.c.l.s4 1966171168
        %v6970 = vunpack.c.0.s8 %v6969
        %v6971 = vlaneseq
        %v6972 = vshrl.u32 %v6971, 7
        %v6973 = vsub.s32 %v6970, %v6972
        %v6974 = vrot.slane %v6946, %v6973
        %v6975 = vcombine.low %v6953, %v6960
        %v6976 = vcombine.low %v6967, %v6974
        %v6978 = vunpack.c.l.s4 1966171168
        %v6979 = vunpack.c.0.s8 %v6978
        %v6980 = vlaneseq
        %v6981 = vshrl.u32 %v6980, 7
        %v6982 = vsub.s32 %v6979, %v6981
        %v6983 = vrot.slane %v6975, %v6982
        %v6985 = vunpack.c.l.s4 1966171168
        %v6986 = vunpack.c.0.s8 %v6985
        %v6987 = vlaneseq
        %v6988 = vshrl.u32 %v6987, 7
        %v6989 = vsub.s32 %v6986, %v6988
        %v6990 = vrot.slane %v6976, %v6989
        %v6991 = vcombine.low %v6983, %v6990
        %v6992 = vcombine.low %v4352, %v4356
        %v6993 = vcombine.low %v4360, %v4364
        %v6994 = vcombine.low %v4368, %v4372
        %v6995 = vcombine.low %v4376, %v4380
        %v6997 = vunpack.c.l.s4 1966171168
        %v6998 = vunpack.c.0.s8 %v6997
        %v6999 = vlaneseq
        %v7000 = vshrl.u32 %v6999, 7
        %v7001 = vsub.s32 %v6998, %v7000
        %v7002 = vrot.slane %v6992, %v7001
        %v7004 = vunpack.c.l.s4 1966171168
        %v7005 = vunpack.c.0.s8 %v7004
        %v7006 = vlaneseq
        %v7007 = vshrl.u32 %v7006, 7
        %v7008 = vsub.s32 %v7005, %v7007
        %v7009 = vrot.slane %v6993, %v7008
        %v7011 = vunpack.c.l.s4 1966171168
        %v7012 = vunpack.c.0.s8 %v7011
        %v7013 = vlaneseq
        %v7014 = vshrl.u32 %v7013, 7
        %v7015 = vsub.s32 %v7012, %v7014
        %v7016 = vrot.slane %v6994, %v7015
        %v7018 = vunpack.c.l.s4 1966171168
        %v7019 = vunpack.c.0.s8 %v7018
        %v7020 = vlaneseq
        %v7021 = vshrl.u32 %v7020, 7
        %v7022 = vsub.s32 %v7019, %v7021
        %v7023 = vrot.slane %v6995, %v7022
        %v7024 = vcombine.low %v7002, %v7009
        %v7025 = vcombine.low %v7016, %v7023
        %v7027 = vunpack.c.l.s4 1966171168
        %v7028 = vunpack.c.0.s8 %v7027
        %v7029 = vlaneseq
        %v7030 = vshrl.u32 %v7029, 7
        %v7031 = vsub.s32 %v7028, %v7030
        %v7032 = vrot.slane %v7024, %v7031
        %v7034 = vunpack.c.l.s4 1966171168
        %v7035 = vunpack.c.0.s8 %v7034
        %v7036 = vlaneseq
        %v7037 = vshrl.u32 %v7036, 7
        %v7038 = vsub.s32 %v7035, %v7037
        %v7039 = vrot.slane %v7025, %v7038
        %v7040 = vcombine.low %v7032, %v7039
        %v7041 = vcombine.low %v4384, %v4388
        %v7042 = vcombine.low %v4392, %v4396
        %v7043 = vcombine.low %v4400, %v4404
        %v7044 = vcombine.low %v4408, %v4412
        %v7046 = vunpack.c.l.s4 1966171168
        %v7047 = vunpack.c.0.s8 %v7046
        %v7048 = vlaneseq
        %v7049 = vshrl.u32 %v7048, 7
        %v7050 = vsub.s32 %v7047, %v7049
        %v7051 = vrot.slane %v7041, %v7050
        %v7053 = vunpack.c.l.s4 1966171168
        %v7054 = vunpack.c.0.s8 %v7053
        %v7055 = vlaneseq
        %v7056 = vshrl.u32 %v7055, 7
        %v7057 = vsub.s32 %v7054, %v7056
        %v7058 = vrot.slane %v7042, %v7057
        %v7060 = vunpack.c.l.s4 1966171168
        %v7061 = vunpack.c.0.s8 %v7060
        %v7062 = vlaneseq
        %v7063 = vshrl.u32 %v7062, 7
        %v7064 = vsub.s32 %v7061, %v7063
        %v7065 = vrot.slane %v7043, %v7064
        %v7067 = vunpack.c.l.s4 1966171168
        %v7068 = vunpack.c.0.s8 %v7067
        %v7069 = vlaneseq
        %v7070 = vshrl.u32 %v7069, 7
        %v7071 = vsub.s32 %v7068, %v7070
        %v7072 = vrot.slane %v7044, %v7071
        %v7073 = vcombine.low %v7051, %v7058
        %v7074 = vcombine.low %v7065, %v7072
        %v7076 = vunpack.c.l.s4 1966171168
        %v7077 = vunpack.c.0.s8 %v7076
        %v7078 = vlaneseq
        %v7079 = vshrl.u32 %v7078, 7
        %v7080 = vsub.s32 %v7077, %v7079
        %v7081 = vrot.slane %v7073, %v7080
        %v7083 = vunpack.c.l.s4 1966171168
        %v7084 = vunpack.c.0.s8 %v7083
        %v7085 = vlaneseq
        %v7086 = vshrl.u32 %v7085, 7
        %v7087 = vsub.s32 %v7084, %v7086
        %v7088 = vrot.slane %v7074, %v7087
        %v7089 = vcombine.low %v7081, %v7088
        %v7090 = vcombine.low %v4416, %v4420
        %v7091 = vcombine.low %v4424, %v4428
        %v7092 = vcombine.low %v4432, %v4436
        %v7093 = vcombine.low %v4440, %v4444
        %v7095 = vunpack.c.l.s4 1966171168
        %v7096 = vunpack.c.0.s8 %v7095
        %v7097 = vlaneseq
        %v7098 = vshrl.u32 %v7097, 7
        %v7099 = vsub.s32 %v7096, %v7098
        %v7100 = vrot.slane %v7090, %v7099
        %v7102 = vunpack.c.l.s4 1966171168
        %v7103 = vunpack.c.0.s8 %v7102
        %v7104 = vlaneseq
        %v7105 = vshrl.u32 %v7104, 7
        %v7106 = vsub.s32 %v7103, %v7105
        %v7107 = vrot.slane %v7091, %v7106
        %v7109 = vunpack.c.l.s4 1966171168
        %v7110 = vunpack.c.0.s8 %v7109
        %v7111 = vlaneseq
        %v7112 = vshrl.u32 %v7111, 7
        %v7113 = vsub.s32 %v7110, %v7112
        %v7114 = vrot.slane %v7092, %v7113
        %v7116 = vunpack.c.l.s4 1966171168
        %v7117 = vunpack.c.0.s8 %v7116
        %v7118 = vlaneseq
        %v7119 = vshrl.u32 %v7118, 7
        %v7120 = vsub.s32 %v7117, %v7119
        %v7121 = vrot.slane %v7093, %v7120
        %v7122 = vcombine.low %v7100, %v7107
        %v7123 = vcombine.low %v7114, %v7121
        %v7125 = vunpack.c.l.s4 1966171168
        %v7126 = vunpack.c.0.s8 %v7125
        %v7127 = vlaneseq
        %v7128 = vshrl.u32 %v7127, 7
        %v7129 = vsub.s32 %v7126, %v7128
        %v7130 = vrot.slane %v7122, %v7129
        %v7132 = vunpack.c.l.s4 1966171168
        %v7133 = vunpack.c.0.s8 %v7132
        %v7134 = vlaneseq
        %v7135 = vshrl.u32 %v7134, 7
        %v7136 = vsub.s32 %v7133, %v7135
        %v7137 = vrot.slane %v7123, %v7136
        %v7138 = vcombine.low %v7130, %v7137
        %v7139 = vcombine.low %v4448, %v4452
        %v7140 = vcombine.low %v4456, %v4460
        %v7141 = vcombine.low %v4464, %v4468
        %v7142 = vcombine.low %v4472, %v4476
        %v7144 = vunpack.c.l.s4 1966171168
        %v7145 = vunpack.c.0.s8 %v7144
        %v7146 = vlaneseq
        %v7147 = vshrl.u32 %v7146, 7
        %v7148 = vsub.s32 %v7145, %v7147
        %v7149 = vrot.slane %v7139, %v7148
        %v7151 = vunpack.c.l.s4 1966171168
        %v7152 = vunpack.c.0.s8 %v7151
        %v7153 = vlaneseq
        %v7154 = vshrl.u32 %v7153, 7
        %v7155 = vsub.s32 %v7152, %v7154
        %v7156 = vrot.slane %v7140, %v7155
        %v7158 = vunpack.c.l.s4 1966171168
        %v7159 = vunpack.c.0.s8 %v7158
        %v7160 = vlaneseq
        %v7161 = vshrl.u32 %v7160, 7
        %v7162 = vsub.s32 %v7159, %v7161
        %v7163 = vrot.slane %v7141, %v7162
        %v7165 = vunpack.c.l.s4 1966171168
        %v7166 = vunpack.c.0.s8 %v7165
        %v7167 = vlaneseq
        %v7168 = vshrl.u32 %v7167, 7
        %v7169 = vsub.s32 %v7166, %v7168
        %v7170 = vrot.slane %v7142, %v7169
        %v7171 = vcombine.low %v7149, %v7156
        %v7172 = vcombine.low %v7163, %v7170
        %v7174 = vunpack.c.l.s4 1966171168
        %v7175 = vunpack.c.0.s8 %v7174
        %v7176 = vlaneseq
        %v7177 = vshrl.u32 %v7176, 7
        %v7178 = vsub.s32 %v7175, %v7177
        %v7179 = vrot.slane %v7171, %v7178
        %v7181 = vunpack.c.l.s4 1966171168
        %v7182 = vunpack.c.0.s8 %v7181
        %v7183 = vlaneseq
        %v7184 = vshrl.u32 %v7183, 7
        %v7185 = vsub.s32 %v7182, %v7184
        %v7186 = vrot.slane %v7172, %v7185
        %v7187 = vcombine.low %v7179, %v7186
        %v7188 = vcombine.low %v4480, %v4484
        %v7189 = vcombine.low %v4488, %v4492
        %v7190 = vcombine.low %v4496, %v4500
        %v7191 = vcombine.low %v4504, %v4508
        %v7193 = vunpack.c.l.s4 1966171168
        %v7194 = vunpack.c.0.s8 %v7193
        %v7195 = vlaneseq
        %v7196 = vshrl.u32 %v7195, 7
        %v7197 = vsub.s32 %v7194, %v7196
        %v7198 = vrot.slane %v7188, %v7197
        %v7200 = vunpack.c.l.s4 1966171168
        %v7201 = vunpack.c.0.s8 %v7200
        %v7202 = vlaneseq
        %v7203 = vshrl.u32 %v7202, 7
        %v7204 = vsub.s32 %v7201, %v7203
        %v7205 = vrot.slane %v7189, %v7204
        %v7207 = vunpack.c.l.s4 1966171168
        %v7208 = vunpack.c.0.s8 %v7207
        %v7209 = vlaneseq
        %v7210 = vshrl.u32 %v7209, 7
        %v7211 = vsub.s32 %v7208, %v7210
        %v7212 = vrot.slane %v7190, %v7211
        %v7214 = vunpack.c.l.s4 1966171168
        %v7215 = vunpack.c.0.s8 %v7214
        %v7216 = vlaneseq
        %v7217 = vshrl.u32 %v7216, 7
        %v7218 = vsub.s32 %v7215, %v7217
        %v7219 = vrot.slane %v7191, %v7218
        %v7220 = vcombine.low %v7198, %v7205
        %v7221 = vcombine.low %v7212, %v7219
        %v7223 = vunpack.c.l.s4 1966171168
        %v7224 = vunpack.c.0.s8 %v7223
        %v7225 = vlaneseq
        %v7226 = vshrl.u32 %v7225, 7
        %v7227 = vsub.s32 %v7224, %v7226
        %v7228 = vrot.slane %v7220, %v7227
        %v7230 = vunpack.c.l.s4 1966171168
        %v7231 = vunpack.c.0.s8 %v7230
        %v7232 = vlaneseq
        %v7233 = vshrl.u32 %v7232, 7
        %v7234 = vsub.s32 %v7231, %v7233
        %v7235 = vrot.slane %v7221, %v7234
        %v7236 = vcombine.low %v7228, %v7235
        %v7237 = vcombine.low %v4512, %v4516
        %v7238 = vcombine.low %v4520, %v4524
        %v7239 = vcombine.low %v4528, %v4532
        %v7240 = vcombine.low %v4536, %v4540
        %v7242 = vunpack.c.l.s4 1966171168
        %v7243 = vunpack.c.0.s8 %v7242
        %v7244 = vlaneseq
        %v7245 = vshrl.u32 %v7244, 7
        %v7246 = vsub.s32 %v7243, %v7245
        %v7247 = vrot.slane %v7237, %v7246
        %v7249 = vunpack.c.l.s4 1966171168
        %v7250 = vunpack.c.0.s8 %v7249
        %v7251 = vlaneseq
        %v7252 = vshrl.u32 %v7251, 7
        %v7253 = vsub.s32 %v7250, %v7252
        %v7254 = vrot.slane %v7238, %v7253
        %v7256 = vunpack.c.l.s4 1966171168
        %v7257 = vunpack.c.0.s8 %v7256
        %v7258 = vlaneseq
        %v7259 = vshrl.u32 %v7258, 7
        %v7260 = vsub.s32 %v7257, %v7259
        %v7261 = vrot.slane %v7239, %v7260
        %v7263 = vunpack.c.l.s4 1966171168
        %v7264 = vunpack.c.0.s8 %v7263
        %v7265 = vlaneseq
        %v7266 = vshrl.u32 %v7265, 7
        %v7267 = vsub.s32 %v7264, %v7266
        %v7268 = vrot.slane %v7240, %v7267
        %v7269 = vcombine.low %v7247, %v7254
        %v7270 = vcombine.low %v7261, %v7268
        %v7272 = vunpack.c.l.s4 1966171168
        %v7273 = vunpack.c.0.s8 %v7272
        %v7274 = vlaneseq
        %v7275 = vshrl.u32 %v7274, 7
        %v7276 = vsub.s32 %v7273, %v7275
        %v7277 = vrot.slane %v7269, %v7276
        %v7279 = vunpack.c.l.s4 1966171168
        %v7280 = vunpack.c.0.s8 %v7279
        %v7281 = vlaneseq
        %v7282 = vshrl.u32 %v7281, 7
        %v7283 = vsub.s32 %v7280, %v7282
        %v7284 = vrot.slane %v7270, %v7283
        %v7285 = vcombine.low %v7277, %v7284
        %v7286 = vcombine.low %v4544, %v4548
        %v7287 = vcombine.low %v4552, %v4556
        %v7288 = vcombine.low %v4560, %v4564
        %v7289 = vcombine.low %v4568, %v4572
        %v7291 = vunpack.c.l.s4 1966171168
        %v7292 = vunpack.c.0.s8 %v7291
        %v7293 = vlaneseq
        %v7294 = vshrl.u32 %v7293, 7
        %v7295 = vsub.s32 %v7292, %v7294
        %v7296 = vrot.slane %v7286, %v7295
        %v7298 = vunpack.c.l.s4 1966171168
        %v7299 = vunpack.c.0.s8 %v7298
        %v7300 = vlaneseq
        %v7301 = vshrl.u32 %v7300, 7
        %v7302 = vsub.s32 %v7299, %v7301
        %v7303 = vrot.slane %v7287, %v7302
        %v7305 = vunpack.c.l.s4 1966171168
        %v7306 = vunpack.c.0.s8 %v7305
        %v7307 = vlaneseq
        %v7308 = vshrl.u32 %v7307, 7
        %v7309 = vsub.s32 %v7306, %v7308
        %v7310 = vrot.slane %v7288, %v7309
        %v7312 = vunpack.c.l.s4 1966171168
        %v7313 = vunpack.c.0.s8 %v7312
        %v7314 = vlaneseq
        %v7315 = vshrl.u32 %v7314, 7
        %v7316 = vsub.s32 %v7313, %v7315
        %v7317 = vrot.slane %v7289, %v7316
        %v7318 = vcombine.low %v7296, %v7303
        %v7319 = vcombine.low %v7310, %v7317
        %v7321 = vunpack.c.l.s4 1966171168
        %v7322 = vunpack.c.0.s8 %v7321
        %v7323 = vlaneseq
        %v7324 = vshrl.u32 %v7323, 7
        %v7325 = vsub.s32 %v7322, %v7324
        %v7326 = vrot.slane %v7318, %v7325
        %v7328 = vunpack.c.l.s4 1966171168
        %v7329 = vunpack.c.0.s8 %v7328
        %v7330 = vlaneseq
        %v7331 = vshrl.u32 %v7330, 7
        %v7332 = vsub.s32 %v7329, %v7331
        %v7333 = vrot.slane %v7319, %v7332
        %v7334 = vcombine.low %v7326, %v7333
        %v7335 = vcombine.low %v4576, %v4580
        %v7336 = vcombine.low %v4584, %v4588
        %v7337 = vcombine.low %v4592, %v4596
        %v7338 = vcombine.low %v4600, %v4604
        %v7340 = vunpack.c.l.s4 1966171168
        %v7341 = vunpack.c.0.s8 %v7340
        %v7342 = vlaneseq
        %v7343 = vshrl.u32 %v7342, 7
        %v7344 = vsub.s32 %v7341, %v7343
        %v7345 = vrot.slane %v7335, %v7344
        %v7347 = vunpack.c.l.s4 1966171168
        %v7348 = vunpack.c.0.s8 %v7347
        %v7349 = vlaneseq
        %v7350 = vshrl.u32 %v7349, 7
        %v7351 = vsub.s32 %v7348, %v7350
        %v7352 = vrot.slane %v7336, %v7351
        %v7354 = vunpack.c.l.s4 1966171168
        %v7355 = vunpack.c.0.s8 %v7354
        %v7356 = vlaneseq
        %v7357 = vshrl.u32 %v7356, 7
        %v7358 = vsub.s32 %v7355, %v7357
        %v7359 = vrot.slane %v7337, %v7358
        %v7361 = vunpack.c.l.s4 1966171168
        %v7362 = vunpack.c.0.s8 %v7361
        %v7363 = vlaneseq
        %v7364 = vshrl.u32 %v7363, 7
        %v7365 = vsub.s32 %v7362, %v7364
        %v7366 = vrot.slane %v7338, %v7365
        %v7367 = vcombine.low %v7345, %v7352
        %v7368 = vcombine.low %v7359, %v7366
        %v7370 = vunpack.c.l.s4 1966171168
        %v7371 = vunpack.c.0.s8 %v7370
        %v7372 = vlaneseq
        %v7373 = vshrl.u32 %v7372, 7
        %v7374 = vsub.s32 %v7371, %v7373
        %v7375 = vrot.slane %v7367, %v7374
        %v7377 = vunpack.c.l.s4 1966171168
        %v7378 = vunpack.c.0.s8 %v7377
        %v7379 = vlaneseq
        %v7380 = vshrl.u32 %v7379, 7
        %v7381 = vsub.s32 %v7378, %v7380
        %v7382 = vrot.slane %v7368, %v7381
        %v7383 = vcombine.low %v7375, %v7382
        %v7384 = vcombine.low %v4608, %v4612
        %v7385 = vcombine.low %v4616, %v4620
        %v7386 = vcombine.low %v4624, %v4628
        %v7387 = vcombine.low %v4632, %v4636
        %v7389 = vunpack.c.l.s4 1966171168
        %v7390 = vunpack.c.0.s8 %v7389
        %v7391 = vlaneseq
        %v7392 = vshrl.u32 %v7391, 7
        %v7393 = vsub.s32 %v7390, %v7392
        %v7394 = vrot.slane %v7384, %v7393
        %v7396 = vunpack.c.l.s4 1966171168
        %v7397 = vunpack.c.0.s8 %v7396
        %v7398 = vlaneseq
        %v7399 = vshrl.u32 %v7398, 7
        %v7400 = vsub.s32 %v7397, %v7399
        %v7401 = vrot.slane %v7385, %v7400
        %v7403 = vunpack.c.l.s4 1966171168
        %v7404 = vunpack.c.0.s8 %v7403
        %v7405 = vlaneseq
        %v7406 = vshrl.u32 %v7405, 7
        %v7407 = vsub.s32 %v7404, %v7406
        %v7408 = vrot.slane %v7386, %v7407
        %v7410 = vunpack.c.l.s4 1966171168
        %v7411 = vunpack.c.0.s8 %v7410
        %v7412 = vlaneseq
        %v7413 = vshrl.u32 %v7412, 7
        %v7414 = vsub.s32 %v7411, %v7413
        %v7415 = vrot.slane %v7387, %v7414
        %v7416 = vcombine.low %v7394, %v7401
        %v7417 = vcombine.low %v7408, %v7415
        %v7419 = vunpack.c.l.s4 1966171168
        %v7420 = vunpack.c.0.s8 %v7419
        %v7421 = vlaneseq
        %v7422 = vshrl.u32 %v7421, 7
        %v7423 = vsub.s32 %v7420, %v7422
        %v7424 = vrot.slane %v7416, %v7423
        %v7426 = vunpack.c.l.s4 1966171168
        %v7427 = vunpack.c.0.s8 %v7426
        %v7428 = vlaneseq
        %v7429 = vshrl.u32 %v7428, 7
        %v7430 = vsub.s32 %v7427, %v7429
        %v7431 = vrot.slane %v7417, %v7430
        %v7432 = vcombine.low %v7424, %v7431
        %v7433 = vcombine.low %v4640, %v4644
        %v7434 = vcombine.low %v4648, %v4652
        %v7435 = vcombine.low %v4656, %v4660
        %v7436 = vcombine.low %v4664, %v4668
        %v7438 = vunpack.c.l.s4 1966171168
        %v7439 = vunpack.c.0.s8 %v7438
        %v7440 = vlaneseq
        %v7441 = vshrl.u32 %v7440, 7
        %v7442 = vsub.s32 %v7439, %v7441
        %v7443 = vrot.slane %v7433, %v7442
        %v7445 = vunpack.c.l.s4 1966171168
        %v7446 = vunpack.c.0.s8 %v7445
        %v7447 = vlaneseq
        %v7448 = vshrl.u32 %v7447, 7
        %v7449 = vsub.s32 %v7446, %v7448
        %v7450 = vrot.slane %v7434, %v7449
        %v7452 = vunpack.c.l.s4 1966171168
        %v7453 = vunpack.c.0.s8 %v7452
        %v7454 = vlaneseq
        %v7455 = vshrl.u32 %v7454, 7
        %v7456 = vsub.s32 %v7453, %v7455
        %v7457 = vrot.slane %v7435, %v7456
        %v7459 = vunpack.c.l.s4 1966171168
        %v7460 = vunpack.c.0.s8 %v7459
        %v7461 = vlaneseq
        %v7462 = vshrl.u32 %v7461, 7
        %v7463 = vsub.s32 %v7460, %v7462
        %v7464 = vrot.slane %v7436, %v7463
        %v7465 = vcombine.low %v7443, %v7450
        %v7466 = vcombine.low %v7457, %v7464
        %v7468 = vunpack.c.l.s4 1966171168
        %v7469 = vunpack.c.0.s8 %v7468
        %v7470 = vlaneseq
        %v7471 = vshrl.u32 %v7470, 7
        %v7472 = vsub.s32 %v7469, %v7471
        %v7473 = vrot.slane %v7465, %v7472
        %v7475 = vunpack.c.l.s4 1966171168
        %v7476 = vunpack.c.0.s8 %v7475
        %v7477 = vlaneseq
        %v7478 = vshrl.u32 %v7477, 7
        %v7479 = vsub.s32 %v7476, %v7478
        %v7480 = vrot.slane %v7466, %v7479
        %v7481 = vcombine.low %v7473, %v7480
        %v7482 = vcombine.low %v4672, %v4676
        %v7483 = vcombine.low %v4680, %v4684
        %v7484 = vcombine.low %v4688, %v4692
        %v7485 = vcombine.low %v4696, %v4700
        %v7487 = vunpack.c.l.s4 1966171168
        %v7488 = vunpack.c.0.s8 %v7487
        %v7489 = vlaneseq
        %v7490 = vshrl.u32 %v7489, 7
        %v7491 = vsub.s32 %v7488, %v7490
        %v7492 = vrot.slane %v7482, %v7491
        %v7494 = vunpack.c.l.s4 1966171168
        %v7495 = vunpack.c.0.s8 %v7494
        %v7496 = vlaneseq
        %v7497 = vshrl.u32 %v7496, 7
        %v7498 = vsub.s32 %v7495, %v7497
        %v7499 = vrot.slane %v7483, %v7498
        %v7501 = vunpack.c.l.s4 1966171168
        %v7502 = vunpack.c.0.s8 %v7501
        %v7503 = vlaneseq
        %v7504 = vshrl.u32 %v7503, 7
        %v7505 = vsub.s32 %v7502, %v7504
        %v7506 = vrot.slane %v7484, %v7505
        %v7508 = vunpack.c.l.s4 1966171168
        %v7509 = vunpack.c.0.s8 %v7508
        %v7510 = vlaneseq
        %v7511 = vshrl.u32 %v7510, 7
        %v7512 = vsub.s32 %v7509, %v7511
        %v7513 = vrot.slane %v7485, %v7512
        %v7514 = vcombine.low %v7492, %v7499
        %v7515 = vcombine.low %v7506, %v7513
        %v7517 = vunpack.c.l.s4 1966171168
        %v7518 = vunpack.c.0.s8 %v7517
        %v7519 = vlaneseq
        %v7520 = vshrl.u32 %v7519, 7
        %v7521 = vsub.s32 %v7518, %v7520
        %v7522 = vrot.slane %v7514, %v7521
        %v7524 = vunpack.c.l.s4 1966171168
        %v7525 = vunpack.c.0.s8 %v7524
        %v7526 = vlaneseq
        %v7527 = vshrl.u32 %v7526, 7
        %v7528 = vsub.s32 %v7525, %v7527
        %v7529 = vrot.slane %v7515, %v7528
        %v7530 = vcombine.low %v7522, %v7529
        %v7531 = vcombine.low %v4704, %v4708
        %v7532 = vcombine.low %v4712, %v4716
        %v7533 = vcombine.low %v4720, %v4724
        %v7534 = vcombine.low %v4728, %v4732
        %v7536 = vunpack.c.l.s4 1966171168
        %v7537 = vunpack.c.0.s8 %v7536
        %v7538 = vlaneseq
        %v7539 = vshrl.u32 %v7538, 7
        %v7540 = vsub.s32 %v7537, %v7539
        %v7541 = vrot.slane %v7531, %v7540
        %v7543 = vunpack.c.l.s4 1966171168
        %v7544 = vunpack.c.0.s8 %v7543
        %v7545 = vlaneseq
        %v7546 = vshrl.u32 %v7545, 7
        %v7547 = vsub.s32 %v7544, %v7546
        %v7548 = vrot.slane %v7532, %v7547
        %v7550 = vunpack.c.l.s4 1966171168
        %v7551 = vunpack.c.0.s8 %v7550
        %v7552 = vlaneseq
        %v7553 = vshrl.u32 %v7552, 7
        %v7554 = vsub.s32 %v7551, %v7553
        %v7555 = vrot.slane %v7533, %v7554
        %v7557 = vunpack.c.l.s4 1966171168
        %v7558 = vunpack.c.0.s8 %v7557
        %v7559 = vlaneseq
        %v7560 = vshrl.u32 %v7559, 7
        %v7561 = vsub.s32 %v7558, %v7560
        %v7562 = vrot.slane %v7534, %v7561
        %v7563 = vcombine.low %v7541, %v7548
        %v7564 = vcombine.low %v7555, %v7562
        %v7566 = vunpack.c.l.s4 1966171168
        %v7567 = vunpack.c.0.s8 %v7566
        %v7568 = vlaneseq
        %v7569 = vshrl.u32 %v7568, 7
        %v7570 = vsub.s32 %v7567, %v7569
        %v7571 = vrot.slane %v7563, %v7570
        %v7573 = vunpack.c.l.s4 1966171168
        %v7574 = vunpack.c.0.s8 %v7573
        %v7575 = vlaneseq
        %v7576 = vshrl.u32 %v7575, 7
        %v7577 = vsub.s32 %v7574, %v7576
        %v7578 = vrot.slane %v7564, %v7577
        %v7579 = vcombine.low %v7571, %v7578
        %v7580 = vcombine.low %v4736, %v4740
        %v7581 = vcombine.low %v4744, %v4748
        %v7582 = vcombine.low %v4752, %v4756
        %v7583 = vcombine.low %v4760, %v4764
        %v7585 = vunpack.c.l.s4 1966171168
        %v7586 = vunpack.c.0.s8 %v7585
        %v7587 = vlaneseq
        %v7588 = vshrl.u32 %v7587, 7
        %v7589 = vsub.s32 %v7586, %v7588
        %v7590 = vrot.slane %v7580, %v7589
        %v7592 = vunpack.c.l.s4 1966171168
        %v7593 = vunpack.c.0.s8 %v7592
        %v7594 = vlaneseq
        %v7595 = vshrl.u32 %v7594, 7
        %v7596 = vsub.s32 %v7593, %v7595
        %v7597 = vrot.slane %v7581, %v7596
        %v7599 = vunpack.c.l.s4 1966171168
        %v7600 = vunpack.c.0.s8 %v7599
        %v7601 = vlaneseq
        %v7602 = vshrl.u32 %v7601, 7
        %v7603 = vsub.s32 %v7600, %v7602
        %v7604 = vrot.slane %v7582, %v7603
        %v7606 = vunpack.c.l.s4 1966171168
        %v7607 = vunpack.c.0.s8 %v7606
        %v7608 = vlaneseq
        %v7609 = vshrl.u32 %v7608, 7
        %v7610 = vsub.s32 %v7607, %v7609
        %v7611 = vrot.slane %v7583, %v7610
        %v7612 = vcombine.low %v7590, %v7597
        %v7613 = vcombine.low %v7604, %v7611
        %v7615 = vunpack.c.l.s4 1966171168
        %v7616 = vunpack.c.0.s8 %v7615
        %v7617 = vlaneseq
        %v7618 = vshrl.u32 %v7617, 7
        %v7619 = vsub.s32 %v7616, %v7618
        %v7620 = vrot.slane %v7612, %v7619
        %v7622 = vunpack.c.l.s4 1966171168
        %v7623 = vunpack.c.0.s8 %v7622
        %v7624 = vlaneseq
        %v7625 = vshrl.u32 %v7624, 7
        %v7626 = vsub.s32 %v7623, %v7625
        %v7627 = vrot.slane %v7613, %v7626
        %v7628 = vcombine.low %v7620, %v7627
        %v7629 = vcombine.low %v4768, %v4772
        %v7630 = vcombine.low %v4776, %v4780
        %v7631 = vcombine.low %v4784, %v4788
        %v7632 = vcombine.low %v4792, %v4796
        %v7634 = vunpack.c.l.s4 1966171168
        %v7635 = vunpack.c.0.s8 %v7634
        %v7636 = vlaneseq
        %v7637 = vshrl.u32 %v7636, 7
        %v7638 = vsub.s32 %v7635, %v7637
        %v7639 = vrot.slane %v7629, %v7638
        %v7641 = vunpack.c.l.s4 1966171168
        %v7642 = vunpack.c.0.s8 %v7641
        %v7643 = vlaneseq
        %v7644 = vshrl.u32 %v7643, 7
        %v7645 = vsub.s32 %v7642, %v7644
        %v7646 = vrot.slane %v7630, %v7645
        %v7648 = vunpack.c.l.s4 1966171168
        %v7649 = vunpack.c.0.s8 %v7648
        %v7650 = vlaneseq
        %v7651 = vshrl.u32 %v7650, 7
        %v7652 = vsub.s32 %v7649, %v7651
        %v7653 = vrot.slane %v7631, %v7652
        %v7655 = vunpack.c.l.s4 1966171168
        %v7656 = vunpack.c.0.s8 %v7655
        %v7657 = vlaneseq
        %v7658 = vshrl.u32 %v7657, 7
        %v7659 = vsub.s32 %v7656, %v7658
        %v7660 = vrot.slane %v7632, %v7659
        %v7661 = vcombine.low %v7639, %v7646
        %v7662 = vcombine.low %v7653, %v7660
        %v7664 = vunpack.c.l.s4 1966171168
        %v7665 = vunpack.c.0.s8 %v7664
        %v7666 = vlaneseq
        %v7667 = vshrl.u32 %v7666, 7
        %v7668 = vsub.s32 %v7665, %v7667
        %v7669 = vrot.slane %v7661, %v7668
        %v7671 = vunpack.c.l.s4 1966171168
        %v7672 = vunpack.c.0.s8 %v7671
        %v7673 = vlaneseq
        %v7674 = vshrl.u32 %v7673, 7
        %v7675 = vsub.s32 %v7672, %v7674
        %v7676 = vrot.slane %v7662, %v7675
        %v7677 = vcombine.low %v7669, %v7676
        %v7678 = vcombine.low %v4800, %v4804
        %v7679 = vcombine.low %v4808, %v4812
        %v7680 = vcombine.low %v4816, %v4820
        %v7681 = vcombine.low %v4824, %v4828
        %v7683 = vunpack.c.l.s4 1966171168
        %v7684 = vunpack.c.0.s8 %v7683
        %v7685 = vlaneseq
        %v7686 = vshrl.u32 %v7685, 7
        %v7687 = vsub.s32 %v7684, %v7686
        %v7688 = vrot.slane %v7678, %v7687
        %v7690 = vunpack.c.l.s4 1966171168
        %v7691 = vunpack.c.0.s8 %v7690
        %v7692 = vlaneseq
        %v7693 = vshrl.u32 %v7692, 7
        %v7694 = vsub.s32 %v7691, %v7693
        %v7695 = vrot.slane %v7679, %v7694
        %v7697 = vunpack.c.l.s4 1966171168
        %v7698 = vunpack.c.0.s8 %v7697
        %v7699 = vlaneseq
        %v7700 = vshrl.u32 %v7699, 7
        %v7701 = vsub.s32 %v7698, %v7700
        %v7702 = vrot.slane %v7680, %v7701
        %v7704 = vunpack.c.l.s4 1966171168
        %v7705 = vunpack.c.0.s8 %v7704
        %v7706 = vlaneseq
        %v7707 = vshrl.u32 %v7706, 7
        %v7708 = vsub.s32 %v7705, %v7707
        %v7709 = vrot.slane %v7681, %v7708
        %v7710 = vcombine.low %v7688, %v7695
        %v7711 = vcombine.low %v7702, %v7709
        %v7713 = vunpack.c.l.s4 1966171168
        %v7714 = vunpack.c.0.s8 %v7713
        %v7715 = vlaneseq
        %v7716 = vshrl.u32 %v7715, 7
        %v7717 = vsub.s32 %v7714, %v7716
        %v7718 = vrot.slane %v7710, %v7717
        %v7720 = vunpack.c.l.s4 1966171168
        %v7721 = vunpack.c.0.s8 %v7720
        %v7722 = vlaneseq
        %v7723 = vshrl.u32 %v7722, 7
        %v7724 = vsub.s32 %v7721, %v7723
        %v7725 = vrot.slane %v7711, %v7724
        %v7726 = vcombine.low %v7718, %v7725
        %v7727 = vcombine.low %v4832, %v4836
        %v7728 = vcombine.low %v4840, %v4844
        %v7729 = vcombine.low %v4848, %v4852
        %v7730 = vcombine.low %v4856, %v4860
        %v7732 = vunpack.c.l.s4 1966171168
        %v7733 = vunpack.c.0.s8 %v7732
        %v7734 = vlaneseq
        %v7735 = vshrl.u32 %v7734, 7
        %v7736 = vsub.s32 %v7733, %v7735
        %v7737 = vrot.slane %v7727, %v7736
        %v7739 = vunpack.c.l.s4 1966171168
        %v7740 = vunpack.c.0.s8 %v7739
        %v7741 = vlaneseq
        %v7742 = vshrl.u32 %v7741, 7
        %v7743 = vsub.s32 %v7740, %v7742
        %v7744 = vrot.slane %v7728, %v7743
        %v7746 = vunpack.c.l.s4 1966171168
        %v7747 = vunpack.c.0.s8 %v7746
        %v7748 = vlaneseq
        %v7749 = vshrl.u32 %v7748, 7
        %v7750 = vsub.s32 %v7747, %v7749
        %v7751 = vrot.slane %v7729, %v7750
        %v7753 = vunpack.c.l.s4 1966171168
        %v7754 = vunpack.c.0.s8 %v7753
        %v7755 = vlaneseq
        %v7756 = vshrl.u32 %v7755, 7
        %v7757 = vsub.s32 %v7754, %v7756
        %v7758 = vrot.slane %v7730, %v7757
        %v7759 = vcombine.low %v7737, %v7744
        %v7760 = vcombine.low %v7751, %v7758
        %v7762 = vunpack.c.l.s4 1966171168
        %v7763 = vunpack.c.0.s8 %v7762
        %v7764 = vlaneseq
        %v7765 = vshrl.u32 %v7764, 7
        %v7766 = vsub.s32 %v7763, %v7765
        %v7767 = vrot.slane %v7759, %v7766
        %v7769 = vunpack.c.l.s4 1966171168
        %v7770 = vunpack.c.0.s8 %v7769
        %v7771 = vlaneseq
        %v7772 = vshrl.u32 %v7771, 7
        %v7773 = vsub.s32 %v7770, %v7772
        %v7774 = vrot.slane %v7760, %v7773
        %v7775 = vcombine.low %v7767, %v7774
        %v7776 = vcombine.low %v4864, %v4868
        %v7777 = vcombine.low %v4872, %v4876
        %v7778 = vcombine.low %v4880, %v4884
        %v7779 = vcombine.low %v4888, %v4892
        %v7781 = vunpack.c.l.s4 1966171168
        %v7782 = vunpack.c.0.s8 %v7781
        %v7783 = vlaneseq
        %v7784 = vshrl.u32 %v7783, 7
        %v7785 = vsub.s32 %v7782, %v7784
        %v7786 = vrot.slane %v7776, %v7785
        %v7788 = vunpack.c.l.s4 1966171168
        %v7789 = vunpack.c.0.s8 %v7788
        %v7790 = vlaneseq
        %v7791 = vshrl.u32 %v7790, 7
        %v7792 = vsub.s32 %v7789, %v7791
        %v7793 = vrot.slane %v7777, %v7792
        %v7795 = vunpack.c.l.s4 1966171168
        %v7796 = vunpack.c.0.s8 %v7795
        %v7797 = vlaneseq
        %v7798 = vshrl.u32 %v7797, 7
        %v7799 = vsub.s32 %v7796, %v7798
        %v7800 = vrot.slane %v7778, %v7799
        %v7802 = vunpack.c.l.s4 1966171168
        %v7803 = vunpack.c.0.s8 %v7802
        %v7804 = vlaneseq
        %v7805 = vshrl.u32 %v7804, 7
        %v7806 = vsub.s32 %v7803, %v7805
        %v7807 = vrot.slane %v7779, %v7806
        %v7808 = vcombine.low %v7786, %v7793
        %v7809 = vcombine.low %v7800, %v7807
        %v7811 = vunpack.c.l.s4 1966171168
        %v7812 = vunpack.c.0.s8 %v7811
        %v7813 = vlaneseq
        %v7814 = vshrl.u32 %v7813, 7
        %v7815 = vsub.s32 %v7812, %v7814
        %v7816 = vrot.slane %v7808, %v7815
        %v7818 = vunpack.c.l.s4 1966171168
        %v7819 = vunpack.c.0.s8 %v7818
        %v7820 = vlaneseq
        %v7821 = vshrl.u32 %v7820, 7
        %v7822 = vsub.s32 %v7819, %v7821
        %v7823 = vrot.slane %v7809, %v7822
        %v7824 = vcombine.low %v7816, %v7823
        %v7825 = vcombine.low %v4896, %v4900
        %v7826 = vcombine.low %v4904, %v4908
        %v7827 = vcombine.low %v4912, %v4916
        %v7828 = vcombine.low %v4920, %v4924
        %v7830 = vunpack.c.l.s4 1966171168
        %v7831 = vunpack.c.0.s8 %v7830
        %v7832 = vlaneseq
        %v7833 = vshrl.u32 %v7832, 7
        %v7834 = vsub.s32 %v7831, %v7833
        %v7835 = vrot.slane %v7825, %v7834
        %v7837 = vunpack.c.l.s4 1966171168
        %v7838 = vunpack.c.0.s8 %v7837
        %v7839 = vlaneseq
        %v7840 = vshrl.u32 %v7839, 7
        %v7841 = vsub.s32 %v7838, %v7840
        %v7842 = vrot.slane %v7826, %v7841
        %v7844 = vunpack.c.l.s4 1966171168
        %v7845 = vunpack.c.0.s8 %v7844
        %v7846 = vlaneseq
        %v7847 = vshrl.u32 %v7846, 7
        %v7848 = vsub.s32 %v7845, %v7847
        %v7849 = vrot.slane %v7827, %v7848
        %v7851 = vunpack.c.l.s4 1966171168
        %v7852 = vunpack.c.0.s8 %v7851
        %v7853 = vlaneseq
        %v7854 = vshrl.u32 %v7853, 7
        %v7855 = vsub.s32 %v7852, %v7854
        %v7856 = vrot.slane %v7828, %v7855
        %v7857 = vcombine.low %v7835, %v7842
        %v7858 = vcombine.low %v7849, %v7856
        %v7860 = vunpack.c.l.s4 1966171168
        %v7861 = vunpack.c.0.s8 %v7860
        %v7862 = vlaneseq
        %v7863 = vshrl.u32 %v7862, 7
        %v7864 = vsub.s32 %v7861, %v7863
        %v7865 = vrot.slane %v7857, %v7864
        %v7867 = vunpack.c.l.s4 1966171168
        %v7868 = vunpack.c.0.s8 %v7867
        %v7869 = vlaneseq
        %v7870 = vshrl.u32 %v7869, 7
        %v7871 = vsub.s32 %v7868, %v7870
        %v7872 = vrot.slane %v7858, %v7871
        %v7873 = vcombine.low %v7865, %v7872
        %v7874 = vcombine.low %v4928, %v4932
        %v7875 = vcombine.low %v4936, %v4940
        %v7876 = vcombine.low %v4944, %v4948
        %v7877 = vcombine.low %v4952, %v4956
        %v7879 = vunpack.c.l.s4 1966171168
        %v7880 = vunpack.c.0.s8 %v7879
        %v7881 = vlaneseq
        %v7882 = vshrl.u32 %v7881, 7
        %v7883 = vsub.s32 %v7880, %v7882
        %v7884 = vrot.slane %v7874, %v7883
        %v7886 = vunpack.c.l.s4 1966171168
        %v7887 = vunpack.c.0.s8 %v7886
        %v7888 = vlaneseq
        %v7889 = vshrl.u32 %v7888, 7
        %v7890 = vsub.s32 %v7887, %v7889
        %v7891 = vrot.slane %v7875, %v7890
        %v7893 = vunpack.c.l.s4 1966171168
        %v7894 = vunpack.c.0.s8 %v7893
        %v7895 = vlaneseq
        %v7896 = vshrl.u32 %v7895, 7
        %v7897 = vsub.s32 %v7894, %v7896
        %v7898 = vrot.slane %v7876, %v7897
        %v7900 = vunpack.c.l.s4 1966171168
        %v7901 = vunpack.c.0.s8 %v7900
        %v7902 = vlaneseq
        %v7903 = vshrl.u32 %v7902, 7
        %v7904 = vsub.s32 %v7901, %v7903
        %v7905 = vrot.slane %v7877, %v7904
        %v7906 = vcombine.low %v7884, %v7891
        %v7907 = vcombine.low %v7898, %v7905
        %v7909 = vunpack.c.l.s4 1966171168
        %v7910 = vunpack.c.0.s8 %v7909
        %v7911 = vlaneseq
        %v7912 = vshrl.u32 %v7911, 7
        %v7913 = vsub.s32 %v7910, %v7912
        %v7914 = vrot.slane %v7906, %v7913
        %v7916 = vunpack.c.l.s4 1966171168
        %v7917 = vunpack.c.0.s8 %v7916
        %v7918 = vlaneseq
        %v7919 = vshrl.u32 %v7918, 7
        %v7920 = vsub.s32 %v7917, %v7919
        %v7921 = vrot.slane %v7907, %v7920
        %v7922 = vcombine.low %v7914, %v7921
        %v7923 = vcombine.low %v4960, %v4964
        %v7924 = vcombine.low %v4968, %v4972
        %v7925 = vcombine.low %v4976, %v4980
        %v7926 = vcombine.low %v4984, %v4988
        %v7928 = vunpack.c.l.s4 1966171168
        %v7929 = vunpack.c.0.s8 %v7928
        %v7930 = vlaneseq
        %v7931 = vshrl.u32 %v7930, 7
        %v7932 = vsub.s32 %v7929, %v7931
        %v7933 = vrot.slane %v7923, %v7932
        %v7935 = vunpack.c.l.s4 1966171168
        %v7936 = vunpack.c.0.s8 %v7935
        %v7937 = vlaneseq
        %v7938 = vshrl.u32 %v7937, 7
        %v7939 = vsub.s32 %v7936, %v7938
        %v7940 = vrot.slane %v7924, %v7939
        %v7942 = vunpack.c.l.s4 1966171168
        %v7943 = vunpack.c.0.s8 %v7942
        %v7944 = vlaneseq
        %v7945 = vshrl.u32 %v7944, 7
        %v7946 = vsub.s32 %v7943, %v7945
        %v7947 = vrot.slane %v7925, %v7946
        %v7949 = vunpack.c.l.s4 1966171168
        %v7950 = vunpack.c.0.s8 %v7949
        %v7951 = vlaneseq
        %v7952 = vshrl.u32 %v7951, 7
        %v7953 = vsub.s32 %v7950, %v7952
        %v7954 = vrot.slane %v7926, %v7953
        %v7955 = vcombine.low %v7933, %v7940
        %v7956 = vcombine.low %v7947, %v7954
        %v7958 = vunpack.c.l.s4 1966171168
        %v7959 = vunpack.c.0.s8 %v7958
        %v7960 = vlaneseq
        %v7961 = vshrl.u32 %v7960, 7
        %v7962 = vsub.s32 %v7959, %v7961
        %v7963 = vrot.slane %v7955, %v7962
        %v7965 = vunpack.c.l.s4 1966171168
        %v7966 = vunpack.c.0.s8 %v7965
        %v7967 = vlaneseq
        %v7968 = vshrl.u32 %v7967, 7
        %v7969 = vsub.s32 %v7966, %v7968
        %v7970 = vrot.slane %v7956, %v7969
        %v7971 = vcombine.low %v7963, %v7970
        %v7972 = vcombine.low %v4992, %v4996
        %v7973 = vcombine.low %v5000, %v5004
        %v7974 = vcombine.low %v5008, %v5012
        %v7975 = vcombine.low %v5016, %v5020
        %v7977 = vunpack.c.l.s4 1966171168
        %v7978 = vunpack.c.0.s8 %v7977
        %v7979 = vlaneseq
        %v7980 = vshrl.u32 %v7979, 7
        %v7981 = vsub.s32 %v7978, %v7980
        %v7982 = vrot.slane %v7972, %v7981
        %v7984 = vunpack.c.l.s4 1966171168
        %v7985 = vunpack.c.0.s8 %v7984
        %v7986 = vlaneseq
        %v7987 = vshrl.u32 %v7986, 7
        %v7988 = vsub.s32 %v7985, %v7987
        %v7989 = vrot.slane %v7973, %v7988
        %v7991 = vunpack.c.l.s4 1966171168
        %v7992 = vunpack.c.0.s8 %v7991
        %v7993 = vlaneseq
        %v7994 = vshrl.u32 %v7993, 7
        %v7995 = vsub.s32 %v7992, %v7994
        %v7996 = vrot.slane %v7974, %v7995
        %v7998 = vunpack.c.l.s4 1966171168
        %v7999 = vunpack.c.0.s8 %v7998
        %v8000 = vlaneseq
        %v8001 = vshrl.u32 %v8000, 7
        %v8002 = vsub.s32 %v7999, %v8001
        %v8003 = vrot.slane %v7975, %v8002
        %v8004 = vcombine.low %v7982, %v7989
        %v8005 = vcombine.low %v7996, %v8003
        %v8007 = vunpack.c.l.s4 1966171168
        %v8008 = vunpack.c.0.s8 %v8007
        %v8009 = vlaneseq
        %v8010 = vshrl.u32 %v8009, 7
        %v8011 = vsub.s32 %v8008, %v8010
        %v8012 = vrot.slane %v8004, %v8011
        %v8014 = vunpack.c.l.s4 1966171168
        %v8015 = vunpack.c.0.s8 %v8014
        %v8016 = vlaneseq
        %v8017 = vshrl.u32 %v8016, 7
        %v8018 = vsub.s32 %v8015, %v8017
        %v8019 = vrot.slane %v8005, %v8018
        %v8020 = vcombine.low %v8012, %v8019
        %v8021 = vcombine.low %v5024, %v5028
        %v8022 = vcombine.low %v5032, %v5036
        %v8023 = vcombine.low %v5040, %v5044
        %v8024 = vcombine.low %v5048, %v5052
        %v8026 = vunpack.c.l.s4 1966171168
        %v8027 = vunpack.c.0.s8 %v8026
        %v8028 = vlaneseq
        %v8029 = vshrl.u32 %v8028, 7
        %v8030 = vsub.s32 %v8027, %v8029
        %v8031 = vrot.slane %v8021, %v8030
        %v8033 = vunpack.c.l.s4 1966171168
        %v8034 = vunpack.c.0.s8 %v8033
        %v8035 = vlaneseq
        %v8036 = vshrl.u32 %v8035, 7
        %v8037 = vsub.s32 %v8034, %v8036
        %v8038 = vrot.slane %v8022, %v8037
        %v8040 = vunpack.c.l.s4 1966171168
        %v8041 = vunpack.c.0.s8 %v8040
        %v8042 = vlaneseq
        %v8043 = vshrl.u32 %v8042, 7
        %v8044 = vsub.s32 %v8041, %v8043
        %v8045 = vrot.slane %v8023, %v8044
        %v8047 = vunpack.c.l.s4 1966171168
        %v8048 = vunpack.c.0.s8 %v8047
        %v8049 = vlaneseq
        %v8050 = vshrl.u32 %v8049, 7
        %v8051 = vsub.s32 %v8048, %v8050
        %v8052 = vrot.slane %v8024, %v8051
        %v8053 = vcombine.low %v8031, %v8038
        %v8054 = vcombine.low %v8045, %v8052
        %v8056 = vunpack.c.l.s4 1966171168
        %v8057 = vunpack.c.0.s8 %v8056
        %v8058 = vlaneseq
        %v8059 = vshrl.u32 %v8058, 7
        %v8060 = vsub.s32 %v8057, %v8059
        %v8061 = vrot.slane %v8053, %v8060
        %v8063 = vunpack.c.l.s4 1966171168
        %v8064 = vunpack.c.0.s8 %v8063
        %v8065 = vlaneseq
        %v8066 = vshrl.u32 %v8065, 7
        %v8067 = vsub.s32 %v8064, %v8066
        %v8068 = vrot.slane %v8054, %v8067
        %v8069 = vcombine.low %v8061, %v8068
        %v8070 = vcombine.low %v5056, %v5060
        %v8071 = vcombine.low %v5064, %v5068
        %v8072 = vcombine.low %v5072, %v5076
        %v8073 = vcombine.low %v5080, %v5084
        %v8075 = vunpack.c.l.s4 1966171168
        %v8076 = vunpack.c.0.s8 %v8075
        %v8077 = vlaneseq
        %v8078 = vshrl.u32 %v8077, 7
        %v8079 = vsub.s32 %v8076, %v8078
        %v8080 = vrot.slane %v8070, %v8079
        %v8082 = vunpack.c.l.s4 1966171168
        %v8083 = vunpack.c.0.s8 %v8082
        %v8084 = vlaneseq
        %v8085 = vshrl.u32 %v8084, 7
        %v8086 = vsub.s32 %v8083, %v8085
        %v8087 = vrot.slane %v8071, %v8086
        %v8089 = vunpack.c.l.s4 1966171168
        %v8090 = vunpack.c.0.s8 %v8089
        %v8091 = vlaneseq
        %v8092 = vshrl.u32 %v8091, 7
        %v8093 = vsub.s32 %v8090, %v8092
        %v8094 = vrot.slane %v8072, %v8093
        %v8096 = vunpack.c.l.s4 1966171168
        %v8097 = vunpack.c.0.s8 %v8096
        %v8098 = vlaneseq
        %v8099 = vshrl.u32 %v8098, 7
        %v8100 = vsub.s32 %v8097, %v8099
        %v8101 = vrot.slane %v8073, %v8100
        %v8102 = vcombine.low %v8080, %v8087
        %v8103 = vcombine.low %v8094, %v8101
        %v8105 = vunpack.c.l.s4 1966171168
        %v8106 = vunpack.c.0.s8 %v8105
        %v8107 = vlaneseq
        %v8108 = vshrl.u32 %v8107, 7
        %v8109 = vsub.s32 %v8106, %v8108
        %v8110 = vrot.slane %v8102, %v8109
        %v8112 = vunpack.c.l.s4 1966171168
        %v8113 = vunpack.c.0.s8 %v8112
        %v8114 = vlaneseq
        %v8115 = vshrl.u32 %v8114, 7
        %v8116 = vsub.s32 %v8113, %v8115
        %v8117 = vrot.slane %v8103, %v8116
        %v8118 = vcombine.low %v8110, %v8117
        %v8119 = vcombine.low %v5088, %v5092
        %v8120 = vcombine.low %v5096, %v5100
        %v8121 = vcombine.low %v5104, %v5108
        %v8122 = vcombine.low %v5112, %v5116
        %v8124 = vunpack.c.l.s4 1966171168
        %v8125 = vunpack.c.0.s8 %v8124
        %v8126 = vlaneseq
        %v8127 = vshrl.u32 %v8126, 7
        %v8128 = vsub.s32 %v8125, %v8127
        %v8129 = vrot.slane %v8119, %v8128
        %v8131 = vunpack.c.l.s4 1966171168
        %v8132 = vunpack.c.0.s8 %v8131
        %v8133 = vlaneseq
        %v8134 = vshrl.u32 %v8133, 7
        %v8135 = vsub.s32 %v8132, %v8134
        %v8136 = vrot.slane %v8120, %v8135
        %v8138 = vunpack.c.l.s4 1966171168
        %v8139 = vunpack.c.0.s8 %v8138
        %v8140 = vlaneseq
        %v8141 = vshrl.u32 %v8140, 7
        %v8142 = vsub.s32 %v8139, %v8141
        %v8143 = vrot.slane %v8121, %v8142
        %v8145 = vunpack.c.l.s4 1966171168
        %v8146 = vunpack.c.0.s8 %v8145
        %v8147 = vlaneseq
        %v8148 = vshrl.u32 %v8147, 7
        %v8149 = vsub.s32 %v8146, %v8148
        %v8150 = vrot.slane %v8122, %v8149
        %v8151 = vcombine.low %v8129, %v8136
        %v8152 = vcombine.low %v8143, %v8150
        %v8154 = vunpack.c.l.s4 1966171168
        %v8155 = vunpack.c.0.s8 %v8154
        %v8156 = vlaneseq
        %v8157 = vshrl.u32 %v8156, 7
        %v8158 = vsub.s32 %v8155, %v8157
        %v8159 = vrot.slane %v8151, %v8158
        %v8161 = vunpack.c.l.s4 1966171168
        %v8162 = vunpack.c.0.s8 %v8161
        %v8163 = vlaneseq
        %v8164 = vshrl.u32 %v8163, 7
        %v8165 = vsub.s32 %v8162, %v8164
        %v8166 = vrot.slane %v8152, %v8165
        %v8167 = vcombine.low %v8159, %v8166
        %v8168 = vcombine.low %v5120, %v5124
        %v8169 = vcombine.low %v5128, %v5132
        %v8170 = vcombine.low %v5136, %v5140
        %v8171 = vcombine.low %v5144, %v5148
        %v8173 = vunpack.c.l.s4 1966171168
        %v8174 = vunpack.c.0.s8 %v8173
        %v8175 = vlaneseq
        %v8176 = vshrl.u32 %v8175, 7
        %v8177 = vsub.s32 %v8174, %v8176
        %v8178 = vrot.slane %v8168, %v8177
        %v8180 = vunpack.c.l.s4 1966171168
        %v8181 = vunpack.c.0.s8 %v8180
        %v8182 = vlaneseq
        %v8183 = vshrl.u32 %v8182, 7
        %v8184 = vsub.s32 %v8181, %v8183
        %v8185 = vrot.slane %v8169, %v8184
        %v8187 = vunpack.c.l.s4 1966171168
        %v8188 = vunpack.c.0.s8 %v8187
        %v8189 = vlaneseq
        %v8190 = vshrl.u32 %v8189, 7
        %v8191 = vsub.s32 %v8188, %v8190
        %v8192 = vrot.slane %v8170, %v8191
        %v8194 = vunpack.c.l.s4 1966171168
        %v8195 = vunpack.c.0.s8 %v8194
        %v8196 = vlaneseq
        %v8197 = vshrl.u32 %v8196, 7
        %v8198 = vsub.s32 %v8195, %v8197
        %v8199 = vrot.slane %v8171, %v8198
        %v8200 = vcombine.low %v8178, %v8185
        %v8201 = vcombine.low %v8192, %v8199
        %v8203 = vunpack.c.l.s4 1966171168
        %v8204 = vunpack.c.0.s8 %v8203
        %v8205 = vlaneseq
        %v8206 = vshrl.u32 %v8205, 7
        %v8207 = vsub.s32 %v8204, %v8206
        %v8208 = vrot.slane %v8200, %v8207
        %v8210 = vunpack.c.l.s4 1966171168
        %v8211 = vunpack.c.0.s8 %v8210
        %v8212 = vlaneseq
        %v8213 = vshrl.u32 %v8212, 7
        %v8214 = vsub.s32 %v8211, %v8213
        %v8215 = vrot.slane %v8201, %v8214
        %v8216 = vcombine.low %v8208, %v8215
        %v8217 = vcombine.low %v5152, %v5156
        %v8218 = vcombine.low %v5160, %v5164
        %v8219 = vcombine.low %v5168, %v5172
        %v8220 = vcombine.low %v5176, %v5180
        %v8222 = vunpack.c.l.s4 1966171168
        %v8223 = vunpack.c.0.s8 %v8222
        %v8224 = vlaneseq
        %v8225 = vshrl.u32 %v8224, 7
        %v8226 = vsub.s32 %v8223, %v8225
        %v8227 = vrot.slane %v8217, %v8226
        %v8229 = vunpack.c.l.s4 1966171168
        %v8230 = vunpack.c.0.s8 %v8229
        %v8231 = vlaneseq
        %v8232 = vshrl.u32 %v8231, 7
        %v8233 = vsub.s32 %v8230, %v8232
        %v8234 = vrot.slane %v8218, %v8233
        %v8236 = vunpack.c.l.s4 1966171168
        %v8237 = vunpack.c.0.s8 %v8236
        %v8238 = vlaneseq
        %v8239 = vshrl.u32 %v8238, 7
        %v8240 = vsub.s32 %v8237, %v8239
        %v8241 = vrot.slane %v8219, %v8240
        %v8243 = vunpack.c.l.s4 1966171168
        %v8244 = vunpack.c.0.s8 %v8243
        %v8245 = vlaneseq
        %v8246 = vshrl.u32 %v8245, 7
        %v8247 = vsub.s32 %v8244, %v8246
        %v8248 = vrot.slane %v8220, %v8247
        %v8249 = vcombine.low %v8227, %v8234
        %v8250 = vcombine.low %v8241, %v8248
        %v8252 = vunpack.c.l.s4 1966171168
        %v8253 = vunpack.c.0.s8 %v8252
        %v8254 = vlaneseq
        %v8255 = vshrl.u32 %v8254, 7
        %v8256 = vsub.s32 %v8253, %v8255
        %v8257 = vrot.slane %v8249, %v8256
        %v8259 = vunpack.c.l.s4 1966171168
        %v8260 = vunpack.c.0.s8 %v8259
        %v8261 = vlaneseq
        %v8262 = vshrl.u32 %v8261, 7
        %v8263 = vsub.s32 %v8260, %v8262
        %v8264 = vrot.slane %v8250, %v8263
        %v8265 = vcombine.low %v8257, %v8264
        %v8266 = vcombine.low %v5184, %v5188
        %v8267 = vcombine.low %v5192, %v5196
        %v8268 = vcombine.low %v5200, %v5204
        %v8269 = vcombine.low %v5208, %v5212
        %v8271 = vunpack.c.l.s4 1966171168
        %v8272 = vunpack.c.0.s8 %v8271
        %v8273 = vlaneseq
        %v8274 = vshrl.u32 %v8273, 7
        %v8275 = vsub.s32 %v8272, %v8274
        %v8276 = vrot.slane %v8266, %v8275
        %v8278 = vunpack.c.l.s4 1966171168
        %v8279 = vunpack.c.0.s8 %v8278
        %v8280 = vlaneseq
        %v8281 = vshrl.u32 %v8280, 7
        %v8282 = vsub.s32 %v8279, %v8281
        %v8283 = vrot.slane %v8267, %v8282
        %v8285 = vunpack.c.l.s4 1966171168
        %v8286 = vunpack.c.0.s8 %v8285
        %v8287 = vlaneseq
        %v8288 = vshrl.u32 %v8287, 7
        %v8289 = vsub.s32 %v8286, %v8288
        %v8290 = vrot.slane %v8268, %v8289
        %v8292 = vunpack.c.l.s4 1966171168
        %v8293 = vunpack.c.0.s8 %v8292
        %v8294 = vlaneseq
        %v8295 = vshrl.u32 %v8294, 7
        %v8296 = vsub.s32 %v8293, %v8295
        %v8297 = vrot.slane %v8269, %v8296
        %v8298 = vcombine.low %v8276, %v8283
        %v8299 = vcombine.low %v8290, %v8297
        %v8301 = vunpack.c.l.s4 1966171168
        %v8302 = vunpack.c.0.s8 %v8301
        %v8303 = vlaneseq
        %v8304 = vshrl.u32 %v8303, 7
        %v8305 = vsub.s32 %v8302, %v8304
        %v8306 = vrot.slane %v8298, %v8305
        %v8308 = vunpack.c.l.s4 1966171168
        %v8309 = vunpack.c.0.s8 %v8308
        %v8310 = vlaneseq
        %v8311 = vshrl.u32 %v8310, 7
        %v8312 = vsub.s32 %v8309, %v8311
        %v8313 = vrot.slane %v8299, %v8312
        %v8314 = vcombine.low %v8306, %v8313
        %v8315 = vcombine.low %v5216, %v5220
        %v8316 = vcombine.low %v5224, %v5228
        %v8317 = vcombine.low %v5232, %v5236
        %v8318 = vcombine.low %v5240, %v5244
        %v8320 = vunpack.c.l.s4 1966171168
        %v8321 = vunpack.c.0.s8 %v8320
        %v8322 = vlaneseq
        %v8323 = vshrl.u32 %v8322, 7
        %v8324 = vsub.s32 %v8321, %v8323
        %v8325 = vrot.slane %v8315, %v8324
        %v8327 = vunpack.c.l.s4 1966171168
        %v8328 = vunpack.c.0.s8 %v8327
        %v8329 = vlaneseq
        %v8330 = vshrl.u32 %v8329, 7
        %v8331 = vsub.s32 %v8328, %v8330
        %v8332 = vrot.slane %v8316, %v8331
        %v8334 = vunpack.c.l.s4 1966171168
        %v8335 = vunpack.c.0.s8 %v8334
        %v8336 = vlaneseq
        %v8337 = vshrl.u32 %v8336, 7
        %v8338 = vsub.s32 %v8335, %v8337
        %v8339 = vrot.slane %v8317, %v8338
        %v8341 = vunpack.c.l.s4 1966171168
        %v8342 = vunpack.c.0.s8 %v8341
        %v8343 = vlaneseq
        %v8344 = vshrl.u32 %v8343, 7
        %v8345 = vsub.s32 %v8342, %v8344
        %v8346 = vrot.slane %v8318, %v8345
        %v8347 = vcombine.low %v8325, %v8332
        %v8348 = vcombine.low %v8339, %v8346
        %v8350 = vunpack.c.l.s4 1966171168
        %v8351 = vunpack.c.0.s8 %v8350
        %v8352 = vlaneseq
        %v8353 = vshrl.u32 %v8352, 7
        %v8354 = vsub.s32 %v8351, %v8353
        %v8355 = vrot.slane %v8347, %v8354
        %v8357 = vunpack.c.l.s4 1966171168
        %v8358 = vunpack.c.0.s8 %v8357
        %v8359 = vlaneseq
        %v8360 = vshrl.u32 %v8359, 7
        %v8361 = vsub.s32 %v8358, %v8360
        %v8362 = vrot.slane %v8348, %v8361
        %v8363 = vcombine.low %v8355, %v8362
        %v8364 = vcombine.low %v5248, %v5252
        %v8365 = vcombine.low %v5256, %v5260
        %v8366 = vcombine.low %v5264, %v5268
        %v8367 = vcombine.low %v5272, %v5276
        %v8369 = vunpack.c.l.s4 1966171168
        %v8370 = vunpack.c.0.s8 %v8369
        %v8371 = vlaneseq
        %v8372 = vshrl.u32 %v8371, 7
        %v8373 = vsub.s32 %v8370, %v8372
        %v8374 = vrot.slane %v8364, %v8373
        %v8376 = vunpack.c.l.s4 1966171168
        %v8377 = vunpack.c.0.s8 %v8376
        %v8378 = vlaneseq
        %v8379 = vshrl.u32 %v8378, 7
        %v8380 = vsub.s32 %v8377, %v8379
        %v8381 = vrot.slane %v8365, %v8380
        %v8383 = vunpack.c.l.s4 1966171168
        %v8384 = vunpack.c.0.s8 %v8383
        %v8385 = vlaneseq
        %v8386 = vshrl.u32 %v8385, 7
        %v8387 = vsub.s32 %v8384, %v8386
        %v8388 = vrot.slane %v8366, %v8387
        %v8390 = vunpack.c.l.s4 1966171168
        %v8391 = vunpack.c.0.s8 %v8390
        %v8392 = vlaneseq
        %v8393 = vshrl.u32 %v8392, 7
        %v8394 = vsub.s32 %v8391, %v8393
        %v8395 = vrot.slane %v8367, %v8394
        %v8396 = vcombine.low %v8374, %v8381
        %v8397 = vcombine.low %v8388, %v8395
        %v8399 = vunpack.c.l.s4 1966171168
        %v8400 = vunpack.c.0.s8 %v8399
        %v8401 = vlaneseq
        %v8402 = vshrl.u32 %v8401, 7
        %v8403 = vsub.s32 %v8400, %v8402
        %v8404 = vrot.slane %v8396, %v8403
        %v8406 = vunpack.c.l.s4 1966171168
        %v8407 = vunpack.c.0.s8 %v8406
        %v8408 = vlaneseq
        %v8409 = vshrl.u32 %v8408, 7
        %v8410 = vsub.s32 %v8407, %v8409
        %v8411 = vrot.slane %v8397, %v8410
        %v8412 = vcombine.low %v8404, %v8411
        %8413 = vset.pattern.permute.xlu0 0
        %8414 = vperm.xlu0 %8413, %v5325
        %v8415 = vpop.permute.xlu0 %8414
        %8416 = vset.pattern.permute.xlu0 0
        %8417 = vperm.xlu0 %8416, %v5374
        %v8418 = vpop.permute.xlu0 %8417
        %8419 = vset.pattern.permute.xlu0 0
        %8420 = vperm.xlu0 %8419, %v5423
        %v8421 = vpop.permute.xlu0 %8420
        %8422 = vset.pattern.permute.xlu0 0
        %8423 = vperm.xlu0 %8422, %v5472
        %v8424 = vpop.permute.xlu0 %8423
        %8425 = vset.pattern.permute.xlu0 0
        %8426 = vperm.xlu0 %8425, %v5521
        %v8427 = vpop.permute.xlu0 %8426
        %8428 = vset.pattern.permute.xlu0 0
        %8429 = vperm.xlu0 %8428, %v5570
        %v8430 = vpop.permute.xlu0 %8429
        %8431 = vset.pattern.permute.xlu0 0
        %8432 = vperm.xlu0 %8431, %v5619
        %v8433 = vpop.permute.xlu0 %8432
        %8434 = vset.pattern.permute.xlu0 0
        %8435 = vperm.xlu0 %8434, %v5668
        %v8436 = vpop.permute.xlu0 %8435
        %8437 = vset.pattern.permute.xlu0 0
        %8438 = vperm.xlu0 %8437, %v5717
        %v8439 = vpop.permute.xlu0 %8438
        %8440 = vset.pattern.permute.xlu0 0
        %8441 = vperm.xlu0 %8440, %v5766
        %v8442 = vpop.permute.xlu0 %8441
        %8443 = vset.pattern.permute.xlu0 0
        %8444 = vperm.xlu0 %8443, %v5815
        %v8445 = vpop.permute.xlu0 %8444
        %8446 = vset.pattern.permute.xlu0 0
        %8447 = vperm.xlu0 %8446, %v5864
        %v8448 = vpop.permute.xlu0 %8447
        %8449 = vset.pattern.permute.xlu0 0
        %8450 = vperm.xlu0 %8449, %v5913
        %v8451 = vpop.permute.xlu0 %8450
        %8452 = vset.pattern.permute.xlu0 0
        %8453 = vperm.xlu0 %8452, %v5962
        %v8454 = vpop.permute.xlu0 %8453
        %8455 = vset.pattern.permute.xlu0 0
        %8456 = vperm.xlu0 %8455, %v6011
        %v8457 = vpop.permute.xlu0 %8456
        %8458 = vset.pattern.permute.xlu0 0
        %8459 = vperm.xlu0 %8458, %v6060
        %v8460 = vpop.permute.xlu0 %8459
        %8461 = vset.pattern.permute.xlu0 0
        %8462 = vperm.xlu0 %8461, %v6109
        %v8463 = vpop.permute.xlu0 %8462
        %8464 = vset.pattern.permute.xlu0 0
        %8465 = vperm.xlu0 %8464, %v6158
        %v8466 = vpop.permute.xlu0 %8465
        %8467 = vset.pattern.permute.xlu0 0
        %8468 = vperm.xlu0 %8467, %v6207
        %v8469 = vpop.permute.xlu0 %8468
        %8470 = vset.pattern.permute.xlu0 0
        %8471 = vperm.xlu0 %8470, %v6256
        %v8472 = vpop.permute.xlu0 %8471
        %8473 = vset.pattern.permute.xlu0 0
        %8474 = vperm.xlu0 %8473, %v6305
        %v8475 = vpop.permute.xlu0 %8474
        %8476 = vset.pattern.permute.xlu0 0
        %8477 = vperm.xlu0 %8476, %v6354
        %v8478 = vpop.permute.xlu0 %8477
        %8479 = vset.pattern.permute.xlu0 0
        %8480 = vperm.xlu0 %8479, %v6403
        %v8481 = vpop.permute.xlu0 %8480
        %8482 = vset.pattern.permute.xlu0 0
        %8483 = vperm.xlu0 %8482, %v6452
        %v8484 = vpop.permute.xlu0 %8483
        %8485 = vset.pattern.permute.xlu0 0
        %8486 = vperm.xlu0 %8485, %v6501
        %v8487 = vpop.permute.xlu0 %8486
        %8488 = vset.pattern.permute.xlu0 0
        %8489 = vperm.xlu0 %8488, %v6550
        %v8490 = vpop.permute.xlu0 %8489
        %8491 = vset.pattern.permute.xlu0 0
        %8492 = vperm.xlu0 %8491, %v6599
        %v8493 = vpop.permute.xlu0 %8492
        %8494 = vset.pattern.permute.xlu0 0
        %8495 = vperm.xlu0 %8494, %v6648
        %v8496 = vpop.permute.xlu0 %8495
        %8497 = vset.pattern.permute.xlu0 0
        %8498 = vperm.xlu0 %8497, %v6697
        %v8499 = vpop.permute.xlu0 %8498
        %8500 = vset.pattern.permute.xlu0 0
        %8501 = vperm.xlu0 %8500, %v6746
        %v8502 = vpop.permute.xlu0 %8501
        %8503 = vset.pattern.permute.xlu0 0
        %8504 = vperm.xlu0 %8503, %v6795
        %v8505 = vpop.permute.xlu0 %8504
        %8506 = vset.pattern.permute.xlu0 0
        %8507 = vperm.xlu0 %8506, %v6844
        %v8508 = vpop.permute.xlu0 %8507
        %8509 = vset.pattern.permute.xlu0 0
        %8510 = vperm.xlu0 %8509, %v6893
        %v8511 = vpop.permute.xlu0 %8510
        %8512 = vset.pattern.permute.xlu0 0
        %8513 = vperm.xlu0 %8512, %v6942
        %v8514 = vpop.permute.xlu0 %8513
        %8515 = vset.pattern.permute.xlu0 0
        %8516 = vperm.xlu0 %8515, %v6991
        %v8517 = vpop.permute.xlu0 %8516
        %8518 = vset.pattern.permute.xlu0 0
        %8519 = vperm.xlu0 %8518, %v7040
        %v8520 = vpop.permute.xlu0 %8519
        %8521 = vset.pattern.permute.xlu0 0
        %8522 = vperm.xlu0 %8521, %v7089
        %v8523 = vpop.permute.xlu0 %8522
        %8524 = vset.pattern.permute.xlu0 0
        %8525 = vperm.xlu0 %8524, %v7138
        %v8526 = vpop.permute.xlu0 %8525
        %8527 = vset.pattern.permute.xlu0 0
        %8528 = vperm.xlu0 %8527, %v7187
        %v8529 = vpop.permute.xlu0 %8528
        %8530 = vset.pattern.permute.xlu0 0
        %8531 = vperm.xlu0 %8530, %v7236
        %v8532 = vpop.permute.xlu0 %8531
        %8533 = vset.pattern.permute.xlu0 0
        %8534 = vperm.xlu0 %8533, %v7285
        %v8535 = vpop.permute.xlu0 %8534
        %8536 = vset.pattern.permute.xlu0 0
        %8537 = vperm.xlu0 %8536, %v7334
        %v8538 = vpop.permute.xlu0 %8537
        %8539 = vset.pattern.permute.xlu0 0
        %8540 = vperm.xlu0 %8539, %v7383
        %v8541 = vpop.permute.xlu0 %8540
        %8542 = vset.pattern.permute.xlu0 0
        %8543 = vperm.xlu0 %8542, %v7432
        %v8544 = vpop.permute.xlu0 %8543
        %8545 = vset.pattern.permute.xlu0 0
        %8546 = vperm.xlu0 %8545, %v7481
        %v8547 = vpop.permute.xlu0 %8546
        %8548 = vset.pattern.permute.xlu0 0
        %8549 = vperm.xlu0 %8548, %v7530
        %v8550 = vpop.permute.xlu0 %8549
        %8551 = vset.pattern.permute.xlu0 0
        %8552 = vperm.xlu0 %8551, %v7579
        %v8553 = vpop.permute.xlu0 %8552
        %8554 = vset.pattern.permute.xlu0 0
        %8555 = vperm.xlu0 %8554, %v7628
        %v8556 = vpop.permute.xlu0 %8555
        %8557 = vset.pattern.permute.xlu0 0
        %8558 = vperm.xlu0 %8557, %v7677
        %v8559 = vpop.permute.xlu0 %8558
        %8560 = vset.pattern.permute.xlu0 0
        %8561 = vperm.xlu0 %8560, %v7726
        %v8562 = vpop.permute.xlu0 %8561
        %8563 = vset.pattern.permute.xlu0 0
        %8564 = vperm.xlu0 %8563, %v7775
        %v8565 = vpop.permute.xlu0 %8564
        %8566 = vset.pattern.permute.xlu0 0
        %8567 = vperm.xlu0 %8566, %v7824
        %v8568 = vpop.permute.xlu0 %8567
        %8569 = vset.pattern.permute.xlu0 0
        %8570 = vperm.xlu0 %8569, %v7873
        %v8571 = vpop.permute.xlu0 %8570
        %8572 = vset.pattern.permute.xlu0 0
        %8573 = vperm.xlu0 %8572, %v7922
        %v8574 = vpop.permute.xlu0 %8573
        %8575 = vset.pattern.permute.xlu0 0
        %8576 = vperm.xlu0 %8575, %v7971
        %v8577 = vpop.permute.xlu0 %8576
        %8578 = vset.pattern.permute.xlu0 0
        %8579 = vperm.xlu0 %8578, %v8020
        %v8580 = vpop.permute.xlu0 %8579
        %8581 = vset.pattern.permute.xlu0 0
        %8582 = vperm.xlu0 %8581, %v8069
        %v8583 = vpop.permute.xlu0 %8582
        %8584 = vset.pattern.permute.xlu0 0
        %8585 = vperm.xlu0 %8584, %v8118
        %v8586 = vpop.permute.xlu0 %8585
        %8587 = vset.pattern.permute.xlu0 0
        %8588 = vperm.xlu0 %8587, %v8167
        %v8589 = vpop.permute.xlu0 %8588
        %8590 = vset.pattern.permute.xlu0 0
        %8591 = vperm.xlu0 %8590, %v8216
        %v8592 = vpop.permute.xlu0 %8591
        %8593 = vset.pattern.permute.xlu0 0
        %8594 = vperm.xlu0 %8593, %v8265
        %v8595 = vpop.permute.xlu0 %8594
        %8596 = vset.pattern.permute.xlu0 0
        %8597 = vperm.xlu0 %8596, %v8314
        %v8598 = vpop.permute.xlu0 %8597
        %8599 = vset.pattern.permute.xlu0 0
        %8600 = vperm.xlu0 %8599, %v8363
        %v8601 = vpop.permute.xlu0 %8600
        %8602 = vset.pattern.permute.xlu0 0
        %8603 = vperm.xlu0 %8602, %v8412
        %v8604 = vpop.permute.xlu0 %8603
        %v8605 = vlaneseq
        %v8606 = vshrl.u32 %v8605, 7
        %v8607 = vsub.s32 %v281, %v8606
        %v8608 = vrot.slane %v8415, %v8607
        %v8609 = vadd.s32 %v281, 4294967288
        %v8610 = vlaneseq
        %v8611 = vshrl.u32 %v8610, 7
        %v8612 = vsub.s32 %v8609, %v8611
        %v8613 = vrot.slane %v8418, %v8612
        %vm8614 = vcmask 130112
        %v8615 = vsel %vm8614, %v8613, %v8608
        %v8616 = vadd.s32 %v281, 4294967280
        %v8617 = vlaneseq
        %v8618 = vshrl.u32 %v8617, 7
        %v8619 = vsub.s32 %v8616, %v8618
        %v8620 = vrot.slane %v8421, %v8619
        %vm8621 = vcmask 195712
        %v8622 = vsel %vm8621, %v8620, %v8615
        %v8623 = vadd.s32 %v281, 4294967272
        %v8624 = vlaneseq
        %v8625 = vshrl.u32 %v8624, 7
        %v8626 = vsub.s32 %v8623, %v8625
        %v8627 = vrot.slane %v8424, %v8626
        %vm8628 = vcmask 261312
        %v8629 = vsel %vm8628, %v8627, %v8622
        %v8630 = vadd.s32 %v281, 4294967264
        %v8631 = vlaneseq
        %v8632 = vshrl.u32 %v8631, 7
        %v8633 = vsub.s32 %v8630, %v8632
        %v8634 = vrot.slane %v8427, %v8633
        %vm8635 = vcmask 326912
        %v8636 = vsel %vm8635, %v8634, %v8629
        %v8637 = vadd.s32 %v281, 4294967256
        %v8638 = vlaneseq
        %v8639 = vshrl.u32 %v8638, 7
        %v8640 = vsub.s32 %v8637, %v8639
        %v8641 = vrot.slane %v8430, %v8640
        %vm8642 = vcmask 392512
        %v8643 = vsel %vm8642, %v8641, %v8636
        %v8644 = vadd.s32 %v281, 4294967248
        %v8645 = vlaneseq
        %v8646 = vshrl.u32 %v8645, 7
        %v8647 = vsub.s32 %v8644, %v8646
        %v8648 = vrot.slane %v8433, %v8647
        %vm8649 = vcmask 458112
        %v8650 = vsel %vm8649, %v8648, %v8643
        %v8651 = vadd.s32 %v281, 4294967240
        %v8652 = vlaneseq
        %v8653 = vshrl.u32 %v8652, 7
        %v8654 = vsub.s32 %v8651, %v8653
        %v8655 = vrot.slane %v8436, %v8654
        %vm8656 = vcmask 523712
        %v8657 = vsel %vm8656, %v8655, %v8650
        %v8658 = vadd.s32 %v281, 4294967232
        %v8659 = vlaneseq
        %v8660 = vshrl.u32 %v8659, 7
        %v8661 = vsub.s32 %v8658, %v8660
        %v8662 = vrot.slane %v8439, %v8661
        %vm8663 = vcmask 589312
        %v8664 = vsel %vm8663, %v8662, %v8657
        %v8665 = vadd.s32 %v281, 4294967224
        %v8666 = vlaneseq
        %v8667 = vshrl.u32 %v8666, 7
        %v8668 = vsub.s32 %v8665, %v8667
        %v8669 = vrot.slane %v8442, %v8668
        %vm8670 = vcmask 654912
        %v8671 = vsel %vm8670, %v8669, %v8664
        %v8672 = vadd.s32 %v281, 4294967216
        %v8673 = vlaneseq
        %v8674 = vshrl.u32 %v8673, 7
        %v8675 = vsub.s32 %v8672, %v8674
        %v8676 = vrot.slane %v8445, %v8675
        %vm8677 = vcmask 720512
        %v8678 = vsel %vm8677, %v8676, %v8671
        %v8679 = vadd.s32 %v281, 4294967208
        %v8680 = vlaneseq
        %v8681 = vshrl.u32 %v8680, 7
        %v8682 = vsub.s32 %v8679, %v8681
        %v8683 = vrot.slane %v8448, %v8682
        %vm8684 = vcmask 786112
        %v8685 = vsel %vm8684, %v8683, %v8678
        %v8686 = vadd.s32 %v281, 4294967200
        %v8687 = vlaneseq
        %v8688 = vshrl.u32 %v8687, 7
        %v8689 = vsub.s32 %v8686, %v8688
        %v8690 = vrot.slane %v8451, %v8689
        %vm8691 = vcmask 851712
        %v8692 = vsel %vm8691, %v8690, %v8685
        %v8693 = vadd.s32 %v281, 4294967192
        %v8694 = vlaneseq
        %v8695 = vshrl.u32 %v8694, 7
        %v8696 = vsub.s32 %v8693, %v8695
        %v8697 = vrot.slane %v8454, %v8696
        %vm8698 = vcmask 917312
        %v8699 = vsel %vm8698, %v8697, %v8692
        %v8700 = vadd.s32 %v281, 4294967184
        %v8701 = vlaneseq
        %v8702 = vshrl.u32 %v8701, 7
        %v8703 = vsub.s32 %v8700, %v8702
        %v8704 = vrot.slane %v8457, %v8703
        %vm8705 = vcmask 982912
        %v8706 = vsel %vm8705, %v8704, %v8699
        %v8707 = vadd.s32 %v281, 4294967176
        %v8708 = vlaneseq
        %v8709 = vshrl.u32 %v8708, 7
        %v8710 = vsub.s32 %v8707, %v8709
        %v8711 = vrot.slane %v8460, %v8710
        %vm8712 = vcmask 1048512
        %v8713 = vsel %vm8712, %v8711, %v8706
        %v8714 = vlaneseq
        %v8715 = vshrl.u32 %v8714, 7
        %v8716 = vsub.s32 %v281, %v8715
        %v8717 = vrot.slane %v8463, %v8716
        %v8718 = vlaneseq
        %v8719 = vshrl.u32 %v8718, 7
        %v8720 = vsub.s32 %v8609, %v8719
        %v8721 = vrot.slane %v8466, %v8720
        %v8722 = vsel %vm8614, %v8721, %v8717
        %v8723 = vlaneseq
        %v8724 = vshrl.u32 %v8723, 7
        %v8725 = vsub.s32 %v8616, %v8724
        %v8726 = vrot.slane %v8469, %v8725
        %v8727 = vsel %vm8621, %v8726, %v8722
        %v8728 = vlaneseq
        %v8729 = vshrl.u32 %v8728, 7
        %v8730 = vsub.s32 %v8623, %v8729
        %v8731 = vrot.slane %v8472, %v8730
        %v8732 = vsel %vm8628, %v8731, %v8727
        %v8733 = vlaneseq
        %v8734 = vshrl.u32 %v8733, 7
        %v8735 = vsub.s32 %v8630, %v8734
        %v8736 = vrot.slane %v8475, %v8735
        %v8737 = vsel %vm8635, %v8736, %v8732
        %v8738 = vlaneseq
        %v8739 = vshrl.u32 %v8738, 7
        %v8740 = vsub.s32 %v8637, %v8739
        %v8741 = vrot.slane %v8478, %v8740
        %v8742 = vsel %vm8642, %v8741, %v8737
        %v8743 = vlaneseq
        %v8744 = vshrl.u32 %v8743, 7
        %v8745 = vsub.s32 %v8644, %v8744
        %v8746 = vrot.slane %v8481, %v8745
        %v8747 = vsel %vm8649, %v8746, %v8742
        %v8748 = vlaneseq
        %v8749 = vshrl.u32 %v8748, 7
        %v8750 = vsub.s32 %v8651, %v8749
        %v8751 = vrot.slane %v8484, %v8750
        %v8752 = vsel %vm8656, %v8751, %v8747
        %v8753 = vlaneseq
        %v8754 = vshrl.u32 %v8753, 7
        %v8755 = vsub.s32 %v8658, %v8754
        %v8756 = vrot.slane %v8487, %v8755
        %v8757 = vsel %vm8663, %v8756, %v8752
        %v8758 = vlaneseq
        %v8759 = vshrl.u32 %v8758, 7
        %v8760 = vsub.s32 %v8665, %v8759
        %v8761 = vrot.slane %v8490, %v8760
        %v8762 = vsel %vm8670, %v8761, %v8757
        %v8763 = vlaneseq
        %v8764 = vshrl.u32 %v8763, 7
        %v8765 = vsub.s32 %v8672, %v8764
        %v8766 = vrot.slane %v8493, %v8765
        %v8767 = vsel %vm8677, %v8766, %v8762
        %v8768 = vlaneseq
        %v8769 = vshrl.u32 %v8768, 7
        %v8770 = vsub.s32 %v8679, %v8769
        %v8771 = vrot.slane %v8496, %v8770
        %v8772 = vsel %vm8684, %v8771, %v8767
        %v8773 = vlaneseq
        %v8774 = vshrl.u32 %v8773, 7
        %v8775 = vsub.s32 %v8686, %v8774
        %v8776 = vrot.slane %v8499, %v8775
        %v8777 = vsel %vm8691, %v8776, %v8772
        %v8778 = vlaneseq
        %v8779 = vshrl.u32 %v8778, 7
        %v8780 = vsub.s32 %v8693, %v8779
        %v8781 = vrot.slane %v8502, %v8780
        %v8782 = vsel %vm8698, %v8781, %v8777
        %v8783 = vlaneseq
        %v8784 = vshrl.u32 %v8783, 7
        %v8785 = vsub.s32 %v8700, %v8784
        %v8786 = vrot.slane %v8505, %v8785
        %v8787 = vsel %vm8705, %v8786, %v8782
        %v8788 = vlaneseq
        %v8789 = vshrl.u32 %v8788, 7
        %v8790 = vsub.s32 %v8707, %v8789
        %v8791 = vrot.slane %v8508, %v8790
        %v8792 = vsel %vm8712, %v8791, %v8787
        %v8793 = vlaneseq
        %v8794 = vshrl.u32 %v8793, 7
        %v8795 = vsub.s32 %v281, %v8794
        %v8796 = vrot.slane %v8511, %v8795
        %v8797 = vlaneseq
        %v8798 = vshrl.u32 %v8797, 7
        %v8799 = vsub.s32 %v8609, %v8798
        %v8800 = vrot.slane %v8514, %v8799
        %v8801 = vsel %vm8614, %v8800, %v8796
        %v8802 = vlaneseq
        %v8803 = vshrl.u32 %v8802, 7
        %v8804 = vsub.s32 %v8616, %v8803
        %v8805 = vrot.slane %v8517, %v8804
        %v8806 = vsel %vm8621, %v8805, %v8801
        %v8807 = vlaneseq
        %v8808 = vshrl.u32 %v8807, 7
        %v8809 = vsub.s32 %v8623, %v8808
        %v8810 = vrot.slane %v8520, %v8809
        %v8811 = vsel %vm8628, %v8810, %v8806
        %v8812 = vlaneseq
        %v8813 = vshrl.u32 %v8812, 7
        %v8814 = vsub.s32 %v8630, %v8813
        %v8815 = vrot.slane %v8523, %v8814
        %v8816 = vsel %vm8635, %v8815, %v8811
        %v8817 = vlaneseq
        %v8818 = vshrl.u32 %v8817, 7
        %v8819 = vsub.s32 %v8637, %v8818
        %v8820 = vrot.slane %v8526, %v8819
        %v8821 = vsel %vm8642, %v8820, %v8816
        %v8822 = vlaneseq
        %v8823 = vshrl.u32 %v8822, 7
        %v8824 = vsub.s32 %v8644, %v8823
        %v8825 = vrot.slane %v8529, %v8824
        %v8826 = vsel %vm8649, %v8825, %v8821
        %v8827 = vlaneseq
        %v8828 = vshrl.u32 %v8827, 7
        %v8829 = vsub.s32 %v8651, %v8828
        %v8830 = vrot.slane %v8532, %v8829
        %v8831 = vsel %vm8656, %v8830, %v8826
        %v8832 = vlaneseq
        %v8833 = vshrl.u32 %v8832, 7
        %v8834 = vsub.s32 %v8658, %v8833
        %v8835 = vrot.slane %v8535, %v8834
        %v8836 = vsel %vm8663, %v8835, %v8831
        %v8837 = vlaneseq
        %v8838 = vshrl.u32 %v8837, 7
        %v8839 = vsub.s32 %v8665, %v8838
        %v8840 = vrot.slane %v8538, %v8839
        %v8841 = vsel %vm8670, %v8840, %v8836
        %v8842 = vlaneseq
        %v8843 = vshrl.u32 %v8842, 7
        %v8844 = vsub.s32 %v8672, %v8843
        %v8845 = vrot.slane %v8541, %v8844
        %v8846 = vsel %vm8677, %v8845, %v8841
        %v8847 = vlaneseq
        %v8848 = vshrl.u32 %v8847, 7
        %v8849 = vsub.s32 %v8679, %v8848
        %v8850 = vrot.slane %v8544, %v8849
        %v8851 = vsel %vm8684, %v8850, %v8846
        %v8852 = vlaneseq
        %v8853 = vshrl.u32 %v8852, 7
        %v8854 = vsub.s32 %v8686, %v8853
        %v8855 = vrot.slane %v8547, %v8854
        %v8856 = vsel %vm8691, %v8855, %v8851
        %v8857 = vlaneseq
        %v8858 = vshrl.u32 %v8857, 7
        %v8859 = vsub.s32 %v8693, %v8858
        %v8860 = vrot.slane %v8550, %v8859
        %v8861 = vsel %vm8698, %v8860, %v8856
        %v8862 = vlaneseq
        %v8863 = vshrl.u32 %v8862, 7
        %v8864 = vsub.s32 %v8700, %v8863
        %v8865 = vrot.slane %v8553, %v8864
        %v8866 = vsel %vm8705, %v8865, %v8861
        %v8867 = vlaneseq
        %v8868 = vshrl.u32 %v8867, 7
        %v8869 = vsub.s32 %v8707, %v8868
        %v8870 = vrot.slane %v8556, %v8869
        %v8871 = vsel %vm8712, %v8870, %v8866
        %v8872 = vlaneseq
        %v8873 = vshrl.u32 %v8872, 7
        %v8874 = vsub.s32 %v281, %v8873
        %v8875 = vrot.slane %v8559, %v8874
        %v8876 = vlaneseq
        %v8877 = vshrl.u32 %v8876, 7
        %v8878 = vsub.s32 %v8609, %v8877
        %v8879 = vrot.slane %v8562, %v8878
        %v8880 = vsel %vm8614, %v8879, %v8875
        %v8881 = vlaneseq
        %v8882 = vshrl.u32 %v8881, 7
        %v8883 = vsub.s32 %v8616, %v8882
        %v8884 = vrot.slane %v8565, %v8883
        %v8885 = vsel %vm8621, %v8884, %v8880
        %v8886 = vlaneseq
        %v8887 = vshrl.u32 %v8886, 7
        %v8888 = vsub.s32 %v8623, %v8887
        %v8889 = vrot.slane %v8568, %v8888
        %v8890 = vsel %vm8628, %v8889, %v8885
        %v8891 = vlaneseq
        %v8892 = vshrl.u32 %v8891, 7
        %v8893 = vsub.s32 %v8630, %v8892
        %v8894 = vrot.slane %v8571, %v8893
        %v8895 = vsel %vm8635, %v8894, %v8890
        %v8896 = vlaneseq
        %v8897 = vshrl.u32 %v8896, 7
        %v8898 = vsub.s32 %v8637, %v8897
        %v8899 = vrot.slane %v8574, %v8898
        %v8900 = vsel %vm8642, %v8899, %v8895
        %v8901 = vlaneseq
        %v8902 = vshrl.u32 %v8901, 7
        %v8903 = vsub.s32 %v8644, %v8902
        %v8904 = vrot.slane %v8577, %v8903
        %v8905 = vsel %vm8649, %v8904, %v8900
        %v8906 = vlaneseq
        %v8907 = vshrl.u32 %v8906, 7
        %v8908 = vsub.s32 %v8651, %v8907
        %v8909 = vrot.slane %v8580, %v8908
        %v8910 = vsel %vm8656, %v8909, %v8905
        %v8911 = vlaneseq
        %v8912 = vshrl.u32 %v8911, 7
        %v8913 = vsub.s32 %v8658, %v8912
        %v8914 = vrot.slane %v8583, %v8913
        %v8915 = vsel %vm8663, %v8914, %v8910
        %v8916 = vlaneseq
        %v8917 = vshrl.u32 %v8916, 7
        %v8918 = vsub.s32 %v8665, %v8917
        %v8919 = vrot.slane %v8586, %v8918
        %v8920 = vsel %vm8670, %v8919, %v8915
        %v8921 = vlaneseq
        %v8922 = vshrl.u32 %v8921, 7
        %v8923 = vsub.s32 %v8672, %v8922
        %v8924 = vrot.slane %v8589, %v8923
        %v8925 = vsel %vm8677, %v8924, %v8920
        %v8926 = vlaneseq
        %v8927 = vshrl.u32 %v8926, 7
        %v8928 = vsub.s32 %v8679, %v8927
        %v8929 = vrot.slane %v8592, %v8928
        %v8930 = vsel %vm8684, %v8929, %v8925
        %v8931 = vlaneseq
        %v8932 = vshrl.u32 %v8931, 7
        %v8933 = vsub.s32 %v8686, %v8932
        %v8934 = vrot.slane %v8595, %v8933
        %v8935 = vsel %vm8691, %v8934, %v8930
        %v8936 = vlaneseq
        %v8937 = vshrl.u32 %v8936, 7
        %v8938 = vsub.s32 %v8693, %v8937
        %v8939 = vrot.slane %v8598, %v8938
        %v8940 = vsel %vm8698, %v8939, %v8935
        %v8941 = vlaneseq
        %v8942 = vshrl.u32 %v8941, 7
        %v8943 = vsub.s32 %v8700, %v8942
        %v8944 = vrot.slane %v8601, %v8943
        %v8945 = vsel %vm8705, %v8944, %v8940
        %v8946 = vlaneseq
        %v8947 = vshrl.u32 %v8946, 7
        %v8948 = vsub.s32 %v8707, %v8947
        %v8949 = vrot.slane %v8604, %v8948
        %v8950 = vsel %vm8712, %v8949, %v8945
        %v8951 = vcombine.low %v8713, %v8792
        %v8952 = vcombine.low %v8871, %v8950
        %v8954 = vunpack.c.l.s4 1966171168
        %v8955 = vunpack.c.0.s8 %v8954
        %v8956 = vlaneseq
        %v8957 = vshrl.u32 %v8956, 7
        %v8958 = vsub.s32 %v8955, %v8957
        %v8959 = vrot.slane %v8951, %v8958
        %v8961 = vunpack.c.l.s4 1966171168
        %v8962 = vunpack.c.0.s8 %v8961
        %v8963 = vlaneseq
        %v8964 = vshrl.u32 %v8963, 7
        %v8965 = vsub.s32 %v8962, %v8964
        %v8966 = vrot.slane %v8952, %v8965
        %v8967 = vcombine.low %v8959, %v8966
        %v8969 = vunpack.c.l.s4 1966171168
        %v8970 = vunpack.c.0.s8 %v8969
        %v8971 = vlaneseq
        %v8972 = vshrl.u32 %v8971, 7
        %v8973 = vsub.s32 %v8970, %v8972
        %v8974 = vrot.slane %v8967, %v8973
        %v8976 = vlaneseq
        %vm8977 = vcmp.ge.s32.totalorder %v8976, 0
        %vm8978 = vcmp.lt.s32.totalorder %v8976, 512
        %vm8979 = vmand %vm8977, %vm8978
        %8980 = vst.msk [vmem:[%s250] sm:$0xf] %vm8979, %v8974
        %s8981 = sand.u32 %s147, 1
        %s8982 = scalar_lea.sflag [#allocation3], %s8981
        %s8983 = sand.u32 %s147, 1
        %s8984 = smul.addr %s8983, 4
        %s8985 = scalar_lea.vmem [#allocation2], %s8984
        // Predicated region
        $region41: #{tpu_custom_call.1} parent=39 // pred_check
          %p8986 = pneg %p157
        $region42: #{tpu_custom_call.1} parent=39 // pred_check_branch
          %8988 = sbr.rel (%p8986) target = $region44
        $region43: #{tpu_custom_call.1} parent=39 // pred_region
          %s8990 = ssub.s32 64, 64
          %8991 = vsyncadd %s8982, %s8990
          %s8992 = smul.addr %s19, 4
          %s8993 = smul.addr %s8992, 16
          %s8994 = scalar_lea.hbm %s5, %s8993
          %s8996 = sshll.u32 %s8985, 4
          %s8997 = int_to_ptr.vmem [resolvable:$true] %s8996
          %8999 = dma.vmem_to_hbm [thread:$0]  %s8997, 64, %s8994, %s8982
        $region44: #{tpu_custom_call.1} parent=39 // pred_fallthru
          _
      $region40: #{tpu_custom_call.1} parent=5 // pred_fallthru
        _
      %p9000 = scmp.le.s32.totalorder 2, %s14
      // Predicated region
      $region45: #{tpu_custom_call.1} parent=5 // pred_check
        %p9001 = pneg %p9000
      $region46: #{tpu_custom_call.1} parent=5 // pred_check_branch
        %9003 = sbr.rel (%p9001) target = $region48
      $region47: #{tpu_custom_call.1} parent=5 // pred_region
        %s9004 = ssub.s32 %s14, 2
        // Predicated region
        $region49: #{tpu_custom_call.1} parent=47 // pred_check
          %p9005 = pneg %p163
        $region50: #{tpu_custom_call.1} parent=47 // pred_check_branch
          %9007 = sbr.rel (%p9005) target = $region52
        $region51: #{tpu_custom_call.1} parent=47 // pred_region
          %s9008 = sand.u32 %s148, 1
          %s9009 = scalar_lea.sflag [#allocation3], %s9008
          %s9010 = sand.u32 %s148, 1
          %s9011 = smul.addr %s9010, 4
          %s9012 = scalar_lea.vmem [#allocation2], %s9011
          %9013 = dma.done %s9009, 64
        $region52: #{tpu_custom_call.1} parent=47 // pred_fallthru
          _
      $region48: #{tpu_custom_call.1} parent=5 // pred_fallthru
        _
    $region6: #{tpu_custom_call.1} parent=1 // loop_footer
      %s18 = sadd.s32 1, %s14
    $region7: #{tpu_custom_call.1} parent=1 // loop_footer_branch
      %13 = sbr.rel target = $region3
    $region8: #{tpu_custom_call.1} parent=1 // loop_exit
      _
    %9014 = vsyncpa [#allocation3], 1
    %s9015 = scalar_lea.sflag [#allocation3], 1
    %9016 = vsyncpa %s9015, 1

</llo_original>
